<compile_context>
chip_gen: v6e
topology: v6e:2x2x1
jax: 0.10.0
libtpu: 0.0.40
codegen_flags: <defaults>
</compile_context>

<pallas_src>
import jax
import jax.numpy as jnp
import numpy as np
from jax.experimental import pallas as pl
from jax.experimental.pallas import tpu as pltpu

INPUT_SHAPE = 1000          # three stride-10 convs -> enc_conv3 output length 1
Z_SHAPE = 20
OUTPUT_SHAPE = 11

_K = 16                     # kernel size of every (de)conv in the module
_S = 10                     # stride
_P = 3                      # padding
_TB_MAX = 64                # batch tile (grid blocks are (tb, features))

_WEIGHT_KEYS = ("M1", "b1", "M2", "b2", "M3", "b3",
                "Wmu", "bmu", "Wlv", "blv", "Wd", "bd",
                "D1", "bD1", "D2", "bD2", "D3", "bD3", "Wc", "bc")


# ----------------------------------------------------------------------------
# Dense-operator folding (one-time, numpy).  Flattening order == PyTorch .view:
#   Conv1d / ConvTranspose1d activations (C, L) -> index c*L + t.
# ----------------------------------------------------------------------------
def conv1d_dense_operator(w, b, L_in, stride=_S, pad=_P):
    """PyTorch Conv1d (w: (C_out, C_in, K)) as out_flat = x_flat @ M + bias."""
    C_out, C_in, K = w.shape
    L_out = (L_in + 2 * pad - K) // stride + 1
    M = np.zeros((C_in * L_in, C_out * L_out), dtype=w.dtype)
    rows_c = np.arange(C_in) * L_in
    cols_c = np.arange(C_out) * L_out
    for m in range(L_out):
        for k in range(K):
            t = m * stride - pad + k
            if 0 <= t < L_in:
                M[np.ix_(rows_c + t, cols_c + m)] = w[:, :, k].T
    bias_full = np.repeat(np.asarray(b, dtype=w.dtype), L_out)
    return M, bias_full, L_out


def conv_transpose1d_dense_operator(w, b, L_in, stride=_S, pad=_P):
    """PyTorch ConvTranspose1d (w: (C_in, C_out, K)) as x_flat @ M + bias."""
    C_in, C_out, K = w.shape
    L_out = (L_in - 1) * stride - 2 * pad + K
    M = np.zeros((C_in * L_in, C_out * L_out), dtype=w.dtype)
    rows_c = np.arange(C_in) * L_in
    cols_c = np.arange(C_out) * L_out
    for i in range(L_in):
        for k in range(K):
            t = i * stride - pad + k
            if 0 <= t < L_out:
                M[np.ix_(rows_c + i, cols_c + t)] = w[:, :, k]
    bias_full = np.repeat(np.asarray(b, dtype=w.dtype), L_out)
    return M, bias_full, L_out


# ----------------------------------------------------------------------------
# The single fused Pallas kernel: 10 MXU dots, everything VMEM-resident.
# ----------------------------------------------------------------------------
def _vae2_fused_kernel(x_ref, eps_ref,
                       m1_ref, b1_ref, m2_ref, b2_ref, m3_ref, b3_ref,
                       wmu_ref, bmu_ref, wlv_ref, blv_ref,
                       wd_ref, bd_ref, d1_ref, bd1_ref, d2_ref, bd2_ref,
                       d3_ref, bd3_ref, wc_ref, bc_ref,
                       xrec_ref, y_ref, mu_ref, logvar_ref):
    f32 = jnp.float32

    def dense(a, w_ref, b_ref):
        # bf16 cast only happens for the two big (bf16-packed) operators;
        # accumulation is always f32 (preferred_element_type).
        a = a.astype(w_ref.dtype)
        return jnp.dot(a, w_ref[...], preferred_element_type=f32) + b_ref[...]

    # ---------------- encoder ----------------
    x = x_ref[...]                                            # (tb, 2000)
    h = jnp.maximum(dense(x, m1_ref, b1_ref), 0.0)            # enc_conv1+relu (tb, 600)
    h = jnp.maximum(dense(h, m2_ref, b2_ref), 0.0)            # enc_conv2+relu (tb, 60)
    h = jnp.maximum(dense(h, m3_ref, b3_ref), 0.0)            # enc_conv3+relu (tb, 6)

    mu = dense(h, wmu_ref, bmu_ref)                           # (tb, 20)
    logvar = dense(h, wlv_ref, blv_ref)                       # (tb, 20)
    z = mu + eps_ref[...] * jnp.exp(0.5 * logvar)             # reparameterize

    # ---------------- decoder ----------------
    g = dense(z, wd_ref, bd_ref)                              # dec_fc1      (tb, 6)
    g = jnp.maximum(dense(g, d1_ref, bd1_ref), 0.0)           # deconv1+relu (tb, 60)
    g = jnp.maximum(dense(g, d2_ref, bd2_ref), 0.0)           # deconv2+relu (tb, 600)
    xrec_ref[...] = jax.nn.sigmoid(dense(g, d3_ref, bd3_ref))  # deconv3+sigmoid (tb, 2000)

    # ---------------- classifier / heads ----------------
    y_ref[...] = dense(z, wc_ref, bc_ref)                     # (tb, 11)
    mu_ref[...] = mu
    logvar_ref[...] = logvar


def _fused_call(x2d, eps2d, packed, tb):
    Bp = x2d.shape[0]
    weights = [packed[k] for k in _WEIGHT_KEYS]
    grid = (Bp // tb,)

    in_specs = [pl.BlockSpec((tb, x2d.shape[1]), lambda i: (i, 0)),
                pl.BlockSpec((tb, Z_SHAPE), lambda i: (i, 0))]
    in_specs += [pl.BlockSpec(w.shape, lambda i: (0, 0)) for w in weights]

    out_shape = (jax.ShapeDtypeStruct((Bp, 2 * INPUT_SHAPE), jnp.float32),
                 jax.ShapeDtypeStruct((Bp, OUTPUT_SHAPE), jnp.float32),
                 jax.ShapeDtypeStruct((Bp, Z_SHAPE), jnp.float32),
                 jax.ShapeDtypeStruct((Bp, Z_SHAPE), jnp.float32))
    out_specs = (pl.BlockSpec((tb, 2 * INPUT_SHAPE), lambda i: (i, 0)),
                 pl.BlockSpec((tb, OUTPUT_SHAPE), lambda i: (i, 0)),
                 pl.BlockSpec((tb, Z_SHAPE), lambda i: (i, 0)),
                 pl.BlockSpec((tb, Z_SHAPE), lambda i: (i, 0)))

    return pl.pallas_call(
        _vae2_fused_kernel,
        out_shape=out_shape,
        grid=grid,
        in_specs=in_specs,
        out_specs=out_specs,
        compiler_params=pltpu.CompilerParams(
            dimension_semantics=("parallel",),
            vmem_limit_bytes=32 * 1024 * 1024,   # worst-case footprint ~22-25 MiB
        ),
    )(x2d, eps2d, *weights)


def _choose_batch_tile(B, tb_max=_TB_MAX):
    """Bounded batch tile; never one giant block, pad ragged batches instead."""
    if B <= tb_max:
        return B, B
    for t in range(tb_max, 7, -1):
        if B % t == 0:
            return t, B
    Bp = -(-B // tb_max) * tb_max
    return tb_max, Bp


def vae2_forward(packed, x, eps):
    """Matches VAE2.forward; `eps` plays the role of torch.randn_like(std)."""
    B = x.shape[0]
    x2d = x.reshape(B, 2 * INPUT_SHAPE).astype(jnp.float32)   # free row-major reshape
    eps2d = eps.reshape(B, Z_SHAPE).astype(jnp.float32)

    tb, Bp = _choose_batch_tile(B)
    if Bp != B:
        x2d = jnp.pad(x2d, ((0, Bp - B), (0, 0)))
        eps2d = jnp.pad(eps2d, ((0, Bp - B), (0, 0)))

    xrec, y, mu, logvar = _fused_call(x2d, eps2d, packed, tb)
    if Bp != B:
        xrec, y, mu, logvar = xrec[:B], y[:B], mu[:B], logvar[:B]

    pre_x = xrec.reshape(B, 2, INPUT_SHAPE)                   # free reshape (NCL layout)
    return pre_x, y, mu, logvar


# ----------------------------------------------------------------------------
# Parameters (deterministic, PyTorch-style layout) and one-time packing.
# ----------------------------------------------------------------------------
def init_torch_params(key):
    ks = jax.random.split(key, 20)

    def u(k, shape, fan_in):
        bound = 1.0 / np.sqrt(fan_in)
        return jax.random.uniform(k, shape, jnp.float32, -bound, bound)

    flat = int(INPUT_SHAPE / 10 / 10 / 10 * 6)   # = 6
    tp = {}
    tp["enc1_w"] = u(ks[0], (6, 2, _K), 2 * _K);  tp["enc1_b"] = u(ks[1], (6,), 2 * _K)
    tp["enc2_w"] = u(ks[2], (6, 6, _K), 6 * _K);  tp["enc2_b"] = u(ks[3], (6,), 6 * _K)
    tp["enc3_w"] = u(ks[4], (6, 6, _K), 6 * _K);  tp["enc3_b"] = u(ks[5], (6,), 6 * _K)
    tp["encmean_w"] = u(ks[6], (Z_SHAPE, flat), flat);  tp["encmean_b"] = u(ks[7], (Z_SHAPE,), flat)
    tp["encvar_w"] = u(ks[8], (Z_SHAPE, flat), flat);   tp["encvar_b"] = u(ks[9], (Z_SHAPE,), flat)
    tp["dec_fc1_w"] = u(ks[10], (flat, Z_SHAPE), Z_SHAPE); tp["dec_fc1_b"] = u(ks[11], (flat,), Z_SHAPE)
    tp["dec1_w"] = u(ks[12], (6, 6, _K), 6 * _K); tp["dec1_b"] = u(ks[13], (6,), 6 * _K)
    tp["dec2_w"] = u(ks[14], (6, 6, _K), 6 * _K); tp["dec2_b"] = u(ks[15], (6,), 6 * _K)
    tp["dec3_w"] = u(ks[16], (6, 2, _K), 6 * _K); tp["dec3_b"] = u(ks[17], (2,), 6 * _K)
    tp["cla_w"] = u(ks[18], (OUTPUT_SHAPE, Z_SHAPE), Z_SHAPE)
    tp["cla_b"] = u(ks[19], (OUTPUT_SHAPE,), Z_SHAPE)
    return tp


def pack_params(tp, big_dtype=jnp.bfloat16):
    """Fold every layer into (in_features, out_features) + (1, out_features)."""
    w = {k: np.asarray(v, np.float32) for k, v in tp.items()}

    M1, b1, L1 = conv1d_dense_operator(w["enc1_w"], w["enc1_b"], INPUT_SHAPE)
    M2, b2, L2 = conv1d_dense_operator(w["enc2_w"], w["enc2_b"], L1)
    M3, b3, L3 = conv1d_dense_operator(w["enc3_w"], w["enc3_b"], L2)
    flat = 6 * L3
    assert flat == w["encmean_w"].shape[1] == w["dec_fc1_w"].shape[0]

    D1, bD1, G1 = conv_transpose1d_dense_operator(w["dec1_w"], w["dec1_b"], L3)
    D2, bD2, G2 = conv_transpose1d_dense_operator(w["dec2_w"], w["dec2_b"], G1)
    D3, bD3, G3 = conv_transpose1d_dense_operator(w["dec3_w"], w["dec3_b"], G2)
    assert G3 == INPUT_SHAPE

    def as2d(v):
        return jnp.asarray(np.asarray(v, np.float32).reshape(1, -1))

    return {
        "M1": jnp.asarray(M1, big_dtype), "b1": as2d(b1),
        "M2": jnp.asarray(M2, jnp.float32), "b2": as2d(b2),
        "M3": jnp.asarray(M3, jnp.float32), "b3": as2d(b3),
        "Wmu": jnp.asarray(w["encmean_w"].T), "bmu": as2d(w["encmean_b"]),
        "Wlv": jnp.asarray(w["encvar_w"].T), "blv": as2d(w["encvar_b"]),
        "Wd": jnp.asarray(w["dec_fc1_w"].T), "bd": as2d(w["dec_fc1_b"]),
        "D1": jnp.asarray(D1, jnp.float32), "bD1": as2d(bD1),
        "D2": jnp.asarray(D2, jnp.float32), "bD2": as2d(bD2),
        "D3": jnp.asarray(D3, big_dtype), "bD3": as2d(bD3),
        "Wc": jnp.asarray(w["cla_w"].T), "bc": as2d(w["cla_b"]),
    }


# ----------------------------------------------------------------------------
# References / self-checks
# ----------------------------------------------------------------------------
def reference_forward(packed, x, eps):
    """Plain-XLA forward from the same packed (f32) operators."""
    B = x.shape[0]
    xf = x.reshape(B, 2 * INPUT_SHAPE).astype(jnp.float32)
    e = eps.reshape(B, Z_SHAPE).astype(jnp.float32)

    def dense(a, wk, bk):
        return a @ packed[wk].astype(jnp.float32) + packed[bk]

    h = jax.nn.relu(dense(xf, "M1", "b1"))
    h = jax.nn.relu(dense(h, "M2", "b2"))
    h = jax.nn.relu(dense(h, "M3", "b3"))
    mu = dense(h, "Wmu", "bmu")
    logvar = dense(h, "Wlv", "blv")
    z = mu + e * jnp.exp(0.5 * logvar)
    g = dense(z, "Wd", "bd")
    g = jax.nn.relu(dense(g, "D1", "bD1"))
    g = jax.nn.relu(dense(g, "D2", "bD2"))
    pre_x = jax.nn.sigmoid(dense(g, "D3", "bD3")).reshape(B, 2, INPUT_SHAPE)
    y = dense(z, "Wc", "bc")
    return pre_x, y, mu, logvar


def _conv1d_ref_np(x, w, b, stride, pad):
    C_out, C_in, K = w.shape
    L_in = x.shape[1]
    L_out = (L_in + 2 * pad - K) // stride + 1
    xp = np.pad(x, ((0, 0), (pad, pad)))
    out = np.zeros((C_out, L_out))
    for m in range(L_out):
        out[:, m] = np.einsum("ck,ock->o", xp[:, m * stride:m * stride + K], w) + b
    return out


def _deconv1d_ref_np(x, w, b, stride, pad):
    C_in, C_out, K = w.shape
    L_in = x.shape[1]
    full = np.zeros((C_out, (L_in - 1) * stride + K))
    for i in range(L_in):
        full[:, i * stride:i * stride + K] += np.einsum("c,cok->ok", x[:, i], w)
    L_out = (L_in - 1) * stride - 2 * pad + K
    return full[:, pad:pad + L_out] + b[:, None]


def _check_dense_operators(tp):
    """float64 check: every folded dense operator == the conv it replaces."""
    rng = np.random.default_rng(0)

    def chk_conv(wk, bk, L_in):
        w = np.asarray(tp[wk], np.float64); b = np.asarray(tp[bk], np.float64)
        x = rng.standard_normal((w.shape[1], L_in))
        M, bf, _ = conv1d_dense_operator(w, b, L_in)
        got = x.reshape(-1) @ M + bf
        ref = _conv1d_ref_np(x, w, b, _S, _P).reshape(-1)
        assert np.allclose(got, ref, rtol=1e-10, atol=1e-10), wk

    def chk_deconv(wk, bk, L_in):
        w = np.asarray(tp[wk], np.float64); b = np.asarray(tp[bk], np.float64)
        x = rng.standard_normal((w.shape[0], L_in))
        M, bf, _ = conv_transpose1d_dense_operator(w, b, L_in)
        got = x.reshape(-1) @ M + bf
        ref = _deconv1d_ref_np(x, w, b, _S, _P).reshape(-1)
        assert np.allclose(got, ref, rtol=1e-10, atol=1e-10), wk

    chk_conv("enc1_w", "enc1_b", INPUT_SHAPE)
    chk_conv("enc2_w", "enc2_b", INPUT_SHAPE // 10)
    chk_conv("enc3_w", "enc3_b", INPUT_SHAPE // 100)
    chk_deconv("dec1_w", "dec1_b", 1)
    chk_deconv("dec2_w", "dec2_b", INPUT_SHAPE // 100)
    chk_deconv("dec3_w", "dec3_b", INPUT_SHAPE // 10)


# ----------------------------------------------------------------------------
if __name__ == "__main__":
    key = jax.random.PRNGKey(0)
    kp, kx0, ke0, kx1, ke1 = jax.random.split(key, 5)

    tp = init_torch_params(kp)
    _check_dense_operators(tp)                       # exact operator-folding check

    packed_f32 = pack_params(tp, big_dtype=jnp.float32)     # exactness configuration
    packed_bf16 = pack_params(tp, big_dtype=jnp.bfloat16)   # perf configuration

    fwd = jax.jit(vae2_forward)
    ref = jax.jit(reference_forward)

    # ---- f32 kernel vs plain-XLA reference (structural correctness) ----
    B0 = 8
    x0 = jax.random.uniform(kx0, (B0, 2, INPUT_SHAPE), jnp.float32)
    e0 = jax.random.normal(ke0, (B0, Z_SHAPE), jnp.float32)
    got = jax.block_until_ready(fwd(packed_f32, x0, e0))
    want = jax.block_until_ready(ref(packed_f32, x0, e0))
    for g, r in zip(got, want):
        np.testing.assert_allclose(np.asarray(g), np.asarray(r), rtol=2e-2, atol=1e-2)

    # ---- bf16-big-weight perf configuration, larger batch ----
    B1 = 64
    x1 = jax.random.uniform(kx1, (B1, 2, INPUT_SHAPE), jnp.float32)
    e1 = jax.random.normal(ke1, (B1, Z_SHAPE), jnp.float32)
    pre_x, y, mu, logvar = jax.block_until_ready(fwd(packed_bf16, x1, e1))
    rx, ry, rmu, rlv = jax.block_until_ready(ref(packed_f32, x1, e1))

    assert pre_x.shape == (B1, 2, INPUT_SHAPE)
    assert y.shape == (B1, OUTPUT_SHAPE)
    assert mu.shape == (B1, Z_SHAPE) and logvar.shape == (B1, Z_SHAPE)
    assert bool(jnp.all(jnp.isfinite(pre_x))) and bool(jnp.all(jnp.isfinite(y)))
    assert bool(jnp.all((pre_x >= 0.0) & (pre_x <= 1.0)))   # sigmoid output range
    np.testing.assert_allclose(np.asarray(pre_x), np.asarray(rx), rtol=0.1, atol=0.1)
    np.testing.assert_allclose(np.asarray(mu), np.asarray(rmu), rtol=0.1, atol=0.1)
    np.testing.assert_allclose(np.asarray(logvar), np.asarray(rlv), rtol=0.1, atol=0.1)
    np.testing.assert_allclose(np.asarray(y), np.asarray(ry), rtol=0.1, atol=0.1)

    print("KERNEL_OK")
</pallas_src>

<mosaic_0001>
module attributes {stable_mosaic.version = 11 : i64} {
  func.func @_vae2_fused_kernel(%arg0: i32, %arg1: memref<8x2000xf32, #tpu.memory_space<vmem>>, %arg2: memref<8x20xf32, #tpu.memory_space<vmem>>, %arg3: memref<2000x600xf32, #tpu.memory_space<vmem>>, %arg4: memref<1x600xf32, #tpu.memory_space<vmem>>, %arg5: memref<600x60xf32, #tpu.memory_space<vmem>>, %arg6: memref<1x60xf32, #tpu.memory_space<vmem>>, %arg7: memref<60x6xf32, #tpu.memory_space<vmem>>, %arg8: memref<1x6xf32, #tpu.memory_space<vmem>>, %arg9: memref<6x20xf32, #tpu.memory_space<vmem>>, %arg10: memref<1x20xf32, #tpu.memory_space<vmem>>, %arg11: memref<6x20xf32, #tpu.memory_space<vmem>>, %arg12: memref<1x20xf32, #tpu.memory_space<vmem>>, %arg13: memref<20x6xf32, #tpu.memory_space<vmem>>, %arg14: memref<1x6xf32, #tpu.memory_space<vmem>>, %arg15: memref<6x60xf32, #tpu.memory_space<vmem>>, %arg16: memref<1x60xf32, #tpu.memory_space<vmem>>, %arg17: memref<60x600xf32, #tpu.memory_space<vmem>>, %arg18: memref<1x600xf32, #tpu.memory_space<vmem>>, %arg19: memref<600x2000xf32, #tpu.memory_space<vmem>>, %arg20: memref<1x2000xf32, #tpu.memory_space<vmem>>, %arg21: memref<20x11xf32, #tpu.memory_space<vmem>>, %arg22: memref<1x11xf32, #tpu.memory_space<vmem>>, %arg23: memref<8x2000xf32, #tpu.memory_space<vmem>>, %arg24: memref<8x11xf32, #tpu.memory_space<vmem>>, %arg25: memref<8x20xf32, #tpu.memory_space<vmem>>, %arg26: memref<8x20xf32, #tpu.memory_space<vmem>>) attributes {dimension_semantics = [#tpu.dimension_semantics<parallel>], iteration_bounds = array<i64: 1>, scalar_prefetch = 0 : i64, scratch_operands = 0 : i64, tpu.core_type = #tpu.core_type<tc>, window_params = [{transform_indices = @transform_0, window_bounds = array<i64: 8, 2000>}, {transform_indices = @transform_1, window_bounds = array<i64: 8, 20>}, {pipeline_mode = #tpu.pipeline_mode<synchronous>, transform_indices = @transform_2, window_bounds = array<i64: 2000, 600>}, {pipeline_mode = #tpu.pipeline_mode<synchronous>, transform_indices = @transform_3, window_bounds = array<i64: 1, 600>}, {pipeline_mode = #tpu.pipeline_mode<synchronous>, transform_indices = @transform_4, window_bounds = array<i64: 600, 60>}, {pipeline_mode = #tpu.pipeline_mode<synchronous>, transform_indices = @transform_5, window_bounds = array<i64: 1, 60>}, {pipeline_mode = #tpu.pipeline_mode<synchronous>, transform_indices = @transform_6, window_bounds = array<i64: 60, 6>}, {pipeline_mode = #tpu.pipeline_mode<synchronous>, transform_indices = @transform_7, window_bounds = array<i64: 1, 6>}, {pipeline_mode = #tpu.pipeline_mode<synchronous>, transform_indices = @transform_8, window_bounds = array<i64: 6, 20>}, {pipeline_mode = #tpu.pipeline_mode<synchronous>, transform_indices = @transform_9, window_bounds = array<i64: 1, 20>}, {pipeline_mode = #tpu.pipeline_mode<synchronous>, transform_indices = @transform_10, window_bounds = array<i64: 6, 20>}, {pipeline_mode = #tpu.pipeline_mode<synchronous>, transform_indices = @transform_11, window_bounds = array<i64: 1, 20>}, {pipeline_mode = #tpu.pipeline_mode<synchronous>, transform_indices = @transform_12, window_bounds = array<i64: 20, 6>}, {pipeline_mode = #tpu.pipeline_mode<synchronous>, transform_indices = @transform_13, window_bounds = array<i64: 1, 6>}, {pipeline_mode = #tpu.pipeline_mode<synchronous>, transform_indices = @transform_14, window_bounds = array<i64: 6, 60>}, {pipeline_mode = #tpu.pipeline_mode<synchronous>, transform_indices = @transform_15, window_bounds = array<i64: 1, 60>}, {pipeline_mode = #tpu.pipeline_mode<synchronous>, transform_indices = @transform_16, window_bounds = array<i64: 60, 600>}, {pipeline_mode = #tpu.pipeline_mode<synchronous>, transform_indices = @transform_17, window_bounds = array<i64: 1, 600>}, {pipeline_mode = #tpu.pipeline_mode<synchronous>, transform_indices = @transform_18, window_bounds = array<i64: 600, 2000>}, {pipeline_mode = #tpu.pipeline_mode<synchronous>, transform_indices = @transform_19, window_bounds = array<i64: 1, 2000>}, {pipeline_mode = #tpu.pipeline_mode<synchronous>, transform_indices = @transform_20, window_bounds = array<i64: 20, 11>}, {pipeline_mode = #tpu.pipeline_mode<synchronous>, transform_indices = @transform_21, window_bounds = array<i64: 1, 11>}, {transform_indices = @transform_22, window_bounds = array<i64: 8, 2000>}, {transform_indices = @transform_23, window_bounds = array<i64: 8, 11>}, {transform_indices = @transform_24, window_bounds = array<i64: 8, 20>}, {transform_indices = @transform_25, window_bounds = array<i64: 8, 20>}]} {
    %c0 = arith.constant 0 : index
    %c0_0 = arith.constant 0 : index
    %0 = vector.load %arg1[%c0, %c0_0] : memref<8x2000xf32, #tpu.memory_space<vmem>>, vector<8x2000xf32>
    %c0_1 = arith.constant 0 : index
    %c0_2 = arith.constant 0 : index
    %1 = vector.load %arg3[%c0_1, %c0_2] : memref<2000x600xf32, #tpu.memory_space<vmem>>, vector<2000x600xf32>
    %cst = arith.constant dense<0.000000e+00> : vector<8x600xf32>
    %2 = tpu.matmul %0, %1, %cst {dimension_numbers = #tpu.dot_dimension_numbers<[1], [0], [0], [1], [0, 0, 1, 1], [], []>} : vector<8x2000xf32>, vector<2000x600xf32>, vector<8x600xf32> -> vector<8x600xf32>
    %c0_3 = arith.constant 0 : index
    %c0_4 = arith.constant 0 : index
    %3 = vector.load %arg4[%c0_3, %c0_4] : memref<1x600xf32, #tpu.memory_space<vmem>>, vector<1x600xf32>
    %4 = vector.broadcast %3 : vector<1x600xf32> to vector<8x600xf32>
    %5 = arith.addf %2, %4 : vector<8x600xf32>
    %cst_5 = arith.constant 0.000000e+00 : f32
    %6 = vector.broadcast %cst_5 : f32 to vector<8x600xf32>
    %7 = arith.maximumf %5, %6 : vector<8x600xf32>
    %c0_6 = arith.constant 0 : index
    %c0_7 = arith.constant 0 : index
    %8 = vector.load %arg5[%c0_6, %c0_7] : memref<600x60xf32, #tpu.memory_space<vmem>>, vector<600x60xf32>
    %cst_8 = arith.constant dense<0.000000e+00> : vector<8x60xf32>
    %9 = tpu.matmul %7, %8, %cst_8 {dimension_numbers = #tpu.dot_dimension_numbers<[1], [0], [0], [1], [0, 0, 1, 1], [], []>} : vector<8x600xf32>, vector<600x60xf32>, vector<8x60xf32> -> vector<8x60xf32>
    %c0_9 = arith.constant 0 : index
    %c0_10 = arith.constant 0 : index
    %10 = vector.load %arg6[%c0_9, %c0_10] : memref<1x60xf32, #tpu.memory_space<vmem>>, vector<1x60xf32>
    %11 = vector.broadcast %10 : vector<1x60xf32> to vector<8x60xf32>
    %12 = arith.addf %9, %11 : vector<8x60xf32>
    %cst_11 = arith.constant 0.000000e+00 : f32
    %13 = vector.broadcast %cst_11 : f32 to vector<8x60xf32>
    %14 = arith.maximumf %12, %13 : vector<8x60xf32>
    %c0_12 = arith.constant 0 : index
    %c0_13 = arith.constant 0 : index
    %15 = vector.load %arg7[%c0_12, %c0_13] : memref<60x6xf32, #tpu.memory_space<vmem>>, vector<60x6xf32>
    %cst_14 = arith.constant dense<0.000000e+00> : vector<8x6xf32>
    %16 = tpu.matmul %14, %15, %cst_14 {dimension_numbers = #tpu.dot_dimension_numbers<[1], [0], [0], [1], [0, 0, 1, 1], [], []>} : vector<8x60xf32>, vector<60x6xf32>, vector<8x6xf32> -> vector<8x6xf32>
    %c0_15 = arith.constant 0 : index
    %c0_16 = arith.constant 0 : index
    %17 = vector.load %arg8[%c0_15, %c0_16] : memref<1x6xf32, #tpu.memory_space<vmem>>, vector<1x6xf32>
    %18 = vector.broadcast %17 : vector<1x6xf32> to vector<8x6xf32>
    %19 = arith.addf %16, %18 : vector<8x6xf32>
    %cst_17 = arith.constant 0.000000e+00 : f32
    %20 = vector.broadcast %cst_17 : f32 to vector<8x6xf32>
    %21 = arith.maximumf %19, %20 : vector<8x6xf32>
    %c0_18 = arith.constant 0 : index
    %c0_19 = arith.constant 0 : index
    %22 = vector.load %arg9[%c0_18, %c0_19] : memref<6x20xf32, #tpu.memory_space<vmem>>, vector<6x20xf32>
    %cst_20 = arith.constant dense<0.000000e+00> : vector<8x20xf32>
    %23 = tpu.matmul %21, %22, %cst_20 {dimension_numbers = #tpu.dot_dimension_numbers<[1], [0], [0], [1], [0, 0, 1, 1], [], []>} : vector<8x6xf32>, vector<6x20xf32>, vector<8x20xf32> -> vector<8x20xf32>
    %c0_21 = arith.constant 0 : index
    %c0_22 = arith.constant 0 : index
    %24 = vector.load %arg10[%c0_21, %c0_22] : memref<1x20xf32, #tpu.memory_space<vmem>>, vector<1x20xf32>
    %25 = vector.broadcast %24 : vector<1x20xf32> to vector<8x20xf32>
    %26 = arith.addf %23, %25 : vector<8x20xf32>
    %c0_23 = arith.constant 0 : index
    %c0_24 = arith.constant 0 : index
    %27 = vector.load %arg11[%c0_23, %c0_24] : memref<6x20xf32, #tpu.memory_space<vmem>>, vector<6x20xf32>
    %cst_25 = arith.constant dense<0.000000e+00> : vector<8x20xf32>
    %28 = tpu.matmul %21, %27, %cst_25 {dimension_numbers = #tpu.dot_dimension_numbers<[1], [0], [0], [1], [0, 0, 1, 1], [], []>} : vector<8x6xf32>, vector<6x20xf32>, vector<8x20xf32> -> vector<8x20xf32>
    %c0_26 = arith.constant 0 : index
    %c0_27 = arith.constant 0 : index
    %29 = vector.load %arg12[%c0_26, %c0_27] : memref<1x20xf32, #tpu.memory_space<vmem>>, vector<1x20xf32>
    %30 = vector.broadcast %29 : vector<1x20xf32> to vector<8x20xf32>
    %31 = arith.addf %28, %30 : vector<8x20xf32>
    %c0_28 = arith.constant 0 : index
    %c0_29 = arith.constant 0 : index
    %32 = vector.load %arg2[%c0_28, %c0_29] : memref<8x20xf32, #tpu.memory_space<vmem>>, vector<8x20xf32>
    %cst_30 = arith.constant 5.000000e-01 : f32
    %33 = vector.broadcast %cst_30 : f32 to vector<8x20xf32>
    %34 = arith.mulf %33, %31 : vector<8x20xf32>
    %35 = math.exp %34 : vector<8x20xf32>
    %36 = arith.mulf %32, %35 : vector<8x20xf32>
    %37 = arith.addf %26, %36 : vector<8x20xf32>
    %c0_31 = arith.constant 0 : index
    %c0_32 = arith.constant 0 : index
    %38 = vector.load %arg13[%c0_31, %c0_32] : memref<20x6xf32, #tpu.memory_space<vmem>>, vector<20x6xf32>
    %cst_33 = arith.constant dense<0.000000e+00> : vector<8x6xf32>
    %39 = tpu.matmul %37, %38, %cst_33 {dimension_numbers = #tpu.dot_dimension_numbers<[1], [0], [0], [1], [0, 0, 1, 1], [], []>} : vector<8x20xf32>, vector<20x6xf32>, vector<8x6xf32> -> vector<8x6xf32>
    %c0_34 = arith.constant 0 : index
    %c0_35 = arith.constant 0 : index
    %40 = vector.load %arg14[%c0_34, %c0_35] : memref<1x6xf32, #tpu.memory_space<vmem>>, vector<1x6xf32>
    %41 = vector.broadcast %40 : vector<1x6xf32> to vector<8x6xf32>
    %42 = arith.addf %39, %41 : vector<8x6xf32>
    %c0_36 = arith.constant 0 : index
    %c0_37 = arith.constant 0 : index
    %43 = vector.load %arg15[%c0_36, %c0_37] : memref<6x60xf32, #tpu.memory_space<vmem>>, vector<6x60xf32>
    %cst_38 = arith.constant dense<0.000000e+00> : vector<8x60xf32>
    %44 = tpu.matmul %42, %43, %cst_38 {dimension_numbers = #tpu.dot_dimension_numbers<[1], [0], [0], [1], [0, 0, 1, 1], [], []>} : vector<8x6xf32>, vector<6x60xf32>, vector<8x60xf32> -> vector<8x60xf32>
    %c0_39 = arith.constant 0 : index
    %c0_40 = arith.constant 0 : index
    %45 = vector.load %arg16[%c0_39, %c0_40] : memref<1x60xf32, #tpu.memory_space<vmem>>, vector<1x60xf32>
    %46 = vector.broadcast %45 : vector<1x60xf32> to vector<8x60xf32>
    %47 = arith.addf %44, %46 : vector<8x60xf32>
    %cst_41 = arith.constant 0.000000e+00 : f32
    %48 = vector.broadcast %cst_41 : f32 to vector<8x60xf32>
    %49 = arith.maximumf %47, %48 : vector<8x60xf32>
    %c0_42 = arith.constant 0 : index
    %c0_43 = arith.constant 0 : index
    %50 = vector.load %arg17[%c0_42, %c0_43] : memref<60x600xf32, #tpu.memory_space<vmem>>, vector<60x600xf32>
    %cst_44 = arith.constant dense<0.000000e+00> : vector<8x600xf32>
    %51 = tpu.matmul %49, %50, %cst_44 {dimension_numbers = #tpu.dot_dimension_numbers<[1], [0], [0], [1], [0, 0, 1, 1], [], []>} : vector<8x60xf32>, vector<60x600xf32>, vector<8x600xf32> -> vector<8x600xf32>
    %c0_45 = arith.constant 0 : index
    %c0_46 = arith.constant 0 : index
    %52 = vector.load %arg18[%c0_45, %c0_46] : memref<1x600xf32, #tpu.memory_space<vmem>>, vector<1x600xf32>
    %53 = vector.broadcast %52 : vector<1x600xf32> to vector<8x600xf32>
    %54 = arith.addf %51, %53 : vector<8x600xf32>
    %cst_47 = arith.constant 0.000000e+00 : f32
    %55 = vector.broadcast %cst_47 : f32 to vector<8x600xf32>
    %56 = arith.maximumf %54, %55 : vector<8x600xf32>
    %c0_48 = arith.constant 0 : index
    %c0_49 = arith.constant 0 : index
    %57 = vector.load %arg19[%c0_48, %c0_49] : memref<600x2000xf32, #tpu.memory_space<vmem>>, vector<600x2000xf32>
    %cst_50 = arith.constant dense<0.000000e+00> : vector<8x2000xf32>
    %58 = tpu.matmul %56, %57, %cst_50 {dimension_numbers = #tpu.dot_dimension_numbers<[1], [0], [0], [1], [0, 0, 1, 1], [], []>} : vector<8x600xf32>, vector<600x2000xf32>, vector<8x2000xf32> -> vector<8x2000xf32>
    %c0_51 = arith.constant 0 : index
    %c0_52 = arith.constant 0 : index
    %59 = vector.load %arg20[%c0_51, %c0_52] : memref<1x2000xf32, #tpu.memory_space<vmem>>, vector<1x2000xf32>
    %60 = vector.broadcast %59 : vector<1x2000xf32> to vector<8x2000xf32>
    %61 = arith.addf %58, %60 : vector<8x2000xf32>
    %62 = arith.negf %61 : vector<8x2000xf32>
    %63 = math.exp %62 : vector<8x2000xf32>
    %cst_53 = arith.constant 1.000000e+00 : f32
    %64 = vector.broadcast %cst_53 : f32 to vector<8x2000xf32>
    %65 = arith.addf %64, %63 : vector<8x2000xf32>
    %66 = arith.divf %64, %65 : vector<8x2000xf32>
    %c0_54 = arith.constant 0 : index
    %c0_55 = arith.constant 0 : index
    %67 = vector.load %arg23[%c0_54, %c0_55] : memref<8x2000xf32, #tpu.memory_space<vmem>>, vector<8x2000xf32>
    tpu.vector_store %arg23[%c0_54, %c0_55], %66 {strides = array<i32>} : memref<8x2000xf32, #tpu.memory_space<vmem>>, vector<8x2000xf32>,
    %c0_56 = arith.constant 0 : index
    %c0_57 = arith.constant 0 : index
    %68 = vector.load %arg21[%c0_56, %c0_57] : memref<20x11xf32, #tpu.memory_space<vmem>>, vector<20x11xf32>
    %cst_58 = arith.constant dense<0.000000e+00> : vector<8x11xf32>
    %69 = tpu.matmul %37, %68, %cst_58 {dimension_numbers = #tpu.dot_dimension_numbers<[1], [0], [0], [1], [0, 0, 1, 1], [], []>} : vector<8x20xf32>, vector<20x11xf32>, vector<8x11xf32> -> vector<8x11xf32>
    %c0_59 = arith.constant 0 : index
    %c0_60 = arith.constant 0 : index
    %70 = vector.load %arg22[%c0_59, %c0_60] : memref<1x11xf32, #tpu.memory_space<vmem>>, vector<1x11xf32>
    %71 = vector.broadcast %70 : vector<1x11xf32> to vector<8x11xf32>
    %72 = arith.addf %69, %71 : vector<8x11xf32>
    %c0_61 = arith.constant 0 : index
    %c0_62 = arith.constant 0 : index
    %73 = vector.load %arg24[%c0_61, %c0_62] : memref<8x11xf32, #tpu.memory_space<vmem>>, vector<8x11xf32>
    tpu.vector_store %arg24[%c0_61, %c0_62], %72 {strides = array<i32>} : memref<8x11xf32, #tpu.memory_space<vmem>>, vector<8x11xf32>,
    %c0_63 = arith.constant 0 : index
    %c0_64 = arith.constant 0 : index
    %74 = vector.load %arg25[%c0_63, %c0_64] : memref<8x20xf32, #tpu.memory_space<vmem>>, vector<8x20xf32>
    tpu.vector_store %arg25[%c0_63, %c0_64], %26 {strides = array<i32>} : memref<8x20xf32, #tpu.memory_space<vmem>>, vector<8x20xf32>,
    %c0_65 = arith.constant 0 : index
    %c0_66 = arith.constant 0 : index
    %75 = vector.load %arg26[%c0_65, %c0_66] : memref<8x20xf32, #tpu.memory_space<vmem>>, vector<8x20xf32>
    tpu.vector_store %arg26[%c0_65, %c0_66], %31 {strides = array<i32>} : memref<8x20xf32, #tpu.memory_space<vmem>>, vector<8x20xf32>,
    return
  }
  func.func @transform_0(%arg0: i32) -> (i32, i32) {
    %c0_i32 = arith.constant 0 : i32
    %c0_i32_0 = arith.constant 0 : i32
    return %arg0, %c0_i32 : i32, i32
  }
  func.func @transform_1(%arg0: i32) -> (i32, i32) {
    %c0_i32 = arith.constant 0 : i32
    %c0_i32_0 = arith.constant 0 : i32
    return %arg0, %c0_i32 : i32, i32
  }
  func.func @transform_2(%arg0: i32) -> (i32, i32) {
    %c0_i32 = arith.constant 0 : i32
    %c0_i32_0 = arith.constant 0 : i32
    %c0_i32_1 = arith.constant 0 : i32
    return %c0_i32, %c0_i32_0 : i32, i32
  }
  func.func @transform_3(%arg0: i32) -> (i32, i32) {
    %c0_i32 = arith.constant 0 : i32
    %c0_i32_0 = arith.constant 0 : i32
    %c0_i32_1 = arith.constant 0 : i32
    return %c0_i32, %c0_i32_0 : i32, i32
  }
  func.func @transform_4(%arg0: i32) -> (i32, i32) {
    %c0_i32 = arith.constant 0 : i32
    %c0_i32_0 = arith.constant 0 : i32
    %c0_i32_1 = arith.constant 0 : i32
    return %c0_i32, %c0_i32_0 : i32, i32
  }
  func.func @transform_5(%arg0: i32) -> (i32, i32) {
    %c0_i32 = arith.constant 0 : i32
    %c0_i32_0 = arith.constant 0 : i32
    %c0_i32_1 = arith.constant 0 : i32
    return %c0_i32, %c0_i32_0 : i32, i32
  }
  func.func @transform_6(%arg0: i32) -> (i32, i32) {
    %c0_i32 = arith.constant 0 : i32
    %c0_i32_0 = arith.constant 0 : i32
    %c0_i32_1 = arith.constant 0 : i32
    return %c0_i32, %c0_i32_0 : i32, i32
  }
  func.func @transform_7(%arg0: i32) -> (i32, i32) {
    %c0_i32 = arith.constant 0 : i32
    %c0_i32_0 = arith.constant 0 : i32
    %c0_i32_1 = arith.constant 0 : i32
    return %c0_i32, %c0_i32_0 : i32, i32
  }
  func.func @transform_8(%arg0: i32) -> (i32, i32) {
    %c0_i32 = arith.constant 0 : i32
    %c0_i32_0 = arith.constant 0 : i32
    %c0_i32_1 = arith.constant 0 : i32
    return %c0_i32, %c0_i32_0 : i32, i32
  }
  func.func @transform_9(%arg0: i32) -> (i32, i32) {
    %c0_i32 = arith.constant 0 : i32
    %c0_i32_0 = arith.constant 0 : i32
    %c0_i32_1 = arith.constant 0 : i32
    return %c0_i32, %c0_i32_0 : i32, i32
  }
  func.func @transform_10(%arg0: i32) -> (i32, i32) {
    %c0_i32 = arith.constant 0 : i32
    %c0_i32_0 = arith.constant 0 : i32
    %c0_i32_1 = arith.constant 0 : i32
    return %c0_i32, %c0_i32_0 : i32, i32
  }
  func.func @transform_11(%arg0: i32) -> (i32, i32) {
    %c0_i32 = arith.constant 0 : i32
    %c0_i32_0 = arith.constant 0 : i32
    %c0_i32_1 = arith.constant 0 : i32
    return %c0_i32, %c0_i32_0 : i32, i32
  }
  func.func @transform_12(%arg0: i32) -> (i32, i32) {
    %c0_i32 = arith.constant 0 : i32
    %c0_i32_0 = arith.constant 0 : i32
    %c0_i32_1 = arith.constant 0 : i32
    return %c0_i32, %c0_i32_0 : i32, i32
  }
  func.func @transform_13(%arg0: i32) -> (i32, i32) {
    %c0_i32 = arith.constant 0 : i32
    %c0_i32_0 = arith.constant 0 : i32
    %c0_i32_1 = arith.constant 0 : i32
    return %c0_i32, %c0_i32_0 : i32, i32
  }
  func.func @transform_14(%arg0: i32) -> (i32, i32) {
    %c0_i32 = arith.constant 0 : i32
    %c0_i32_0 = arith.constant 0 : i32
    %c0_i32_1 = arith.constant 0 : i32
    return %c0_i32, %c0_i32_0 : i32, i32
  }
  func.func @transform_15(%arg0: i32) -> (i32, i32) {
    %c0_i32 = arith.constant 0 : i32
    %c0_i32_0 = arith.constant 0 : i32
    %c0_i32_1 = arith.constant 0 : i32
    return %c0_i32, %c0_i32_0 : i32, i32
  }
  func.func @transform_16(%arg0: i32) -> (i32, i32) {
    %c0_i32 = arith.constant 0 : i32
    %c0_i32_0 = arith.constant 0 : i32
    %c0_i32_1 = arith.constant 0 : i32
    return %c0_i32, %c0_i32_0 : i32, i32
  }
  func.func @transform_17(%arg0: i32) -> (i32, i32) {
    %c0_i32 = arith.constant 0 : i32
    %c0_i32_0 = arith.constant 0 : i32
    %c0_i32_1 = arith.constant 0 : i32
    return %c0_i32, %c0_i32_0 : i32, i32
  }
  func.func @transform_18(%arg0: i32) -> (i32, i32) {
    %c0_i32 = arith.constant 0 : i32
    %c0_i32_0 = arith.constant 0 : i32
    %c0_i32_1 = arith.constant 0 : i32
    return %c0_i32, %c0_i32_0 : i32, i32
  }
  func.func @transform_19(%arg0: i32) -> (i32, i32) {
    %c0_i32 = arith.constant 0 : i32
    %c0_i32_0 = arith.constant 0 : i32
    %c0_i32_1 = arith.constant 0 : i32
    return %c0_i32, %c0_i32_0 : i32, i32
  }
  func.func @transform_20(%arg0: i32) -> (i32, i32) {
    %c0_i32 = arith.constant 0 : i32
    %c0_i32_0 = arith.constant 0 : i32
    %c0_i32_1 = arith.constant 0 : i32
    return %c0_i32, %c0_i32_0 : i32, i32
  }
  func.func @transform_21(%arg0: i32) -> (i32, i32) {
    %c0_i32 = arith.constant 0 : i32
    %c0_i32_0 = arith.constant 0 : i32
    %c0_i32_1 = arith.constant 0 : i32
    return %c0_i32, %c0_i32_0 : i32, i32
  }
  func.func @transform_22(%arg0: i32) -> (i32, i32) {
    %c0_i32 = arith.constant 0 : i32
    %c0_i32_0 = arith.constant 0 : i32
    return %arg0, %c0_i32 : i32, i32
  }
  func.func @transform_23(%arg0: i32) -> (i32, i32) {
    %c0_i32 = arith.constant 0 : i32
    %c0_i32_0 = arith.constant 0 : i32
    return %arg0, %c0_i32 : i32, i32
  }
  func.func @transform_24(%arg0: i32) -> (i32, i32) {
    %c0_i32 = arith.constant 0 : i32
    %c0_i32_0 = arith.constant 0 : i32
    return %arg0, %c0_i32 : i32, i32
  }
  func.func @transform_25(%arg0: i32) -> (i32, i32) {
    %c0_i32 = arith.constant 0 : i32
    %c0_i32_0 = arith.constant 0 : i32
    return %arg0, %c0_i32 : i32, i32
  }
}

</mosaic_0001>

<llo_original>
// kernel: vae2_forward.1
$region0: #{vae2_forward.1}
  #allocation0 [shape = 'u32[]', space=smem, size = 0x4, offset = 0x4, fixed_abs, tag = 'smem constant byte address 0x4 - core index']
  #allocation1 [shape = 'u32[144,128]{1,0:T(1,128)}', space=vmem, size = 0x12000, scoped, tag = 'internal scratch']
  %s0 = inlined_call_operand.vmem [shape: f32[8,2000], index: 0, kind: input, shape index: {}]
  %s1 = inlined_call_operand.vmem [shape: f32[8,20], index: 1, kind: input, shape index: {}]
  %s2 = inlined_call_operand.vmem [shape: f32[2000,600], index: 2, kind: input, shape index: {}]
  %s3 = inlined_call_operand.vmem [shape: f32[1,600], index: 3, kind: input, shape index: {}]
  %s4 = inlined_call_operand.vmem [shape: f32[600,60], index: 4, kind: input, shape index: {}]
  %s5 = inlined_call_operand.vmem [shape: f32[1,60], index: 5, kind: input, shape index: {}]
  %s6 = inlined_call_operand.vmem [shape: f32[60,6], index: 6, kind: input, shape index: {}]
  %s7 = inlined_call_operand.vmem [shape: f32[1,6], index: 7, kind: input, shape index: {}]
  %s8 = inlined_call_operand.vmem [shape: f32[6,20], index: 8, kind: input, shape index: {}]
  %s9 = inlined_call_operand.vmem [shape: f32[1,20], index: 9, kind: input, shape index: {}]
  %s10 = inlined_call_operand.vmem [shape: f32[6,20], index: 10, kind: input, shape index: {}]
  %s11 = inlined_call_operand.vmem [shape: f32[1,20], index: 11, kind: input, shape index: {}]
  %s12 = inlined_call_operand.vmem [shape: f32[20,6], index: 12, kind: input, shape index: {}]
  %s13 = inlined_call_operand.vmem [shape: f32[1,6], index: 13, kind: input, shape index: {}]
  %s14 = inlined_call_operand.vmem [shape: f32[6,60], index: 14, kind: input, shape index: {}]
  %s15 = inlined_call_operand.vmem [shape: f32[1,60], index: 15, kind: input, shape index: {}]
  %s16 = inlined_call_operand.vmem [shape: f32[60,600], index: 16, kind: input, shape index: {}]
  %s17 = inlined_call_operand.vmem [shape: f32[1,600], index: 17, kind: input, shape index: {}]
  %s18 = inlined_call_operand.vmem [shape: f32[600,2000], index: 18, kind: input, shape index: {}]
  %s19 = inlined_call_operand.vmem [shape: f32[1,2000], index: 19, kind: input, shape index: {}]
  %s20 = inlined_call_operand.vmem [shape: f32[20,11], index: 20, kind: input, shape index: {}]
  %s21 = inlined_call_operand.vmem [shape: f32[1,11], index: 21, kind: input, shape index: {}]
  %s22 = inlined_call_operand.vmem [shape: f32[8,2000], index: 22, kind: output, shape index: {0}]
  %s23 = inlined_call_operand.hbm [shape: f32[8,11], index: 23, kind: output, shape index: {1}]
  %s24 = inlined_call_operand.hbm [shape: f32[8,20], index: 24, kind: output, shape index: {2}]
  %s25 = inlined_call_operand.hbm [shape: f32[8,20], index: 25, kind: output, shape index: {3}]
  %26 = xla_tuple %s22, %s23, %s24, %s25
  %s27 = sld [smem:[#allocation0]]
  $region122: #{vae2_forward.1} parent=0
    _
  %s29 = ssub.s32 1, %s27
  %s30 = scalar_select 0, %s29, %s27
  $region1: #{vae2_forward.1} parent=0
    #allocation2 [shape = 'u8[4096]{0}', space=vmem, size = 0x1000, scoped, tag = 'output window, operand 1, single buffered']
    #allocation3 [shape = 's32[1]{0}', space=sflag, size = 0x4, scoped, tag = 'scoped memory for vae2_forward.1']
    #allocation4 [shape = 'u8[4096]{0}', space=vmem, size = 0x1000, scoped, tag = 'output window, operand 2, single buffered']
    #allocation5 [shape = 's32[1]{0}', space=sflag, size = 0x4, scoped, tag = 'scoped memory for vae2_forward.1']
    #allocation6 [shape = 'u8[4096]{0}', space=vmem, size = 0x1000, scoped, tag = 'output window, operand 3, single buffered']
    %31 = vsyncpa [#allocation3], 0
    %32 = vsyncpa [#allocation5], 0
    // Predicated region
    $region2: #{vae2_forward.1} parent=1 // pred_check
      _
    $region3: #{vae2_forward.1} parent=1 // pred_check_branch
      %34 = sbr.rel (0) target = $region5
    $region4: #{vae2_forward.1} parent=1 // pred_region
      _
    $region5: #{vae2_forward.1} parent=1 // pred_fallthru
      _
    // Predicated region
    $region6: #{vae2_forward.1} parent=1 // pred_check
      _
    $region7: #{vae2_forward.1} parent=1 // pred_check_branch
      %36 = sbr.rel (0) target = $region9
    $region8: #{vae2_forward.1} parent=1 // pred_region
      _
    $region9: #{vae2_forward.1} parent=1 // pred_fallthru
      _
    // Predicated region
    $region10: #{vae2_forward.1} parent=1 // pred_check
      _
    $region11: #{vae2_forward.1} parent=1 // pred_check_branch
      %38 = sbr.rel (0) target = $region13
    $region12: #{vae2_forward.1} parent=1 // pred_region
      _
    $region13: #{vae2_forward.1} parent=1 // pred_fallthru
      _
    // Predicated region
    $region14: #{vae2_forward.1} parent=1 // pred_check
      _
    $region15: #{vae2_forward.1} parent=1 // pred_check_branch
      %40 = sbr.rel (0) target = $region17
    $region16: #{vae2_forward.1} parent=1 // pred_region
      _
    $region17: #{vae2_forward.1} parent=1 // pred_fallthru
      _
    // Predicated region
    $region18: #{vae2_forward.1} parent=1 // pred_check
      _
    $region19: #{vae2_forward.1} parent=1 // pred_check_branch
      %42 = sbr.rel (0) target = $region21
    $region20: #{vae2_forward.1} parent=1 // pred_region
      _
    $region21: #{vae2_forward.1} parent=1 // pred_fallthru
      _
    // Predicated region
    $region22: #{vae2_forward.1} parent=1 // pred_check
      _
    $region23: #{vae2_forward.1} parent=1 // pred_check_branch
      %44 = sbr.rel (0) target = $region25
    $region24: #{vae2_forward.1} parent=1 // pred_region
      _
    $region25: #{vae2_forward.1} parent=1 // pred_fallthru
      _
    // Predicated region
    $region26: #{vae2_forward.1} parent=1 // pred_check
      _
    $region27: #{vae2_forward.1} parent=1 // pred_check_branch
      %46 = sbr.rel (0) target = $region29
    $region28: #{vae2_forward.1} parent=1 // pred_region
      _
    $region29: #{vae2_forward.1} parent=1 // pred_fallthru
      _
    // Predicated region
    $region30: #{vae2_forward.1} parent=1 // pred_check
      _
    $region31: #{vae2_forward.1} parent=1 // pred_check_branch
      %48 = sbr.rel (0) target = $region33
    $region32: #{vae2_forward.1} parent=1 // pred_region
      _
    $region33: #{vae2_forward.1} parent=1 // pred_fallthru
      _
    // Predicated region
    $region34: #{vae2_forward.1} parent=1 // pred_check
      _
    $region35: #{vae2_forward.1} parent=1 // pred_check_branch
      %50 = sbr.rel (0) target = $region37
    $region36: #{vae2_forward.1} parent=1 // pred_region
      _
    $region37: #{vae2_forward.1} parent=1 // pred_fallthru
      _
    // Predicated region
    $region38: #{vae2_forward.1} parent=1 // pred_check
      _
    $region39: #{vae2_forward.1} parent=1 // pred_check_branch
      %52 = sbr.rel (0) target = $region41
    $region40: #{vae2_forward.1} parent=1 // pred_region
      _
    $region41: #{vae2_forward.1} parent=1 // pred_fallthru
      _
    // Predicated region
    $region42: #{vae2_forward.1} parent=1 // pred_check
      _
    $region43: #{vae2_forward.1} parent=1 // pred_check_branch
      %54 = sbr.rel (0) target = $region45
    $region44: #{vae2_forward.1} parent=1 // pred_region
      _
    $region45: #{vae2_forward.1} parent=1 // pred_fallthru
      _
    // Predicated region
    $region46: #{vae2_forward.1} parent=1 // pred_check
      _
    $region47: #{vae2_forward.1} parent=1 // pred_check_branch
      %56 = sbr.rel (0) target = $region49
    $region48: #{vae2_forward.1} parent=1 // pred_region
      _
    $region49: #{vae2_forward.1} parent=1 // pred_fallthru
      _
    // Predicated region
    $region50: #{vae2_forward.1} parent=1 // pred_check
      _
    $region51: #{vae2_forward.1} parent=1 // pred_check_branch
      %58 = sbr.rel (0) target = $region53
    $region52: #{vae2_forward.1} parent=1 // pred_region
      _
    $region53: #{vae2_forward.1} parent=1 // pred_fallthru
      _
    // Predicated region
    $region54: #{vae2_forward.1} parent=1 // pred_check
      _
    $region55: #{vae2_forward.1} parent=1 // pred_check_branch
      %60 = sbr.rel (0) target = $region57
    $region56: #{vae2_forward.1} parent=1 // pred_region
      _
    $region57: #{vae2_forward.1} parent=1 // pred_fallthru
      _
    // Predicated region
    $region58: #{vae2_forward.1} parent=1 // pred_check
      _
    $region59: #{vae2_forward.1} parent=1 // pred_check_branch
      %62 = sbr.rel (0) target = $region61
    $region60: #{vae2_forward.1} parent=1 // pred_region
      _
    $region61: #{vae2_forward.1} parent=1 // pred_fallthru
      _
    // Predicated region
    $region62: #{vae2_forward.1} parent=1 // pred_check
      _
    $region63: #{vae2_forward.1} parent=1 // pred_check_branch
      %64 = sbr.rel (0) target = $region65
    $region64: #{vae2_forward.1} parent=1 // pred_region
      _
    $region65: #{vae2_forward.1} parent=1 // pred_fallthru
      _
    // Predicated region
    $region66: #{vae2_forward.1} parent=1 // pred_check
      _
    $region67: #{vae2_forward.1} parent=1 // pred_check_branch
      %66 = sbr.rel (0) target = $region69
    $region68: #{vae2_forward.1} parent=1 // pred_region
      _
    $region69: #{vae2_forward.1} parent=1 // pred_fallthru
      _
    // Predicated region
    $region70: #{vae2_forward.1} parent=1 // pred_check
      _
    $region71: #{vae2_forward.1} parent=1 // pred_check_branch
      %68 = sbr.rel (0) target = $region73
    $region72: #{vae2_forward.1} parent=1 // pred_region
      _
    $region73: #{vae2_forward.1} parent=1 // pred_fallthru
      _
    // Predicated region
    $region74: #{vae2_forward.1} parent=1 // pred_check
      _
    $region75: #{vae2_forward.1} parent=1 // pred_check_branch
      %70 = sbr.rel (0) target = $region77
    $region76: #{vae2_forward.1} parent=1 // pred_region
      _
    $region77: #{vae2_forward.1} parent=1 // pred_fallthru
      _
    // Predicated region
    $region78: #{vae2_forward.1} parent=1 // pred_check
      _
    $region79: #{vae2_forward.1} parent=1 // pred_check_branch
      %72 = sbr.rel (0) target = $region81
    $region80: #{vae2_forward.1} parent=1 // pred_region
      _
    $region81: #{vae2_forward.1} parent=1 // pred_fallthru
      _
    // Predicated region
    $region82: #{vae2_forward.1} parent=1 // pred_check
      _
    $region83: #{vae2_forward.1} parent=1 // pred_check_branch
      %74 = sbr.rel (0) target = $region85
    $region84: #{vae2_forward.1} parent=1 // pred_region
      _
    $region85: #{vae2_forward.1} parent=1 // pred_fallthru
      _
    // Predicated region
    $region86: #{vae2_forward.1} parent=1 // pred_check
      _
    $region87: #{vae2_forward.1} parent=1 // pred_check_branch
      %76 = sbr.rel (0) target = $region89
    $region88: #{vae2_forward.1} parent=1 // pred_region
      _
    $region89: #{vae2_forward.1} parent=1 // pred_fallthru
      _
    %v77 = vld [vmem:[%s0] sm:$0xff]
    %v78 = vld [vmem:[%s0 + $0x8] sm:$0xff]
    %v79 = vld [vmem:[%s0 + $0x10] sm:$0xff]
    %v80 = vld [vmem:[%s0 + $0x18] sm:$0xff]
    %v81 = vld [vmem:[%s0 + $0x20] sm:$0xff]
    %v82 = vld [vmem:[%s0 + $0x28] sm:$0xff]
    %v83 = vld [vmem:[%s0 + $0x30] sm:$0xff]
    %v84 = vld [vmem:[%s0 + $0x38] sm:$0xff]
    %v85 = vld [vmem:[%s0 + $0x40] sm:$0xff]
    %v86 = vld [vmem:[%s0 + $0x48] sm:$0xff]
    %v87 = vld [vmem:[%s0 + $0x50] sm:$0xff]
    %v88 = vld [vmem:[%s0 + $0x58] sm:$0xff]
    %v89 = vld [vmem:[%s0 + $0x60] sm:$0xff]
    %v90 = vld [vmem:[%s0 + $0x68] sm:$0xff]
    %v91 = vld [vmem:[%s0 + $0x70] sm:$0xff]
    %v92 = vld [vmem:[%s0 + $0x78] sm:$0xff]
    %v93 = vld [vmem:[%s2] sm:$0xff]
    %v94 = vld [vmem:[%s2 + $0x8] sm:$0xff]
    %v95 = vld [vmem:[%s2 + $0x10] sm:$0xff]
    %v96 = vld [vmem:[%s2 + $0x18] sm:$0xff]
    %v97 = vld [vmem:[%s2 + $0x20] sm:$0xff]
    %v98 = vld [vmem:[%s2 + $0x28] sm:$0xff]
    %v99 = vld [vmem:[%s2 + $0x30] sm:$0xff]
    %v100 = vld [vmem:[%s2 + $0x38] sm:$0xff]
    %v101 = vld [vmem:[%s2 + $0x40] sm:$0xff]
    %v102 = vld [vmem:[%s2 + $0x48] sm:$0xff]
    %v103 = vld [vmem:[%s2 + $0x50] sm:$0xff]
    %v104 = vld [vmem:[%s2 + $0x58] sm:$0xff]
    %v105 = vld [vmem:[%s2 + $0x60] sm:$0xff]
    %v106 = vld [vmem:[%s2 + $0x68] sm:$0xff]
    %v107 = vld [vmem:[%s2 + $0x70] sm:$0xff]
    %v108 = vld [vmem:[%s2 + $0x78] sm:$0xff]
    %v109 = vld [vmem:[%s2 + $0x80] sm:$0xff]
    %v110 = vld [vmem:[%s2 + $0x88] sm:$0xff]
    %v111 = vld [vmem:[%s2 + $0x90] sm:$0xff]
    %v112 = vld [vmem:[%s2 + $0x98] sm:$0xff]
    %v113 = vld [vmem:[%s2 + $0xa0] sm:$0xff]
    %v114 = vld [vmem:[%s2 + $0xa8] sm:$0xff]
    %v115 = vld [vmem:[%s2 + $0xb0] sm:$0xff]
    %v116 = vld [vmem:[%s2 + $0xb8] sm:$0xff]
    %v117 = vld [vmem:[%s2 + $0xc0] sm:$0xff]
    %v118 = vld [vmem:[%s2 + $0xc8] sm:$0xff]
    %v119 = vld [vmem:[%s2 + $0xd0] sm:$0xff]
    %v120 = vld [vmem:[%s2 + $0xd8] sm:$0xff]
    %v121 = vld [vmem:[%s2 + $0xe0] sm:$0xff]
    %v122 = vld [vmem:[%s2 + $0xe8] sm:$0xff]
    %v123 = vld [vmem:[%s2 + $0xf0] sm:$0xff]
    %v124 = vld [vmem:[%s2 + $0xf8] sm:$0xff]
    %v125 = vld [vmem:[%s2 + $0x100] sm:$0xff]
    %v126 = vld [vmem:[%s2 + $0x108] sm:$0xff]
    %v127 = vld [vmem:[%s2 + $0x110] sm:$0xff]
    %v128 = vld [vmem:[%s2 + $0x118] sm:$0xff]
    %v129 = vld [vmem:[%s2 + $0x120] sm:$0xff]
    %v130 = vld [vmem:[%s2 + $0x128] sm:$0xff]
    %v131 = vld [vmem:[%s2 + $0x130] sm:$0xff]
    %v132 = vld [vmem:[%s2 + $0x138] sm:$0xff]
    %v133 = vld [vmem:[%s2 + $0x140] sm:$0xff]
    %v134 = vld [vmem:[%s2 + $0x148] sm:$0xff]
    %v135 = vld [vmem:[%s2 + $0x150] sm:$0xff]
    %v136 = vld [vmem:[%s2 + $0x158] sm:$0xff]
    %v137 = vld [vmem:[%s2 + $0x160] sm:$0xff]
    %v138 = vld [vmem:[%s2 + $0x168] sm:$0xff]
    %v139 = vld [vmem:[%s2 + $0x170] sm:$0xff]
    %v140 = vld [vmem:[%s2 + $0x178] sm:$0xff]
    %v141 = vld [vmem:[%s2 + $0x180] sm:$0xff]
    %v142 = vld [vmem:[%s2 + $0x188] sm:$0xff]
    %v143 = vld [vmem:[%s2 + $0x190] sm:$0xff]
    %v144 = vld [vmem:[%s2 + $0x198] sm:$0xff]
    %v145 = vld [vmem:[%s2 + $0x1a0] sm:$0xff]
    %v146 = vld [vmem:[%s2 + $0x1a8] sm:$0xff]
    %v147 = vld [vmem:[%s2 + $0x1b0] sm:$0xff]
    %v148 = vld [vmem:[%s2 + $0x1b8] sm:$0xff]
    %v149 = vld [vmem:[%s2 + $0x1c0] sm:$0xff]
    %v150 = vld [vmem:[%s2 + $0x1c8] sm:$0xff]
    %v151 = vld [vmem:[%s2 + $0x1d0] sm:$0xff]
    %v152 = vld [vmem:[%s2 + $0x1d8] sm:$0xff]
    %v153 = vld [vmem:[%s2 + $0x1e0] sm:$0xff]
    %v154 = vld [vmem:[%s2 + $0x1e8] sm:$0xff]
    %v155 = vld [vmem:[%s2 + $0x1f0] sm:$0xff]
    %v156 = vld [vmem:[%s2 + $0x1f8] sm:$0xff]
    %v157 = vld [vmem:[%s2 + $0x200] sm:$0xff]
    %v158 = vld [vmem:[%s2 + $0x208] sm:$0xff]
    %v159 = vld [vmem:[%s2 + $0x210] sm:$0xff]
    %v160 = vld [vmem:[%s2 + $0x218] sm:$0xff]
    %v161 = vld [vmem:[%s2 + $0x220] sm:$0xff]
    %v162 = vld [vmem:[%s2 + $0x228] sm:$0xff]
    %v163 = vld [vmem:[%s2 + $0x230] sm:$0xff]
    %v164 = vld [vmem:[%s2 + $0x238] sm:$0xff]
    %v165 = vld [vmem:[%s2 + $0x240] sm:$0xff]
    %v166 = vld [vmem:[%s2 + $0x248] sm:$0xff]
    %v167 = vld [vmem:[%s2 + $0x250] sm:$0xff]
    %v168 = vld [vmem:[%s2 + $0x258] sm:$0xff]
    %v169 = vld [vmem:[%s2 + $0x260] sm:$0xff]
    %v170 = vld [vmem:[%s2 + $0x268] sm:$0xff]
    %v171 = vld [vmem:[%s2 + $0x270] sm:$0xff]
    %v172 = vld [vmem:[%s2 + $0x278] sm:$0xff]
    %v173 = vld [vmem:[%s2 + $0x280] sm:$0xff]
    %v174 = vld [vmem:[%s2 + $0x288] sm:$0xff]
    %v175 = vld [vmem:[%s2 + $0x290] sm:$0xff]
    %v176 = vld [vmem:[%s2 + $0x298] sm:$0xff]
    %v177 = vld [vmem:[%s2 + $0x2a0] sm:$0xff]
    %v178 = vld [vmem:[%s2 + $0x2a8] sm:$0xff]
    %v179 = vld [vmem:[%s2 + $0x2b0] sm:$0xff]
    %v180 = vld [vmem:[%s2 + $0x2b8] sm:$0xff]
    %v181 = vld [vmem:[%s2 + $0x2c0] sm:$0xff]
    %v182 = vld [vmem:[%s2 + $0x2c8] sm:$0xff]
    %v183 = vld [vmem:[%s2 + $0x2d0] sm:$0xff]
    %v184 = vld [vmem:[%s2 + $0x2d8] sm:$0xff]
    %v185 = vld [vmem:[%s2 + $0x2e0] sm:$0xff]
    %v186 = vld [vmem:[%s2 + $0x2e8] sm:$0xff]
    %v187 = vld [vmem:[%s2 + $0x2f0] sm:$0xff]
    %v188 = vld [vmem:[%s2 + $0x2f8] sm:$0xff]
    %v189 = vld [vmem:[%s2 + $0x300] sm:$0xff]
    %v190 = vld [vmem:[%s2 + $0x308] sm:$0xff]
    %v191 = vld [vmem:[%s2 + $0x310] sm:$0xff]
    %v192 = vld [vmem:[%s2 + $0x318] sm:$0xff]
    %v193 = vld [vmem:[%s2 + $0x320] sm:$0xff]
    %v194 = vld [vmem:[%s2 + $0x328] sm:$0xff]
    %v195 = vld [vmem:[%s2 + $0x330] sm:$0xff]
    %v196 = vld [vmem:[%s2 + $0x338] sm:$0xff]
    %v197 = vld [vmem:[%s2 + $0x340] sm:$0xff]
    %v198 = vld [vmem:[%s2 + $0x348] sm:$0xff]
    %v199 = vld [vmem:[%s2 + $0x350] sm:$0xff]
    %v200 = vld [vmem:[%s2 + $0x358] sm:$0xff]
    %v201 = vld [vmem:[%s2 + $0x360] sm:$0xff]
    %v202 = vld [vmem:[%s2 + $0x368] sm:$0xff]
    %v203 = vld [vmem:[%s2 + $0x370] sm:$0xff]
    %v204 = vld [vmem:[%s2 + $0x378] sm:$0xff]
    %v205 = vld [vmem:[%s2 + $0x380] sm:$0xff]
    %v206 = vld [vmem:[%s2 + $0x388] sm:$0xff]
    %v207 = vld [vmem:[%s2 + $0x390] sm:$0xff]
    %v208 = vld [vmem:[%s2 + $0x398] sm:$0xff]
    %v209 = vld [vmem:[%s2 + $0x3a0] sm:$0xff]
    %v210 = vld [vmem:[%s2 + $0x3a8] sm:$0xff]
    %v211 = vld [vmem:[%s2 + $0x3b0] sm:$0xff]
    %v212 = vld [vmem:[%s2 + $0x3b8] sm:$0xff]
    %v213 = vld [vmem:[%s2 + $0x3c0] sm:$0xff]
    %v214 = vld [vmem:[%s2 + $0x3c8] sm:$0xff]
    %v215 = vld [vmem:[%s2 + $0x3d0] sm:$0xff]
    %v216 = vld [vmem:[%s2 + $0x3d8] sm:$0xff]
    %v217 = vld [vmem:[%s2 + $0x3e0] sm:$0xff]
    %v218 = vld [vmem:[%s2 + $0x3e8] sm:$0xff]
    %v219 = vld [vmem:[%s2 + $0x3f0] sm:$0xff]
    %v220 = vld [vmem:[%s2 + $0x3f8] sm:$0xff]
    %v221 = vld [vmem:[%s2 + $0x400] sm:$0xff]
    %v222 = vld [vmem:[%s2 + $0x408] sm:$0xff]
    %v223 = vld [vmem:[%s2 + $0x410] sm:$0xff]
    %v224 = vld [vmem:[%s2 + $0x418] sm:$0xff]
    %v225 = vld [vmem:[%s2 + $0x420] sm:$0xff]
    %v226 = vld [vmem:[%s2 + $0x428] sm:$0xff]
    %v227 = vld [vmem:[%s2 + $0x430] sm:$0xff]
    %v228 = vld [vmem:[%s2 + $0x438] sm:$0xff]
    %v229 = vld [vmem:[%s2 + $0x440] sm:$0xff]
    %v230 = vld [vmem:[%s2 + $0x448] sm:$0xff]
    %v231 = vld [vmem:[%s2 + $0x450] sm:$0xff]
    %v232 = vld [vmem:[%s2 + $0x458] sm:$0xff]
    %v233 = vld [vmem:[%s2 + $0x460] sm:$0xff]
    %v234 = vld [vmem:[%s2 + $0x468] sm:$0xff]
    %v235 = vld [vmem:[%s2 + $0x470] sm:$0xff]
    %v236 = vld [vmem:[%s2 + $0x478] sm:$0xff]
    %v237 = vld [vmem:[%s2 + $0x480] sm:$0xff]
    %v238 = vld [vmem:[%s2 + $0x488] sm:$0xff]
    %v239 = vld [vmem:[%s2 + $0x490] sm:$0xff]
    %v240 = vld [vmem:[%s2 + $0x498] sm:$0xff]
    %v241 = vld [vmem:[%s2 + $0x4a0] sm:$0xff]
    %v242 = vld [vmem:[%s2 + $0x4a8] sm:$0xff]
    %v243 = vld [vmem:[%s2 + $0x4b0] sm:$0xff]
    %v244 = vld [vmem:[%s2 + $0x4b8] sm:$0xff]
    %v245 = vld [vmem:[%s2 + $0x4c0] sm:$0xff]
    %v246 = vld [vmem:[%s2 + $0x4c8] sm:$0xff]
    %v247 = vld [vmem:[%s2 + $0x4d0] sm:$0xff]
    %v248 = vld [vmem:[%s2 + $0x4d8] sm:$0xff]
    %v249 = vld [vmem:[%s2 + $0x4e0] sm:$0xff]
    %v250 = vld [vmem:[%s2 + $0x4e8] sm:$0xff]
    %v251 = vld [vmem:[%s2 + $0x4f0] sm:$0xff]
    %v252 = vld [vmem:[%s2 + $0x4f8] sm:$0xff]
    %v253 = vld [vmem:[%s2 + $0x500] sm:$0xff]
    %v254 = vld [vmem:[%s2 + $0x508] sm:$0xff]
    %v255 = vld [vmem:[%s2 + $0x510] sm:$0xff]
    %v256 = vld [vmem:[%s2 + $0x518] sm:$0xff]
    %v257 = vld [vmem:[%s2 + $0x520] sm:$0xff]
    %v258 = vld [vmem:[%s2 + $0x528] sm:$0xff]
    %v259 = vld [vmem:[%s2 + $0x530] sm:$0xff]
    %v260 = vld [vmem:[%s2 + $0x538] sm:$0xff]
    %v261 = vld [vmem:[%s2 + $0x540] sm:$0xff]
    %v262 = vld [vmem:[%s2 + $0x548] sm:$0xff]
    %v263 = vld [vmem:[%s2 + $0x550] sm:$0xff]
    %v264 = vld [vmem:[%s2 + $0x558] sm:$0xff]
    %v265 = vld [vmem:[%s2 + $0x560] sm:$0xff]
    %v266 = vld [vmem:[%s2 + $0x568] sm:$0xff]
    %v267 = vld [vmem:[%s2 + $0x570] sm:$0xff]
    %v268 = vld [vmem:[%s2 + $0x578] sm:$0xff]
    %v269 = vld [vmem:[%s2 + $0x580] sm:$0xff]
    %v270 = vld [vmem:[%s2 + $0x588] sm:$0xff]
    %v271 = vld [vmem:[%s2 + $0x590] sm:$0xff]
    %v272 = vld [vmem:[%s2 + $0x598] sm:$0xff]
    %v273 = vld [vmem:[%s2 + $0x5a0] sm:$0xff]
    %v274 = vld [vmem:[%s2 + $0x5a8] sm:$0xff]
    %v275 = vld [vmem:[%s2 + $0x5b0] sm:$0xff]
    %v276 = vld [vmem:[%s2 + $0x5b8] sm:$0xff]
    %v277 = vld [vmem:[%s2 + $0x5c0] sm:$0xff]
    %v278 = vld [vmem:[%s2 + $0x5c8] sm:$0xff]
    %v279 = vld [vmem:[%s2 + $0x5d0] sm:$0xff]
    %v280 = vld [vmem:[%s2 + $0x5d8] sm:$0xff]
    %v281 = vld [vmem:[%s2 + $0x5e0] sm:$0xff]
    %v282 = vld [vmem:[%s2 + $0x5e8] sm:$0xff]
    %v283 = vld [vmem:[%s2 + $0x5f0] sm:$0xff]
    %v284 = vld [vmem:[%s2 + $0x5f8] sm:$0xff]
    %v285 = vld [vmem:[%s2 + $0x600] sm:$0xff]
    %v286 = vld [vmem:[%s2 + $0x608] sm:$0xff]
    %v287 = vld [vmem:[%s2 + $0x610] sm:$0xff]
    %v288 = vld [vmem:[%s2 + $0x618] sm:$0xff]
    %v289 = vld [vmem:[%s2 + $0x620] sm:$0xff]
    %v290 = vld [vmem:[%s2 + $0x628] sm:$0xff]
    %v291 = vld [vmem:[%s2 + $0x630] sm:$0xff]
    %v292 = vld [vmem:[%s2 + $0x638] sm:$0xff]
    %v293 = vld [vmem:[%s2 + $0x640] sm:$0xff]
    %v294 = vld [vmem:[%s2 + $0x648] sm:$0xff]
    %v295 = vld [vmem:[%s2 + $0x650] sm:$0xff]
    %v296 = vld [vmem:[%s2 + $0x658] sm:$0xff]
    %v297 = vld [vmem:[%s2 + $0x660] sm:$0xff]
    %v298 = vld [vmem:[%s2 + $0x668] sm:$0xff]
    %v299 = vld [vmem:[%s2 + $0x670] sm:$0xff]
    %v300 = vld [vmem:[%s2 + $0x678] sm:$0xff]
    %v301 = vld [vmem:[%s2 + $0x680] sm:$0xff]
    %v302 = vld [vmem:[%s2 + $0x688] sm:$0xff]
    %v303 = vld [vmem:[%s2 + $0x690] sm:$0xff]
    %v304 = vld [vmem:[%s2 + $0x698] sm:$0xff]
    %v305 = vld [vmem:[%s2 + $0x6a0] sm:$0xff]
    %v306 = vld [vmem:[%s2 + $0x6a8] sm:$0xff]
    %v307 = vld [vmem:[%s2 + $0x6b0] sm:$0xff]
    %v308 = vld [vmem:[%s2 + $0x6b8] sm:$0xff]
    %v309 = vld [vmem:[%s2 + $0x6c0] sm:$0xff]
    %v310 = vld [vmem:[%s2 + $0x6c8] sm:$0xff]
    %v311 = vld [vmem:[%s2 + $0x6d0] sm:$0xff]
    %v312 = vld [vmem:[%s2 + $0x6d8] sm:$0xff]
    %v313 = vld [vmem:[%s2 + $0x6e0] sm:$0xff]
    %v314 = vld [vmem:[%s2 + $0x6e8] sm:$0xff]
    %v315 = vld [vmem:[%s2 + $0x6f0] sm:$0xff]
    %v316 = vld [vmem:[%s2 + $0x6f8] sm:$0xff]
    %v317 = vld [vmem:[%s2 + $0x700] sm:$0xff]
    %v318 = vld [vmem:[%s2 + $0x708] sm:$0xff]
    %v319 = vld [vmem:[%s2 + $0x710] sm:$0xff]
    %v320 = vld [vmem:[%s2 + $0x718] sm:$0xff]
    %v321 = vld [vmem:[%s2 + $0x720] sm:$0xff]
    %v322 = vld [vmem:[%s2 + $0x728] sm:$0xff]
    %v323 = vld [vmem:[%s2 + $0x730] sm:$0xff]
    %v324 = vld [vmem:[%s2 + $0x738] sm:$0xff]
    %v325 = vld [vmem:[%s2 + $0x740] sm:$0xff]
    %v326 = vld [vmem:[%s2 + $0x748] sm:$0xff]
    %v327 = vld [vmem:[%s2 + $0x750] sm:$0xff]
    %v328 = vld [vmem:[%s2 + $0x758] sm:$0xff]
    %v329 = vld [vmem:[%s2 + $0x760] sm:$0xff]
    %v330 = vld [vmem:[%s2 + $0x768] sm:$0xff]
    %v331 = vld [vmem:[%s2 + $0x770] sm:$0xff]
    %v332 = vld [vmem:[%s2 + $0x778] sm:$0xff]
    %v333 = vld [vmem:[%s2 + $0x780] sm:$0xff]
    %v334 = vld [vmem:[%s2 + $0x788] sm:$0xff]
    %v335 = vld [vmem:[%s2 + $0x790] sm:$0xff]
    %v336 = vld [vmem:[%s2 + $0x798] sm:$0xff]
    %v337 = vld [vmem:[%s2 + $0x7a0] sm:$0xff]
    %v338 = vld [vmem:[%s2 + $0x7a8] sm:$0xff]
    %v339 = vld [vmem:[%s2 + $0x7b0] sm:$0xff]
    %v340 = vld [vmem:[%s2 + $0x7b8] sm:$0xff]
    %v341 = vld [vmem:[%s2 + $0x7c0] sm:$0xff]
    %v342 = vld [vmem:[%s2 + $0x7c8] sm:$0xff]
    %v343 = vld [vmem:[%s2 + $0x7d0] sm:$0xff]
    %v344 = vld [vmem:[%s2 + $0x7d8] sm:$0xff]
    %v345 = vld [vmem:[%s2 + $0x7e0] sm:$0xff]
    %v346 = vld [vmem:[%s2 + $0x7e8] sm:$0xff]
    %v347 = vld [vmem:[%s2 + $0x7f0] sm:$0xff]
    %v348 = vld [vmem:[%s2 + $0x7f8] sm:$0xff]
    %v349 = vld [vmem:[%s2 + $0x800] sm:$0xff]
    %v350 = vld [vmem:[%s2 + $0x808] sm:$0xff]
    %v351 = vld [vmem:[%s2 + $0x810] sm:$0xff]
    %v352 = vld [vmem:[%s2 + $0x818] sm:$0xff]
    %v353 = vld [vmem:[%s2 + $0x820] sm:$0xff]
    %v354 = vld [vmem:[%s2 + $0x828] sm:$0xff]
    %v355 = vld [vmem:[%s2 + $0x830] sm:$0xff]
    %v356 = vld [vmem:[%s2 + $0x838] sm:$0xff]
    %v357 = vld [vmem:[%s2 + $0x840] sm:$0xff]
    %v358 = vld [vmem:[%s2 + $0x848] sm:$0xff]
    %v359 = vld [vmem:[%s2 + $0x850] sm:$0xff]
    %v360 = vld [vmem:[%s2 + $0x858] sm:$0xff]
    %v361 = vld [vmem:[%s2 + $0x860] sm:$0xff]
    %v362 = vld [vmem:[%s2 + $0x868] sm:$0xff]
    %v363 = vld [vmem:[%s2 + $0x870] sm:$0xff]
    %v364 = vld [vmem:[%s2 + $0x878] sm:$0xff]
    %v365 = vld [vmem:[%s2 + $0x880] sm:$0xff]
    %v366 = vld [vmem:[%s2 + $0x888] sm:$0xff]
    %v367 = vld [vmem:[%s2 + $0x890] sm:$0xff]
    %v368 = vld [vmem:[%s2 + $0x898] sm:$0xff]
    %v369 = vld [vmem:[%s2 + $0x8a0] sm:$0xff]
    %v370 = vld [vmem:[%s2 + $0x8a8] sm:$0xff]
    %v371 = vld [vmem:[%s2 + $0x8b0] sm:$0xff]
    %v372 = vld [vmem:[%s2 + $0x8b8] sm:$0xff]
    %v373 = vld [vmem:[%s2 + $0x8c0] sm:$0xff]
    %v374 = vld [vmem:[%s2 + $0x8c8] sm:$0xff]
    %v375 = vld [vmem:[%s2 + $0x8d0] sm:$0xff]
    %v376 = vld [vmem:[%s2 + $0x8d8] sm:$0xff]
    %v377 = vld [vmem:[%s2 + $0x8e0] sm:$0xff]
    %v378 = vld [vmem:[%s2 + $0x8e8] sm:$0xff]
    %v379 = vld [vmem:[%s2 + $0x8f0] sm:$0xff]
    %v380 = vld [vmem:[%s2 + $0x8f8] sm:$0xff]
    %v381 = vld [vmem:[%s2 + $0x900] sm:$0xff]
    %v382 = vld [vmem:[%s2 + $0x908] sm:$0xff]
    %v383 = vld [vmem:[%s2 + $0x910] sm:$0xff]
    %v384 = vld [vmem:[%s2 + $0x918] sm:$0xff]
    %v385 = vld [vmem:[%s2 + $0x920] sm:$0xff]
    %v386 = vld [vmem:[%s2 + $0x928] sm:$0xff]
    %v387 = vld [vmem:[%s2 + $0x930] sm:$0xff]
    %v388 = vld [vmem:[%s2 + $0x938] sm:$0xff]
    %v389 = vld [vmem:[%s2 + $0x940] sm:$0xff]
    %v390 = vld [vmem:[%s2 + $0x948] sm:$0xff]
    %v391 = vld [vmem:[%s2 + $0x950] sm:$0xff]
    %v392 = vld [vmem:[%s2 + $0x958] sm:$0xff]
    %v393 = vld [vmem:[%s2 + $0x960] sm:$0xff]
    %v394 = vld [vmem:[%s2 + $0x968] sm:$0xff]
    %v395 = vld [vmem:[%s2 + $0x970] sm:$0xff]
    %v396 = vld [vmem:[%s2 + $0x978] sm:$0xff]
    %v397 = vld [vmem:[%s2 + $0x980] sm:$0xff]
    %v398 = vld [vmem:[%s2 + $0x988] sm:$0xff]
    %v399 = vld [vmem:[%s2 + $0x990] sm:$0xff]
    %v400 = vld [vmem:[%s2 + $0x998] sm:$0xff]
    %v401 = vld [vmem:[%s2 + $0x9a0] sm:$0xff]
    %v402 = vld [vmem:[%s2 + $0x9a8] sm:$0xff]
    %v403 = vld [vmem:[%s2 + $0x9b0] sm:$0xff]
    %v404 = vld [vmem:[%s2 + $0x9b8] sm:$0xff]
    %v405 = vld [vmem:[%s2 + $0x9c0] sm:$0xff]
    %v406 = vld [vmem:[%s2 + $0x9c8] sm:$0xff]
    %v407 = vld [vmem:[%s2 + $0x9d0] sm:$0xff]
    %v408 = vld [vmem:[%s2 + $0x9d8] sm:$0xff]
    %v409 = vld [vmem:[%s2 + $0x9e0] sm:$0xff]
    %v410 = vld [vmem:[%s2 + $0x9e8] sm:$0xff]
    %v411 = vld [vmem:[%s2 + $0x9f0] sm:$0xff]
    %v412 = vld [vmem:[%s2 + $0x9f8] sm:$0xff]
    %v413 = vld [vmem:[%s2 + $0xa00] sm:$0xff]
    %v414 = vld [vmem:[%s2 + $0xa08] sm:$0xff]
    %v415 = vld [vmem:[%s2 + $0xa10] sm:$0xff]
    %v416 = vld [vmem:[%s2 + $0xa18] sm:$0xff]
    %v417 = vld [vmem:[%s2 + $0xa20] sm:$0xff]
    %v418 = vld [vmem:[%s2 + $0xa28] sm:$0xff]
    %v419 = vld [vmem:[%s2 + $0xa30] sm:$0xff]
    %v420 = vld [vmem:[%s2 + $0xa38] sm:$0xff]
    %v421 = vld [vmem:[%s2 + $0xa40] sm:$0xff]
    %v422 = vld [vmem:[%s2 + $0xa48] sm:$0xff]
    %v423 = vld [vmem:[%s2 + $0xa50] sm:$0xff]
    %v424 = vld [vmem:[%s2 + $0xa58] sm:$0xff]
    %v425 = vld [vmem:[%s2 + $0xa60] sm:$0xff]
    %v426 = vld [vmem:[%s2 + $0xa68] sm:$0xff]
    %v427 = vld [vmem:[%s2 + $0xa70] sm:$0xff]
    %v428 = vld [vmem:[%s2 + $0xa78] sm:$0xff]
    %v429 = vld [vmem:[%s2 + $0xa80] sm:$0xff]
    %v430 = vld [vmem:[%s2 + $0xa88] sm:$0xff]
    %v431 = vld [vmem:[%s2 + $0xa90] sm:$0xff]
    %v432 = vld [vmem:[%s2 + $0xa98] sm:$0xff]
    %v433 = vld [vmem:[%s2 + $0xaa0] sm:$0xff]
    %v434 = vld [vmem:[%s2 + $0xaa8] sm:$0xff]
    %v435 = vld [vmem:[%s2 + $0xab0] sm:$0xff]
    %v436 = vld [vmem:[%s2 + $0xab8] sm:$0xff]
    %v437 = vld [vmem:[%s2 + $0xac0] sm:$0xff]
    %v438 = vld [vmem:[%s2 + $0xac8] sm:$0xff]
    %v439 = vld [vmem:[%s2 + $0xad0] sm:$0xff]
    %v440 = vld [vmem:[%s2 + $0xad8] sm:$0xff]
    %v441 = vld [vmem:[%s2 + $0xae0] sm:$0xff]
    %v442 = vld [vmem:[%s2 + $0xae8] sm:$0xff]
    %v443 = vld [vmem:[%s2 + $0xaf0] sm:$0xff]
    %v444 = vld [vmem:[%s2 + $0xaf8] sm:$0xff]
    %v445 = vld [vmem:[%s2 + $0xb00] sm:$0xff]
    %v446 = vld [vmem:[%s2 + $0xb08] sm:$0xff]
    %v447 = vld [vmem:[%s2 + $0xb10] sm:$0xff]
    %v448 = vld [vmem:[%s2 + $0xb18] sm:$0xff]
    %v449 = vld [vmem:[%s2 + $0xb20] sm:$0xff]
    %v450 = vld [vmem:[%s2 + $0xb28] sm:$0xff]
    %v451 = vld [vmem:[%s2 + $0xb30] sm:$0xff]
    %v452 = vld [vmem:[%s2 + $0xb38] sm:$0xff]
    %v453 = vld [vmem:[%s2 + $0xb40] sm:$0xff]
    %v454 = vld [vmem:[%s2 + $0xb48] sm:$0xff]
    %v455 = vld [vmem:[%s2 + $0xb50] sm:$0xff]
    %v456 = vld [vmem:[%s2 + $0xb58] sm:$0xff]
    %v457 = vld [vmem:[%s2 + $0xb60] sm:$0xff]
    %v458 = vld [vmem:[%s2 + $0xb68] sm:$0xff]
    %v459 = vld [vmem:[%s2 + $0xb70] sm:$0xff]
    %v460 = vld [vmem:[%s2 + $0xb78] sm:$0xff]
    %v461 = vld [vmem:[%s2 + $0xb80] sm:$0xff]
    %v462 = vld [vmem:[%s2 + $0xb88] sm:$0xff]
    %v463 = vld [vmem:[%s2 + $0xb90] sm:$0xff]
    %v464 = vld [vmem:[%s2 + $0xb98] sm:$0xff]
    %v465 = vld [vmem:[%s2 + $0xba0] sm:$0xff]
    %v466 = vld [vmem:[%s2 + $0xba8] sm:$0xff]
    %v467 = vld [vmem:[%s2 + $0xbb0] sm:$0xff]
    %v468 = vld [vmem:[%s2 + $0xbb8] sm:$0xff]
    %v469 = vld [vmem:[%s2 + $0xbc0] sm:$0xff]
    %v470 = vld [vmem:[%s2 + $0xbc8] sm:$0xff]
    %v471 = vld [vmem:[%s2 + $0xbd0] sm:$0xff]
    %v472 = vld [vmem:[%s2 + $0xbd8] sm:$0xff]
    %v473 = vld [vmem:[%s2 + $0xbe0] sm:$0xff]
    %v474 = vld [vmem:[%s2 + $0xbe8] sm:$0xff]
    %v475 = vld [vmem:[%s2 + $0xbf0] sm:$0xff]
    %v476 = vld [vmem:[%s2 + $0xbf8] sm:$0xff]
    %v477 = vld [vmem:[%s2 + $0xc00] sm:$0xff]
    %v478 = vld [vmem:[%s2 + $0xc08] sm:$0xff]
    %v479 = vld [vmem:[%s2 + $0xc10] sm:$0xff]
    %v480 = vld [vmem:[%s2 + $0xc18] sm:$0xff]
    %v481 = vld [vmem:[%s2 + $0xc20] sm:$0xff]
    %v482 = vld [vmem:[%s2 + $0xc28] sm:$0xff]
    %v483 = vld [vmem:[%s2 + $0xc30] sm:$0xff]
    %v484 = vld [vmem:[%s2 + $0xc38] sm:$0xff]
    %v485 = vld [vmem:[%s2 + $0xc40] sm:$0xff]
    %v486 = vld [vmem:[%s2 + $0xc48] sm:$0xff]
    %v487 = vld [vmem:[%s2 + $0xc50] sm:$0xff]
    %v488 = vld [vmem:[%s2 + $0xc58] sm:$0xff]
    %v489 = vld [vmem:[%s2 + $0xc60] sm:$0xff]
    %v490 = vld [vmem:[%s2 + $0xc68] sm:$0xff]
    %v491 = vld [vmem:[%s2 + $0xc70] sm:$0xff]
    %v492 = vld [vmem:[%s2 + $0xc78] sm:$0xff]
    %v493 = vld [vmem:[%s2 + $0xc80] sm:$0xff]
    %v494 = vld [vmem:[%s2 + $0xc88] sm:$0xff]
    %v495 = vld [vmem:[%s2 + $0xc90] sm:$0xff]
    %v496 = vld [vmem:[%s2 + $0xc98] sm:$0xff]
    %v497 = vld [vmem:[%s2 + $0xca0] sm:$0xff]
    %v498 = vld [vmem:[%s2 + $0xca8] sm:$0xff]
    %v499 = vld [vmem:[%s2 + $0xcb0] sm:$0xff]
    %v500 = vld [vmem:[%s2 + $0xcb8] sm:$0xff]
    %v501 = vld [vmem:[%s2 + $0xcc0] sm:$0xff]
    %v502 = vld [vmem:[%s2 + $0xcc8] sm:$0xff]
    %v503 = vld [vmem:[%s2 + $0xcd0] sm:$0xff]
    %v504 = vld [vmem:[%s2 + $0xcd8] sm:$0xff]
    %v505 = vld [vmem:[%s2 + $0xce0] sm:$0xff]
    %v506 = vld [vmem:[%s2 + $0xce8] sm:$0xff]
    %v507 = vld [vmem:[%s2 + $0xcf0] sm:$0xff]
    %v508 = vld [vmem:[%s2 + $0xcf8] sm:$0xff]
    %v509 = vld [vmem:[%s2 + $0xd00] sm:$0xff]
    %v510 = vld [vmem:[%s2 + $0xd08] sm:$0xff]
    %v511 = vld [vmem:[%s2 + $0xd10] sm:$0xff]
    %v512 = vld [vmem:[%s2 + $0xd18] sm:$0xff]
    %v513 = vld [vmem:[%s2 + $0xd20] sm:$0xff]
    %v514 = vld [vmem:[%s2 + $0xd28] sm:$0xff]
    %v515 = vld [vmem:[%s2 + $0xd30] sm:$0xff]
    %v516 = vld [vmem:[%s2 + $0xd38] sm:$0xff]
    %v517 = vld [vmem:[%s2 + $0xd40] sm:$0xff]
    %v518 = vld [vmem:[%s2 + $0xd48] sm:$0xff]
    %v519 = vld [vmem:[%s2 + $0xd50] sm:$0xff]
    %v520 = vld [vmem:[%s2 + $0xd58] sm:$0xff]
    %v521 = vld [vmem:[%s2 + $0xd60] sm:$0xff]
    %v522 = vld [vmem:[%s2 + $0xd68] sm:$0xff]
    %v523 = vld [vmem:[%s2 + $0xd70] sm:$0xff]
    %v524 = vld [vmem:[%s2 + $0xd78] sm:$0xff]
    %v525 = vld [vmem:[%s2 + $0xd80] sm:$0xff]
    %v526 = vld [vmem:[%s2 + $0xd88] sm:$0xff]
    %v527 = vld [vmem:[%s2 + $0xd90] sm:$0xff]
    %v528 = vld [vmem:[%s2 + $0xd98] sm:$0xff]
    %v529 = vld [vmem:[%s2 + $0xda0] sm:$0xff]
    %v530 = vld [vmem:[%s2 + $0xda8] sm:$0xff]
    %v531 = vld [vmem:[%s2 + $0xdb0] sm:$0xff]
    %v532 = vld [vmem:[%s2 + $0xdb8] sm:$0xff]
    %v533 = vld [vmem:[%s2 + $0xdc0] sm:$0xff]
    %v534 = vld [vmem:[%s2 + $0xdc8] sm:$0xff]
    %v535 = vld [vmem:[%s2 + $0xdd0] sm:$0xff]
    %v536 = vld [vmem:[%s2 + $0xdd8] sm:$0xff]
    %v537 = vld [vmem:[%s2 + $0xde0] sm:$0xff]
    %v538 = vld [vmem:[%s2 + $0xde8] sm:$0xff]
    %v539 = vld [vmem:[%s2 + $0xdf0] sm:$0xff]
    %v540 = vld [vmem:[%s2 + $0xdf8] sm:$0xff]
    %v541 = vld [vmem:[%s2 + $0xe00] sm:$0xff]
    %v542 = vld [vmem:[%s2 + $0xe08] sm:$0xff]
    %v543 = vld [vmem:[%s2 + $0xe10] sm:$0xff]
    %v544 = vld [vmem:[%s2 + $0xe18] sm:$0xff]
    %v545 = vld [vmem:[%s2 + $0xe20] sm:$0xff]
    %v546 = vld [vmem:[%s2 + $0xe28] sm:$0xff]
    %v547 = vld [vmem:[%s2 + $0xe30] sm:$0xff]
    %v548 = vld [vmem:[%s2 + $0xe38] sm:$0xff]
    %v549 = vld [vmem:[%s2 + $0xe40] sm:$0xff]
    %v550 = vld [vmem:[%s2 + $0xe48] sm:$0xff]
    %v551 = vld [vmem:[%s2 + $0xe50] sm:$0xff]
    %v552 = vld [vmem:[%s2 + $0xe58] sm:$0xff]
    %v553 = vld [vmem:[%s2 + $0xe60] sm:$0xff]
    %v554 = vld [vmem:[%s2 + $0xe68] sm:$0xff]
    %v555 = vld [vmem:[%s2 + $0xe70] sm:$0xff]
    %v556 = vld [vmem:[%s2 + $0xe78] sm:$0xff]
    %v557 = vld [vmem:[%s2 + $0xe80] sm:$0xff]
    %v558 = vld [vmem:[%s2 + $0xe88] sm:$0xff]
    %v559 = vld [vmem:[%s2 + $0xe90] sm:$0xff]
    %v560 = vld [vmem:[%s2 + $0xe98] sm:$0xff]
    %v561 = vld [vmem:[%s2 + $0xea0] sm:$0xff]
    %v562 = vld [vmem:[%s2 + $0xea8] sm:$0xff]
    %v563 = vld [vmem:[%s2 + $0xeb0] sm:$0xff]
    %v564 = vld [vmem:[%s2 + $0xeb8] sm:$0xff]
    %v565 = vld [vmem:[%s2 + $0xec0] sm:$0xff]
    %v566 = vld [vmem:[%s2 + $0xec8] sm:$0xff]
    %v567 = vld [vmem:[%s2 + $0xed0] sm:$0xff]
    %v568 = vld [vmem:[%s2 + $0xed8] sm:$0xff]
    %v569 = vld [vmem:[%s2 + $0xee0] sm:$0xff]
    %v570 = vld [vmem:[%s2 + $0xee8] sm:$0xff]
    %v571 = vld [vmem:[%s2 + $0xef0] sm:$0xff]
    %v572 = vld [vmem:[%s2 + $0xef8] sm:$0xff]
    %v573 = vld [vmem:[%s2 + $0xf00] sm:$0xff]
    %v574 = vld [vmem:[%s2 + $0xf08] sm:$0xff]
    %v575 = vld [vmem:[%s2 + $0xf10] sm:$0xff]
    %v576 = vld [vmem:[%s2 + $0xf18] sm:$0xff]
    %v577 = vld [vmem:[%s2 + $0xf20] sm:$0xff]
    %v578 = vld [vmem:[%s2 + $0xf28] sm:$0xff]
    %v579 = vld [vmem:[%s2 + $0xf30] sm:$0xff]
    %v580 = vld [vmem:[%s2 + $0xf38] sm:$0xff]
    %v581 = vld [vmem:[%s2 + $0xf40] sm:$0xff]
    %v582 = vld [vmem:[%s2 + $0xf48] sm:$0xff]
    %v583 = vld [vmem:[%s2 + $0xf50] sm:$0xff]
    %v584 = vld [vmem:[%s2 + $0xf58] sm:$0xff]
    %v585 = vld [vmem:[%s2 + $0xf60] sm:$0xff]
    %v586 = vld [vmem:[%s2 + $0xf68] sm:$0xff]
    %v587 = vld [vmem:[%s2 + $0xf70] sm:$0xff]
    %v588 = vld [vmem:[%s2 + $0xf78] sm:$0xff]
    %v589 = vld [vmem:[%s2 + $0xf80] sm:$0xff]
    %v590 = vld [vmem:[%s2 + $0xf88] sm:$0xff]
    %v591 = vld [vmem:[%s2 + $0xf90] sm:$0xff]
    %v592 = vld [vmem:[%s2 + $0xf98] sm:$0xff]
    %v593 = vld [vmem:[%s2 + $0xfa0] sm:$0xff]
    %v594 = vld [vmem:[%s2 + $0xfa8] sm:$0xff]
    %v595 = vld [vmem:[%s2 + $0xfb0] sm:$0xff]
    %v596 = vld [vmem:[%s2 + $0xfb8] sm:$0xff]
    %v597 = vld [vmem:[%s2 + $0xfc0] sm:$0xff]
    %v598 = vld [vmem:[%s2 + $0xfc8] sm:$0xff]
    %v599 = vld [vmem:[%s2 + $0xfd0] sm:$0xff]
    %v600 = vld [vmem:[%s2 + $0xfd8] sm:$0xff]
    %v601 = vld [vmem:[%s2 + $0xfe0] sm:$0xff]
    %v602 = vld [vmem:[%s2 + $0xfe8] sm:$0xff]
    %v603 = vld [vmem:[%s2 + $0xff0] sm:$0xff]
    %v604 = vld [vmem:[%s2 + $0xff8] sm:$0xff]
    %v605 = vld [vmem:[%s2 + $0x1000] sm:$0xff]
    %v606 = vld [vmem:[%s2 + $0x1008] sm:$0xff]
    %v607 = vld [vmem:[%s2 + $0x1010] sm:$0xff]
    %v608 = vld [vmem:[%s2 + $0x1018] sm:$0xff]
    %v609 = vld [vmem:[%s2 + $0x1020] sm:$0xff]
    %v610 = vld [vmem:[%s2 + $0x1028] sm:$0xff]
    %v611 = vld [vmem:[%s2 + $0x1030] sm:$0xff]
    %v612 = vld [vmem:[%s2 + $0x1038] sm:$0xff]
    %v613 = vld [vmem:[%s2 + $0x1040] sm:$0xff]
    %v614 = vld [vmem:[%s2 + $0x1048] sm:$0xff]
    %v615 = vld [vmem:[%s2 + $0x1050] sm:$0xff]
    %v616 = vld [vmem:[%s2 + $0x1058] sm:$0xff]
    %v617 = vld [vmem:[%s2 + $0x1060] sm:$0xff]
    %v618 = vld [vmem:[%s2 + $0x1068] sm:$0xff]
    %v619 = vld [vmem:[%s2 + $0x1070] sm:$0xff]
    %v620 = vld [vmem:[%s2 + $0x1078] sm:$0xff]
    %v621 = vld [vmem:[%s2 + $0x1080] sm:$0xff]
    %v622 = vld [vmem:[%s2 + $0x1088] sm:$0xff]
    %v623 = vld [vmem:[%s2 + $0x1090] sm:$0xff]
    %v624 = vld [vmem:[%s2 + $0x1098] sm:$0xff]
    %v625 = vld [vmem:[%s2 + $0x10a0] sm:$0xff]
    %v626 = vld [vmem:[%s2 + $0x10a8] sm:$0xff]
    %v627 = vld [vmem:[%s2 + $0x10b0] sm:$0xff]
    %v628 = vld [vmem:[%s2 + $0x10b8] sm:$0xff]
    %v629 = vld [vmem:[%s2 + $0x10c0] sm:$0xff]
    %v630 = vld [vmem:[%s2 + $0x10c8] sm:$0xff]
    %v631 = vld [vmem:[%s2 + $0x10d0] sm:$0xff]
    %v632 = vld [vmem:[%s2 + $0x10d8] sm:$0xff]
    %v633 = vld [vmem:[%s2 + $0x10e0] sm:$0xff]
    %v634 = vld [vmem:[%s2 + $0x10e8] sm:$0xff]
    %v635 = vld [vmem:[%s2 + $0x10f0] sm:$0xff]
    %v636 = vld [vmem:[%s2 + $0x10f8] sm:$0xff]
    %v637 = vld [vmem:[%s2 + $0x1100] sm:$0xff]
    %v638 = vld [vmem:[%s2 + $0x1108] sm:$0xff]
    %v639 = vld [vmem:[%s2 + $0x1110] sm:$0xff]
    %v640 = vld [vmem:[%s2 + $0x1118] sm:$0xff]
    %v641 = vld [vmem:[%s2 + $0x1120] sm:$0xff]
    %v642 = vld [vmem:[%s2 + $0x1128] sm:$0xff]
    %v643 = vld [vmem:[%s2 + $0x1130] sm:$0xff]
    %v644 = vld [vmem:[%s2 + $0x1138] sm:$0xff]
    %v645 = vld [vmem:[%s2 + $0x1140] sm:$0xff]
    %v646 = vld [vmem:[%s2 + $0x1148] sm:$0xff]
    %v647 = vld [vmem:[%s2 + $0x1150] sm:$0xff]
    %v648 = vld [vmem:[%s2 + $0x1158] sm:$0xff]
    %v649 = vld [vmem:[%s2 + $0x1160] sm:$0xff]
    %v650 = vld [vmem:[%s2 + $0x1168] sm:$0xff]
    %v651 = vld [vmem:[%s2 + $0x1170] sm:$0xff]
    %v652 = vld [vmem:[%s2 + $0x1178] sm:$0xff]
    %v653 = vld [vmem:[%s2 + $0x1180] sm:$0xff]
    %v654 = vld [vmem:[%s2 + $0x1188] sm:$0xff]
    %v655 = vld [vmem:[%s2 + $0x1190] sm:$0xff]
    %v656 = vld [vmem:[%s2 + $0x1198] sm:$0xff]
    %v657 = vld [vmem:[%s2 + $0x11a0] sm:$0xff]
    %v658 = vld [vmem:[%s2 + $0x11a8] sm:$0xff]
    %v659 = vld [vmem:[%s2 + $0x11b0] sm:$0xff]
    %v660 = vld [vmem:[%s2 + $0x11b8] sm:$0xff]
    %v661 = vld [vmem:[%s2 + $0x11c0] sm:$0xff]
    %v662 = vld [vmem:[%s2 + $0x11c8] sm:$0xff]
    %v663 = vld [vmem:[%s2 + $0x11d0] sm:$0xff]
    %v664 = vld [vmem:[%s2 + $0x11d8] sm:$0xff]
    %v665 = vld [vmem:[%s2 + $0x11e0] sm:$0xff]
    %v666 = vld [vmem:[%s2 + $0x11e8] sm:$0xff]
    %v667 = vld [vmem:[%s2 + $0x11f0] sm:$0xff]
    %v668 = vld [vmem:[%s2 + $0x11f8] sm:$0xff]
    %v669 = vld [vmem:[%s2 + $0x1200] sm:$0xff]
    %v670 = vld [vmem:[%s2 + $0x1208] sm:$0xff]
    %v671 = vld [vmem:[%s2 + $0x1210] sm:$0xff]
    %v672 = vld [vmem:[%s2 + $0x1218] sm:$0xff]
    %v673 = vld [vmem:[%s2 + $0x1220] sm:$0xff]
    %v674 = vld [vmem:[%s2 + $0x1228] sm:$0xff]
    %v675 = vld [vmem:[%s2 + $0x1230] sm:$0xff]
    %v676 = vld [vmem:[%s2 + $0x1238] sm:$0xff]
    %v677 = vld [vmem:[%s2 + $0x1240] sm:$0xff]
    %v678 = vld [vmem:[%s2 + $0x1248] sm:$0xff]
    %v679 = vld [vmem:[%s2 + $0x1250] sm:$0xff]
    %v680 = vld [vmem:[%s2 + $0x1258] sm:$0xff]
    %v681 = vld [vmem:[%s2 + $0x1260] sm:$0xff]
    %v682 = vld [vmem:[%s2 + $0x1268] sm:$0xff]
    %v683 = vld [vmem:[%s2 + $0x1270] sm:$0xff]
    %v684 = vld [vmem:[%s2 + $0x1278] sm:$0xff]
    %v685 = vld [vmem:[%s2 + $0x1280] sm:$0xff]
    %v686 = vld [vmem:[%s2 + $0x1288] sm:$0xff]
    %v687 = vld [vmem:[%s2 + $0x1290] sm:$0xff]
    %v688 = vld [vmem:[%s2 + $0x1298] sm:$0xff]
    %v689 = vld [vmem:[%s2 + $0x12a0] sm:$0xff]
    %v690 = vld [vmem:[%s2 + $0x12a8] sm:$0xff]
    %v691 = vld [vmem:[%s2 + $0x12b0] sm:$0xff]
    %v692 = vld [vmem:[%s2 + $0x12b8] sm:$0xff]
    %v693 = vld [vmem:[%s2 + $0x12c0] sm:$0xff]
    %v694 = vld [vmem:[%s2 + $0x12c8] sm:$0xff]
    %v695 = vld [vmem:[%s2 + $0x12d0] sm:$0xff]
    %v696 = vld [vmem:[%s2 + $0x12d8] sm:$0xff]
    %v697 = vld [vmem:[%s2 + $0x12e0] sm:$0xff]
    %v698 = vld [vmem:[%s2 + $0x12e8] sm:$0xff]
    %v699 = vld [vmem:[%s2 + $0x12f0] sm:$0xff]
    %v700 = vld [vmem:[%s2 + $0x12f8] sm:$0xff]
    %v701 = vld [vmem:[%s2 + $0x1300] sm:$0xff]
    %v702 = vld [vmem:[%s2 + $0x1308] sm:$0xff]
    %v703 = vld [vmem:[%s2 + $0x1310] sm:$0xff]
    %v704 = vld [vmem:[%s2 + $0x1318] sm:$0xff]
    %v705 = vld [vmem:[%s2 + $0x1320] sm:$0xff]
    %v706 = vld [vmem:[%s2 + $0x1328] sm:$0xff]
    %v707 = vld [vmem:[%s2 + $0x1330] sm:$0xff]
    %v708 = vld [vmem:[%s2 + $0x1338] sm:$0xff]
    %v709 = vld [vmem:[%s2 + $0x1340] sm:$0xff]
    %v710 = vld [vmem:[%s2 + $0x1348] sm:$0xff]
    %v711 = vld [vmem:[%s2 + $0x1350] sm:$0xff]
    %v712 = vld [vmem:[%s2 + $0x1358] sm:$0xff]
    %v713 = vld [vmem:[%s2 + $0x1360] sm:$0xff]
    %v714 = vld [vmem:[%s2 + $0x1368] sm:$0xff]
    %v715 = vld [vmem:[%s2 + $0x1370] sm:$0xff]
    %v716 = vld [vmem:[%s2 + $0x1378] sm:$0xff]
    %v717 = vld [vmem:[%s2 + $0x1380] sm:$0xff]
    %v718 = vld [vmem:[%s2 + $0x1388] sm:$0xff]
    %v719 = vld [vmem:[%s2 + $0x1390] sm:$0xff]
    %v720 = vld [vmem:[%s2 + $0x1398] sm:$0xff]
    %v721 = vld [vmem:[%s2 + $0x13a0] sm:$0xff]
    %v722 = vld [vmem:[%s2 + $0x13a8] sm:$0xff]
    %v723 = vld [vmem:[%s2 + $0x13b0] sm:$0xff]
    %v724 = vld [vmem:[%s2 + $0x13b8] sm:$0xff]
    %v725 = vld [vmem:[%s2 + $0x13c0] sm:$0xff]
    %v726 = vld [vmem:[%s2 + $0x13c8] sm:$0xff]
    %v727 = vld [vmem:[%s2 + $0x13d0] sm:$0xff]
    %v728 = vld [vmem:[%s2 + $0x13d8] sm:$0xff]
    %v729 = vld [vmem:[%s2 + $0x13e0] sm:$0xff]
    %v730 = vld [vmem:[%s2 + $0x13e8] sm:$0xff]
    %v731 = vld [vmem:[%s2 + $0x13f0] sm:$0xff]
    %v732 = vld [vmem:[%s2 + $0x13f8] sm:$0xff]
    %v733 = vld [vmem:[%s2 + $0x1400] sm:$0xff]
    %v734 = vld [vmem:[%s2 + $0x1408] sm:$0xff]
    %v735 = vld [vmem:[%s2 + $0x1410] sm:$0xff]
    %v736 = vld [vmem:[%s2 + $0x1418] sm:$0xff]
    %v737 = vld [vmem:[%s2 + $0x1420] sm:$0xff]
    %v738 = vld [vmem:[%s2 + $0x1428] sm:$0xff]
    %v739 = vld [vmem:[%s2 + $0x1430] sm:$0xff]
    %v740 = vld [vmem:[%s2 + $0x1438] sm:$0xff]
    %v741 = vld [vmem:[%s2 + $0x1440] sm:$0xff]
    %v742 = vld [vmem:[%s2 + $0x1448] sm:$0xff]
    %v743 = vld [vmem:[%s2 + $0x1450] sm:$0xff]
    %v744 = vld [vmem:[%s2 + $0x1458] sm:$0xff]
    %v745 = vld [vmem:[%s2 + $0x1460] sm:$0xff]
    %v746 = vld [vmem:[%s2 + $0x1468] sm:$0xff]
    %v747 = vld [vmem:[%s2 + $0x1470] sm:$0xff]
    %v748 = vld [vmem:[%s2 + $0x1478] sm:$0xff]
    %v749 = vld [vmem:[%s2 + $0x1480] sm:$0xff]
    %v750 = vld [vmem:[%s2 + $0x1488] sm:$0xff]
    %v751 = vld [vmem:[%s2 + $0x1490] sm:$0xff]
    %v752 = vld [vmem:[%s2 + $0x1498] sm:$0xff]
    %v753 = vld [vmem:[%s2 + $0x14a0] sm:$0xff]
    %v754 = vld [vmem:[%s2 + $0x14a8] sm:$0xff]
    %v755 = vld [vmem:[%s2 + $0x14b0] sm:$0xff]
    %v756 = vld [vmem:[%s2 + $0x14b8] sm:$0xff]
    %v757 = vld [vmem:[%s2 + $0x14c0] sm:$0xff]
    %v758 = vld [vmem:[%s2 + $0x14c8] sm:$0xff]
    %v759 = vld [vmem:[%s2 + $0x14d0] sm:$0xff]
    %v760 = vld [vmem:[%s2 + $0x14d8] sm:$0xff]
    %v761 = vld [vmem:[%s2 + $0x14e0] sm:$0xff]
    %v762 = vld [vmem:[%s2 + $0x14e8] sm:$0xff]
    %v763 = vld [vmem:[%s2 + $0x14f0] sm:$0xff]
    %v764 = vld [vmem:[%s2 + $0x14f8] sm:$0xff]
    %v765 = vld [vmem:[%s2 + $0x1500] sm:$0xff]
    %v766 = vld [vmem:[%s2 + $0x1508] sm:$0xff]
    %v767 = vld [vmem:[%s2 + $0x1510] sm:$0xff]
    %v768 = vld [vmem:[%s2 + $0x1518] sm:$0xff]
    %v769 = vld [vmem:[%s2 + $0x1520] sm:$0xff]
    %v770 = vld [vmem:[%s2 + $0x1528] sm:$0xff]
    %v771 = vld [vmem:[%s2 + $0x1530] sm:$0xff]
    %v772 = vld [vmem:[%s2 + $0x1538] sm:$0xff]
    %v773 = vld [vmem:[%s2 + $0x1540] sm:$0xff]
    %v774 = vld [vmem:[%s2 + $0x1548] sm:$0xff]
    %v775 = vld [vmem:[%s2 + $0x1550] sm:$0xff]
    %v776 = vld [vmem:[%s2 + $0x1558] sm:$0xff]
    %v777 = vld [vmem:[%s2 + $0x1560] sm:$0xff]
    %v778 = vld [vmem:[%s2 + $0x1568] sm:$0xff]
    %v779 = vld [vmem:[%s2 + $0x1570] sm:$0xff]
    %v780 = vld [vmem:[%s2 + $0x1578] sm:$0xff]
    %v781 = vld [vmem:[%s2 + $0x1580] sm:$0xff]
    %v782 = vld [vmem:[%s2 + $0x1588] sm:$0xff]
    %v783 = vld [vmem:[%s2 + $0x1590] sm:$0xff]
    %v784 = vld [vmem:[%s2 + $0x1598] sm:$0xff]
    %v785 = vld [vmem:[%s2 + $0x15a0] sm:$0xff]
    %v786 = vld [vmem:[%s2 + $0x15a8] sm:$0xff]
    %v787 = vld [vmem:[%s2 + $0x15b0] sm:$0xff]
    %v788 = vld [vmem:[%s2 + $0x15b8] sm:$0xff]
    %v789 = vld [vmem:[%s2 + $0x15c0] sm:$0xff]
    %v790 = vld [vmem:[%s2 + $0x15c8] sm:$0xff]
    %v791 = vld [vmem:[%s2 + $0x15d0] sm:$0xff]
    %v792 = vld [vmem:[%s2 + $0x15d8] sm:$0xff]
    %v793 = vld [vmem:[%s2 + $0x15e0] sm:$0xff]
    %v794 = vld [vmem:[%s2 + $0x15e8] sm:$0xff]
    %v795 = vld [vmem:[%s2 + $0x15f0] sm:$0xff]
    %v796 = vld [vmem:[%s2 + $0x15f8] sm:$0xff]
    %v797 = vld [vmem:[%s2 + $0x1600] sm:$0xff]
    %v798 = vld [vmem:[%s2 + $0x1608] sm:$0xff]
    %v799 = vld [vmem:[%s2 + $0x1610] sm:$0xff]
    %v800 = vld [vmem:[%s2 + $0x1618] sm:$0xff]
    %v801 = vld [vmem:[%s2 + $0x1620] sm:$0xff]
    %v802 = vld [vmem:[%s2 + $0x1628] sm:$0xff]
    %v803 = vld [vmem:[%s2 + $0x1630] sm:$0xff]
    %v804 = vld [vmem:[%s2 + $0x1638] sm:$0xff]
    %v805 = vld [vmem:[%s2 + $0x1640] sm:$0xff]
    %v806 = vld [vmem:[%s2 + $0x1648] sm:$0xff]
    %v807 = vld [vmem:[%s2 + $0x1650] sm:$0xff]
    %v808 = vld [vmem:[%s2 + $0x1658] sm:$0xff]
    %v809 = vld [vmem:[%s2 + $0x1660] sm:$0xff]
    %v810 = vld [vmem:[%s2 + $0x1668] sm:$0xff]
    %v811 = vld [vmem:[%s2 + $0x1670] sm:$0xff]
    %v812 = vld [vmem:[%s2 + $0x1678] sm:$0xff]
    %v813 = vld [vmem:[%s2 + $0x1680] sm:$0xff]
    %v814 = vld [vmem:[%s2 + $0x1688] sm:$0xff]
    %v815 = vld [vmem:[%s2 + $0x1690] sm:$0xff]
    %v816 = vld [vmem:[%s2 + $0x1698] sm:$0xff]
    %v817 = vld [vmem:[%s2 + $0x16a0] sm:$0xff]
    %v818 = vld [vmem:[%s2 + $0x16a8] sm:$0xff]
    %v819 = vld [vmem:[%s2 + $0x16b0] sm:$0xff]
    %v820 = vld [vmem:[%s2 + $0x16b8] sm:$0xff]
    %v821 = vld [vmem:[%s2 + $0x16c0] sm:$0xff]
    %v822 = vld [vmem:[%s2 + $0x16c8] sm:$0xff]
    %v823 = vld [vmem:[%s2 + $0x16d0] sm:$0xff]
    %v824 = vld [vmem:[%s2 + $0x16d8] sm:$0xff]
    %v825 = vld [vmem:[%s2 + $0x16e0] sm:$0xff]
    %v826 = vld [vmem:[%s2 + $0x16e8] sm:$0xff]
    %v827 = vld [vmem:[%s2 + $0x16f0] sm:$0xff]
    %v828 = vld [vmem:[%s2 + $0x16f8] sm:$0xff]
    %v829 = vld [vmem:[%s2 + $0x1700] sm:$0xff]
    %v830 = vld [vmem:[%s2 + $0x1708] sm:$0xff]
    %v831 = vld [vmem:[%s2 + $0x1710] sm:$0xff]
    %v832 = vld [vmem:[%s2 + $0x1718] sm:$0xff]
    %v833 = vld [vmem:[%s2 + $0x1720] sm:$0xff]
    %v834 = vld [vmem:[%s2 + $0x1728] sm:$0xff]
    %v835 = vld [vmem:[%s2 + $0x1730] sm:$0xff]
    %v836 = vld [vmem:[%s2 + $0x1738] sm:$0xff]
    %v837 = vld [vmem:[%s2 + $0x1740] sm:$0xff]
    %v838 = vld [vmem:[%s2 + $0x1748] sm:$0xff]
    %v839 = vld [vmem:[%s2 + $0x1750] sm:$0xff]
    %v840 = vld [vmem:[%s2 + $0x1758] sm:$0xff]
    %v841 = vld [vmem:[%s2 + $0x1760] sm:$0xff]
    %v842 = vld [vmem:[%s2 + $0x1768] sm:$0xff]
    %v843 = vld [vmem:[%s2 + $0x1770] sm:$0xff]
    %v844 = vld [vmem:[%s2 + $0x1778] sm:$0xff]
    %v845 = vld [vmem:[%s2 + $0x1780] sm:$0xff]
    %v846 = vld [vmem:[%s2 + $0x1788] sm:$0xff]
    %v847 = vld [vmem:[%s2 + $0x1790] sm:$0xff]
    %v848 = vld [vmem:[%s2 + $0x1798] sm:$0xff]
    %v849 = vld [vmem:[%s2 + $0x17a0] sm:$0xff]
    %v850 = vld [vmem:[%s2 + $0x17a8] sm:$0xff]
    %v851 = vld [vmem:[%s2 + $0x17b0] sm:$0xff]
    %v852 = vld [vmem:[%s2 + $0x17b8] sm:$0xff]
    %v853 = vld [vmem:[%s2 + $0x17c0] sm:$0xff]
    %v854 = vld [vmem:[%s2 + $0x17c8] sm:$0xff]
    %v855 = vld [vmem:[%s2 + $0x17d0] sm:$0xff]
    %v856 = vld [vmem:[%s2 + $0x17d8] sm:$0xff]
    %v857 = vld [vmem:[%s2 + $0x17e0] sm:$0xff]
    %v858 = vld [vmem:[%s2 + $0x17e8] sm:$0xff]
    %v859 = vld [vmem:[%s2 + $0x17f0] sm:$0xff]
    %v860 = vld [vmem:[%s2 + $0x17f8] sm:$0xff]
    %v861 = vld [vmem:[%s2 + $0x1800] sm:$0xff]
    %v862 = vld [vmem:[%s2 + $0x1808] sm:$0xff]
    %v863 = vld [vmem:[%s2 + $0x1810] sm:$0xff]
    %v864 = vld [vmem:[%s2 + $0x1818] sm:$0xff]
    %v865 = vld [vmem:[%s2 + $0x1820] sm:$0xff]
    %v866 = vld [vmem:[%s2 + $0x1828] sm:$0xff]
    %v867 = vld [vmem:[%s2 + $0x1830] sm:$0xff]
    %v868 = vld [vmem:[%s2 + $0x1838] sm:$0xff]
    %v869 = vld [vmem:[%s2 + $0x1840] sm:$0xff]
    %v870 = vld [vmem:[%s2 + $0x1848] sm:$0xff]
    %v871 = vld [vmem:[%s2 + $0x1850] sm:$0xff]
    %v872 = vld [vmem:[%s2 + $0x1858] sm:$0xff]
    %v873 = vld [vmem:[%s2 + $0x1860] sm:$0xff]
    %v874 = vld [vmem:[%s2 + $0x1868] sm:$0xff]
    %v875 = vld [vmem:[%s2 + $0x1870] sm:$0xff]
    %v876 = vld [vmem:[%s2 + $0x1878] sm:$0xff]
    %v877 = vld [vmem:[%s2 + $0x1880] sm:$0xff]
    %v878 = vld [vmem:[%s2 + $0x1888] sm:$0xff]
    %v879 = vld [vmem:[%s2 + $0x1890] sm:$0xff]
    %v880 = vld [vmem:[%s2 + $0x1898] sm:$0xff]
    %v881 = vld [vmem:[%s2 + $0x18a0] sm:$0xff]
    %v882 = vld [vmem:[%s2 + $0x18a8] sm:$0xff]
    %v883 = vld [vmem:[%s2 + $0x18b0] sm:$0xff]
    %v884 = vld [vmem:[%s2 + $0x18b8] sm:$0xff]
    %v885 = vld [vmem:[%s2 + $0x18c0] sm:$0xff]
    %v886 = vld [vmem:[%s2 + $0x18c8] sm:$0xff]
    %v887 = vld [vmem:[%s2 + $0x18d0] sm:$0xff]
    %v888 = vld [vmem:[%s2 + $0x18d8] sm:$0xff]
    %v889 = vld [vmem:[%s2 + $0x18e0] sm:$0xff]
    %v890 = vld [vmem:[%s2 + $0x18e8] sm:$0xff]
    %v891 = vld [vmem:[%s2 + $0x18f0] sm:$0xff]
    %v892 = vld [vmem:[%s2 + $0x18f8] sm:$0xff]
    %v893 = vld [vmem:[%s2 + $0x1900] sm:$0xff]
    %v894 = vld [vmem:[%s2 + $0x1908] sm:$0xff]
    %v895 = vld [vmem:[%s2 + $0x1910] sm:$0xff]
    %v896 = vld [vmem:[%s2 + $0x1918] sm:$0xff]
    %v897 = vld [vmem:[%s2 + $0x1920] sm:$0xff]
    %v898 = vld [vmem:[%s2 + $0x1928] sm:$0xff]
    %v899 = vld [vmem:[%s2 + $0x1930] sm:$0xff]
    %v900 = vld [vmem:[%s2 + $0x1938] sm:$0xff]
    %v901 = vld [vmem:[%s2 + $0x1940] sm:$0xff]
    %v902 = vld [vmem:[%s2 + $0x1948] sm:$0xff]
    %v903 = vld [vmem:[%s2 + $0x1950] sm:$0xff]
    %v904 = vld [vmem:[%s2 + $0x1958] sm:$0xff]
    %v905 = vld [vmem:[%s2 + $0x1960] sm:$0xff]
    %v906 = vld [vmem:[%s2 + $0x1968] sm:$0xff]
    %v907 = vld [vmem:[%s2 + $0x1970] sm:$0xff]
    %v908 = vld [vmem:[%s2 + $0x1978] sm:$0xff]
    %v909 = vld [vmem:[%s2 + $0x1980] sm:$0xff]
    %v910 = vld [vmem:[%s2 + $0x1988] sm:$0xff]
    %v911 = vld [vmem:[%s2 + $0x1990] sm:$0xff]
    %v912 = vld [vmem:[%s2 + $0x1998] sm:$0xff]
    %v913 = vld [vmem:[%s2 + $0x19a0] sm:$0xff]
    %v914 = vld [vmem:[%s2 + $0x19a8] sm:$0xff]
    %v915 = vld [vmem:[%s2 + $0x19b0] sm:$0xff]
    %v916 = vld [vmem:[%s2 + $0x19b8] sm:$0xff]
    %v917 = vld [vmem:[%s2 + $0x19c0] sm:$0xff]
    %v918 = vld [vmem:[%s2 + $0x19c8] sm:$0xff]
    %v919 = vld [vmem:[%s2 + $0x19d0] sm:$0xff]
    %v920 = vld [vmem:[%s2 + $0x19d8] sm:$0xff]
    %v921 = vld [vmem:[%s2 + $0x19e0] sm:$0xff]
    %v922 = vld [vmem:[%s2 + $0x19e8] sm:$0xff]
    %v923 = vld [vmem:[%s2 + $0x19f0] sm:$0xff]
    %v924 = vld [vmem:[%s2 + $0x19f8] sm:$0xff]
    %v925 = vld [vmem:[%s2 + $0x1a00] sm:$0xff]
    %v926 = vld [vmem:[%s2 + $0x1a08] sm:$0xff]
    %v927 = vld [vmem:[%s2 + $0x1a10] sm:$0xff]
    %v928 = vld [vmem:[%s2 + $0x1a18] sm:$0xff]
    %v929 = vld [vmem:[%s2 + $0x1a20] sm:$0xff]
    %v930 = vld [vmem:[%s2 + $0x1a28] sm:$0xff]
    %v931 = vld [vmem:[%s2 + $0x1a30] sm:$0xff]
    %v932 = vld [vmem:[%s2 + $0x1a38] sm:$0xff]
    %v933 = vld [vmem:[%s2 + $0x1a40] sm:$0xff]
    %v934 = vld [vmem:[%s2 + $0x1a48] sm:$0xff]
    %v935 = vld [vmem:[%s2 + $0x1a50] sm:$0xff]
    %v936 = vld [vmem:[%s2 + $0x1a58] sm:$0xff]
    %v937 = vld [vmem:[%s2 + $0x1a60] sm:$0xff]
    %v938 = vld [vmem:[%s2 + $0x1a68] sm:$0xff]
    %v939 = vld [vmem:[%s2 + $0x1a70] sm:$0xff]
    %v940 = vld [vmem:[%s2 + $0x1a78] sm:$0xff]
    %v941 = vld [vmem:[%s2 + $0x1a80] sm:$0xff]
    %v942 = vld [vmem:[%s2 + $0x1a88] sm:$0xff]
    %v943 = vld [vmem:[%s2 + $0x1a90] sm:$0xff]
    %v944 = vld [vmem:[%s2 + $0x1a98] sm:$0xff]
    %v945 = vld [vmem:[%s2 + $0x1aa0] sm:$0xff]
    %v946 = vld [vmem:[%s2 + $0x1aa8] sm:$0xff]
    %v947 = vld [vmem:[%s2 + $0x1ab0] sm:$0xff]
    %v948 = vld [vmem:[%s2 + $0x1ab8] sm:$0xff]
    %v949 = vld [vmem:[%s2 + $0x1ac0] sm:$0xff]
    %v950 = vld [vmem:[%s2 + $0x1ac8] sm:$0xff]
    %v951 = vld [vmem:[%s2 + $0x1ad0] sm:$0xff]
    %v952 = vld [vmem:[%s2 + $0x1ad8] sm:$0xff]
    %v953 = vld [vmem:[%s2 + $0x1ae0] sm:$0xff]
    %v954 = vld [vmem:[%s2 + $0x1ae8] sm:$0xff]
    %v955 = vld [vmem:[%s2 + $0x1af0] sm:$0xff]
    %v956 = vld [vmem:[%s2 + $0x1af8] sm:$0xff]
    %v957 = vld [vmem:[%s2 + $0x1b00] sm:$0xff]
    %v958 = vld [vmem:[%s2 + $0x1b08] sm:$0xff]
    %v959 = vld [vmem:[%s2 + $0x1b10] sm:$0xff]
    %v960 = vld [vmem:[%s2 + $0x1b18] sm:$0xff]
    %v961 = vld [vmem:[%s2 + $0x1b20] sm:$0xff]
    %v962 = vld [vmem:[%s2 + $0x1b28] sm:$0xff]
    %v963 = vld [vmem:[%s2 + $0x1b30] sm:$0xff]
    %v964 = vld [vmem:[%s2 + $0x1b38] sm:$0xff]
    %v965 = vld [vmem:[%s2 + $0x1b40] sm:$0xff]
    %v966 = vld [vmem:[%s2 + $0x1b48] sm:$0xff]
    %v967 = vld [vmem:[%s2 + $0x1b50] sm:$0xff]
    %v968 = vld [vmem:[%s2 + $0x1b58] sm:$0xff]
    %v969 = vld [vmem:[%s2 + $0x1b60] sm:$0xff]
    %v970 = vld [vmem:[%s2 + $0x1b68] sm:$0xff]
    %v971 = vld [vmem:[%s2 + $0x1b70] sm:$0xff]
    %v972 = vld [vmem:[%s2 + $0x1b78] sm:$0xff]
    %v973 = vld [vmem:[%s2 + $0x1b80] sm:$0xff]
    %v974 = vld [vmem:[%s2 + $0x1b88] sm:$0xff]
    %v975 = vld [vmem:[%s2 + $0x1b90] sm:$0xff]
    %v976 = vld [vmem:[%s2 + $0x1b98] sm:$0xff]
    %v977 = vld [vmem:[%s2 + $0x1ba0] sm:$0xff]
    %v978 = vld [vmem:[%s2 + $0x1ba8] sm:$0xff]
    %v979 = vld [vmem:[%s2 + $0x1bb0] sm:$0xff]
    %v980 = vld [vmem:[%s2 + $0x1bb8] sm:$0xff]
    %v981 = vld [vmem:[%s2 + $0x1bc0] sm:$0xff]
    %v982 = vld [vmem:[%s2 + $0x1bc8] sm:$0xff]
    %v983 = vld [vmem:[%s2 + $0x1bd0] sm:$0xff]
    %v984 = vld [vmem:[%s2 + $0x1bd8] sm:$0xff]
    %v985 = vld [vmem:[%s2 + $0x1be0] sm:$0xff]
    %v986 = vld [vmem:[%s2 + $0x1be8] sm:$0xff]
    %v987 = vld [vmem:[%s2 + $0x1bf0] sm:$0xff]
    %v988 = vld [vmem:[%s2 + $0x1bf8] sm:$0xff]
    %v989 = vld [vmem:[%s2 + $0x1c00] sm:$0xff]
    %v990 = vld [vmem:[%s2 + $0x1c08] sm:$0xff]
    %v991 = vld [vmem:[%s2 + $0x1c10] sm:$0xff]
    %v992 = vld [vmem:[%s2 + $0x1c18] sm:$0xff]
    %v993 = vld [vmem:[%s2 + $0x1c20] sm:$0xff]
    %v994 = vld [vmem:[%s2 + $0x1c28] sm:$0xff]
    %v995 = vld [vmem:[%s2 + $0x1c30] sm:$0xff]
    %v996 = vld [vmem:[%s2 + $0x1c38] sm:$0xff]
    %v997 = vld [vmem:[%s2 + $0x1c40] sm:$0xff]
    %v998 = vld [vmem:[%s2 + $0x1c48] sm:$0xff]
    %v999 = vld [vmem:[%s2 + $0x1c50] sm:$0xff]
    %v1000 = vld [vmem:[%s2 + $0x1c58] sm:$0xff]
    %v1001 = vld [vmem:[%s2 + $0x1c60] sm:$0xff]
    %v1002 = vld [vmem:[%s2 + $0x1c68] sm:$0xff]
    %v1003 = vld [vmem:[%s2 + $0x1c70] sm:$0xff]
    %v1004 = vld [vmem:[%s2 + $0x1c78] sm:$0xff]
    %v1005 = vld [vmem:[%s2 + $0x1c80] sm:$0xff]
    %v1006 = vld [vmem:[%s2 + $0x1c88] sm:$0xff]
    %v1007 = vld [vmem:[%s2 + $0x1c90] sm:$0xff]
    %v1008 = vld [vmem:[%s2 + $0x1c98] sm:$0xff]
    %v1009 = vld [vmem:[%s2 + $0x1ca0] sm:$0xff]
    %v1010 = vld [vmem:[%s2 + $0x1ca8] sm:$0xff]
    %v1011 = vld [vmem:[%s2 + $0x1cb0] sm:$0xff]
    %v1012 = vld [vmem:[%s2 + $0x1cb8] sm:$0xff]
    %v1013 = vld [vmem:[%s2 + $0x1cc0] sm:$0xff]
    %v1014 = vld [vmem:[%s2 + $0x1cc8] sm:$0xff]
    %v1015 = vld [vmem:[%s2 + $0x1cd0] sm:$0xff]
    %v1016 = vld [vmem:[%s2 + $0x1cd8] sm:$0xff]
    %v1017 = vld [vmem:[%s2 + $0x1ce0] sm:$0xff]
    %v1018 = vld [vmem:[%s2 + $0x1ce8] sm:$0xff]
    %v1019 = vld [vmem:[%s2 + $0x1cf0] sm:$0xff]
    %v1020 = vld [vmem:[%s2 + $0x1cf8] sm:$0xff]
    %v1021 = vld [vmem:[%s2 + $0x1d00] sm:$0xff]
    %v1022 = vld [vmem:[%s2 + $0x1d08] sm:$0xff]
    %v1023 = vld [vmem:[%s2 + $0x1d10] sm:$0xff]
    %v1024 = vld [vmem:[%s2 + $0x1d18] sm:$0xff]
    %v1025 = vld [vmem:[%s2 + $0x1d20] sm:$0xff]
    %v1026 = vld [vmem:[%s2 + $0x1d28] sm:$0xff]
    %v1027 = vld [vmem:[%s2 + $0x1d30] sm:$0xff]
    %v1028 = vld [vmem:[%s2 + $0x1d38] sm:$0xff]
    %v1029 = vld [vmem:[%s2 + $0x1d40] sm:$0xff]
    %v1030 = vld [vmem:[%s2 + $0x1d48] sm:$0xff]
    %v1031 = vld [vmem:[%s2 + $0x1d50] sm:$0xff]
    %v1032 = vld [vmem:[%s2 + $0x1d58] sm:$0xff]
    %v1033 = vld [vmem:[%s2 + $0x1d60] sm:$0xff]
    %v1034 = vld [vmem:[%s2 + $0x1d68] sm:$0xff]
    %v1035 = vld [vmem:[%s2 + $0x1d70] sm:$0xff]
    %v1036 = vld [vmem:[%s2 + $0x1d78] sm:$0xff]
    %v1037 = vld [vmem:[%s2 + $0x1d80] sm:$0xff]
    %v1038 = vld [vmem:[%s2 + $0x1d88] sm:$0xff]
    %v1039 = vld [vmem:[%s2 + $0x1d90] sm:$0xff]
    %v1040 = vld [vmem:[%s2 + $0x1d98] sm:$0xff]
    %v1041 = vld [vmem:[%s2 + $0x1da0] sm:$0xff]
    %v1042 = vld [vmem:[%s2 + $0x1da8] sm:$0xff]
    %v1043 = vld [vmem:[%s2 + $0x1db0] sm:$0xff]
    %v1044 = vld [vmem:[%s2 + $0x1db8] sm:$0xff]
    %v1045 = vld [vmem:[%s2 + $0x1dc0] sm:$0xff]
    %v1046 = vld [vmem:[%s2 + $0x1dc8] sm:$0xff]
    %v1047 = vld [vmem:[%s2 + $0x1dd0] sm:$0xff]
    %v1048 = vld [vmem:[%s2 + $0x1dd8] sm:$0xff]
    %v1049 = vld [vmem:[%s2 + $0x1de0] sm:$0xff]
    %v1050 = vld [vmem:[%s2 + $0x1de8] sm:$0xff]
    %v1051 = vld [vmem:[%s2 + $0x1df0] sm:$0xff]
    %v1052 = vld [vmem:[%s2 + $0x1df8] sm:$0xff]
    %v1053 = vld [vmem:[%s2 + $0x1e00] sm:$0xff]
    %v1054 = vld [vmem:[%s2 + $0x1e08] sm:$0xff]
    %v1055 = vld [vmem:[%s2 + $0x1e10] sm:$0xff]
    %v1056 = vld [vmem:[%s2 + $0x1e18] sm:$0xff]
    %v1057 = vld [vmem:[%s2 + $0x1e20] sm:$0xff]
    %v1058 = vld [vmem:[%s2 + $0x1e28] sm:$0xff]
    %v1059 = vld [vmem:[%s2 + $0x1e30] sm:$0xff]
    %v1060 = vld [vmem:[%s2 + $0x1e38] sm:$0xff]
    %v1061 = vld [vmem:[%s2 + $0x1e40] sm:$0xff]
    %v1062 = vld [vmem:[%s2 + $0x1e48] sm:$0xff]
    %v1063 = vld [vmem:[%s2 + $0x1e50] sm:$0xff]
    %v1064 = vld [vmem:[%s2 + $0x1e58] sm:$0xff]
    %v1065 = vld [vmem:[%s2 + $0x1e60] sm:$0xff]
    %v1066 = vld [vmem:[%s2 + $0x1e68] sm:$0xff]
    %v1067 = vld [vmem:[%s2 + $0x1e70] sm:$0xff]
    %v1068 = vld [vmem:[%s2 + $0x1e78] sm:$0xff]
    %v1069 = vld [vmem:[%s2 + $0x1e80] sm:$0xff]
    %v1070 = vld [vmem:[%s2 + $0x1e88] sm:$0xff]
    %v1071 = vld [vmem:[%s2 + $0x1e90] sm:$0xff]
    %v1072 = vld [vmem:[%s2 + $0x1e98] sm:$0xff]
    %v1073 = vld [vmem:[%s2 + $0x1ea0] sm:$0xff]
    %v1074 = vld [vmem:[%s2 + $0x1ea8] sm:$0xff]
    %v1075 = vld [vmem:[%s2 + $0x1eb0] sm:$0xff]
    %v1076 = vld [vmem:[%s2 + $0x1eb8] sm:$0xff]
    %v1077 = vld [vmem:[%s2 + $0x1ec0] sm:$0xff]
    %v1078 = vld [vmem:[%s2 + $0x1ec8] sm:$0xff]
    %v1079 = vld [vmem:[%s2 + $0x1ed0] sm:$0xff]
    %v1080 = vld [vmem:[%s2 + $0x1ed8] sm:$0xff]
    %v1081 = vld [vmem:[%s2 + $0x1ee0] sm:$0xff]
    %v1082 = vld [vmem:[%s2 + $0x1ee8] sm:$0xff]
    %v1083 = vld [vmem:[%s2 + $0x1ef0] sm:$0xff]
    %v1084 = vld [vmem:[%s2 + $0x1ef8] sm:$0xff]
    %v1085 = vld [vmem:[%s2 + $0x1f00] sm:$0xff]
    %v1086 = vld [vmem:[%s2 + $0x1f08] sm:$0xff]
    %v1087 = vld [vmem:[%s2 + $0x1f10] sm:$0xff]
    %v1088 = vld [vmem:[%s2 + $0x1f18] sm:$0xff]
    %v1089 = vld [vmem:[%s2 + $0x1f20] sm:$0xff]
    %v1090 = vld [vmem:[%s2 + $0x1f28] sm:$0xff]
    %v1091 = vld [vmem:[%s2 + $0x1f30] sm:$0xff]
    %v1092 = vld [vmem:[%s2 + $0x1f38] sm:$0xff]
    %v1093 = vld [vmem:[%s2 + $0x1f40] sm:$0xff]
    %v1094 = vld [vmem:[%s2 + $0x1f48] sm:$0xff]
    %v1095 = vld [vmem:[%s2 + $0x1f50] sm:$0xff]
    %v1096 = vld [vmem:[%s2 + $0x1f58] sm:$0xff]
    %v1097 = vld [vmem:[%s2 + $0x1f60] sm:$0xff]
    %v1098 = vld [vmem:[%s2 + $0x1f68] sm:$0xff]
    %v1099 = vld [vmem:[%s2 + $0x1f70] sm:$0xff]
    %v1100 = vld [vmem:[%s2 + $0x1f78] sm:$0xff]
    %v1101 = vld [vmem:[%s2 + $0x1f80] sm:$0xff]
    %v1102 = vld [vmem:[%s2 + $0x1f88] sm:$0xff]
    %v1103 = vld [vmem:[%s2 + $0x1f90] sm:$0xff]
    %v1104 = vld [vmem:[%s2 + $0x1f98] sm:$0xff]
    %v1105 = vld [vmem:[%s2 + $0x1fa0] sm:$0xff]
    %v1106 = vld [vmem:[%s2 + $0x1fa8] sm:$0xff]
    %v1107 = vld [vmem:[%s2 + $0x1fb0] sm:$0xff]
    %v1108 = vld [vmem:[%s2 + $0x1fb8] sm:$0xff]
    %v1109 = vld [vmem:[%s2 + $0x1fc0] sm:$0xff]
    %v1110 = vld [vmem:[%s2 + $0x1fc8] sm:$0xff]
    %v1111 = vld [vmem:[%s2 + $0x1fd0] sm:$0xff]
    %v1112 = vld [vmem:[%s2 + $0x1fd8] sm:$0xff]
    %v1113 = vld [vmem:[%s2 + $0x1fe0] sm:$0xff]
    %v1114 = vld [vmem:[%s2 + $0x1fe8] sm:$0xff]
    %v1115 = vld [vmem:[%s2 + $0x1ff0] sm:$0xff]
    %v1116 = vld [vmem:[%s2 + $0x1ff8] sm:$0xff]
    %v1117 = vld [vmem:[%s2 + $0x2000] sm:$0xff]
    %v1118 = vld [vmem:[%s2 + $0x2008] sm:$0xff]
    %v1119 = vld [vmem:[%s2 + $0x2010] sm:$0xff]
    %v1120 = vld [vmem:[%s2 + $0x2018] sm:$0xff]
    %v1121 = vld [vmem:[%s2 + $0x2020] sm:$0xff]
    %v1122 = vld [vmem:[%s2 + $0x2028] sm:$0xff]
    %v1123 = vld [vmem:[%s2 + $0x2030] sm:$0xff]
    %v1124 = vld [vmem:[%s2 + $0x2038] sm:$0xff]
    %v1125 = vld [vmem:[%s2 + $0x2040] sm:$0xff]
    %v1126 = vld [vmem:[%s2 + $0x2048] sm:$0xff]
    %v1127 = vld [vmem:[%s2 + $0x2050] sm:$0xff]
    %v1128 = vld [vmem:[%s2 + $0x2058] sm:$0xff]
    %v1129 = vld [vmem:[%s2 + $0x2060] sm:$0xff]
    %v1130 = vld [vmem:[%s2 + $0x2068] sm:$0xff]
    %v1131 = vld [vmem:[%s2 + $0x2070] sm:$0xff]
    %v1132 = vld [vmem:[%s2 + $0x2078] sm:$0xff]
    %v1133 = vld [vmem:[%s2 + $0x2080] sm:$0xff]
    %v1134 = vld [vmem:[%s2 + $0x2088] sm:$0xff]
    %v1135 = vld [vmem:[%s2 + $0x2090] sm:$0xff]
    %v1136 = vld [vmem:[%s2 + $0x2098] sm:$0xff]
    %v1137 = vld [vmem:[%s2 + $0x20a0] sm:$0xff]
    %v1138 = vld [vmem:[%s2 + $0x20a8] sm:$0xff]
    %v1139 = vld [vmem:[%s2 + $0x20b0] sm:$0xff]
    %v1140 = vld [vmem:[%s2 + $0x20b8] sm:$0xff]
    %v1141 = vld [vmem:[%s2 + $0x20c0] sm:$0xff]
    %v1142 = vld [vmem:[%s2 + $0x20c8] sm:$0xff]
    %v1143 = vld [vmem:[%s2 + $0x20d0] sm:$0xff]
    %v1144 = vld [vmem:[%s2 + $0x20d8] sm:$0xff]
    %v1145 = vld [vmem:[%s2 + $0x20e0] sm:$0xff]
    %v1146 = vld [vmem:[%s2 + $0x20e8] sm:$0xff]
    %v1147 = vld [vmem:[%s2 + $0x20f0] sm:$0xff]
    %v1148 = vld [vmem:[%s2 + $0x20f8] sm:$0xff]
    %v1149 = vld [vmem:[%s2 + $0x2100] sm:$0xff]
    %v1150 = vld [vmem:[%s2 + $0x2108] sm:$0xff]
    %v1151 = vld [vmem:[%s2 + $0x2110] sm:$0xff]
    %v1152 = vld [vmem:[%s2 + $0x2118] sm:$0xff]
    %v1153 = vld [vmem:[%s2 + $0x2120] sm:$0xff]
    %v1154 = vld [vmem:[%s2 + $0x2128] sm:$0xff]
    %v1155 = vld [vmem:[%s2 + $0x2130] sm:$0xff]
    %v1156 = vld [vmem:[%s2 + $0x2138] sm:$0xff]
    %v1157 = vld [vmem:[%s2 + $0x2140] sm:$0xff]
    %v1158 = vld [vmem:[%s2 + $0x2148] sm:$0xff]
    %v1159 = vld [vmem:[%s2 + $0x2150] sm:$0xff]
    %v1160 = vld [vmem:[%s2 + $0x2158] sm:$0xff]
    %v1161 = vld [vmem:[%s2 + $0x2160] sm:$0xff]
    %v1162 = vld [vmem:[%s2 + $0x2168] sm:$0xff]
    %v1163 = vld [vmem:[%s2 + $0x2170] sm:$0xff]
    %v1164 = vld [vmem:[%s2 + $0x2178] sm:$0xff]
    %v1165 = vld [vmem:[%s2 + $0x2180] sm:$0xff]
    %v1166 = vld [vmem:[%s2 + $0x2188] sm:$0xff]
    %v1167 = vld [vmem:[%s2 + $0x2190] sm:$0xff]
    %v1168 = vld [vmem:[%s2 + $0x2198] sm:$0xff]
    %v1169 = vld [vmem:[%s2 + $0x21a0] sm:$0xff]
    %v1170 = vld [vmem:[%s2 + $0x21a8] sm:$0xff]
    %v1171 = vld [vmem:[%s2 + $0x21b0] sm:$0xff]
    %v1172 = vld [vmem:[%s2 + $0x21b8] sm:$0xff]
    %v1173 = vld [vmem:[%s2 + $0x21c0] sm:$0xff]
    %v1174 = vld [vmem:[%s2 + $0x21c8] sm:$0xff]
    %v1175 = vld [vmem:[%s2 + $0x21d0] sm:$0xff]
    %v1176 = vld [vmem:[%s2 + $0x21d8] sm:$0xff]
    %v1177 = vld [vmem:[%s2 + $0x21e0] sm:$0xff]
    %v1178 = vld [vmem:[%s2 + $0x21e8] sm:$0xff]
    %v1179 = vld [vmem:[%s2 + $0x21f0] sm:$0xff]
    %v1180 = vld [vmem:[%s2 + $0x21f8] sm:$0xff]
    %v1181 = vld [vmem:[%s2 + $0x2200] sm:$0xff]
    %v1182 = vld [vmem:[%s2 + $0x2208] sm:$0xff]
    %v1183 = vld [vmem:[%s2 + $0x2210] sm:$0xff]
    %v1184 = vld [vmem:[%s2 + $0x2218] sm:$0xff]
    %v1185 = vld [vmem:[%s2 + $0x2220] sm:$0xff]
    %v1186 = vld [vmem:[%s2 + $0x2228] sm:$0xff]
    %v1187 = vld [vmem:[%s2 + $0x2230] sm:$0xff]
    %v1188 = vld [vmem:[%s2 + $0x2238] sm:$0xff]
    %v1189 = vld [vmem:[%s2 + $0x2240] sm:$0xff]
    %v1190 = vld [vmem:[%s2 + $0x2248] sm:$0xff]
    %v1191 = vld [vmem:[%s2 + $0x2250] sm:$0xff]
    %v1192 = vld [vmem:[%s2 + $0x2258] sm:$0xff]
    %v1193 = vld [vmem:[%s2 + $0x2260] sm:$0xff]
    %v1194 = vld [vmem:[%s2 + $0x2268] sm:$0xff]
    %v1195 = vld [vmem:[%s2 + $0x2270] sm:$0xff]
    %v1196 = vld [vmem:[%s2 + $0x2278] sm:$0xff]
    %v1197 = vld [vmem:[%s2 + $0x2280] sm:$0xff]
    %v1198 = vld [vmem:[%s2 + $0x2288] sm:$0xff]
    %v1199 = vld [vmem:[%s2 + $0x2290] sm:$0xff]
    %v1200 = vld [vmem:[%s2 + $0x2298] sm:$0xff]
    %v1201 = vld [vmem:[%s2 + $0x22a0] sm:$0xff]
    %v1202 = vld [vmem:[%s2 + $0x22a8] sm:$0xff]
    %v1203 = vld [vmem:[%s2 + $0x22b0] sm:$0xff]
    %v1204 = vld [vmem:[%s2 + $0x22b8] sm:$0xff]
    %v1205 = vld [vmem:[%s2 + $0x22c0] sm:$0xff]
    %v1206 = vld [vmem:[%s2 + $0x22c8] sm:$0xff]
    %v1207 = vld [vmem:[%s2 + $0x22d0] sm:$0xff]
    %v1208 = vld [vmem:[%s2 + $0x22d8] sm:$0xff]
    %v1209 = vld [vmem:[%s2 + $0x22e0] sm:$0xff]
    %v1210 = vld [vmem:[%s2 + $0x22e8] sm:$0xff]
    %v1211 = vld [vmem:[%s2 + $0x22f0] sm:$0xff]
    %v1212 = vld [vmem:[%s2 + $0x22f8] sm:$0xff]
    %v1213 = vld [vmem:[%s2 + $0x2300] sm:$0xff]
    %v1214 = vld [vmem:[%s2 + $0x2308] sm:$0xff]
    %v1215 = vld [vmem:[%s2 + $0x2310] sm:$0xff]
    %v1216 = vld [vmem:[%s2 + $0x2318] sm:$0xff]
    %v1217 = vld [vmem:[%s2 + $0x2320] sm:$0xff]
    %v1218 = vld [vmem:[%s2 + $0x2328] sm:$0xff]
    %v1219 = vld [vmem:[%s2 + $0x2330] sm:$0xff]
    %v1220 = vld [vmem:[%s2 + $0x2338] sm:$0xff]
    %v1221 = vld [vmem:[%s2 + $0x2340] sm:$0xff]
    %v1222 = vld [vmem:[%s2 + $0x2348] sm:$0xff]
    %v1223 = vld [vmem:[%s2 + $0x2350] sm:$0xff]
    %v1224 = vld [vmem:[%s2 + $0x2358] sm:$0xff]
    %v1225 = vld [vmem:[%s2 + $0x2360] sm:$0xff]
    %v1226 = vld [vmem:[%s2 + $0x2368] sm:$0xff]
    %v1227 = vld [vmem:[%s2 + $0x2370] sm:$0xff]
    %v1228 = vld [vmem:[%s2 + $0x2378] sm:$0xff]
    %v1229 = vld [vmem:[%s2 + $0x2380] sm:$0xff]
    %v1230 = vld [vmem:[%s2 + $0x2388] sm:$0xff]
    %v1231 = vld [vmem:[%s2 + $0x2390] sm:$0xff]
    %v1232 = vld [vmem:[%s2 + $0x2398] sm:$0xff]
    %v1233 = vld [vmem:[%s2 + $0x23a0] sm:$0xff]
    %v1234 = vld [vmem:[%s2 + $0x23a8] sm:$0xff]
    %v1235 = vld [vmem:[%s2 + $0x23b0] sm:$0xff]
    %v1236 = vld [vmem:[%s2 + $0x23b8] sm:$0xff]
    %v1237 = vld [vmem:[%s2 + $0x23c0] sm:$0xff]
    %v1238 = vld [vmem:[%s2 + $0x23c8] sm:$0xff]
    %v1239 = vld [vmem:[%s2 + $0x23d0] sm:$0xff]
    %v1240 = vld [vmem:[%s2 + $0x23d8] sm:$0xff]
    %v1241 = vld [vmem:[%s2 + $0x23e0] sm:$0xff]
    %v1242 = vld [vmem:[%s2 + $0x23e8] sm:$0xff]
    %v1243 = vld [vmem:[%s2 + $0x23f0] sm:$0xff]
    %v1244 = vld [vmem:[%s2 + $0x23f8] sm:$0xff]
    %v1245 = vld [vmem:[%s2 + $0x2400] sm:$0xff]
    %v1246 = vld [vmem:[%s2 + $0x2408] sm:$0xff]
    %v1247 = vld [vmem:[%s2 + $0x2410] sm:$0xff]
    %v1248 = vld [vmem:[%s2 + $0x2418] sm:$0xff]
    %v1249 = vld [vmem:[%s2 + $0x2420] sm:$0xff]
    %v1250 = vld [vmem:[%s2 + $0x2428] sm:$0xff]
    %v1251 = vld [vmem:[%s2 + $0x2430] sm:$0xff]
    %v1252 = vld [vmem:[%s2 + $0x2438] sm:$0xff]
    %v1253 = vld [vmem:[%s2 + $0x2440] sm:$0xff]
    %v1254 = vld [vmem:[%s2 + $0x2448] sm:$0xff]
    %v1255 = vld [vmem:[%s2 + $0x2450] sm:$0xff]
    %v1256 = vld [vmem:[%s2 + $0x2458] sm:$0xff]
    %v1257 = vld [vmem:[%s2 + $0x2460] sm:$0xff]
    %v1258 = vld [vmem:[%s2 + $0x2468] sm:$0xff]
    %v1259 = vld [vmem:[%s2 + $0x2470] sm:$0xff]
    %v1260 = vld [vmem:[%s2 + $0x2478] sm:$0xff]
    %v1261 = vld [vmem:[%s2 + $0x2480] sm:$0xff]
    %v1262 = vld [vmem:[%s2 + $0x2488] sm:$0xff]
    %v1263 = vld [vmem:[%s2 + $0x2490] sm:$0xff]
    %v1264 = vld [vmem:[%s2 + $0x2498] sm:$0xff]
    %v1265 = vld [vmem:[%s2 + $0x24a0] sm:$0xff]
    %v1266 = vld [vmem:[%s2 + $0x24a8] sm:$0xff]
    %v1267 = vld [vmem:[%s2 + $0x24b0] sm:$0xff]
    %v1268 = vld [vmem:[%s2 + $0x24b8] sm:$0xff]
    %v1269 = vld [vmem:[%s2 + $0x24c0] sm:$0xff]
    %v1270 = vld [vmem:[%s2 + $0x24c8] sm:$0xff]
    %v1271 = vld [vmem:[%s2 + $0x24d0] sm:$0xff]
    %v1272 = vld [vmem:[%s2 + $0x24d8] sm:$0xff]
    %v1273 = vld [vmem:[%s2 + $0x24e0] sm:$0xff]
    %v1274 = vld [vmem:[%s2 + $0x24e8] sm:$0xff]
    %v1275 = vld [vmem:[%s2 + $0x24f0] sm:$0xff]
    %v1276 = vld [vmem:[%s2 + $0x24f8] sm:$0xff]
    %v1277 = vld [vmem:[%s2 + $0x2500] sm:$0xff]
    %v1278 = vld [vmem:[%s2 + $0x2508] sm:$0xff]
    %v1279 = vld [vmem:[%s2 + $0x2510] sm:$0xff]
    %v1280 = vld [vmem:[%s2 + $0x2518] sm:$0xff]
    %v1281 = vld [vmem:[%s2 + $0x2520] sm:$0xff]
    %v1282 = vld [vmem:[%s2 + $0x2528] sm:$0xff]
    %v1283 = vld [vmem:[%s2 + $0x2530] sm:$0xff]
    %v1284 = vld [vmem:[%s2 + $0x2538] sm:$0xff]
    %v1285 = vld [vmem:[%s2 + $0x2540] sm:$0xff]
    %v1286 = vld [vmem:[%s2 + $0x2548] sm:$0xff]
    %v1287 = vld [vmem:[%s2 + $0x2550] sm:$0xff]
    %v1288 = vld [vmem:[%s2 + $0x2558] sm:$0xff]
    %v1289 = vld [vmem:[%s2 + $0x2560] sm:$0xff]
    %v1290 = vld [vmem:[%s2 + $0x2568] sm:$0xff]
    %v1291 = vld [vmem:[%s2 + $0x2570] sm:$0xff]
    %v1292 = vld [vmem:[%s2 + $0x2578] sm:$0xff]
    %v1293 = vld [vmem:[%s2 + $0x2580] sm:$0xff]
    %v1294 = vld [vmem:[%s2 + $0x2588] sm:$0xff]
    %v1295 = vld [vmem:[%s2 + $0x2590] sm:$0xff]
    %v1296 = vld [vmem:[%s2 + $0x2598] sm:$0xff]
    %v1297 = vld [vmem:[%s2 + $0x25a0] sm:$0xff]
    %v1298 = vld [vmem:[%s2 + $0x25a8] sm:$0xff]
    %v1299 = vld [vmem:[%s2 + $0x25b0] sm:$0xff]
    %v1300 = vld [vmem:[%s2 + $0x25b8] sm:$0xff]
    %v1301 = vld [vmem:[%s2 + $0x25c0] sm:$0xff]
    %v1302 = vld [vmem:[%s2 + $0x25c8] sm:$0xff]
    %v1303 = vld [vmem:[%s2 + $0x25d0] sm:$0xff]
    %v1304 = vld [vmem:[%s2 + $0x25d8] sm:$0xff]
    %v1305 = vld [vmem:[%s2 + $0x25e0] sm:$0xff]
    %v1306 = vld [vmem:[%s2 + $0x25e8] sm:$0xff]
    %v1307 = vld [vmem:[%s2 + $0x25f0] sm:$0xff]
    %v1308 = vld [vmem:[%s2 + $0x25f8] sm:$0xff]
    %v1309 = vld [vmem:[%s2 + $0x2600] sm:$0xff]
    %v1310 = vld [vmem:[%s2 + $0x2608] sm:$0xff]
    %v1311 = vld [vmem:[%s2 + $0x2610] sm:$0xff]
    %v1312 = vld [vmem:[%s2 + $0x2618] sm:$0xff]
    %v1313 = vld [vmem:[%s2 + $0x2620] sm:$0xff]
    %v1314 = vld [vmem:[%s2 + $0x2628] sm:$0xff]
    %v1315 = vld [vmem:[%s2 + $0x2630] sm:$0xff]
    %v1316 = vld [vmem:[%s2 + $0x2638] sm:$0xff]
    %v1317 = vld [vmem:[%s2 + $0x2640] sm:$0xff]
    %v1318 = vld [vmem:[%s2 + $0x2648] sm:$0xff]
    %v1319 = vld [vmem:[%s2 + $0x2650] sm:$0xff]
    %v1320 = vld [vmem:[%s2 + $0x2658] sm:$0xff]
    %v1321 = vld [vmem:[%s2 + $0x2660] sm:$0xff]
    %v1322 = vld [vmem:[%s2 + $0x2668] sm:$0xff]
    %v1323 = vld [vmem:[%s2 + $0x2670] sm:$0xff]
    %v1324 = vld [vmem:[%s2 + $0x2678] sm:$0xff]
    %v1325 = vld [vmem:[%s2 + $0x2680] sm:$0xff]
    %v1326 = vld [vmem:[%s2 + $0x2688] sm:$0xff]
    %v1327 = vld [vmem:[%s2 + $0x2690] sm:$0xff]
    %v1328 = vld [vmem:[%s2 + $0x2698] sm:$0xff]
    %v1329 = vld [vmem:[%s2 + $0x26a0] sm:$0xff]
    %v1330 = vld [vmem:[%s2 + $0x26a8] sm:$0xff]
    %v1331 = vld [vmem:[%s2 + $0x26b0] sm:$0xff]
    %v1332 = vld [vmem:[%s2 + $0x26b8] sm:$0xff]
    %v1333 = vld [vmem:[%s2 + $0x26c0] sm:$0xff]
    %v1334 = vld [vmem:[%s2 + $0x26c8] sm:$0xff]
    %v1335 = vld [vmem:[%s2 + $0x26d0] sm:$0xff]
    %v1336 = vld [vmem:[%s2 + $0x26d8] sm:$0xff]
    %v1337 = vld [vmem:[%s2 + $0x26e0] sm:$0xff]
    %v1338 = vld [vmem:[%s2 + $0x26e8] sm:$0xff]
    %v1339 = vld [vmem:[%s2 + $0x26f0] sm:$0xff]
    %v1340 = vld [vmem:[%s2 + $0x26f8] sm:$0xff]
    %v1341 = vld [vmem:[%s2 + $0x2700] sm:$0xff]
    %v1342 = vld [vmem:[%s2 + $0x2708] sm:$0xff]
    %v1343 = vld [vmem:[%s3] sm:$0x1f]
    %v1345 = vlaneseq
    %v1346 = vshrl.u32 %v1345, 7
    %v1347 = vsub.s32 0, %v1346
    %v1348 = vrot.slane %v1343, %v1347
    %v1349 = vlaneseq
    %v1350 = vshrl.u32 %v1349, 7
    %v1351 = vsub.s32 1, %v1350
    %v1352 = vrot.slane %v1343, %v1351
    %v1353 = vlaneseq
    %v1354 = vshrl.u32 %v1353, 7
    %v1355 = vsub.s32 2, %v1354
    %v1356 = vrot.slane %v1343, %v1355
    %v1357 = vlaneseq
    %v1358 = vshrl.u32 %v1357, 7
    %v1359 = vsub.s32 3, %v1358
    %v1360 = vrot.slane %v1343, %v1359
    %v1361 = vlaneseq
    %v1362 = vshrl.u32 %v1361, 7
    %v1363 = vsub.s32 4, %v1362
    %v1364 = vrot.slane %v1343, %v1363
    %vm1370 = vcmask 654336
    %v1372 = vsel %vm1370, %v92, 0
    %1374 = vmatprep.subr.mxu0 %v169
    %1375 = vmatpush1.msra.mxu0 %v168
    %1376 = vmatprep.subr.mxu0 %v164
    %1377 = vmatpush1.msra.mxu0 %v163
    %1378 = vmatprep.subr.mxu0 %v159
    %1379 = vmatpush1.msra.mxu0 %v158
    %1380 = vmatprep.subr.mxu0 %v154
    %1381 = vmatpush1.msra.mxu0 %v153
    %1382 = vmatprep.subr.mxu0 %v149
    %1383 = vmatpush1.msra.mxu0 %v148
    %1384 = vmatprep.subr.mxu0 %v144
    %1385 = vmatpush1.msra.mxu0 %v143
    %1386 = vmatprep.subr.mxu0 %v139
    %1387 = vmatpush1.msra.mxu0 %v138
    %1388 = vmatprep.subr.mxu0 %v134
    %1389 = vmatpush1.msra.mxu0 %v133
    %1390 = vmatprep.subr.mxu0 %v129
    %1391 = vmatpush1.msra.mxu0 %v128
    %1392 = vmatprep.subr.mxu0 %v124
    %1393 = vmatpush1.msra.mxu0 %v123
    %1394 = vmatprep.subr.mxu0 %v119
    %1395 = vmatpush1.msra.mxu0 %v118
    %1396 = vmatprep.subr.mxu0 %v114
    %1397 = vmatpush1.msra.mxu0 %v113
    %1398 = vmatprep.subr.mxu0 %v109
    %1399 = vmatpush1.msra.mxu0 %v108
    %1400 = vmatprep.subr.mxu0 %v104
    %1401 = vmatpush1.msra.mxu0 %v103
    %1402 = vmatprep.subr.mxu0 %v99
    %1403 = vmatpush1.msra.mxu0 %v98
    %1404 = vmatprep.subr.mxu0 %v94
    %1405 = vmatpush1.msra.mxu0 %v93
    %1406 = vmatprep.subr.mxu0 %v249
    %1407 = vmatpush2.msra.mxu0 %v248
    %1408 = vmatprep.subr.mxu0 %v244
    %1409 = vmatpush2.msra.mxu0 %v243
    %1410 = vmatprep.subr.mxu0 %v239
    %1411 = vmatpush2.msra.mxu0 %v238
    %1412 = vmatprep.subr.mxu0 %v234
    %1413 = vmatpush2.msra.mxu0 %v233
    %1414 = vmatprep.subr.mxu0 %v229
    %1415 = vmatpush2.msra.mxu0 %v228
    %1416 = vmatprep.subr.mxu0 %v224
    %1417 = vmatpush2.msra.mxu0 %v223
    %1418 = vmatprep.subr.mxu0 %v219
    %1419 = vmatpush2.msra.mxu0 %v218
    %1420 = vmatprep.subr.mxu0 %v214
    %1421 = vmatpush2.msra.mxu0 %v213
    %1422 = vmatprep.subr.mxu0 %v209
    %1423 = vmatpush2.msra.mxu0 %v208
    %1424 = vmatprep.subr.mxu0 %v204
    %1425 = vmatpush2.msra.mxu0 %v203
    %1426 = vmatprep.subr.mxu0 %v199
    %1427 = vmatpush2.msra.mxu0 %v198
    %1428 = vmatprep.subr.mxu0 %v194
    %1429 = vmatpush2.msra.mxu0 %v193
    %1430 = vmatprep.subr.mxu0 %v189
    %1431 = vmatpush2.msra.mxu0 %v188
    %1432 = vmatprep.subr.mxu0 %v184
    %1433 = vmatpush2.msra.mxu0 %v183
    %1434 = vmatprep.subr.mxu0 %v179
    %1435 = vmatpush2.msra.mxu0 %v178
    %1436 = vmatprep.subr.mxu0 %v174
    %1437 = vmatpush2.msra.mxu0 %v173
    %1438 = vmatprep.mubr.f32.mxu0 %v78
    %1439 = vmatmul.mubr.f32.gmra.mxu0 %v77
    %v1440 = vpop.f32.mrf.mxu0
    %v1441 = vadd.f32 %v1348, %v1440
    %v1442 = vpop.f32.mrf.mxu0
    %v1443 = vadd.f32 %v1352, %v1442
    %1444 = vdwg.mxu0
    %1445 = vmatprep.subr.mxu0 %v329
    %1446 = vmatpush1.msra.mxu0 %v328
    %1447 = vmatprep.subr.mxu0 %v324
    %1448 = vmatpush1.msra.mxu0 %v323
    %1449 = vmatprep.subr.mxu0 %v319
    %1450 = vmatpush1.msra.mxu0 %v318
    %1451 = vmatprep.subr.mxu0 %v314
    %1452 = vmatpush1.msra.mxu0 %v313
    %1453 = vmatprep.subr.mxu0 %v309
    %1454 = vmatpush1.msra.mxu0 %v308
    %1455 = vmatprep.subr.mxu0 %v304
    %1456 = vmatpush1.msra.mxu0 %v303
    %1457 = vmatprep.subr.mxu0 %v299
    %1458 = vmatpush1.msra.mxu0 %v298
    %1459 = vmatprep.subr.mxu0 %v294
    %1460 = vmatpush1.msra.mxu0 %v293
    %1461 = vmatprep.subr.mxu0 %v289
    %1462 = vmatpush1.msra.mxu0 %v288
    %1463 = vmatprep.subr.mxu0 %v284
    %1464 = vmatpush1.msra.mxu0 %v283
    %1465 = vmatprep.subr.mxu0 %v279
    %1466 = vmatpush1.msra.mxu0 %v278
    %1467 = vmatprep.subr.mxu0 %v274
    %1468 = vmatpush1.msra.mxu0 %v273
    %1469 = vmatprep.subr.mxu0 %v269
    %1470 = vmatpush1.msra.mxu0 %v268
    %1471 = vmatprep.subr.mxu0 %v264
    %1472 = vmatpush1.msra.mxu0 %v263
    %1473 = vmatprep.subr.mxu0 %v259
    %1474 = vmatpush1.msra.mxu0 %v258
    %1475 = vmatprep.subr.mxu0 %v254
    %1476 = vmatpush1.msra.mxu0 %v253
    %1477 = vmatprep.subr.mxu0 %v409
    %1478 = vmatpush2.msra.mxu0 %v408
    %1479 = vmatprep.subr.mxu0 %v404
    %1480 = vmatpush2.msra.mxu0 %v403
    %1481 = vmatprep.subr.mxu0 %v399
    %1482 = vmatpush2.msra.mxu0 %v398
    %1483 = vmatprep.subr.mxu0 %v394
    %1484 = vmatpush2.msra.mxu0 %v393
    %1485 = vmatprep.subr.mxu0 %v389
    %1486 = vmatpush2.msra.mxu0 %v388
    %1487 = vmatprep.subr.mxu0 %v384
    %1488 = vmatpush2.msra.mxu0 %v383
    %1489 = vmatprep.subr.mxu0 %v379
    %1490 = vmatpush2.msra.mxu0 %v378
    %1491 = vmatprep.subr.mxu0 %v374
    %1492 = vmatpush2.msra.mxu0 %v373
    %1493 = vmatprep.subr.mxu0 %v369
    %1494 = vmatpush2.msra.mxu0 %v368
    %1495 = vmatprep.subr.mxu0 %v364
    %1496 = vmatpush2.msra.mxu0 %v363
    %1497 = vmatprep.subr.mxu0 %v359
    %1498 = vmatpush2.msra.mxu0 %v358
    %1499 = vmatprep.subr.mxu0 %v354
    %1500 = vmatpush2.msra.mxu0 %v353
    %1501 = vmatprep.subr.mxu0 %v349
    %1502 = vmatpush2.msra.mxu0 %v348
    %1503 = vmatprep.subr.mxu0 %v344
    %1504 = vmatpush2.msra.mxu0 %v343
    %1505 = vmatprep.subr.mxu0 %v339
    %1506 = vmatpush2.msra.mxu0 %v338
    %1507 = vmatprep.subr.mxu0 %v334
    %1508 = vmatpush2.msra.mxu0 %v333
    %1509 = vmatprep.mubr.f32.mxu0 %v80
    %1510 = vmatmul.mubr.f32.gmra.mxu0 %v79
    %v1511 = vpop.f32.mrf.mxu0
    %v1512 = vadd.f32 %v1441, %v1511
    %v1513 = vpop.f32.mrf.mxu0
    %v1514 = vadd.f32 %v1443, %v1513
    %1515 = vdwg.mxu0
    %1516 = vmatprep.subr.mxu0 %v489
    %1517 = vmatpush1.msra.mxu0 %v488
    %1518 = vmatprep.subr.mxu0 %v484
    %1519 = vmatpush1.msra.mxu0 %v483
    %1520 = vmatprep.subr.mxu0 %v479
    %1521 = vmatpush1.msra.mxu0 %v478
    %1522 = vmatprep.subr.mxu0 %v474
    %1523 = vmatpush1.msra.mxu0 %v473
    %1524 = vmatprep.subr.mxu0 %v469
    %1525 = vmatpush1.msra.mxu0 %v468
    %1526 = vmatprep.subr.mxu0 %v464
    %1527 = vmatpush1.msra.mxu0 %v463
    %1528 = vmatprep.subr.mxu0 %v459
    %1529 = vmatpush1.msra.mxu0 %v458
    %1530 = vmatprep.subr.mxu0 %v454
    %1531 = vmatpush1.msra.mxu0 %v453
    %1532 = vmatprep.subr.mxu0 %v449
    %1533 = vmatpush1.msra.mxu0 %v448
    %1534 = vmatprep.subr.mxu0 %v444
    %1535 = vmatpush1.msra.mxu0 %v443
    %1536 = vmatprep.subr.mxu0 %v439
    %1537 = vmatpush1.msra.mxu0 %v438
    %1538 = vmatprep.subr.mxu0 %v434
    %1539 = vmatpush1.msra.mxu0 %v433
    %1540 = vmatprep.subr.mxu0 %v429
    %1541 = vmatpush1.msra.mxu0 %v428
    %1542 = vmatprep.subr.mxu0 %v424
    %1543 = vmatpush1.msra.mxu0 %v423
    %1544 = vmatprep.subr.mxu0 %v419
    %1545 = vmatpush1.msra.mxu0 %v418
    %1546 = vmatprep.subr.mxu0 %v414
    %1547 = vmatpush1.msra.mxu0 %v413
    %1548 = vmatprep.subr.mxu0 %v569
    %1549 = vmatpush2.msra.mxu0 %v568
    %1550 = vmatprep.subr.mxu0 %v564
    %1551 = vmatpush2.msra.mxu0 %v563
    %1552 = vmatprep.subr.mxu0 %v559
    %1553 = vmatpush2.msra.mxu0 %v558
    %1554 = vmatprep.subr.mxu0 %v554
    %1555 = vmatpush2.msra.mxu0 %v553
    %1556 = vmatprep.subr.mxu0 %v549
    %1557 = vmatpush2.msra.mxu0 %v548
    %1558 = vmatprep.subr.mxu0 %v544
    %1559 = vmatpush2.msra.mxu0 %v543
    %1560 = vmatprep.subr.mxu0 %v539
    %1561 = vmatpush2.msra.mxu0 %v538
    %1562 = vmatprep.subr.mxu0 %v534
    %1563 = vmatpush2.msra.mxu0 %v533
    %1564 = vmatprep.subr.mxu0 %v529
    %1565 = vmatpush2.msra.mxu0 %v528
    %1566 = vmatprep.subr.mxu0 %v524
    %1567 = vmatpush2.msra.mxu0 %v523
    %1568 = vmatprep.subr.mxu0 %v519
    %1569 = vmatpush2.msra.mxu0 %v518
    %1570 = vmatprep.subr.mxu0 %v514
    %1571 = vmatpush2.msra.mxu0 %v513
    %1572 = vmatprep.subr.mxu0 %v509
    %1573 = vmatpush2.msra.mxu0 %v508
    %1574 = vmatprep.subr.mxu0 %v504
    %1575 = vmatpush2.msra.mxu0 %v503
    %1576 = vmatprep.subr.mxu0 %v499
    %1577 = vmatpush2.msra.mxu0 %v498
    %1578 = vmatprep.subr.mxu0 %v494
    %1579 = vmatpush2.msra.mxu0 %v493
    %1580 = vmatprep.mubr.f32.mxu0 %v82
    %1581 = vmatmul.mubr.f32.gmra.mxu0 %v81
    %v1582 = vpop.f32.mrf.mxu0
    %v1583 = vadd.f32 %v1512, %v1582
    %v1584 = vpop.f32.mrf.mxu0
    %v1585 = vadd.f32 %v1514, %v1584
    %1586 = vdwg.mxu0
    %1587 = vmatprep.subr.mxu0 %v649
    %1588 = vmatpush1.msra.mxu0 %v648
    %1589 = vmatprep.subr.mxu0 %v644
    %1590 = vmatpush1.msra.mxu0 %v643
    %1591 = vmatprep.subr.mxu0 %v639
    %1592 = vmatpush1.msra.mxu0 %v638
    %1593 = vmatprep.subr.mxu0 %v634
    %1594 = vmatpush1.msra.mxu0 %v633
    %1595 = vmatprep.subr.mxu0 %v629
    %1596 = vmatpush1.msra.mxu0 %v628
    %1597 = vmatprep.subr.mxu0 %v624
    %1598 = vmatpush1.msra.mxu0 %v623
    %1599 = vmatprep.subr.mxu0 %v619
    %1600 = vmatpush1.msra.mxu0 %v618
    %1601 = vmatprep.subr.mxu0 %v614
    %1602 = vmatpush1.msra.mxu0 %v613
    %1603 = vmatprep.subr.mxu0 %v609
    %1604 = vmatpush1.msra.mxu0 %v608
    %1605 = vmatprep.subr.mxu0 %v604
    %1606 = vmatpush1.msra.mxu0 %v603
    %1607 = vmatprep.subr.mxu0 %v599
    %1608 = vmatpush1.msra.mxu0 %v598
    %1609 = vmatprep.subr.mxu0 %v594
    %1610 = vmatpush1.msra.mxu0 %v593
    %1611 = vmatprep.subr.mxu0 %v589
    %1612 = vmatpush1.msra.mxu0 %v588
    %1613 = vmatprep.subr.mxu0 %v584
    %1614 = vmatpush1.msra.mxu0 %v583
    %1615 = vmatprep.subr.mxu0 %v579
    %1616 = vmatpush1.msra.mxu0 %v578
    %1617 = vmatprep.subr.mxu0 %v574
    %1618 = vmatpush1.msra.mxu0 %v573
    %1619 = vmatprep.subr.mxu0 %v729
    %1620 = vmatpush2.msra.mxu0 %v728
    %1621 = vmatprep.subr.mxu0 %v724
    %1622 = vmatpush2.msra.mxu0 %v723
    %1623 = vmatprep.subr.mxu0 %v719
    %1624 = vmatpush2.msra.mxu0 %v718
    %1625 = vmatprep.subr.mxu0 %v714
    %1626 = vmatpush2.msra.mxu0 %v713
    %1627 = vmatprep.subr.mxu0 %v709
    %1628 = vmatpush2.msra.mxu0 %v708
    %1629 = vmatprep.subr.mxu0 %v704
    %1630 = vmatpush2.msra.mxu0 %v703
    %1631 = vmatprep.subr.mxu0 %v699
    %1632 = vmatpush2.msra.mxu0 %v698
    %1633 = vmatprep.subr.mxu0 %v694
    %1634 = vmatpush2.msra.mxu0 %v693
    %1635 = vmatprep.subr.mxu0 %v689
    %1636 = vmatpush2.msra.mxu0 %v688
    %1637 = vmatprep.subr.mxu0 %v684
    %1638 = vmatpush2.msra.mxu0 %v683
    %1639 = vmatprep.subr.mxu0 %v679
    %1640 = vmatpush2.msra.mxu0 %v678
    %1641 = vmatprep.subr.mxu0 %v674
    %1642 = vmatpush2.msra.mxu0 %v673
    %1643 = vmatprep.subr.mxu0 %v669
    %1644 = vmatpush2.msra.mxu0 %v668
    %1645 = vmatprep.subr.mxu0 %v664
    %1646 = vmatpush2.msra.mxu0 %v663
    %1647 = vmatprep.subr.mxu0 %v659
    %1648 = vmatpush2.msra.mxu0 %v658
    %1649 = vmatprep.subr.mxu0 %v654
    %1650 = vmatpush2.msra.mxu0 %v653
    %1651 = vmatprep.mubr.f32.mxu0 %v84
    %1652 = vmatmul.mubr.f32.gmra.mxu0 %v83
    %v1653 = vpop.f32.mrf.mxu0
    %v1654 = vadd.f32 %v1583, %v1653
    %v1655 = vpop.f32.mrf.mxu0
    %v1656 = vadd.f32 %v1585, %v1655
    %1657 = vdwg.mxu0
    %1658 = vmatprep.subr.mxu0 %v809
    %1659 = vmatpush1.msra.mxu0 %v808
    %1660 = vmatprep.subr.mxu0 %v804
    %1661 = vmatpush1.msra.mxu0 %v803
    %1662 = vmatprep.subr.mxu0 %v799
    %1663 = vmatpush1.msra.mxu0 %v798
    %1664 = vmatprep.subr.mxu0 %v794
    %1665 = vmatpush1.msra.mxu0 %v793
    %1666 = vmatprep.subr.mxu0 %v789
    %1667 = vmatpush1.msra.mxu0 %v788
    %1668 = vmatprep.subr.mxu0 %v784
    %1669 = vmatpush1.msra.mxu0 %v783
    %1670 = vmatprep.subr.mxu0 %v779
    %1671 = vmatpush1.msra.mxu0 %v778
    %1672 = vmatprep.subr.mxu0 %v774
    %1673 = vmatpush1.msra.mxu0 %v773
    %1674 = vmatprep.subr.mxu0 %v769
    %1675 = vmatpush1.msra.mxu0 %v768
    %1676 = vmatprep.subr.mxu0 %v764
    %1677 = vmatpush1.msra.mxu0 %v763
    %1678 = vmatprep.subr.mxu0 %v759
    %1679 = vmatpush1.msra.mxu0 %v758
    %1680 = vmatprep.subr.mxu0 %v754
    %1681 = vmatpush1.msra.mxu0 %v753
    %1682 = vmatprep.subr.mxu0 %v749
    %1683 = vmatpush1.msra.mxu0 %v748
    %1684 = vmatprep.subr.mxu0 %v744
    %1685 = vmatpush1.msra.mxu0 %v743
    %1686 = vmatprep.subr.mxu0 %v739
    %1687 = vmatpush1.msra.mxu0 %v738
    %1688 = vmatprep.subr.mxu0 %v734
    %1689 = vmatpush1.msra.mxu0 %v733
    %1690 = vmatprep.subr.mxu0 %v889
    %1691 = vmatpush2.msra.mxu0 %v888
    %1692 = vmatprep.subr.mxu0 %v884
    %1693 = vmatpush2.msra.mxu0 %v883
    %1694 = vmatprep.subr.mxu0 %v879
    %1695 = vmatpush2.msra.mxu0 %v878
    %1696 = vmatprep.subr.mxu0 %v874
    %1697 = vmatpush2.msra.mxu0 %v873
    %1698 = vmatprep.subr.mxu0 %v869
    %1699 = vmatpush2.msra.mxu0 %v868
    %1700 = vmatprep.subr.mxu0 %v864
    %1701 = vmatpush2.msra.mxu0 %v863
    %1702 = vmatprep.subr.mxu0 %v859
    %1703 = vmatpush2.msra.mxu0 %v858
    %1704 = vmatprep.subr.mxu0 %v854
    %1705 = vmatpush2.msra.mxu0 %v853
    %1706 = vmatprep.subr.mxu0 %v849
    %1707 = vmatpush2.msra.mxu0 %v848
    %1708 = vmatprep.subr.mxu0 %v844
    %1709 = vmatpush2.msra.mxu0 %v843
    %1710 = vmatprep.subr.mxu0 %v839
    %1711 = vmatpush2.msra.mxu0 %v838
    %1712 = vmatprep.subr.mxu0 %v834
    %1713 = vmatpush2.msra.mxu0 %v833
    %1714 = vmatprep.subr.mxu0 %v829
    %1715 = vmatpush2.msra.mxu0 %v828
    %1716 = vmatprep.subr.mxu0 %v824
    %1717 = vmatpush2.msra.mxu0 %v823
    %1718 = vmatprep.subr.mxu0 %v819
    %1719 = vmatpush2.msra.mxu0 %v818
    %1720 = vmatprep.subr.mxu0 %v814
    %1721 = vmatpush2.msra.mxu0 %v813
    %1722 = vmatprep.mubr.f32.mxu0 %v86
    %1723 = vmatmul.mubr.f32.gmra.mxu0 %v85
    %v1724 = vpop.f32.mrf.mxu0
    %v1725 = vadd.f32 %v1654, %v1724
    %v1726 = vpop.f32.mrf.mxu0
    %v1727 = vadd.f32 %v1656, %v1726
    %1728 = vdwg.mxu0
    %1729 = vmatprep.subr.mxu0 %v969
    %1730 = vmatpush1.msra.mxu0 %v968
    %1731 = vmatprep.subr.mxu0 %v964
    %1732 = vmatpush1.msra.mxu0 %v963
    %1733 = vmatprep.subr.mxu0 %v959
    %1734 = vmatpush1.msra.mxu0 %v958
    %1735 = vmatprep.subr.mxu0 %v954
    %1736 = vmatpush1.msra.mxu0 %v953
    %1737 = vmatprep.subr.mxu0 %v949
    %1738 = vmatpush1.msra.mxu0 %v948
    %1739 = vmatprep.subr.mxu0 %v944
    %1740 = vmatpush1.msra.mxu0 %v943
    %1741 = vmatprep.subr.mxu0 %v939
    %1742 = vmatpush1.msra.mxu0 %v938
    %1743 = vmatprep.subr.mxu0 %v934
    %1744 = vmatpush1.msra.mxu0 %v933
    %1745 = vmatprep.subr.mxu0 %v929
    %1746 = vmatpush1.msra.mxu0 %v928
    %1747 = vmatprep.subr.mxu0 %v924
    %1748 = vmatpush1.msra.mxu0 %v923
    %1749 = vmatprep.subr.mxu0 %v919
    %1750 = vmatpush1.msra.mxu0 %v918
    %1751 = vmatprep.subr.mxu0 %v914
    %1752 = vmatpush1.msra.mxu0 %v913
    %1753 = vmatprep.subr.mxu0 %v909
    %1754 = vmatpush1.msra.mxu0 %v908
    %1755 = vmatprep.subr.mxu0 %v904
    %1756 = vmatpush1.msra.mxu0 %v903
    %1757 = vmatprep.subr.mxu0 %v899
    %1758 = vmatpush1.msra.mxu0 %v898
    %1759 = vmatprep.subr.mxu0 %v894
    %1760 = vmatpush1.msra.mxu0 %v893
    %1761 = vmatprep.subr.mxu0 %v1049
    %1762 = vmatpush2.msra.mxu0 %v1048
    %1763 = vmatprep.subr.mxu0 %v1044
    %1764 = vmatpush2.msra.mxu0 %v1043
    %1765 = vmatprep.subr.mxu0 %v1039
    %1766 = vmatpush2.msra.mxu0 %v1038
    %1767 = vmatprep.subr.mxu0 %v1034
    %1768 = vmatpush2.msra.mxu0 %v1033
    %1769 = vmatprep.subr.mxu0 %v1029
    %1770 = vmatpush2.msra.mxu0 %v1028
    %1771 = vmatprep.subr.mxu0 %v1024
    %1772 = vmatpush2.msra.mxu0 %v1023
    %1773 = vmatprep.subr.mxu0 %v1019
    %1774 = vmatpush2.msra.mxu0 %v1018
    %1775 = vmatprep.subr.mxu0 %v1014
    %1776 = vmatpush2.msra.mxu0 %v1013
    %1777 = vmatprep.subr.mxu0 %v1009
    %1778 = vmatpush2.msra.mxu0 %v1008
    %1779 = vmatprep.subr.mxu0 %v1004
    %1780 = vmatpush2.msra.mxu0 %v1003
    %1781 = vmatprep.subr.mxu0 %v999
    %1782 = vmatpush2.msra.mxu0 %v998
    %1783 = vmatprep.subr.mxu0 %v994
    %1784 = vmatpush2.msra.mxu0 %v993
    %1785 = vmatprep.subr.mxu0 %v989
    %1786 = vmatpush2.msra.mxu0 %v988
    %1787 = vmatprep.subr.mxu0 %v984
    %1788 = vmatpush2.msra.mxu0 %v983
    %1789 = vmatprep.subr.mxu0 %v979
    %1790 = vmatpush2.msra.mxu0 %v978
    %1791 = vmatprep.subr.mxu0 %v974
    %1792 = vmatpush2.msra.mxu0 %v973
    %1793 = vmatprep.mubr.f32.mxu0 %v88
    %1794 = vmatmul.mubr.f32.gmra.mxu0 %v87
    %v1795 = vpop.f32.mrf.mxu0
    %v1796 = vadd.f32 %v1725, %v1795
    %v1797 = vpop.f32.mrf.mxu0
    %v1798 = vadd.f32 %v1727, %v1797
    %1799 = vdwg.mxu0
    %1800 = vmatprep.subr.mxu0 %v1129
    %1801 = vmatpush1.msra.mxu0 %v1128
    %1802 = vmatprep.subr.mxu0 %v1124
    %1803 = vmatpush1.msra.mxu0 %v1123
    %1804 = vmatprep.subr.mxu0 %v1119
    %1805 = vmatpush1.msra.mxu0 %v1118
    %1806 = vmatprep.subr.mxu0 %v1114
    %1807 = vmatpush1.msra.mxu0 %v1113
    %1808 = vmatprep.subr.mxu0 %v1109
    %1809 = vmatpush1.msra.mxu0 %v1108
    %1810 = vmatprep.subr.mxu0 %v1104
    %1811 = vmatpush1.msra.mxu0 %v1103
    %1812 = vmatprep.subr.mxu0 %v1099
    %1813 = vmatpush1.msra.mxu0 %v1098
    %1814 = vmatprep.subr.mxu0 %v1094
    %1815 = vmatpush1.msra.mxu0 %v1093
    %1816 = vmatprep.subr.mxu0 %v1089
    %1817 = vmatpush1.msra.mxu0 %v1088
    %1818 = vmatprep.subr.mxu0 %v1084
    %1819 = vmatpush1.msra.mxu0 %v1083
    %1820 = vmatprep.subr.mxu0 %v1079
    %1821 = vmatpush1.msra.mxu0 %v1078
    %1822 = vmatprep.subr.mxu0 %v1074
    %1823 = vmatpush1.msra.mxu0 %v1073
    %1824 = vmatprep.subr.mxu0 %v1069
    %1825 = vmatpush1.msra.mxu0 %v1068
    %1826 = vmatprep.subr.mxu0 %v1064
    %1827 = vmatpush1.msra.mxu0 %v1063
    %1828 = vmatprep.subr.mxu0 %v1059
    %1829 = vmatpush1.msra.mxu0 %v1058
    %1830 = vmatprep.subr.mxu0 %v1054
    %1831 = vmatpush1.msra.mxu0 %v1053
    %1832 = vmatprep.subr.mxu0 %v1209
    %1833 = vmatpush2.msra.mxu0 %v1208
    %1834 = vmatprep.subr.mxu0 %v1204
    %1835 = vmatpush2.msra.mxu0 %v1203
    %1836 = vmatprep.subr.mxu0 %v1199
    %1837 = vmatpush2.msra.mxu0 %v1198
    %1838 = vmatprep.subr.mxu0 %v1194
    %1839 = vmatpush2.msra.mxu0 %v1193
    %1840 = vmatprep.subr.mxu0 %v1189
    %1841 = vmatpush2.msra.mxu0 %v1188
    %1842 = vmatprep.subr.mxu0 %v1184
    %1843 = vmatpush2.msra.mxu0 %v1183
    %1844 = vmatprep.subr.mxu0 %v1179
    %1845 = vmatpush2.msra.mxu0 %v1178
    %1846 = vmatprep.subr.mxu0 %v1174
    %1847 = vmatpush2.msra.mxu0 %v1173
    %1848 = vmatprep.subr.mxu0 %v1169
    %1849 = vmatpush2.msra.mxu0 %v1168
    %1850 = vmatprep.subr.mxu0 %v1164
    %1851 = vmatpush2.msra.mxu0 %v1163
    %1852 = vmatprep.subr.mxu0 %v1159
    %1853 = vmatpush2.msra.mxu0 %v1158
    %1854 = vmatprep.subr.mxu0 %v1154
    %1855 = vmatpush2.msra.mxu0 %v1153
    %1856 = vmatprep.subr.mxu0 %v1149
    %1857 = vmatpush2.msra.mxu0 %v1148
    %1858 = vmatprep.subr.mxu0 %v1144
    %1859 = vmatpush2.msra.mxu0 %v1143
    %1860 = vmatprep.subr.mxu0 %v1139
    %1861 = vmatpush2.msra.mxu0 %v1138
    %1862 = vmatprep.subr.mxu0 %v1134
    %1863 = vmatpush2.msra.mxu0 %v1133
    %1864 = vmatprep.mubr.f32.mxu0 %v90
    %1865 = vmatmul.mubr.f32.gmra.mxu0 %v89
    %v1866 = vpop.f32.mrf.mxu0
    %v1867 = vadd.f32 %v1796, %v1866
    %v1868 = vpop.f32.mrf.mxu0
    %v1869 = vadd.f32 %v1798, %v1868
    %1870 = vdwg.mxu0
    %1871 = vmatprep.subr.mxu0 %v1289
    %1872 = vmatpush1.msra.mxu0 %v1288
    %1873 = vmatprep.subr.mxu0 %v1284
    %1874 = vmatpush1.msra.mxu0 %v1283
    %1875 = vmatprep.subr.mxu0 %v1279
    %1876 = vmatpush1.msra.mxu0 %v1278
    %1877 = vmatprep.subr.mxu0 %v1274
    %1878 = vmatpush1.msra.mxu0 %v1273
    %1879 = vmatprep.subr.mxu0 %v1269
    %1880 = vmatpush1.msra.mxu0 %v1268
    %1881 = vmatprep.subr.mxu0 %v1264
    %1882 = vmatpush1.msra.mxu0 %v1263
    %1883 = vmatprep.subr.mxu0 %v1259
    %1884 = vmatpush1.msra.mxu0 %v1258
    %1885 = vmatprep.subr.mxu0 %v1254
    %1886 = vmatpush1.msra.mxu0 %v1253
    %1887 = vmatprep.subr.mxu0 %v1249
    %1888 = vmatpush1.msra.mxu0 %v1248
    %1889 = vmatprep.subr.mxu0 %v1244
    %1890 = vmatpush1.msra.mxu0 %v1243
    %1891 = vmatprep.subr.mxu0 %v1239
    %1892 = vmatpush1.msra.mxu0 %v1238
    %1893 = vmatprep.subr.mxu0 %v1234
    %1894 = vmatpush1.msra.mxu0 %v1233
    %1895 = vmatprep.subr.mxu0 %v1229
    %1896 = vmatpush1.msra.mxu0 %v1228
    %1897 = vmatprep.subr.mxu0 %v1224
    %1898 = vmatpush1.msra.mxu0 %v1223
    %1899 = vmatprep.subr.mxu0 %v1219
    %1900 = vmatpush1.msra.mxu0 %v1218
    %1901 = vmatprep.subr.mxu0 %v1214
    %1902 = vmatpush1.msra.mxu0 %v1213
    %1903 = vmatprep.subr.mxu0 0.0
    %1904 = vmatpush2.msra.mxu0 0.0
    %1905 = vmatprep.subr.mxu0 0.0
    %1906 = vmatpush2.msra.mxu0 0.0
    %1907 = vmatprep.subr.mxu0 0.0
    %1908 = vmatpush2.msra.mxu0 0.0
    %1909 = vmatprep.subr.mxu0 0.0
    %1910 = vmatpush2.msra.mxu0 0.0
    %1911 = vmatprep.subr.mxu0 0.0
    %1912 = vmatpush2.msra.mxu0 0.0
    %1913 = vmatprep.subr.mxu0 0.0
    %1914 = vmatpush2.msra.mxu0 0.0
    %1915 = vmatprep.subr.mxu0 %v1339
    %1916 = vmatpush2.msra.mxu0 %v1338
    %1917 = vmatprep.subr.mxu0 %v1334
    %1918 = vmatpush2.msra.mxu0 %v1333
    %1919 = vmatprep.subr.mxu0 %v1329
    %1920 = vmatpush2.msra.mxu0 %v1328
    %1921 = vmatprep.subr.mxu0 %v1324
    %1922 = vmatpush2.msra.mxu0 %v1323
    %1923 = vmatprep.subr.mxu0 %v1319
    %1924 = vmatpush2.msra.mxu0 %v1318
    %1925 = vmatprep.subr.mxu0 %v1314
    %1926 = vmatpush2.msra.mxu0 %v1313
    %1927 = vmatprep.subr.mxu0 %v1309
    %1928 = vmatpush2.msra.mxu0 %v1308
    %1929 = vmatprep.subr.mxu0 %v1304
    %1930 = vmatpush2.msra.mxu0 %v1303
    %1931 = vmatprep.subr.mxu0 %v1299
    %1932 = vmatpush2.msra.mxu0 %v1298
    %1933 = vmatprep.subr.mxu0 %v1294
    %1934 = vmatpush2.msra.mxu0 %v1293
    %1935 = vmatprep.mubr.f32.mxu0 %v1372
    %1936 = vmatmul.mubr.f32.gmra.mxu0 %v91
    %v1937 = vpop.f32.mrf.mxu0
    %v1938 = vadd.f32 %v1867, %v1937
    %v1939 = vpop.f32.mrf.mxu0
    %v1940 = vadd.f32 %v1869, %v1939
    %1941 = vdwg.mxu0
    %1942 = vmatprep.subr.mxu0 %v171
    %1943 = vmatpush1.msra.mxu0 %v170
    %1944 = vmatprep.subr.mxu0 %v166
    %1945 = vmatpush1.msra.mxu0 %v165
    %1946 = vmatprep.subr.mxu0 %v161
    %1947 = vmatpush1.msra.mxu0 %v160
    %1948 = vmatprep.subr.mxu0 %v156
    %1949 = vmatpush1.msra.mxu0 %v155
    %1950 = vmatprep.subr.mxu0 %v151
    %1951 = vmatpush1.msra.mxu0 %v150
    %1952 = vmatprep.subr.mxu0 %v146
    %1953 = vmatpush1.msra.mxu0 %v145
    %1954 = vmatprep.subr.mxu0 %v141
    %1955 = vmatpush1.msra.mxu0 %v140
    %1956 = vmatprep.subr.mxu0 %v136
    %1957 = vmatpush1.msra.mxu0 %v135
    %1958 = vmatprep.subr.mxu0 %v131
    %1959 = vmatpush1.msra.mxu0 %v130
    %1960 = vmatprep.subr.mxu0 %v126
    %1961 = vmatpush1.msra.mxu0 %v125
    %1962 = vmatprep.subr.mxu0 %v121
    %1963 = vmatpush1.msra.mxu0 %v120
    %1964 = vmatprep.subr.mxu0 %v116
    %1965 = vmatpush1.msra.mxu0 %v115
    %1966 = vmatprep.subr.mxu0 %v111
    %1967 = vmatpush1.msra.mxu0 %v110
    %1968 = vmatprep.subr.mxu0 %v106
    %1969 = vmatpush1.msra.mxu0 %v105
    %1970 = vmatprep.subr.mxu0 %v101
    %1971 = vmatpush1.msra.mxu0 %v100
    %1972 = vmatprep.subr.mxu0 %v96
    %1973 = vmatpush1.msra.mxu0 %v95
    %1974 = vmatprep.subr.mxu0 %v251
    %1975 = vmatpush2.msra.mxu0 %v250
    %1976 = vmatprep.subr.mxu0 %v246
    %1977 = vmatpush2.msra.mxu0 %v245
    %1978 = vmatprep.subr.mxu0 %v241
    %1979 = vmatpush2.msra.mxu0 %v240
    %1980 = vmatprep.subr.mxu0 %v236
    %1981 = vmatpush2.msra.mxu0 %v235
    %1982 = vmatprep.subr.mxu0 %v231
    %1983 = vmatpush2.msra.mxu0 %v230
    %1984 = vmatprep.subr.mxu0 %v226
    %1985 = vmatpush2.msra.mxu0 %v225
    %1986 = vmatprep.subr.mxu0 %v221
    %1987 = vmatpush2.msra.mxu0 %v220
    %1988 = vmatprep.subr.mxu0 %v216
    %1989 = vmatpush2.msra.mxu0 %v215
    %1990 = vmatprep.subr.mxu0 %v211
    %1991 = vmatpush2.msra.mxu0 %v210
    %1992 = vmatprep.subr.mxu0 %v206
    %1993 = vmatpush2.msra.mxu0 %v205
    %1994 = vmatprep.subr.mxu0 %v201
    %1995 = vmatpush2.msra.mxu0 %v200
    %1996 = vmatprep.subr.mxu0 %v196
    %1997 = vmatpush2.msra.mxu0 %v195
    %1998 = vmatprep.subr.mxu0 %v191
    %1999 = vmatpush2.msra.mxu0 %v190
    %2000 = vmatprep.subr.mxu0 %v186
    %2001 = vmatpush2.msra.mxu0 %v185
    %2002 = vmatprep.subr.mxu0 %v181
    %2003 = vmatpush2.msra.mxu0 %v180
    %2004 = vmatprep.subr.mxu0 %v176
    %2005 = vmatpush2.msra.mxu0 %v175
    %2006 = vmatprep.mubr.f32.mxu0 %v78
    %2007 = vmatmul.mubr.f32.gmra.mxu0 %v77
    %v2008 = vpop.f32.mrf.mxu0
    %v2009 = vadd.f32 %v1356, %v2008
    %v2010 = vpop.f32.mrf.mxu0
    %v2011 = vadd.f32 %v1360, %v2010
    %2012 = vdwg.mxu0
    %2013 = vmatprep.subr.mxu0 %v331
    %2014 = vmatpush1.msra.mxu0 %v330
    %2015 = vmatprep.subr.mxu0 %v326
    %2016 = vmatpush1.msra.mxu0 %v325
    %2017 = vmatprep.subr.mxu0 %v321
    %2018 = vmatpush1.msra.mxu0 %v320
    %2019 = vmatprep.subr.mxu0 %v316
    %2020 = vmatpush1.msra.mxu0 %v315
    %2021 = vmatprep.subr.mxu0 %v311
    %2022 = vmatpush1.msra.mxu0 %v310
    %2023 = vmatprep.subr.mxu0 %v306
    %2024 = vmatpush1.msra.mxu0 %v305
    %2025 = vmatprep.subr.mxu0 %v301
    %2026 = vmatpush1.msra.mxu0 %v300
    %2027 = vmatprep.subr.mxu0 %v296
    %2028 = vmatpush1.msra.mxu0 %v295
    %2029 = vmatprep.subr.mxu0 %v291
    %2030 = vmatpush1.msra.mxu0 %v290
    %2031 = vmatprep.subr.mxu0 %v286
    %2032 = vmatpush1.msra.mxu0 %v285
    %2033 = vmatprep.subr.mxu0 %v281
    %2034 = vmatpush1.msra.mxu0 %v280
    %2035 = vmatprep.subr.mxu0 %v276
    %2036 = vmatpush1.msra.mxu0 %v275
    %2037 = vmatprep.subr.mxu0 %v271
    %2038 = vmatpush1.msra.mxu0 %v270
    %2039 = vmatprep.subr.mxu0 %v266
    %2040 = vmatpush1.msra.mxu0 %v265
    %2041 = vmatprep.subr.mxu0 %v261
    %2042 = vmatpush1.msra.mxu0 %v260
    %2043 = vmatprep.subr.mxu0 %v256
    %2044 = vmatpush1.msra.mxu0 %v255
    %2045 = vmatprep.subr.mxu0 %v411
    %2046 = vmatpush2.msra.mxu0 %v410
    %2047 = vmatprep.subr.mxu0 %v406
    %2048 = vmatpush2.msra.mxu0 %v405
    %2049 = vmatprep.subr.mxu0 %v401
    %2050 = vmatpush2.msra.mxu0 %v400
    %2051 = vmatprep.subr.mxu0 %v396
    %2052 = vmatpush2.msra.mxu0 %v395
    %2053 = vmatprep.subr.mxu0 %v391
    %2054 = vmatpush2.msra.mxu0 %v390
    %2055 = vmatprep.subr.mxu0 %v386
    %2056 = vmatpush2.msra.mxu0 %v385
    %2057 = vmatprep.subr.mxu0 %v381
    %2058 = vmatpush2.msra.mxu0 %v380
    %2059 = vmatprep.subr.mxu0 %v376
    %2060 = vmatpush2.msra.mxu0 %v375
    %2061 = vmatprep.subr.mxu0 %v371
    %2062 = vmatpush2.msra.mxu0 %v370
    %2063 = vmatprep.subr.mxu0 %v366
    %2064 = vmatpush2.msra.mxu0 %v365
    %2065 = vmatprep.subr.mxu0 %v361
    %2066 = vmatpush2.msra.mxu0 %v360
    %2067 = vmatprep.subr.mxu0 %v356
    %2068 = vmatpush2.msra.mxu0 %v355
    %2069 = vmatprep.subr.mxu0 %v351
    %2070 = vmatpush2.msra.mxu0 %v350
    %2071 = vmatprep.subr.mxu0 %v346
    %2072 = vmatpush2.msra.mxu0 %v345
    %2073 = vmatprep.subr.mxu0 %v341
    %2074 = vmatpush2.msra.mxu0 %v340
    %2075 = vmatprep.subr.mxu0 %v336
    %2076 = vmatpush2.msra.mxu0 %v335
    %2077 = vmatprep.mubr.f32.mxu0 %v80
    %2078 = vmatmul.mubr.f32.gmra.mxu0 %v79
    %v2079 = vpop.f32.mrf.mxu0
    %v2080 = vadd.f32 %v2009, %v2079
    %v2081 = vpop.f32.mrf.mxu0
    %v2082 = vadd.f32 %v2011, %v2081
    %2083 = vdwg.mxu0
    %2084 = vmatprep.subr.mxu0 %v491
    %2085 = vmatpush1.msra.mxu0 %v490
    %2086 = vmatprep.subr.mxu0 %v486
    %2087 = vmatpush1.msra.mxu0 %v485
    %2088 = vmatprep.subr.mxu0 %v481
    %2089 = vmatpush1.msra.mxu0 %v480
    %2090 = vmatprep.subr.mxu0 %v476
    %2091 = vmatpush1.msra.mxu0 %v475
    %2092 = vmatprep.subr.mxu0 %v471
    %2093 = vmatpush1.msra.mxu0 %v470
    %2094 = vmatprep.subr.mxu0 %v466
    %2095 = vmatpush1.msra.mxu0 %v465
    %2096 = vmatprep.subr.mxu0 %v461
    %2097 = vmatpush1.msra.mxu0 %v460
    %2098 = vmatprep.subr.mxu0 %v456
    %2099 = vmatpush1.msra.mxu0 %v455
    %2100 = vmatprep.subr.mxu0 %v451
    %2101 = vmatpush1.msra.mxu0 %v450
    %2102 = vmatprep.subr.mxu0 %v446
    %2103 = vmatpush1.msra.mxu0 %v445
    %2104 = vmatprep.subr.mxu0 %v441
    %2105 = vmatpush1.msra.mxu0 %v440
    %2106 = vmatprep.subr.mxu0 %v436
    %2107 = vmatpush1.msra.mxu0 %v435
    %2108 = vmatprep.subr.mxu0 %v431
    %2109 = vmatpush1.msra.mxu0 %v430
    %2110 = vmatprep.subr.mxu0 %v426
    %2111 = vmatpush1.msra.mxu0 %v425
    %2112 = vmatprep.subr.mxu0 %v421
    %2113 = vmatpush1.msra.mxu0 %v420
    %2114 = vmatprep.subr.mxu0 %v416
    %2115 = vmatpush1.msra.mxu0 %v415
    %2116 = vmatprep.subr.mxu0 %v571
    %2117 = vmatpush2.msra.mxu0 %v570
    %2118 = vmatprep.subr.mxu0 %v566
    %2119 = vmatpush2.msra.mxu0 %v565
    %2120 = vmatprep.subr.mxu0 %v561
    %2121 = vmatpush2.msra.mxu0 %v560
    %2122 = vmatprep.subr.mxu0 %v556
    %2123 = vmatpush2.msra.mxu0 %v555
    %2124 = vmatprep.subr.mxu0 %v551
    %2125 = vmatpush2.msra.mxu0 %v550
    %2126 = vmatprep.subr.mxu0 %v546
    %2127 = vmatpush2.msra.mxu0 %v545
    %2128 = vmatprep.subr.mxu0 %v541
    %2129 = vmatpush2.msra.mxu0 %v540
    %2130 = vmatprep.subr.mxu0 %v536
    %2131 = vmatpush2.msra.mxu0 %v535
    %2132 = vmatprep.subr.mxu0 %v531
    %2133 = vmatpush2.msra.mxu0 %v530
    %2134 = vmatprep.subr.mxu0 %v526
    %2135 = vmatpush2.msra.mxu0 %v525
    %2136 = vmatprep.subr.mxu0 %v521
    %2137 = vmatpush2.msra.mxu0 %v520
    %2138 = vmatprep.subr.mxu0 %v516
    %2139 = vmatpush2.msra.mxu0 %v515
    %2140 = vmatprep.subr.mxu0 %v511
    %2141 = vmatpush2.msra.mxu0 %v510
    %2142 = vmatprep.subr.mxu0 %v506
    %2143 = vmatpush2.msra.mxu0 %v505
    %2144 = vmatprep.subr.mxu0 %v501
    %2145 = vmatpush2.msra.mxu0 %v500
    %2146 = vmatprep.subr.mxu0 %v496
    %2147 = vmatpush2.msra.mxu0 %v495
    %2148 = vmatprep.mubr.f32.mxu0 %v82
    %2149 = vmatmul.mubr.f32.gmra.mxu0 %v81
    %v2150 = vpop.f32.mrf.mxu0
    %v2151 = vadd.f32 %v2080, %v2150
    %v2152 = vpop.f32.mrf.mxu0
    %v2153 = vadd.f32 %v2082, %v2152
    %2154 = vdwg.mxu0
    %2155 = vmatprep.subr.mxu0 %v651
    %2156 = vmatpush1.msra.mxu0 %v650
    %2157 = vmatprep.subr.mxu0 %v646
    %2158 = vmatpush1.msra.mxu0 %v645
    %2159 = vmatprep.subr.mxu0 %v641
    %2160 = vmatpush1.msra.mxu0 %v640
    %2161 = vmatprep.subr.mxu0 %v636
    %2162 = vmatpush1.msra.mxu0 %v635
    %2163 = vmatprep.subr.mxu0 %v631
    %2164 = vmatpush1.msra.mxu0 %v630
    %2165 = vmatprep.subr.mxu0 %v626
    %2166 = vmatpush1.msra.mxu0 %v625
    %2167 = vmatprep.subr.mxu0 %v621
    %2168 = vmatpush1.msra.mxu0 %v620
    %2169 = vmatprep.subr.mxu0 %v616
    %2170 = vmatpush1.msra.mxu0 %v615
    %2171 = vmatprep.subr.mxu0 %v611
    %2172 = vmatpush1.msra.mxu0 %v610
    %2173 = vmatprep.subr.mxu0 %v606
    %2174 = vmatpush1.msra.mxu0 %v605
    %2175 = vmatprep.subr.mxu0 %v601
    %2176 = vmatpush1.msra.mxu0 %v600
    %2177 = vmatprep.subr.mxu0 %v596
    %2178 = vmatpush1.msra.mxu0 %v595
    %2179 = vmatprep.subr.mxu0 %v591
    %2180 = vmatpush1.msra.mxu0 %v590
    %2181 = vmatprep.subr.mxu0 %v586
    %2182 = vmatpush1.msra.mxu0 %v585
    %2183 = vmatprep.subr.mxu0 %v581
    %2184 = vmatpush1.msra.mxu0 %v580
    %2185 = vmatprep.subr.mxu0 %v576
    %2186 = vmatpush1.msra.mxu0 %v575
    %2187 = vmatprep.subr.mxu0 %v731
    %2188 = vmatpush2.msra.mxu0 %v730
    %2189 = vmatprep.subr.mxu0 %v726
    %2190 = vmatpush2.msra.mxu0 %v725
    %2191 = vmatprep.subr.mxu0 %v721
    %2192 = vmatpush2.msra.mxu0 %v720
    %2193 = vmatprep.subr.mxu0 %v716
    %2194 = vmatpush2.msra.mxu0 %v715
    %2195 = vmatprep.subr.mxu0 %v711
    %2196 = vmatpush2.msra.mxu0 %v710
    %2197 = vmatprep.subr.mxu0 %v706
    %2198 = vmatpush2.msra.mxu0 %v705
    %2199 = vmatprep.subr.mxu0 %v701
    %2200 = vmatpush2.msra.mxu0 %v700
    %2201 = vmatprep.subr.mxu0 %v696
    %2202 = vmatpush2.msra.mxu0 %v695
    %2203 = vmatprep.subr.mxu0 %v691
    %2204 = vmatpush2.msra.mxu0 %v690
    %2205 = vmatprep.subr.mxu0 %v686
    %2206 = vmatpush2.msra.mxu0 %v685
    %2207 = vmatprep.subr.mxu0 %v681
    %2208 = vmatpush2.msra.mxu0 %v680
    %2209 = vmatprep.subr.mxu0 %v676
    %2210 = vmatpush2.msra.mxu0 %v675
    %2211 = vmatprep.subr.mxu0 %v671
    %2212 = vmatpush2.msra.mxu0 %v670
    %2213 = vmatprep.subr.mxu0 %v666
    %2214 = vmatpush2.msra.mxu0 %v665
    %2215 = vmatprep.subr.mxu0 %v661
    %2216 = vmatpush2.msra.mxu0 %v660
    %2217 = vmatprep.subr.mxu0 %v656
    %2218 = vmatpush2.msra.mxu0 %v655
    %2219 = vmatprep.mubr.f32.mxu0 %v84
    %2220 = vmatmul.mubr.f32.gmra.mxu0 %v83
    %v2221 = vpop.f32.mrf.mxu0
    %v2222 = vadd.f32 %v2151, %v2221
    %v2223 = vpop.f32.mrf.mxu0
    %v2224 = vadd.f32 %v2153, %v2223
    %2225 = vdwg.mxu0
    %2226 = vmatprep.subr.mxu0 %v811
    %2227 = vmatpush1.msra.mxu0 %v810
    %2228 = vmatprep.subr.mxu0 %v806
    %2229 = vmatpush1.msra.mxu0 %v805
    %2230 = vmatprep.subr.mxu0 %v801
    %2231 = vmatpush1.msra.mxu0 %v800
    %2232 = vmatprep.subr.mxu0 %v796
    %2233 = vmatpush1.msra.mxu0 %v795
    %2234 = vmatprep.subr.mxu0 %v791
    %2235 = vmatpush1.msra.mxu0 %v790
    %2236 = vmatprep.subr.mxu0 %v786
    %2237 = vmatpush1.msra.mxu0 %v785
    %2238 = vmatprep.subr.mxu0 %v781
    %2239 = vmatpush1.msra.mxu0 %v780
    %2240 = vmatprep.subr.mxu0 %v776
    %2241 = vmatpush1.msra.mxu0 %v775
    %2242 = vmatprep.subr.mxu0 %v771
    %2243 = vmatpush1.msra.mxu0 %v770
    %2244 = vmatprep.subr.mxu0 %v766
    %2245 = vmatpush1.msra.mxu0 %v765
    %2246 = vmatprep.subr.mxu0 %v761
    %2247 = vmatpush1.msra.mxu0 %v760
    %2248 = vmatprep.subr.mxu0 %v756
    %2249 = vmatpush1.msra.mxu0 %v755
    %2250 = vmatprep.subr.mxu0 %v751
    %2251 = vmatpush1.msra.mxu0 %v750
    %2252 = vmatprep.subr.mxu0 %v746
    %2253 = vmatpush1.msra.mxu0 %v745
    %2254 = vmatprep.subr.mxu0 %v741
    %2255 = vmatpush1.msra.mxu0 %v740
    %2256 = vmatprep.subr.mxu0 %v736
    %2257 = vmatpush1.msra.mxu0 %v735
    %2258 = vmatprep.subr.mxu0 %v891
    %2259 = vmatpush2.msra.mxu0 %v890
    %2260 = vmatprep.subr.mxu0 %v886
    %2261 = vmatpush2.msra.mxu0 %v885
    %2262 = vmatprep.subr.mxu0 %v881
    %2263 = vmatpush2.msra.mxu0 %v880
    %2264 = vmatprep.subr.mxu0 %v876
    %2265 = vmatpush2.msra.mxu0 %v875
    %2266 = vmatprep.subr.mxu0 %v871
    %2267 = vmatpush2.msra.mxu0 %v870
    %2268 = vmatprep.subr.mxu0 %v866
    %2269 = vmatpush2.msra.mxu0 %v865
    %2270 = vmatprep.subr.mxu0 %v861
    %2271 = vmatpush2.msra.mxu0 %v860
    %2272 = vmatprep.subr.mxu0 %v856
    %2273 = vmatpush2.msra.mxu0 %v855
    %2274 = vmatprep.subr.mxu0 %v851
    %2275 = vmatpush2.msra.mxu0 %v850
    %2276 = vmatprep.subr.mxu0 %v846
    %2277 = vmatpush2.msra.mxu0 %v845
    %2278 = vmatprep.subr.mxu0 %v841
    %2279 = vmatpush2.msra.mxu0 %v840
    %2280 = vmatprep.subr.mxu0 %v836
    %2281 = vmatpush2.msra.mxu0 %v835
    %2282 = vmatprep.subr.mxu0 %v831
    %2283 = vmatpush2.msra.mxu0 %v830
    %2284 = vmatprep.subr.mxu0 %v826
    %2285 = vmatpush2.msra.mxu0 %v825
    %2286 = vmatprep.subr.mxu0 %v821
    %2287 = vmatpush2.msra.mxu0 %v820
    %2288 = vmatprep.subr.mxu0 %v816
    %2289 = vmatpush2.msra.mxu0 %v815
    %2290 = vmatprep.mubr.f32.mxu0 %v86
    %2291 = vmatmul.mubr.f32.gmra.mxu0 %v85
    %v2292 = vpop.f32.mrf.mxu0
    %v2293 = vadd.f32 %v2222, %v2292
    %v2294 = vpop.f32.mrf.mxu0
    %v2295 = vadd.f32 %v2224, %v2294
    %2296 = vdwg.mxu0
    %2297 = vmatprep.subr.mxu0 %v971
    %2298 = vmatpush1.msra.mxu0 %v970
    %2299 = vmatprep.subr.mxu0 %v966
    %2300 = vmatpush1.msra.mxu0 %v965
    %2301 = vmatprep.subr.mxu0 %v961
    %2302 = vmatpush1.msra.mxu0 %v960
    %2303 = vmatprep.subr.mxu0 %v956
    %2304 = vmatpush1.msra.mxu0 %v955
    %2305 = vmatprep.subr.mxu0 %v951
    %2306 = vmatpush1.msra.mxu0 %v950
    %2307 = vmatprep.subr.mxu0 %v946
    %2308 = vmatpush1.msra.mxu0 %v945
    %2309 = vmatprep.subr.mxu0 %v941
    %2310 = vmatpush1.msra.mxu0 %v940
    %2311 = vmatprep.subr.mxu0 %v936
    %2312 = vmatpush1.msra.mxu0 %v935
    %2313 = vmatprep.subr.mxu0 %v931
    %2314 = vmatpush1.msra.mxu0 %v930
    %2315 = vmatprep.subr.mxu0 %v926
    %2316 = vmatpush1.msra.mxu0 %v925
    %2317 = vmatprep.subr.mxu0 %v921
    %2318 = vmatpush1.msra.mxu0 %v920
    %2319 = vmatprep.subr.mxu0 %v916
    %2320 = vmatpush1.msra.mxu0 %v915
    %2321 = vmatprep.subr.mxu0 %v911
    %2322 = vmatpush1.msra.mxu0 %v910
    %2323 = vmatprep.subr.mxu0 %v906
    %2324 = vmatpush1.msra.mxu0 %v905
    %2325 = vmatprep.subr.mxu0 %v901
    %2326 = vmatpush1.msra.mxu0 %v900
    %2327 = vmatprep.subr.mxu0 %v896
    %2328 = vmatpush1.msra.mxu0 %v895
    %2329 = vmatprep.subr.mxu0 %v1051
    %2330 = vmatpush2.msra.mxu0 %v1050
    %2331 = vmatprep.subr.mxu0 %v1046
    %2332 = vmatpush2.msra.mxu0 %v1045
    %2333 = vmatprep.subr.mxu0 %v1041
    %2334 = vmatpush2.msra.mxu0 %v1040
    %2335 = vmatprep.subr.mxu0 %v1036
    %2336 = vmatpush2.msra.mxu0 %v1035
    %2337 = vmatprep.subr.mxu0 %v1031
    %2338 = vmatpush2.msra.mxu0 %v1030
    %2339 = vmatprep.subr.mxu0 %v1026
    %2340 = vmatpush2.msra.mxu0 %v1025
    %2341 = vmatprep.subr.mxu0 %v1021
    %2342 = vmatpush2.msra.mxu0 %v1020
    %2343 = vmatprep.subr.mxu0 %v1016
    %2344 = vmatpush2.msra.mxu0 %v1015
    %2345 = vmatprep.subr.mxu0 %v1011
    %2346 = vmatpush2.msra.mxu0 %v1010
    %2347 = vmatprep.subr.mxu0 %v1006
    %2348 = vmatpush2.msra.mxu0 %v1005
    %2349 = vmatprep.subr.mxu0 %v1001
    %2350 = vmatpush2.msra.mxu0 %v1000
    %2351 = vmatprep.subr.mxu0 %v996
    %2352 = vmatpush2.msra.mxu0 %v995
    %2353 = vmatprep.subr.mxu0 %v991
    %2354 = vmatpush2.msra.mxu0 %v990
    %2355 = vmatprep.subr.mxu0 %v986
    %2356 = vmatpush2.msra.mxu0 %v985
    %2357 = vmatprep.subr.mxu0 %v981
    %2358 = vmatpush2.msra.mxu0 %v980
    %2359 = vmatprep.subr.mxu0 %v976
    %2360 = vmatpush2.msra.mxu0 %v975
    %2361 = vmatprep.mubr.f32.mxu0 %v88
    %2362 = vmatmul.mubr.f32.gmra.mxu0 %v87
    %v2363 = vpop.f32.mrf.mxu0
    %v2364 = vadd.f32 %v2293, %v2363
    %v2365 = vpop.f32.mrf.mxu0
    %v2366 = vadd.f32 %v2295, %v2365
    %2367 = vdwg.mxu0
    %2368 = vmatprep.subr.mxu0 %v1131
    %2369 = vmatpush1.msra.mxu0 %v1130
    %2370 = vmatprep.subr.mxu0 %v1126
    %2371 = vmatpush1.msra.mxu0 %v1125
    %2372 = vmatprep.subr.mxu0 %v1121
    %2373 = vmatpush1.msra.mxu0 %v1120
    %2374 = vmatprep.subr.mxu0 %v1116
    %2375 = vmatpush1.msra.mxu0 %v1115
    %2376 = vmatprep.subr.mxu0 %v1111
    %2377 = vmatpush1.msra.mxu0 %v1110
    %2378 = vmatprep.subr.mxu0 %v1106
    %2379 = vmatpush1.msra.mxu0 %v1105
    %2380 = vmatprep.subr.mxu0 %v1101
    %2381 = vmatpush1.msra.mxu0 %v1100
    %2382 = vmatprep.subr.mxu0 %v1096
    %2383 = vmatpush1.msra.mxu0 %v1095
    %2384 = vmatprep.subr.mxu0 %v1091
    %2385 = vmatpush1.msra.mxu0 %v1090
    %2386 = vmatprep.subr.mxu0 %v1086
    %2387 = vmatpush1.msra.mxu0 %v1085
    %2388 = vmatprep.subr.mxu0 %v1081
    %2389 = vmatpush1.msra.mxu0 %v1080
    %2390 = vmatprep.subr.mxu0 %v1076
    %2391 = vmatpush1.msra.mxu0 %v1075
    %2392 = vmatprep.subr.mxu0 %v1071
    %2393 = vmatpush1.msra.mxu0 %v1070
    %2394 = vmatprep.subr.mxu0 %v1066
    %2395 = vmatpush1.msra.mxu0 %v1065
    %2396 = vmatprep.subr.mxu0 %v1061
    %2397 = vmatpush1.msra.mxu0 %v1060
    %2398 = vmatprep.subr.mxu0 %v1056
    %2399 = vmatpush1.msra.mxu0 %v1055
    %2400 = vmatprep.subr.mxu0 %v1211
    %2401 = vmatpush2.msra.mxu0 %v1210
    %2402 = vmatprep.subr.mxu0 %v1206
    %2403 = vmatpush2.msra.mxu0 %v1205
    %2404 = vmatprep.subr.mxu0 %v1201
    %2405 = vmatpush2.msra.mxu0 %v1200
    %2406 = vmatprep.subr.mxu0 %v1196
    %2407 = vmatpush2.msra.mxu0 %v1195
    %2408 = vmatprep.subr.mxu0 %v1191
    %2409 = vmatpush2.msra.mxu0 %v1190
    %2410 = vmatprep.subr.mxu0 %v1186
    %2411 = vmatpush2.msra.mxu0 %v1185
    %2412 = vmatprep.subr.mxu0 %v1181
    %2413 = vmatpush2.msra.mxu0 %v1180
    %2414 = vmatprep.subr.mxu0 %v1176
    %2415 = vmatpush2.msra.mxu0 %v1175
    %2416 = vmatprep.subr.mxu0 %v1171
    %2417 = vmatpush2.msra.mxu0 %v1170
    %2418 = vmatprep.subr.mxu0 %v1166
    %2419 = vmatpush2.msra.mxu0 %v1165
    %2420 = vmatprep.subr.mxu0 %v1161
    %2421 = vmatpush2.msra.mxu0 %v1160
    %2422 = vmatprep.subr.mxu0 %v1156
    %2423 = vmatpush2.msra.mxu0 %v1155
    %2424 = vmatprep.subr.mxu0 %v1151
    %2425 = vmatpush2.msra.mxu0 %v1150
    %2426 = vmatprep.subr.mxu0 %v1146
    %2427 = vmatpush2.msra.mxu0 %v1145
    %2428 = vmatprep.subr.mxu0 %v1141
    %2429 = vmatpush2.msra.mxu0 %v1140
    %2430 = vmatprep.subr.mxu0 %v1136
    %2431 = vmatpush2.msra.mxu0 %v1135
    %2432 = vmatprep.mubr.f32.mxu0 %v90
    %2433 = vmatmul.mubr.f32.gmra.mxu0 %v89
    %v2434 = vpop.f32.mrf.mxu0
    %v2435 = vadd.f32 %v2364, %v2434
    %v2436 = vpop.f32.mrf.mxu0
    %v2437 = vadd.f32 %v2366, %v2436
    %2438 = vdwg.mxu0
    %2439 = vmatprep.subr.mxu0 %v1291
    %2440 = vmatpush1.msra.mxu0 %v1290
    %2441 = vmatprep.subr.mxu0 %v1286
    %2442 = vmatpush1.msra.mxu0 %v1285
    %2443 = vmatprep.subr.mxu0 %v1281
    %2444 = vmatpush1.msra.mxu0 %v1280
    %2445 = vmatprep.subr.mxu0 %v1276
    %2446 = vmatpush1.msra.mxu0 %v1275
    %2447 = vmatprep.subr.mxu0 %v1271
    %2448 = vmatpush1.msra.mxu0 %v1270
    %2449 = vmatprep.subr.mxu0 %v1266
    %2450 = vmatpush1.msra.mxu0 %v1265
    %2451 = vmatprep.subr.mxu0 %v1261
    %2452 = vmatpush1.msra.mxu0 %v1260
    %2453 = vmatprep.subr.mxu0 %v1256
    %2454 = vmatpush1.msra.mxu0 %v1255
    %2455 = vmatprep.subr.mxu0 %v1251
    %2456 = vmatpush1.msra.mxu0 %v1250
    %2457 = vmatprep.subr.mxu0 %v1246
    %2458 = vmatpush1.msra.mxu0 %v1245
    %2459 = vmatprep.subr.mxu0 %v1241
    %2460 = vmatpush1.msra.mxu0 %v1240
    %2461 = vmatprep.subr.mxu0 %v1236
    %2462 = vmatpush1.msra.mxu0 %v1235
    %2463 = vmatprep.subr.mxu0 %v1231
    %2464 = vmatpush1.msra.mxu0 %v1230
    %2465 = vmatprep.subr.mxu0 %v1226
    %2466 = vmatpush1.msra.mxu0 %v1225
    %2467 = vmatprep.subr.mxu0 %v1221
    %2468 = vmatpush1.msra.mxu0 %v1220
    %2469 = vmatprep.subr.mxu0 %v1216
    %2470 = vmatpush1.msra.mxu0 %v1215
    %2471 = vmatprep.subr.mxu0 0.0
    %2472 = vmatpush2.msra.mxu0 0.0
    %2473 = vmatprep.subr.mxu0 0.0
    %2474 = vmatpush2.msra.mxu0 0.0
    %2475 = vmatprep.subr.mxu0 0.0
    %2476 = vmatpush2.msra.mxu0 0.0
    %2477 = vmatprep.subr.mxu0 0.0
    %2478 = vmatpush2.msra.mxu0 0.0
    %2479 = vmatprep.subr.mxu0 0.0
    %2480 = vmatpush2.msra.mxu0 0.0
    %2481 = vmatprep.subr.mxu0 0.0
    %2482 = vmatpush2.msra.mxu0 0.0
    %2483 = vmatprep.subr.mxu0 %v1341
    %2484 = vmatpush2.msra.mxu0 %v1340
    %2485 = vmatprep.subr.mxu0 %v1336
    %2486 = vmatpush2.msra.mxu0 %v1335
    %2487 = vmatprep.subr.mxu0 %v1331
    %2488 = vmatpush2.msra.mxu0 %v1330
    %2489 = vmatprep.subr.mxu0 %v1326
    %2490 = vmatpush2.msra.mxu0 %v1325
    %2491 = vmatprep.subr.mxu0 %v1321
    %2492 = vmatpush2.msra.mxu0 %v1320
    %2493 = vmatprep.subr.mxu0 %v1316
    %2494 = vmatpush2.msra.mxu0 %v1315
    %2495 = vmatprep.subr.mxu0 %v1311
    %2496 = vmatpush2.msra.mxu0 %v1310
    %2497 = vmatprep.subr.mxu0 %v1306
    %2498 = vmatpush2.msra.mxu0 %v1305
    %2499 = vmatprep.subr.mxu0 %v1301
    %2500 = vmatpush2.msra.mxu0 %v1300
    %2501 = vmatprep.subr.mxu0 %v1296
    %2502 = vmatpush2.msra.mxu0 %v1295
    %2503 = vmatprep.mubr.f32.mxu0 %v1372
    %2504 = vmatmul.mubr.f32.gmra.mxu0 %v91
    %v2505 = vpop.f32.mrf.mxu0
    %v2506 = vadd.f32 %v2435, %v2505
    %v2507 = vpop.f32.mrf.mxu0
    %v2508 = vadd.f32 %v2437, %v2507
    %2509 = vdwg.mxu0
    %2510 = vmatprep.subr.mxu0 0.0
    %2511 = vmatpush1.msra.mxu0 %v172
    %2512 = vmatprep.subr.mxu0 0.0
    %2513 = vmatpush1.msra.mxu0 %v167
    %2514 = vmatprep.subr.mxu0 0.0
    %2515 = vmatpush1.msra.mxu0 %v162
    %2516 = vmatprep.subr.mxu0 0.0
    %2517 = vmatpush1.msra.mxu0 %v157
    %2518 = vmatprep.subr.mxu0 0.0
    %2519 = vmatpush1.msra.mxu0 %v152
    %2520 = vmatprep.subr.mxu0 0.0
    %2521 = vmatpush1.msra.mxu0 %v147
    %2522 = vmatprep.subr.mxu0 0.0
    %2523 = vmatpush1.msra.mxu0 %v142
    %2524 = vmatprep.subr.mxu0 0.0
    %2525 = vmatpush1.msra.mxu0 %v137
    %2526 = vmatprep.subr.mxu0 0.0
    %2527 = vmatpush1.msra.mxu0 %v132
    %2528 = vmatprep.subr.mxu0 0.0
    %2529 = vmatpush1.msra.mxu0 %v127
    %2530 = vmatprep.subr.mxu0 0.0
    %2531 = vmatpush1.msra.mxu0 %v122
    %2532 = vmatprep.subr.mxu0 0.0
    %2533 = vmatpush1.msra.mxu0 %v117
    %2534 = vmatprep.subr.mxu0 0.0
    %2535 = vmatpush1.msra.mxu0 %v112
    %2536 = vmatprep.subr.mxu0 0.0
    %2537 = vmatpush1.msra.mxu0 %v107
    %2538 = vmatprep.subr.mxu0 0.0
    %2539 = vmatpush1.msra.mxu0 %v102
    %2540 = vmatprep.subr.mxu0 0.0
    %2541 = vmatpush1.msra.mxu0 %v97
    %2542 = vmatprep.subr.mxu0 0.0
    %2543 = vmatpush2.msra.mxu0 %v252
    %2544 = vmatprep.subr.mxu0 0.0
    %2545 = vmatpush2.msra.mxu0 %v247
    %2546 = vmatprep.subr.mxu0 0.0
    %2547 = vmatpush2.msra.mxu0 %v242
    %2548 = vmatprep.subr.mxu0 0.0
    %2549 = vmatpush2.msra.mxu0 %v237
    %2550 = vmatprep.subr.mxu0 0.0
    %2551 = vmatpush2.msra.mxu0 %v232
    %2552 = vmatprep.subr.mxu0 0.0
    %2553 = vmatpush2.msra.mxu0 %v227
    %2554 = vmatprep.subr.mxu0 0.0
    %2555 = vmatpush2.msra.mxu0 %v222
    %2556 = vmatprep.subr.mxu0 0.0
    %2557 = vmatpush2.msra.mxu0 %v217
    %2558 = vmatprep.subr.mxu0 0.0
    %2559 = vmatpush2.msra.mxu0 %v212
    %2560 = vmatprep.subr.mxu0 0.0
    %2561 = vmatpush2.msra.mxu0 %v207
    %2562 = vmatprep.subr.mxu0 0.0
    %2563 = vmatpush2.msra.mxu0 %v202
    %2564 = vmatprep.subr.mxu0 0.0
    %2565 = vmatpush2.msra.mxu0 %v197
    %2566 = vmatprep.subr.mxu0 0.0
    %2567 = vmatpush2.msra.mxu0 %v192
    %2568 = vmatprep.subr.mxu0 0.0
    %2569 = vmatpush2.msra.mxu0 %v187
    %2570 = vmatprep.subr.mxu0 0.0
    %2571 = vmatpush2.msra.mxu0 %v182
    %2572 = vmatprep.subr.mxu0 0.0
    %2573 = vmatpush2.msra.mxu0 %v177
    %2574 = vmatprep.mubr.f32.mxu0 %v78
    %2575 = vmatmul.mubr.f32.gmra.mxu0 %v77
    %v2576 = vpop.f32.mrf.mxu0
    %v2577 = vadd.f32 %v1364, %v2576
    %v2578 = vpop.f32.mrf.mxu0
    %2579 = vdwg.mxu0
    %2580 = vmatprep.subr.mxu0 0.0
    %2581 = vmatpush1.msra.mxu0 %v332
    %2582 = vmatprep.subr.mxu0 0.0
    %2583 = vmatpush1.msra.mxu0 %v327
    %2584 = vmatprep.subr.mxu0 0.0
    %2585 = vmatpush1.msra.mxu0 %v322
    %2586 = vmatprep.subr.mxu0 0.0
    %2587 = vmatpush1.msra.mxu0 %v317
    %2588 = vmatprep.subr.mxu0 0.0
    %2589 = vmatpush1.msra.mxu0 %v312
    %2590 = vmatprep.subr.mxu0 0.0
    %2591 = vmatpush1.msra.mxu0 %v307
    %2592 = vmatprep.subr.mxu0 0.0
    %2593 = vmatpush1.msra.mxu0 %v302
    %2594 = vmatprep.subr.mxu0 0.0
    %2595 = vmatpush1.msra.mxu0 %v297
    %2596 = vmatprep.subr.mxu0 0.0
    %2597 = vmatpush1.msra.mxu0 %v292
    %2598 = vmatprep.subr.mxu0 0.0
    %2599 = vmatpush1.msra.mxu0 %v287
    %2600 = vmatprep.subr.mxu0 0.0
    %2601 = vmatpush1.msra.mxu0 %v282
    %2602 = vmatprep.subr.mxu0 0.0
    %2603 = vmatpush1.msra.mxu0 %v277
    %2604 = vmatprep.subr.mxu0 0.0
    %2605 = vmatpush1.msra.mxu0 %v272
    %2606 = vmatprep.subr.mxu0 0.0
    %2607 = vmatpush1.msra.mxu0 %v267
    %2608 = vmatprep.subr.mxu0 0.0
    %2609 = vmatpush1.msra.mxu0 %v262
    %2610 = vmatprep.subr.mxu0 0.0
    %2611 = vmatpush1.msra.mxu0 %v257
    %2612 = vmatprep.subr.mxu0 0.0
    %2613 = vmatpush2.msra.mxu0 %v412
    %2614 = vmatprep.subr.mxu0 0.0
    %2615 = vmatpush2.msra.mxu0 %v407
    %2616 = vmatprep.subr.mxu0 0.0
    %2617 = vmatpush2.msra.mxu0 %v402
    %2618 = vmatprep.subr.mxu0 0.0
    %2619 = vmatpush2.msra.mxu0 %v397
    %2620 = vmatprep.subr.mxu0 0.0
    %2621 = vmatpush2.msra.mxu0 %v392
    %2622 = vmatprep.subr.mxu0 0.0
    %2623 = vmatpush2.msra.mxu0 %v387
    %2624 = vmatprep.subr.mxu0 0.0
    %2625 = vmatpush2.msra.mxu0 %v382
    %2626 = vmatprep.subr.mxu0 0.0
    %2627 = vmatpush2.msra.mxu0 %v377
    %2628 = vmatprep.subr.mxu0 0.0
    %2629 = vmatpush2.msra.mxu0 %v372
    %2630 = vmatprep.subr.mxu0 0.0
    %2631 = vmatpush2.msra.mxu0 %v367
    %2632 = vmatprep.subr.mxu0 0.0
    %2633 = vmatpush2.msra.mxu0 %v362
    %2634 = vmatprep.subr.mxu0 0.0
    %2635 = vmatpush2.msra.mxu0 %v357
    %2636 = vmatprep.subr.mxu0 0.0
    %2637 = vmatpush2.msra.mxu0 %v352
    %2638 = vmatprep.subr.mxu0 0.0
    %2639 = vmatpush2.msra.mxu0 %v347
    %2640 = vmatprep.subr.mxu0 0.0
    %2641 = vmatpush2.msra.mxu0 %v342
    %2642 = vmatprep.subr.mxu0 0.0
    %2643 = vmatpush2.msra.mxu0 %v337
    %2644 = vmatprep.mubr.f32.mxu0 %v80
    %2645 = vmatmul.mubr.f32.gmra.mxu0 %v79
    %v2646 = vpop.f32.mrf.mxu0
    %v2647 = vadd.f32 %v2577, %v2646
    %v2648 = vpop.f32.mrf.mxu0
    %2649 = vdwg.mxu0
    %2650 = vmatprep.subr.mxu0 0.0
    %2651 = vmatpush1.msra.mxu0 %v492
    %2652 = vmatprep.subr.mxu0 0.0
    %2653 = vmatpush1.msra.mxu0 %v487
    %2654 = vmatprep.subr.mxu0 0.0
    %2655 = vmatpush1.msra.mxu0 %v482
    %2656 = vmatprep.subr.mxu0 0.0
    %2657 = vmatpush1.msra.mxu0 %v477
    %2658 = vmatprep.subr.mxu0 0.0
    %2659 = vmatpush1.msra.mxu0 %v472
    %2660 = vmatprep.subr.mxu0 0.0
    %2661 = vmatpush1.msra.mxu0 %v467
    %2662 = vmatprep.subr.mxu0 0.0
    %2663 = vmatpush1.msra.mxu0 %v462
    %2664 = vmatprep.subr.mxu0 0.0
    %2665 = vmatpush1.msra.mxu0 %v457
    %2666 = vmatprep.subr.mxu0 0.0
    %2667 = vmatpush1.msra.mxu0 %v452
    %2668 = vmatprep.subr.mxu0 0.0
    %2669 = vmatpush1.msra.mxu0 %v447
    %2670 = vmatprep.subr.mxu0 0.0
    %2671 = vmatpush1.msra.mxu0 %v442
    %2672 = vmatprep.subr.mxu0 0.0
    %2673 = vmatpush1.msra.mxu0 %v437
    %2674 = vmatprep.subr.mxu0 0.0
    %2675 = vmatpush1.msra.mxu0 %v432
    %2676 = vmatprep.subr.mxu0 0.0
    %2677 = vmatpush1.msra.mxu0 %v427
    %2678 = vmatprep.subr.mxu0 0.0
    %2679 = vmatpush1.msra.mxu0 %v422
    %2680 = vmatprep.subr.mxu0 0.0
    %2681 = vmatpush1.msra.mxu0 %v417
    %2682 = vmatprep.subr.mxu0 0.0
    %2683 = vmatpush2.msra.mxu0 %v572
    %2684 = vmatprep.subr.mxu0 0.0
    %2685 = vmatpush2.msra.mxu0 %v567
    %2686 = vmatprep.subr.mxu0 0.0
    %2687 = vmatpush2.msra.mxu0 %v562
    %2688 = vmatprep.subr.mxu0 0.0
    %2689 = vmatpush2.msra.mxu0 %v557
    %2690 = vmatprep.subr.mxu0 0.0
    %2691 = vmatpush2.msra.mxu0 %v552
    %2692 = vmatprep.subr.mxu0 0.0
    %2693 = vmatpush2.msra.mxu0 %v547
    %2694 = vmatprep.subr.mxu0 0.0
    %2695 = vmatpush2.msra.mxu0 %v542
    %2696 = vmatprep.subr.mxu0 0.0
    %2697 = vmatpush2.msra.mxu0 %v537
    %2698 = vmatprep.subr.mxu0 0.0
    %2699 = vmatpush2.msra.mxu0 %v532
    %2700 = vmatprep.subr.mxu0 0.0
    %2701 = vmatpush2.msra.mxu0 %v527
    %2702 = vmatprep.subr.mxu0 0.0
    %2703 = vmatpush2.msra.mxu0 %v522
    %2704 = vmatprep.subr.mxu0 0.0
    %2705 = vmatpush2.msra.mxu0 %v517
    %2706 = vmatprep.subr.mxu0 0.0
    %2707 = vmatpush2.msra.mxu0 %v512
    %2708 = vmatprep.subr.mxu0 0.0
    %2709 = vmatpush2.msra.mxu0 %v507
    %2710 = vmatprep.subr.mxu0 0.0
    %2711 = vmatpush2.msra.mxu0 %v502
    %2712 = vmatprep.subr.mxu0 0.0
    %2713 = vmatpush2.msra.mxu0 %v497
    %2714 = vmatprep.mubr.f32.mxu0 %v82
    %2715 = vmatmul.mubr.f32.gmra.mxu0 %v81
    %v2716 = vpop.f32.mrf.mxu0
    %v2717 = vadd.f32 %v2647, %v2716
    %v2718 = vpop.f32.mrf.mxu0
    %2719 = vdwg.mxu0
    %2720 = vmatprep.subr.mxu0 0.0
    %2721 = vmatpush1.msra.mxu0 %v652
    %2722 = vmatprep.subr.mxu0 0.0
    %2723 = vmatpush1.msra.mxu0 %v647
    %2724 = vmatprep.subr.mxu0 0.0
    %2725 = vmatpush1.msra.mxu0 %v642
    %2726 = vmatprep.subr.mxu0 0.0
    %2727 = vmatpush1.msra.mxu0 %v637
    %2728 = vmatprep.subr.mxu0 0.0
    %2729 = vmatpush1.msra.mxu0 %v632
    %2730 = vmatprep.subr.mxu0 0.0
    %2731 = vmatpush1.msra.mxu0 %v627
    %2732 = vmatprep.subr.mxu0 0.0
    %2733 = vmatpush1.msra.mxu0 %v622
    %2734 = vmatprep.subr.mxu0 0.0
    %2735 = vmatpush1.msra.mxu0 %v617
    %2736 = vmatprep.subr.mxu0 0.0
    %2737 = vmatpush1.msra.mxu0 %v612
    %2738 = vmatprep.subr.mxu0 0.0
    %2739 = vmatpush1.msra.mxu0 %v607
    %2740 = vmatprep.subr.mxu0 0.0
    %2741 = vmatpush1.msra.mxu0 %v602
    %2742 = vmatprep.subr.mxu0 0.0
    %2743 = vmatpush1.msra.mxu0 %v597
    %2744 = vmatprep.subr.mxu0 0.0
    %2745 = vmatpush1.msra.mxu0 %v592
    %2746 = vmatprep.subr.mxu0 0.0
    %2747 = vmatpush1.msra.mxu0 %v587
    %2748 = vmatprep.subr.mxu0 0.0
    %2749 = vmatpush1.msra.mxu0 %v582
    %2750 = vmatprep.subr.mxu0 0.0
    %2751 = vmatpush1.msra.mxu0 %v577
    %2752 = vmatprep.subr.mxu0 0.0
    %2753 = vmatpush2.msra.mxu0 %v732
    %2754 = vmatprep.subr.mxu0 0.0
    %2755 = vmatpush2.msra.mxu0 %v727
    %2756 = vmatprep.subr.mxu0 0.0
    %2757 = vmatpush2.msra.mxu0 %v722
    %2758 = vmatprep.subr.mxu0 0.0
    %2759 = vmatpush2.msra.mxu0 %v717
    %2760 = vmatprep.subr.mxu0 0.0
    %2761 = vmatpush2.msra.mxu0 %v712
    %2762 = vmatprep.subr.mxu0 0.0
    %2763 = vmatpush2.msra.mxu0 %v707
    %2764 = vmatprep.subr.mxu0 0.0
    %2765 = vmatpush2.msra.mxu0 %v702
    %2766 = vmatprep.subr.mxu0 0.0
    %2767 = vmatpush2.msra.mxu0 %v697
    %2768 = vmatprep.subr.mxu0 0.0
    %2769 = vmatpush2.msra.mxu0 %v692
    %2770 = vmatprep.subr.mxu0 0.0
    %2771 = vmatpush2.msra.mxu0 %v687
    %2772 = vmatprep.subr.mxu0 0.0
    %2773 = vmatpush2.msra.mxu0 %v682
    %2774 = vmatprep.subr.mxu0 0.0
    %2775 = vmatpush2.msra.mxu0 %v677
    %2776 = vmatprep.subr.mxu0 0.0
    %2777 = vmatpush2.msra.mxu0 %v672
    %2778 = vmatprep.subr.mxu0 0.0
    %2779 = vmatpush2.msra.mxu0 %v667
    %2780 = vmatprep.subr.mxu0 0.0
    %2781 = vmatpush2.msra.mxu0 %v662
    %2782 = vmatprep.subr.mxu0 0.0
    %2783 = vmatpush2.msra.mxu0 %v657
    %2784 = vmatprep.mubr.f32.mxu0 %v84
    %2785 = vmatmul.mubr.f32.gmra.mxu0 %v83
    %v2786 = vpop.f32.mrf.mxu0
    %v2787 = vadd.f32 %v2717, %v2786
    %v2788 = vpop.f32.mrf.mxu0
    %2789 = vdwg.mxu0
    %2790 = vmatprep.subr.mxu0 0.0
    %2791 = vmatpush1.msra.mxu0 %v812
    %2792 = vmatprep.subr.mxu0 0.0
    %2793 = vmatpush1.msra.mxu0 %v807
    %2794 = vmatprep.subr.mxu0 0.0
    %2795 = vmatpush1.msra.mxu0 %v802
    %2796 = vmatprep.subr.mxu0 0.0
    %2797 = vmatpush1.msra.mxu0 %v797
    %2798 = vmatprep.subr.mxu0 0.0
    %2799 = vmatpush1.msra.mxu0 %v792
    %2800 = vmatprep.subr.mxu0 0.0
    %2801 = vmatpush1.msra.mxu0 %v787
    %2802 = vmatprep.subr.mxu0 0.0
    %2803 = vmatpush1.msra.mxu0 %v782
    %2804 = vmatprep.subr.mxu0 0.0
    %2805 = vmatpush1.msra.mxu0 %v777
    %2806 = vmatprep.subr.mxu0 0.0
    %2807 = vmatpush1.msra.mxu0 %v772
    %2808 = vmatprep.subr.mxu0 0.0
    %2809 = vmatpush1.msra.mxu0 %v767
    %2810 = vmatprep.subr.mxu0 0.0
    %2811 = vmatpush1.msra.mxu0 %v762
    %2812 = vmatprep.subr.mxu0 0.0
    %2813 = vmatpush1.msra.mxu0 %v757
    %2814 = vmatprep.subr.mxu0 0.0
    %2815 = vmatpush1.msra.mxu0 %v752
    %2816 = vmatprep.subr.mxu0 0.0
    %2817 = vmatpush1.msra.mxu0 %v747
    %2818 = vmatprep.subr.mxu0 0.0
    %2819 = vmatpush1.msra.mxu0 %v742
    %2820 = vmatprep.subr.mxu0 0.0
    %2821 = vmatpush1.msra.mxu0 %v737
    %2822 = vmatprep.subr.mxu0 0.0
    %2823 = vmatpush2.msra.mxu0 %v892
    %2824 = vmatprep.subr.mxu0 0.0
    %2825 = vmatpush2.msra.mxu0 %v887
    %2826 = vmatprep.subr.mxu0 0.0
    %2827 = vmatpush2.msra.mxu0 %v882
    %2828 = vmatprep.subr.mxu0 0.0
    %2829 = vmatpush2.msra.mxu0 %v877
    %2830 = vmatprep.subr.mxu0 0.0
    %2831 = vmatpush2.msra.mxu0 %v872
    %2832 = vmatprep.subr.mxu0 0.0
    %2833 = vmatpush2.msra.mxu0 %v867
    %2834 = vmatprep.subr.mxu0 0.0
    %2835 = vmatpush2.msra.mxu0 %v862
    %2836 = vmatprep.subr.mxu0 0.0
    %2837 = vmatpush2.msra.mxu0 %v857
    %2838 = vmatprep.subr.mxu0 0.0
    %2839 = vmatpush2.msra.mxu0 %v852
    %2840 = vmatprep.subr.mxu0 0.0
    %2841 = vmatpush2.msra.mxu0 %v847
    %2842 = vmatprep.subr.mxu0 0.0
    %2843 = vmatpush2.msra.mxu0 %v842
    %2844 = vmatprep.subr.mxu0 0.0
    %2845 = vmatpush2.msra.mxu0 %v837
    %2846 = vmatprep.subr.mxu0 0.0
    %2847 = vmatpush2.msra.mxu0 %v832
    %2848 = vmatprep.subr.mxu0 0.0
    %2849 = vmatpush2.msra.mxu0 %v827
    %2850 = vmatprep.subr.mxu0 0.0
    %2851 = vmatpush2.msra.mxu0 %v822
    %2852 = vmatprep.subr.mxu0 0.0
    %2853 = vmatpush2.msra.mxu0 %v817
    %2854 = vmatprep.mubr.f32.mxu0 %v86
    %2855 = vmatmul.mubr.f32.gmra.mxu0 %v85
    %v2856 = vpop.f32.mrf.mxu0
    %v2857 = vadd.f32 %v2787, %v2856
    %v2858 = vpop.f32.mrf.mxu0
    %2859 = vdwg.mxu0
    %2860 = vmatprep.subr.mxu0 0.0
    %2861 = vmatpush1.msra.mxu0 %v972
    %2862 = vmatprep.subr.mxu0 0.0
    %2863 = vmatpush1.msra.mxu0 %v967
    %2864 = vmatprep.subr.mxu0 0.0
    %2865 = vmatpush1.msra.mxu0 %v962
    %2866 = vmatprep.subr.mxu0 0.0
    %2867 = vmatpush1.msra.mxu0 %v957
    %2868 = vmatprep.subr.mxu0 0.0
    %2869 = vmatpush1.msra.mxu0 %v952
    %2870 = vmatprep.subr.mxu0 0.0
    %2871 = vmatpush1.msra.mxu0 %v947
    %2872 = vmatprep.subr.mxu0 0.0
    %2873 = vmatpush1.msra.mxu0 %v942
    %2874 = vmatprep.subr.mxu0 0.0
    %2875 = vmatpush1.msra.mxu0 %v937
    %2876 = vmatprep.subr.mxu0 0.0
    %2877 = vmatpush1.msra.mxu0 %v932
    %2878 = vmatprep.subr.mxu0 0.0
    %2879 = vmatpush1.msra.mxu0 %v927
    %2880 = vmatprep.subr.mxu0 0.0
    %2881 = vmatpush1.msra.mxu0 %v922
    %2882 = vmatprep.subr.mxu0 0.0
    %2883 = vmatpush1.msra.mxu0 %v917
    %2884 = vmatprep.subr.mxu0 0.0
    %2885 = vmatpush1.msra.mxu0 %v912
    %2886 = vmatprep.subr.mxu0 0.0
    %2887 = vmatpush1.msra.mxu0 %v907
    %2888 = vmatprep.subr.mxu0 0.0
    %2889 = vmatpush1.msra.mxu0 %v902
    %2890 = vmatprep.subr.mxu0 0.0
    %2891 = vmatpush1.msra.mxu0 %v897
    %2892 = vmatprep.subr.mxu0 0.0
    %2893 = vmatpush2.msra.mxu0 %v1052
    %2894 = vmatprep.subr.mxu0 0.0
    %2895 = vmatpush2.msra.mxu0 %v1047
    %2896 = vmatprep.subr.mxu0 0.0
    %2897 = vmatpush2.msra.mxu0 %v1042
    %2898 = vmatprep.subr.mxu0 0.0
    %2899 = vmatpush2.msra.mxu0 %v1037
    %2900 = vmatprep.subr.mxu0 0.0
    %2901 = vmatpush2.msra.mxu0 %v1032
    %2902 = vmatprep.subr.mxu0 0.0
    %2903 = vmatpush2.msra.mxu0 %v1027
    %2904 = vmatprep.subr.mxu0 0.0
    %2905 = vmatpush2.msra.mxu0 %v1022
    %2906 = vmatprep.subr.mxu0 0.0
    %2907 = vmatpush2.msra.mxu0 %v1017
    %2908 = vmatprep.subr.mxu0 0.0
    %2909 = vmatpush2.msra.mxu0 %v1012
    %2910 = vmatprep.subr.mxu0 0.0
    %2911 = vmatpush2.msra.mxu0 %v1007
    %2912 = vmatprep.subr.mxu0 0.0
    %2913 = vmatpush2.msra.mxu0 %v1002
    %2914 = vmatprep.subr.mxu0 0.0
    %2915 = vmatpush2.msra.mxu0 %v997
    %2916 = vmatprep.subr.mxu0 0.0
    %2917 = vmatpush2.msra.mxu0 %v992
    %2918 = vmatprep.subr.mxu0 0.0
    %2919 = vmatpush2.msra.mxu0 %v987
    %2920 = vmatprep.subr.mxu0 0.0
    %2921 = vmatpush2.msra.mxu0 %v982
    %2922 = vmatprep.subr.mxu0 0.0
    %2923 = vmatpush2.msra.mxu0 %v977
    %2924 = vmatprep.mubr.f32.mxu0 %v88
    %2925 = vmatmul.mubr.f32.gmra.mxu0 %v87
    %v2926 = vpop.f32.mrf.mxu0
    %v2927 = vadd.f32 %v2857, %v2926
    %v2928 = vpop.f32.mrf.mxu0
    %2929 = vdwg.mxu0
    %2930 = vmatprep.subr.mxu0 0.0
    %2931 = vmatpush1.msra.mxu0 %v1132
    %2932 = vmatprep.subr.mxu0 0.0
    %2933 = vmatpush1.msra.mxu0 %v1127
    %2934 = vmatprep.subr.mxu0 0.0
    %2935 = vmatpush1.msra.mxu0 %v1122
    %2936 = vmatprep.subr.mxu0 0.0
    %2937 = vmatpush1.msra.mxu0 %v1117
    %2938 = vmatprep.subr.mxu0 0.0
    %2939 = vmatpush1.msra.mxu0 %v1112
    %2940 = vmatprep.subr.mxu0 0.0
    %2941 = vmatpush1.msra.mxu0 %v1107
    %2942 = vmatprep.subr.mxu0 0.0
    %2943 = vmatpush1.msra.mxu0 %v1102
    %2944 = vmatprep.subr.mxu0 0.0
    %2945 = vmatpush1.msra.mxu0 %v1097
    %2946 = vmatprep.subr.mxu0 0.0
    %2947 = vmatpush1.msra.mxu0 %v1092
    %2948 = vmatprep.subr.mxu0 0.0
    %2949 = vmatpush1.msra.mxu0 %v1087
    %2950 = vmatprep.subr.mxu0 0.0
    %2951 = vmatpush1.msra.mxu0 %v1082
    %2952 = vmatprep.subr.mxu0 0.0
    %2953 = vmatpush1.msra.mxu0 %v1077
    %2954 = vmatprep.subr.mxu0 0.0
    %2955 = vmatpush1.msra.mxu0 %v1072
    %2956 = vmatprep.subr.mxu0 0.0
    %2957 = vmatpush1.msra.mxu0 %v1067
    %2958 = vmatprep.subr.mxu0 0.0
    %2959 = vmatpush1.msra.mxu0 %v1062
    %2960 = vmatprep.subr.mxu0 0.0
    %2961 = vmatpush1.msra.mxu0 %v1057
    %2962 = vmatprep.subr.mxu0 0.0
    %2963 = vmatpush2.msra.mxu0 %v1212
    %2964 = vmatprep.subr.mxu0 0.0
    %2965 = vmatpush2.msra.mxu0 %v1207
    %2966 = vmatprep.subr.mxu0 0.0
    %2967 = vmatpush2.msra.mxu0 %v1202
    %2968 = vmatprep.subr.mxu0 0.0
    %2969 = vmatpush2.msra.mxu0 %v1197
    %2970 = vmatprep.subr.mxu0 0.0
    %2971 = vmatpush2.msra.mxu0 %v1192
    %2972 = vmatprep.subr.mxu0 0.0
    %2973 = vmatpush2.msra.mxu0 %v1187
    %2974 = vmatprep.subr.mxu0 0.0
    %2975 = vmatpush2.msra.mxu0 %v1182
    %2976 = vmatprep.subr.mxu0 0.0
    %2977 = vmatpush2.msra.mxu0 %v1177
    %2978 = vmatprep.subr.mxu0 0.0
    %2979 = vmatpush2.msra.mxu0 %v1172
    %2980 = vmatprep.subr.mxu0 0.0
    %2981 = vmatpush2.msra.mxu0 %v1167
    %2982 = vmatprep.subr.mxu0 0.0
    %2983 = vmatpush2.msra.mxu0 %v1162
    %2984 = vmatprep.subr.mxu0 0.0
    %2985 = vmatpush2.msra.mxu0 %v1157
    %2986 = vmatprep.subr.mxu0 0.0
    %2987 = vmatpush2.msra.mxu0 %v1152
    %2988 = vmatprep.subr.mxu0 0.0
    %2989 = vmatpush2.msra.mxu0 %v1147
    %2990 = vmatprep.subr.mxu0 0.0
    %2991 = vmatpush2.msra.mxu0 %v1142
    %2992 = vmatprep.subr.mxu0 0.0
    %2993 = vmatpush2.msra.mxu0 %v1137
    %2994 = vmatprep.mubr.f32.mxu0 %v90
    %2995 = vmatmul.mubr.f32.gmra.mxu0 %v89
    %v2996 = vpop.f32.mrf.mxu0
    %v2997 = vadd.f32 %v2927, %v2996
    %v2998 = vpop.f32.mrf.mxu0
    %2999 = vdwg.mxu0
    %3000 = vmatprep.subr.mxu0 0.0
    %3001 = vmatpush1.msra.mxu0 %v1292
    %3002 = vmatprep.subr.mxu0 0.0
    %3003 = vmatpush1.msra.mxu0 %v1287
    %3004 = vmatprep.subr.mxu0 0.0
    %3005 = vmatpush1.msra.mxu0 %v1282
    %3006 = vmatprep.subr.mxu0 0.0
    %3007 = vmatpush1.msra.mxu0 %v1277
    %3008 = vmatprep.subr.mxu0 0.0
    %3009 = vmatpush1.msra.mxu0 %v1272
    %3010 = vmatprep.subr.mxu0 0.0
    %3011 = vmatpush1.msra.mxu0 %v1267
    %3012 = vmatprep.subr.mxu0 0.0
    %3013 = vmatpush1.msra.mxu0 %v1262
    %3014 = vmatprep.subr.mxu0 0.0
    %3015 = vmatpush1.msra.mxu0 %v1257
    %3016 = vmatprep.subr.mxu0 0.0
    %3017 = vmatpush1.msra.mxu0 %v1252
    %3018 = vmatprep.subr.mxu0 0.0
    %3019 = vmatpush1.msra.mxu0 %v1247
    %3020 = vmatprep.subr.mxu0 0.0
    %3021 = vmatpush1.msra.mxu0 %v1242
    %3022 = vmatprep.subr.mxu0 0.0
    %3023 = vmatpush1.msra.mxu0 %v1237
    %3024 = vmatprep.subr.mxu0 0.0
    %3025 = vmatpush1.msra.mxu0 %v1232
    %3026 = vmatprep.subr.mxu0 0.0
    %3027 = vmatpush1.msra.mxu0 %v1227
    %3028 = vmatprep.subr.mxu0 0.0
    %3029 = vmatpush1.msra.mxu0 %v1222
    %3030 = vmatprep.subr.mxu0 0.0
    %3031 = vmatpush1.msra.mxu0 %v1217
    %3032 = vmatprep.subr.mxu0 0.0
    %3033 = vmatpush2.msra.mxu0 0.0
    %3034 = vmatprep.subr.mxu0 0.0
    %3035 = vmatpush2.msra.mxu0 0.0
    %3036 = vmatprep.subr.mxu0 0.0
    %3037 = vmatpush2.msra.mxu0 0.0
    %3038 = vmatprep.subr.mxu0 0.0
    %3039 = vmatpush2.msra.mxu0 0.0
    %3040 = vmatprep.subr.mxu0 0.0
    %3041 = vmatpush2.msra.mxu0 0.0
    %3042 = vmatprep.subr.mxu0 0.0
    %3043 = vmatpush2.msra.mxu0 0.0
    %3044 = vmatprep.subr.mxu0 0.0
    %3045 = vmatpush2.msra.mxu0 %v1342
    %3046 = vmatprep.subr.mxu0 0.0
    %3047 = vmatpush2.msra.mxu0 %v1337
    %3048 = vmatprep.subr.mxu0 0.0
    %3049 = vmatpush2.msra.mxu0 %v1332
    %3050 = vmatprep.subr.mxu0 0.0
    %3051 = vmatpush2.msra.mxu0 %v1327
    %3052 = vmatprep.subr.mxu0 0.0
    %3053 = vmatpush2.msra.mxu0 %v1322
    %3054 = vmatprep.subr.mxu0 0.0
    %3055 = vmatpush2.msra.mxu0 %v1317
    %3056 = vmatprep.subr.mxu0 0.0
    %3057 = vmatpush2.msra.mxu0 %v1312
    %3058 = vmatprep.subr.mxu0 0.0
    %3059 = vmatpush2.msra.mxu0 %v1307
    %3060 = vmatprep.subr.mxu0 0.0
    %3061 = vmatpush2.msra.mxu0 %v1302
    %3062 = vmatprep.subr.mxu0 0.0
    %3063 = vmatpush2.msra.mxu0 %v1297
    %3064 = vmatprep.mubr.f32.mxu0 %v1372
    %3065 = vmatmul.mubr.f32.gmra.mxu0 %v91
    %v3066 = vpop.f32.mrf.mxu0
    %v3067 = vadd.f32 %v2997, %v3066
    %v3068 = vpop.f32.mrf.mxu0
    %3069 = vdwg.mxu0
    %v3070 = vmax.f32 %v1938, 0.0
    %v3071 = vmax.f32 %v1940, 0.0
    %v3072 = vmax.f32 %v2506, 0.0
    %v3073 = vmax.f32 %v2508, 0.0
    %v3074 = vmax.f32 %v3067, 0.0
    %v3075 = vld [vmem:[%s4] sm:$0xff]
    %v3076 = vld [vmem:[%s4 + $0x8] sm:$0xff]
    %v3077 = vld [vmem:[%s4 + $0x10] sm:$0xff]
    %v3078 = vld [vmem:[%s4 + $0x18] sm:$0xff]
    %v3079 = vld [vmem:[%s4 + $0x20] sm:$0xff]
    %v3080 = vld [vmem:[%s4 + $0x28] sm:$0xff]
    %v3081 = vld [vmem:[%s4 + $0x30] sm:$0xff]
    %v3082 = vld [vmem:[%s4 + $0x38] sm:$0xff]
    %v3083 = vld [vmem:[%s4 + $0x40] sm:$0xff]
    %v3084 = vld [vmem:[%s4 + $0x48] sm:$0xff]
    %v3085 = vld [vmem:[%s4 + $0x50] sm:$0xff]
    %v3086 = vld [vmem:[%s4 + $0x58] sm:$0xff]
    %v3087 = vld [vmem:[%s4 + $0x60] sm:$0xff]
    %v3088 = vld [vmem:[%s4 + $0x68] sm:$0xff]
    %v3089 = vld [vmem:[%s4 + $0x70] sm:$0xff]
    %v3090 = vld [vmem:[%s4 + $0x78] sm:$0xff]
    %v3091 = vld [vmem:[%s4 + $0x80] sm:$0xff]
    %v3092 = vld [vmem:[%s4 + $0x88] sm:$0xff]
    %v3093 = vld [vmem:[%s4 + $0x90] sm:$0xff]
    %v3094 = vld [vmem:[%s4 + $0x98] sm:$0xff]
    %v3095 = vld [vmem:[%s4 + $0xa0] sm:$0xff]
    %v3096 = vld [vmem:[%s4 + $0xa8] sm:$0xff]
    %v3097 = vld [vmem:[%s4 + $0xb0] sm:$0xff]
    %v3098 = vld [vmem:[%s4 + $0xb8] sm:$0xff]
    %v3099 = vld [vmem:[%s4 + $0xc0] sm:$0xff]
    %v3100 = vld [vmem:[%s4 + $0xc8] sm:$0xff]
    %v3101 = vld [vmem:[%s4 + $0xd0] sm:$0xff]
    %v3102 = vld [vmem:[%s4 + $0xd8] sm:$0xff]
    %v3103 = vld [vmem:[%s4 + $0xe0] sm:$0xff]
    %v3104 = vld [vmem:[%s4 + $0xe8] sm:$0xff]
    %v3105 = vld [vmem:[%s4 + $0xf0] sm:$0xff]
    %v3106 = vld [vmem:[%s4 + $0xf8] sm:$0xff]
    %v3107 = vld [vmem:[%s4 + $0x100] sm:$0xff]
    %v3108 = vld [vmem:[%s4 + $0x108] sm:$0xff]
    %v3109 = vld [vmem:[%s4 + $0x110] sm:$0xff]
    %v3110 = vld [vmem:[%s4 + $0x118] sm:$0xff]
    %v3111 = vld [vmem:[%s4 + $0x120] sm:$0xff]
    %v3112 = vld [vmem:[%s4 + $0x128] sm:$0xff]
    %v3113 = vld [vmem:[%s4 + $0x130] sm:$0xff]
    %v3114 = vld [vmem:[%s4 + $0x138] sm:$0xff]
    %v3115 = vld [vmem:[%s4 + $0x140] sm:$0xff]
    %v3116 = vld [vmem:[%s4 + $0x148] sm:$0xff]
    %v3117 = vld [vmem:[%s4 + $0x150] sm:$0xff]
    %v3118 = vld [vmem:[%s4 + $0x158] sm:$0xff]
    %v3119 = vld [vmem:[%s4 + $0x160] sm:$0xff]
    %v3120 = vld [vmem:[%s4 + $0x168] sm:$0xff]
    %v3121 = vld [vmem:[%s4 + $0x170] sm:$0xff]
    %v3122 = vld [vmem:[%s4 + $0x178] sm:$0xff]
    %v3123 = vld [vmem:[%s4 + $0x180] sm:$0xff]
    %v3124 = vld [vmem:[%s4 + $0x188] sm:$0xff]
    %v3125 = vld [vmem:[%s4 + $0x190] sm:$0xff]
    %v3126 = vld [vmem:[%s4 + $0x198] sm:$0xff]
    %v3127 = vld [vmem:[%s4 + $0x1a0] sm:$0xff]
    %v3128 = vld [vmem:[%s4 + $0x1a8] sm:$0xff]
    %v3129 = vld [vmem:[%s4 + $0x1b0] sm:$0xff]
    %v3130 = vld [vmem:[%s4 + $0x1b8] sm:$0xff]
    %v3131 = vld [vmem:[%s4 + $0x1c0] sm:$0xff]
    %v3132 = vld [vmem:[%s4 + $0x1c8] sm:$0xff]
    %v3133 = vld [vmem:[%s4 + $0x1d0] sm:$0xff]
    %v3134 = vld [vmem:[%s4 + $0x1d8] sm:$0xff]
    %v3135 = vld [vmem:[%s4 + $0x1e0] sm:$0xff]
    %v3136 = vld [vmem:[%s4 + $0x1e8] sm:$0xff]
    %v3137 = vld [vmem:[%s4 + $0x1f0] sm:$0xff]
    %v3138 = vld [vmem:[%s4 + $0x1f8] sm:$0xff]
    %v3139 = vld [vmem:[%s4 + $0x200] sm:$0xff]
    %v3140 = vld [vmem:[%s4 + $0x208] sm:$0xff]
    %v3141 = vld [vmem:[%s4 + $0x210] sm:$0xff]
    %v3142 = vld [vmem:[%s4 + $0x218] sm:$0xff]
    %v3143 = vld [vmem:[%s4 + $0x220] sm:$0xff]
    %v3144 = vld [vmem:[%s4 + $0x228] sm:$0xff]
    %v3145 = vld [vmem:[%s4 + $0x230] sm:$0xff]
    %v3146 = vld [vmem:[%s4 + $0x238] sm:$0xff]
    %v3147 = vld [vmem:[%s4 + $0x240] sm:$0xff]
    %v3148 = vld [vmem:[%s4 + $0x248] sm:$0xff]
    %v3149 = vld [vmem:[%s4 + $0x250] sm:$0xff]
    %v3150 = vld [vmem:[%s5] sm:$0x1]
    %v3152 = vlaneseq
    %v3153 = vshrl.u32 %v3152, 7
    %v3154 = vsub.s32 0, %v3153
    %v3155 = vrot.slane %v3150, %v3154
    %vm3157 = vcmask 719872
    %v3159 = vsel %vm3157, %v3074, 0
    %3161 = vmatprep.subr.mxu0 0.0
    %3162 = vmatpush1.msra.mxu0 %v3090
    %3163 = vmatprep.subr.mxu0 0.0
    %3164 = vmatpush1.msra.mxu0 %v3089
    %3165 = vmatprep.subr.mxu0 0.0
    %3166 = vmatpush1.msra.mxu0 %v3088
    %3167 = vmatprep.subr.mxu0 0.0
    %3168 = vmatpush1.msra.mxu0 %v3087
    %3169 = vmatprep.subr.mxu0 0.0
    %3170 = vmatpush1.msra.mxu0 %v3086
    %3171 = vmatprep.subr.mxu0 0.0
    %3172 = vmatpush1.msra.mxu0 %v3085
    %3173 = vmatprep.subr.mxu0 0.0
    %3174 = vmatpush1.msra.mxu0 %v3084
    %3175 = vmatprep.subr.mxu0 0.0
    %3176 = vmatpush1.msra.mxu0 %v3083
    %3177 = vmatprep.subr.mxu0 0.0
    %3178 = vmatpush1.msra.mxu0 %v3082
    %3179 = vmatprep.subr.mxu0 0.0
    %3180 = vmatpush1.msra.mxu0 %v3081
    %3181 = vmatprep.subr.mxu0 0.0
    %3182 = vmatpush1.msra.mxu0 %v3080
    %3183 = vmatprep.subr.mxu0 0.0
    %3184 = vmatpush1.msra.mxu0 %v3079
    %3185 = vmatprep.subr.mxu0 0.0
    %3186 = vmatpush1.msra.mxu0 %v3078
    %3187 = vmatprep.subr.mxu0 0.0
    %3188 = vmatpush1.msra.mxu0 %v3077
    %3189 = vmatprep.subr.mxu0 0.0
    %3190 = vmatpush1.msra.mxu0 %v3076
    %3191 = vmatprep.subr.mxu0 0.0
    %3192 = vmatpush1.msra.mxu0 %v3075
    %3193 = vmatprep.subr.mxu0 0.0
    %3194 = vmatpush2.msra.mxu0 %v3106
    %3195 = vmatprep.subr.mxu0 0.0
    %3196 = vmatpush2.msra.mxu0 %v3105
    %3197 = vmatprep.subr.mxu0 0.0
    %3198 = vmatpush2.msra.mxu0 %v3104
    %3199 = vmatprep.subr.mxu0 0.0
    %3200 = vmatpush2.msra.mxu0 %v3103
    %3201 = vmatprep.subr.mxu0 0.0
    %3202 = vmatpush2.msra.mxu0 %v3102
    %3203 = vmatprep.subr.mxu0 0.0
    %3204 = vmatpush2.msra.mxu0 %v3101
    %3205 = vmatprep.subr.mxu0 0.0
    %3206 = vmatpush2.msra.mxu0 %v3100
    %3207 = vmatprep.subr.mxu0 0.0
    %3208 = vmatpush2.msra.mxu0 %v3099
    %3209 = vmatprep.subr.mxu0 0.0
    %3210 = vmatpush2.msra.mxu0 %v3098
    %3211 = vmatprep.subr.mxu0 0.0
    %3212 = vmatpush2.msra.mxu0 %v3097
    %3213 = vmatprep.subr.mxu0 0.0
    %3214 = vmatpush2.msra.mxu0 %v3096
    %3215 = vmatprep.subr.mxu0 0.0
    %3216 = vmatpush2.msra.mxu0 %v3095
    %3217 = vmatprep.subr.mxu0 0.0
    %3218 = vmatpush2.msra.mxu0 %v3094
    %3219 = vmatprep.subr.mxu0 0.0
    %3220 = vmatpush2.msra.mxu0 %v3093
    %3221 = vmatprep.subr.mxu0 0.0
    %3222 = vmatpush2.msra.mxu0 %v3092
    %3223 = vmatprep.subr.mxu0 0.0
    %3224 = vmatpush2.msra.mxu0 %v3091
    %3225 = vmatprep.mubr.f32.mxu0 %v3071
    %3226 = vmatmul.mubr.f32.gmra.mxu0 %v3070
    %v3227 = vpop.f32.mrf.mxu0
    %v3228 = vadd.f32 %v3155, %v3227
    %v3229 = vpop.f32.mrf.mxu0
    %3230 = vdwg.mxu0
    %3231 = vmatprep.subr.mxu0 0.0
    %3232 = vmatpush1.msra.mxu0 %v3122
    %3233 = vmatprep.subr.mxu0 0.0
    %3234 = vmatpush1.msra.mxu0 %v3121
    %3235 = vmatprep.subr.mxu0 0.0
    %3236 = vmatpush1.msra.mxu0 %v3120
    %3237 = vmatprep.subr.mxu0 0.0
    %3238 = vmatpush1.msra.mxu0 %v3119
    %3239 = vmatprep.subr.mxu0 0.0
    %3240 = vmatpush1.msra.mxu0 %v3118
    %3241 = vmatprep.subr.mxu0 0.0
    %3242 = vmatpush1.msra.mxu0 %v3117
    %3243 = vmatprep.subr.mxu0 0.0
    %3244 = vmatpush1.msra.mxu0 %v3116
    %3245 = vmatprep.subr.mxu0 0.0
    %3246 = vmatpush1.msra.mxu0 %v3115
    %3247 = vmatprep.subr.mxu0 0.0
    %3248 = vmatpush1.msra.mxu0 %v3114
    %3249 = vmatprep.subr.mxu0 0.0
    %3250 = vmatpush1.msra.mxu0 %v3113
    %3251 = vmatprep.subr.mxu0 0.0
    %3252 = vmatpush1.msra.mxu0 %v3112
    %3253 = vmatprep.subr.mxu0 0.0
    %3254 = vmatpush1.msra.mxu0 %v3111
    %3255 = vmatprep.subr.mxu0 0.0
    %3256 = vmatpush1.msra.mxu0 %v3110
    %3257 = vmatprep.subr.mxu0 0.0
    %3258 = vmatpush1.msra.mxu0 %v3109
    %3259 = vmatprep.subr.mxu0 0.0
    %3260 = vmatpush1.msra.mxu0 %v3108
    %3261 = vmatprep.subr.mxu0 0.0
    %3262 = vmatpush1.msra.mxu0 %v3107
    %3263 = vmatprep.subr.mxu0 0.0
    %3264 = vmatpush2.msra.mxu0 %v3138
    %3265 = vmatprep.subr.mxu0 0.0
    %3266 = vmatpush2.msra.mxu0 %v3137
    %3267 = vmatprep.subr.mxu0 0.0
    %3268 = vmatpush2.msra.mxu0 %v3136
    %3269 = vmatprep.subr.mxu0 0.0
    %3270 = vmatpush2.msra.mxu0 %v3135
    %3271 = vmatprep.subr.mxu0 0.0
    %3272 = vmatpush2.msra.mxu0 %v3134
    %3273 = vmatprep.subr.mxu0 0.0
    %3274 = vmatpush2.msra.mxu0 %v3133
    %3275 = vmatprep.subr.mxu0 0.0
    %3276 = vmatpush2.msra.mxu0 %v3132
    %3277 = vmatprep.subr.mxu0 0.0
    %3278 = vmatpush2.msra.mxu0 %v3131
    %3279 = vmatprep.subr.mxu0 0.0
    %3280 = vmatpush2.msra.mxu0 %v3130
    %3281 = vmatprep.subr.mxu0 0.0
    %3282 = vmatpush2.msra.mxu0 %v3129
    %3283 = vmatprep.subr.mxu0 0.0
    %3284 = vmatpush2.msra.mxu0 %v3128
    %3285 = vmatprep.subr.mxu0 0.0
    %3286 = vmatpush2.msra.mxu0 %v3127
    %3287 = vmatprep.subr.mxu0 0.0
    %3288 = vmatpush2.msra.mxu0 %v3126
    %3289 = vmatprep.subr.mxu0 0.0
    %3290 = vmatpush2.msra.mxu0 %v3125
    %3291 = vmatprep.subr.mxu0 0.0
    %3292 = vmatpush2.msra.mxu0 %v3124
    %3293 = vmatprep.subr.mxu0 0.0
    %3294 = vmatpush2.msra.mxu0 %v3123
    %3295 = vmatprep.mubr.f32.mxu0 %v3073
    %3296 = vmatmul.mubr.f32.gmra.mxu0 %v3072
    %v3297 = vpop.f32.mrf.mxu0
    %v3298 = vadd.f32 %v3228, %v3297
    %v3299 = vpop.f32.mrf.mxu0
    %3300 = vdwg.mxu0
    %3301 = vmatprep.subr.mxu0 0.0
    %3302 = vmatpush1.msra.mxu0 0.0
    %3303 = vmatprep.subr.mxu0 0.0
    %3304 = vmatpush1.msra.mxu0 0.0
    %3305 = vmatprep.subr.mxu0 0.0
    %3306 = vmatpush1.msra.mxu0 0.0
    %3307 = vmatprep.subr.mxu0 0.0
    %3308 = vmatpush1.msra.mxu0 0.0
    %3309 = vmatprep.subr.mxu0 0.0
    %3310 = vmatpush1.msra.mxu0 0.0
    %3311 = vmatprep.subr.mxu0 0.0
    %3312 = vmatpush1.msra.mxu0 %v3149
    %3313 = vmatprep.subr.mxu0 0.0
    %3314 = vmatpush1.msra.mxu0 %v3148
    %3315 = vmatprep.subr.mxu0 0.0
    %3316 = vmatpush1.msra.mxu0 %v3147
    %3317 = vmatprep.subr.mxu0 0.0
    %3318 = vmatpush1.msra.mxu0 %v3146
    %3319 = vmatprep.subr.mxu0 0.0
    %3320 = vmatpush1.msra.mxu0 %v3145
    %3321 = vmatprep.subr.mxu0 0.0
    %3322 = vmatpush1.msra.mxu0 %v3144
    %3323 = vmatprep.subr.mxu0 0.0
    %3324 = vmatpush1.msra.mxu0 %v3143
    %3325 = vmatprep.subr.mxu0 0.0
    %3326 = vmatpush1.msra.mxu0 %v3142
    %3327 = vmatprep.subr.mxu0 0.0
    %3328 = vmatpush1.msra.mxu0 %v3141
    %3329 = vmatprep.subr.mxu0 0.0
    %3330 = vmatpush1.msra.mxu0 %v3140
    %3331 = vmatprep.subr.mxu0 0.0
    %3332 = vmatpush1.msra.mxu0 %v3139
    %3333 = vmatprep.subr.mxu0 0.0
    %3334 = vmatpush2.msra.mxu0 0.0
    %3335 = vmatprep.subr.mxu0 0.0
    %3336 = vmatpush2.msra.mxu0 0.0
    %3337 = vmatprep.subr.mxu0 0.0
    %3338 = vmatpush2.msra.mxu0 0.0
    %3339 = vmatprep.subr.mxu0 0.0
    %3340 = vmatpush2.msra.mxu0 0.0
    %3341 = vmatprep.subr.mxu0 0.0
    %3342 = vmatpush2.msra.mxu0 0.0
    %3343 = vmatprep.subr.mxu0 0.0
    %3344 = vmatpush2.msra.mxu0 0.0
    %3345 = vmatprep.subr.mxu0 0.0
    %3346 = vmatpush2.msra.mxu0 0.0
    %3347 = vmatprep.subr.mxu0 0.0
    %3348 = vmatpush2.msra.mxu0 0.0
    %3349 = vmatprep.subr.mxu0 0.0
    %3350 = vmatpush2.msra.mxu0 0.0
    %3351 = vmatprep.subr.mxu0 0.0
    %3352 = vmatpush2.msra.mxu0 0.0
    %3353 = vmatprep.subr.mxu0 0.0
    %3354 = vmatpush2.msra.mxu0 0.0
    %3355 = vmatprep.subr.mxu0 0.0
    %3356 = vmatpush2.msra.mxu0 0.0
    %3357 = vmatprep.subr.mxu0 0.0
    %3358 = vmatpush2.msra.mxu0 0.0
    %3359 = vmatprep.subr.mxu0 0.0
    %3360 = vmatpush2.msra.mxu0 0.0
    %3361 = vmatprep.subr.mxu0 0.0
    %3362 = vmatpush2.msra.mxu0 0.0
    %3363 = vmatprep.subr.mxu0 0.0
    %3364 = vmatpush2.msra.mxu0 0.0
    %3365 = vmatprep.mubr.f32.mxu0 0.0
    %3366 = vmatmul.mubr.f32.gmra.mxu0 %v3159
    %v3367 = vpop.f32.mrf.mxu0
    %v3368 = vadd.f32 %v3298, %v3367
    %v3369 = vpop.f32.mrf.mxu0
    %3370 = vdwg.mxu0
    %v3371 = vmax.f32 %v3368, 0.0
    %v3372 = vld [vmem:[%s6] sm:$0xff]
    %v3373 = vld [vmem:[%s6 + $0x8] sm:$0xff]
    %v3374 = vld [vmem:[%s6 + $0x10] sm:$0xff]
    %v3375 = vld [vmem:[%s6 + $0x18] sm:$0xff]
    %v3376 = vld [vmem:[%s6 + $0x20] sm:$0xff]
    %v3377 = vld [vmem:[%s6 + $0x28] sm:$0xff]
    %v3378 = vld [vmem:[%s6 + $0x30] sm:$0xff]
    %v3379 = vld [vmem:[%s6 + $0x38] sm:$0xf]
    %v3380 = vld [vmem:[%s7] sm:$0x1]
    %v3382 = vlaneseq
    %v3383 = vshrl.u32 %v3382, 7
    %v3384 = vsub.s32 0, %v3383
    %v3385 = vrot.slane %v3380, %v3384
    %vm3387 = vcmask 490496
    %v3389 = vsel %vm3387, %v3371, 0
    %vm3391 = vcmask 1043456
    %v3393 = vsel %vm3391, %v3379, 0
    %3395 = vmatprep.subr.mxu0 0.0
    %3396 = vmatpush1.msra.mxu0 0.0
    %3397 = vmatprep.subr.mxu0 0.0
    %3398 = vmatpush1.msra.mxu0 0.0
    %3399 = vmatprep.subr.mxu0 0.0
    %3400 = vmatpush1.msra.mxu0 0.0
    %3401 = vmatprep.subr.mxu0 0.0
    %3402 = vmatpush1.msra.mxu0 0.0
    %3403 = vmatprep.subr.mxu0 0.0
    %3404 = vmatpush1.msra.mxu0 0.0
    %3405 = vmatprep.subr.mxu0 0.0
    %3406 = vmatpush1.msra.mxu0 0.0
    %3407 = vmatprep.subr.mxu0 0.0
    %3408 = vmatpush1.msra.mxu0 0.0
    %3409 = vmatprep.subr.mxu0 0.0
    %3410 = vmatpush1.msra.mxu0 0.0
    %3411 = vmatprep.subr.mxu0 0.0
    %3412 = vmatpush1.msra.mxu0 %v3393
    %3413 = vmatprep.subr.mxu0 0.0
    %3414 = vmatpush1.msra.mxu0 %v3378
    %3415 = vmatprep.subr.mxu0 0.0
    %3416 = vmatpush1.msra.mxu0 %v3377
    %3417 = vmatprep.subr.mxu0 0.0
    %3418 = vmatpush1.msra.mxu0 %v3376
    %3419 = vmatprep.subr.mxu0 0.0
    %3420 = vmatpush1.msra.mxu0 %v3375
    %3421 = vmatprep.subr.mxu0 0.0
    %3422 = vmatpush1.msra.mxu0 %v3374
    %3423 = vmatprep.subr.mxu0 0.0
    %3424 = vmatpush1.msra.mxu0 %v3373
    %3425 = vmatprep.subr.mxu0 0.0
    %3426 = vmatpush1.msra.mxu0 %v3372
    %3427 = vmatprep.subr.mxu0 0.0
    %3428 = vmatpush2.msra.mxu0 0.0
    %3429 = vmatprep.subr.mxu0 0.0
    %3430 = vmatpush2.msra.mxu0 0.0
    %3431 = vmatprep.subr.mxu0 0.0
    %3432 = vmatpush2.msra.mxu0 0.0
    %3433 = vmatprep.subr.mxu0 0.0
    %3434 = vmatpush2.msra.mxu0 0.0
    %3435 = vmatprep.subr.mxu0 0.0
    %3436 = vmatpush2.msra.mxu0 0.0
    %3437 = vmatprep.subr.mxu0 0.0
    %3438 = vmatpush2.msra.mxu0 0.0
    %3439 = vmatprep.subr.mxu0 0.0
    %3440 = vmatpush2.msra.mxu0 0.0
    %3441 = vmatprep.subr.mxu0 0.0
    %3442 = vmatpush2.msra.mxu0 0.0
    %3443 = vmatprep.subr.mxu0 0.0
    %3444 = vmatpush2.msra.mxu0 0.0
    %3445 = vmatprep.subr.mxu0 0.0
    %3446 = vmatpush2.msra.mxu0 0.0
    %3447 = vmatprep.subr.mxu0 0.0
    %3448 = vmatpush2.msra.mxu0 0.0
    %3449 = vmatprep.subr.mxu0 0.0
    %3450 = vmatpush2.msra.mxu0 0.0
    %3451 = vmatprep.subr.mxu0 0.0
    %3452 = vmatpush2.msra.mxu0 0.0
    %3453 = vmatprep.subr.mxu0 0.0
    %3454 = vmatpush2.msra.mxu0 0.0
    %3455 = vmatprep.subr.mxu0 0.0
    %3456 = vmatpush2.msra.mxu0 0.0
    %3457 = vmatprep.subr.mxu0 0.0
    %3458 = vmatpush2.msra.mxu0 0.0
    %3459 = vmatprep.mubr.f32.mxu0 0.0
    %3460 = vmatmul.mubr.f32.gmra.mxu0 %v3389
    %v3461 = vpop.f32.mrf.mxu0
    %v3462 = vadd.f32 %v3385, %v3461
    %v3463 = vpop.f32.mrf.mxu0
    %3464 = vdwg.mxu0
    %v3465 = vmax.f32 %v3462, 0.0
    %v3466 = vld [vmem:[%s8] sm:$0x3f]
    %v3467 = vld [vmem:[%s9] sm:$0x1]
    %v3469 = vlaneseq
    %v3470 = vshrl.u32 %v3469, 7
    %v3471 = vsub.s32 0, %v3470
    %v3472 = vrot.slane %v3467, %v3471
    %vm3474 = vcmask 48128
    %v3476 = vsel %vm3474, %v3465, 0
    %vm3478 = vcmask 1045504
    %v3480 = vsel %vm3478, %v3466, 0
    %3482 = vmatprep.subr.mxu0 0.0
    %3483 = vmatpush1.msra.mxu0 0.0
    %3484 = vmatprep.subr.mxu0 0.0
    %3485 = vmatpush1.msra.mxu0 0.0
    %3486 = vmatprep.subr.mxu0 0.0
    %3487 = vmatpush1.msra.mxu0 0.0
    %3488 = vmatprep.subr.mxu0 0.0
    %3489 = vmatpush1.msra.mxu0 0.0
    %3490 = vmatprep.subr.mxu0 0.0
    %3491 = vmatpush1.msra.mxu0 0.0
    %3492 = vmatprep.subr.mxu0 0.0
    %3493 = vmatpush1.msra.mxu0 0.0
    %3494 = vmatprep.subr.mxu0 0.0
    %3495 = vmatpush1.msra.mxu0 0.0
    %3496 = vmatprep.subr.mxu0 0.0
    %3497 = vmatpush1.msra.mxu0 0.0
    %3498 = vmatprep.subr.mxu0 0.0
    %3499 = vmatpush1.msra.mxu0 0.0
    %3500 = vmatprep.subr.mxu0 0.0
    %3501 = vmatpush1.msra.mxu0 0.0
    %3502 = vmatprep.subr.mxu0 0.0
    %3503 = vmatpush1.msra.mxu0 0.0
    %3504 = vmatprep.subr.mxu0 0.0
    %3505 = vmatpush1.msra.mxu0 0.0
    %3506 = vmatprep.subr.mxu0 0.0
    %3507 = vmatpush1.msra.mxu0 0.0
    %3508 = vmatprep.subr.mxu0 0.0
    %3509 = vmatpush1.msra.mxu0 0.0
    %3510 = vmatprep.subr.mxu0 0.0
    %3511 = vmatpush1.msra.mxu0 0.0
    %3512 = vmatprep.subr.mxu0 0.0
    %3513 = vmatpush1.msra.mxu0 %v3480
    %3514 = vmatprep.subr.mxu0 0.0
    %3515 = vmatpush2.msra.mxu0 0.0
    %3516 = vmatprep.subr.mxu0 0.0
    %3517 = vmatpush2.msra.mxu0 0.0
    %3518 = vmatprep.subr.mxu0 0.0
    %3519 = vmatpush2.msra.mxu0 0.0
    %3520 = vmatprep.subr.mxu0 0.0
    %3521 = vmatpush2.msra.mxu0 0.0
    %3522 = vmatprep.subr.mxu0 0.0
    %3523 = vmatpush2.msra.mxu0 0.0
    %3524 = vmatprep.subr.mxu0 0.0
    %3525 = vmatpush2.msra.mxu0 0.0
    %3526 = vmatprep.subr.mxu0 0.0
    %3527 = vmatpush2.msra.mxu0 0.0
    %3528 = vmatprep.subr.mxu0 0.0
    %3529 = vmatpush2.msra.mxu0 0.0
    %3530 = vmatprep.subr.mxu0 0.0
    %3531 = vmatpush2.msra.mxu0 0.0
    %3532 = vmatprep.subr.mxu0 0.0
    %3533 = vmatpush2.msra.mxu0 0.0
    %3534 = vmatprep.subr.mxu0 0.0
    %3535 = vmatpush2.msra.mxu0 0.0
    %3536 = vmatprep.subr.mxu0 0.0
    %3537 = vmatpush2.msra.mxu0 0.0
    %3538 = vmatprep.subr.mxu0 0.0
    %3539 = vmatpush2.msra.mxu0 0.0
    %3540 = vmatprep.subr.mxu0 0.0
    %3541 = vmatpush2.msra.mxu0 0.0
    %3542 = vmatprep.subr.mxu0 0.0
    %3543 = vmatpush2.msra.mxu0 0.0
    %3544 = vmatprep.subr.mxu0 0.0
    %3545 = vmatpush2.msra.mxu0 0.0
    %3546 = vmatprep.mubr.f32.mxu0 0.0
    %3547 = vmatmul.mubr.f32.gmra.mxu0 %v3476
    %v3548 = vpop.f32.mrf.mxu0
    %v3549 = vadd.f32 %v3472, %v3548
    %v3550 = vpop.f32.mrf.mxu0
    %3551 = vdwg.mxu0
    %v3552 = vld [vmem:[%s10] sm:$0x3f]
    %v3553 = vld [vmem:[%s11] sm:$0x1]
    %v3555 = vlaneseq
    %v3556 = vshrl.u32 %v3555, 7
    %v3557 = vsub.s32 0, %v3556
    %v3558 = vrot.slane %v3553, %v3557
    %v3561 = vsel %vm3478, %v3552, 0
    %3563 = vmatprep.subr.mxu0 0.0
    %3564 = vmatpush1.msra.mxu0 0.0
    %3565 = vmatprep.subr.mxu0 0.0
    %3566 = vmatpush1.msra.mxu0 0.0
    %3567 = vmatprep.subr.mxu0 0.0
    %3568 = vmatpush1.msra.mxu0 0.0
    %3569 = vmatprep.subr.mxu0 0.0
    %3570 = vmatpush1.msra.mxu0 0.0
    %3571 = vmatprep.subr.mxu0 0.0
    %3572 = vmatpush1.msra.mxu0 0.0
    %3573 = vmatprep.subr.mxu0 0.0
    %3574 = vmatpush1.msra.mxu0 0.0
    %3575 = vmatprep.subr.mxu0 0.0
    %3576 = vmatpush1.msra.mxu0 0.0
    %3577 = vmatprep.subr.mxu0 0.0
    %3578 = vmatpush1.msra.mxu0 0.0
    %3579 = vmatprep.subr.mxu0 0.0
    %3580 = vmatpush1.msra.mxu0 0.0
    %3581 = vmatprep.subr.mxu0 0.0
    %3582 = vmatpush1.msra.mxu0 0.0
    %3583 = vmatprep.subr.mxu0 0.0
    %3584 = vmatpush1.msra.mxu0 0.0
    %3585 = vmatprep.subr.mxu0 0.0
    %3586 = vmatpush1.msra.mxu0 0.0
    %3587 = vmatprep.subr.mxu0 0.0
    %3588 = vmatpush1.msra.mxu0 0.0
    %3589 = vmatprep.subr.mxu0 0.0
    %3590 = vmatpush1.msra.mxu0 0.0
    %3591 = vmatprep.subr.mxu0 0.0
    %3592 = vmatpush1.msra.mxu0 0.0
    %3593 = vmatprep.subr.mxu0 0.0
    %3594 = vmatpush1.msra.mxu0 %v3561
    %3595 = vmatprep.subr.mxu0 0.0
    %3596 = vmatpush2.msra.mxu0 0.0
    %3597 = vmatprep.subr.mxu0 0.0
    %3598 = vmatpush2.msra.mxu0 0.0
    %3599 = vmatprep.subr.mxu0 0.0
    %3600 = vmatpush2.msra.mxu0 0.0
    %3601 = vmatprep.subr.mxu0 0.0
    %3602 = vmatpush2.msra.mxu0 0.0
    %3603 = vmatprep.subr.mxu0 0.0
    %3604 = vmatpush2.msra.mxu0 0.0
    %3605 = vmatprep.subr.mxu0 0.0
    %3606 = vmatpush2.msra.mxu0 0.0
    %3607 = vmatprep.subr.mxu0 0.0
    %3608 = vmatpush2.msra.mxu0 0.0
    %3609 = vmatprep.subr.mxu0 0.0
    %3610 = vmatpush2.msra.mxu0 0.0
    %3611 = vmatprep.subr.mxu0 0.0
    %3612 = vmatpush2.msra.mxu0 0.0
    %3613 = vmatprep.subr.mxu0 0.0
    %3614 = vmatpush2.msra.mxu0 0.0
    %3615 = vmatprep.subr.mxu0 0.0
    %3616 = vmatpush2.msra.mxu0 0.0
    %3617 = vmatprep.subr.mxu0 0.0
    %3618 = vmatpush2.msra.mxu0 0.0
    %3619 = vmatprep.subr.mxu0 0.0
    %3620 = vmatpush2.msra.mxu0 0.0
    %3621 = vmatprep.subr.mxu0 0.0
    %3622 = vmatpush2.msra.mxu0 0.0
    %3623 = vmatprep.subr.mxu0 0.0
    %3624 = vmatpush2.msra.mxu0 0.0
    %3625 = vmatprep.subr.mxu0 0.0
    %3626 = vmatpush2.msra.mxu0 0.0
    %3627 = vmatprep.mubr.f32.mxu0 0.0
    %3628 = vmatmul.mubr.f32.gmra.mxu0 %v3476
    %v3629 = vpop.f32.mrf.mxu0
    %v3630 = vadd.f32 %v3558, %v3629
    %v3631 = vpop.f32.mrf.mxu0
    %3632 = vdwg.mxu0
    %v3633 = vld [vmem:[%s1] sm:$0xff]
    %v3634 = vmul.f32 %v3630, 0.5
    %v3635 = vmul.f32 %v3634, 1.442695
    %v3636 = vpow.pop %v3635
    %v3637 = vmul.f32 %v3633, %v3636
    %v3638 = vadd.f32 %v3549, %v3637
    %v3639 = vld [vmem:[%s12] sm:$0xff]
    %v3640 = vld [vmem:[%s12 + $0x8] sm:$0xff]
    %v3641 = vld [vmem:[%s12 + $0x10] sm:$0xf]
    %v3642 = vld [vmem:[%s13] sm:$0x1]
    %v3644 = vlaneseq
    %v3645 = vshrl.u32 %v3644, 7
    %v3646 = vsub.s32 0, %v3645
    %v3647 = vrot.slane %v3642, %v3646
    %vm3649 = vcmask 162816
    %v3651 = vsel %vm3649, %v3638, 0
    %v3654 = vsel %vm3391, %v3641, 0
    %3656 = vmatprep.subr.mxu0 0.0
    %3657 = vmatpush1.msra.mxu0 0.0
    %3658 = vmatprep.subr.mxu0 0.0
    %3659 = vmatpush1.msra.mxu0 0.0
    %3660 = vmatprep.subr.mxu0 0.0
    %3661 = vmatpush1.msra.mxu0 0.0
    %3662 = vmatprep.subr.mxu0 0.0
    %3663 = vmatpush1.msra.mxu0 0.0
    %3664 = vmatprep.subr.mxu0 0.0
    %3665 = vmatpush1.msra.mxu0 0.0
    %3666 = vmatprep.subr.mxu0 0.0
    %3667 = vmatpush1.msra.mxu0 0.0
    %3668 = vmatprep.subr.mxu0 0.0
    %3669 = vmatpush1.msra.mxu0 0.0
    %3670 = vmatprep.subr.mxu0 0.0
    %3671 = vmatpush1.msra.mxu0 0.0
    %3672 = vmatprep.subr.mxu0 0.0
    %3673 = vmatpush1.msra.mxu0 0.0
    %3674 = vmatprep.subr.mxu0 0.0
    %3675 = vmatpush1.msra.mxu0 0.0
    %3676 = vmatprep.subr.mxu0 0.0
    %3677 = vmatpush1.msra.mxu0 0.0
    %3678 = vmatprep.subr.mxu0 0.0
    %3679 = vmatpush1.msra.mxu0 0.0
    %3680 = vmatprep.subr.mxu0 0.0
    %3681 = vmatpush1.msra.mxu0 0.0
    %3682 = vmatprep.subr.mxu0 0.0
    %3683 = vmatpush1.msra.mxu0 %v3654
    %3684 = vmatprep.subr.mxu0 0.0
    %3685 = vmatpush1.msra.mxu0 %v3640
    %3686 = vmatprep.subr.mxu0 0.0
    %3687 = vmatpush1.msra.mxu0 %v3639
    %3688 = vmatprep.subr.mxu0 0.0
    %3689 = vmatpush2.msra.mxu0 0.0
    %3690 = vmatprep.subr.mxu0 0.0
    %3691 = vmatpush2.msra.mxu0 0.0
    %3692 = vmatprep.subr.mxu0 0.0
    %3693 = vmatpush2.msra.mxu0 0.0
    %3694 = vmatprep.subr.mxu0 0.0
    %3695 = vmatpush2.msra.mxu0 0.0
    %3696 = vmatprep.subr.mxu0 0.0
    %3697 = vmatpush2.msra.mxu0 0.0
    %3698 = vmatprep.subr.mxu0 0.0
    %3699 = vmatpush2.msra.mxu0 0.0
    %3700 = vmatprep.subr.mxu0 0.0
    %3701 = vmatpush2.msra.mxu0 0.0
    %3702 = vmatprep.subr.mxu0 0.0
    %3703 = vmatpush2.msra.mxu0 0.0
    %3704 = vmatprep.subr.mxu0 0.0
    %3705 = vmatpush2.msra.mxu0 0.0
    %3706 = vmatprep.subr.mxu0 0.0
    %3707 = vmatpush2.msra.mxu0 0.0
    %3708 = vmatprep.subr.mxu0 0.0
    %3709 = vmatpush2.msra.mxu0 0.0
    %3710 = vmatprep.subr.mxu0 0.0
    %3711 = vmatpush2.msra.mxu0 0.0
    %3712 = vmatprep.subr.mxu0 0.0
    %3713 = vmatpush2.msra.mxu0 0.0
    %3714 = vmatprep.subr.mxu0 0.0
    %3715 = vmatpush2.msra.mxu0 0.0
    %3716 = vmatprep.subr.mxu0 0.0
    %3717 = vmatpush2.msra.mxu0 0.0
    %3718 = vmatprep.subr.mxu0 0.0
    %3719 = vmatpush2.msra.mxu0 0.0
    %3720 = vmatprep.mubr.f32.mxu0 0.0
    %3721 = vmatmul.mubr.f32.gmra.mxu0 %v3651
    %v3722 = vpop.f32.mrf.mxu0
    %v3723 = vadd.f32 %v3647, %v3722
    %v3724 = vpop.f32.mrf.mxu0
    %3725 = vdwg.mxu0
    %v3726 = vld [vmem:[%s14] sm:$0x3f]
    %v3727 = vld [vmem:[%s15] sm:$0x1]
    %v3729 = vlaneseq
    %v3730 = vshrl.u32 %v3729, 7
    %v3731 = vsub.s32 0, %v3730
    %v3732 = vrot.slane %v3727, %v3731
    %v3735 = vsel %vm3474, %v3723, 0
    %v3738 = vsel %vm3478, %v3726, 0
    %3740 = vmatprep.subr.mxu0 0.0
    %3741 = vmatpush1.msra.mxu0 0.0
    %3742 = vmatprep.subr.mxu0 0.0
    %3743 = vmatpush1.msra.mxu0 0.0
    %3744 = vmatprep.subr.mxu0 0.0
    %3745 = vmatpush1.msra.mxu0 0.0
    %3746 = vmatprep.subr.mxu0 0.0
    %3747 = vmatpush1.msra.mxu0 0.0
    %3748 = vmatprep.subr.mxu0 0.0
    %3749 = vmatpush1.msra.mxu0 0.0
    %3750 = vmatprep.subr.mxu0 0.0
    %3751 = vmatpush1.msra.mxu0 0.0
    %3752 = vmatprep.subr.mxu0 0.0
    %3753 = vmatpush1.msra.mxu0 0.0
    %3754 = vmatprep.subr.mxu0 0.0
    %3755 = vmatpush1.msra.mxu0 0.0
    %3756 = vmatprep.subr.mxu0 0.0
    %3757 = vmatpush1.msra.mxu0 0.0
    %3758 = vmatprep.subr.mxu0 0.0
    %3759 = vmatpush1.msra.mxu0 0.0
    %3760 = vmatprep.subr.mxu0 0.0
    %3761 = vmatpush1.msra.mxu0 0.0
    %3762 = vmatprep.subr.mxu0 0.0
    %3763 = vmatpush1.msra.mxu0 0.0
    %3764 = vmatprep.subr.mxu0 0.0
    %3765 = vmatpush1.msra.mxu0 0.0
    %3766 = vmatprep.subr.mxu0 0.0
    %3767 = vmatpush1.msra.mxu0 0.0
    %3768 = vmatprep.subr.mxu0 0.0
    %3769 = vmatpush1.msra.mxu0 0.0
    %3770 = vmatprep.subr.mxu0 0.0
    %3771 = vmatpush1.msra.mxu0 %v3738
    %3772 = vmatprep.subr.mxu0 0.0
    %3773 = vmatpush2.msra.mxu0 0.0
    %3774 = vmatprep.subr.mxu0 0.0
    %3775 = vmatpush2.msra.mxu0 0.0
    %3776 = vmatprep.subr.mxu0 0.0
    %3777 = vmatpush2.msra.mxu0 0.0
    %3778 = vmatprep.subr.mxu0 0.0
    %3779 = vmatpush2.msra.mxu0 0.0
    %3780 = vmatprep.subr.mxu0 0.0
    %3781 = vmatpush2.msra.mxu0 0.0
    %3782 = vmatprep.subr.mxu0 0.0
    %3783 = vmatpush2.msra.mxu0 0.0
    %3784 = vmatprep.subr.mxu0 0.0
    %3785 = vmatpush2.msra.mxu0 0.0
    %3786 = vmatprep.subr.mxu0 0.0
    %3787 = vmatpush2.msra.mxu0 0.0
    %3788 = vmatprep.subr.mxu0 0.0
    %3789 = vmatpush2.msra.mxu0 0.0
    %3790 = vmatprep.subr.mxu0 0.0
    %3791 = vmatpush2.msra.mxu0 0.0
    %3792 = vmatprep.subr.mxu0 0.0
    %3793 = vmatpush2.msra.mxu0 0.0
    %3794 = vmatprep.subr.mxu0 0.0
    %3795 = vmatpush2.msra.mxu0 0.0
    %3796 = vmatprep.subr.mxu0 0.0
    %3797 = vmatpush2.msra.mxu0 0.0
    %3798 = vmatprep.subr.mxu0 0.0
    %3799 = vmatpush2.msra.mxu0 0.0
    %3800 = vmatprep.subr.mxu0 0.0
    %3801 = vmatpush2.msra.mxu0 0.0
    %3802 = vmatprep.subr.mxu0 0.0
    %3803 = vmatpush2.msra.mxu0 0.0
    %3804 = vmatprep.mubr.f32.mxu0 0.0
    %3805 = vmatmul.mubr.f32.gmra.mxu0 %v3735
    %v3806 = vpop.f32.mrf.mxu0
    %v3807 = vadd.f32 %v3732, %v3806
    %v3808 = vpop.f32.mrf.mxu0
    %3809 = vdwg.mxu0
    %v3810 = vmax.f32 %v3807, 0.0
    %v3811 = vld [vmem:[%s16] sm:$0xff]
    %v3812 = vld [vmem:[%s16 + $0x8] sm:$0xff]
    %v3813 = vld [vmem:[%s16 + $0x10] sm:$0xff]
    %v3814 = vld [vmem:[%s16 + $0x18] sm:$0xff]
    %v3815 = vld [vmem:[%s16 + $0x20] sm:$0xff]
    %v3816 = vld [vmem:[%s16 + $0x28] sm:$0xff]
    %v3817 = vld [vmem:[%s16 + $0x30] sm:$0xff]
    %v3818 = vld [vmem:[%s16 + $0x38] sm:$0xff]
    %v3819 = vld [vmem:[%s16 + $0x40] sm:$0xff]
    %v3820 = vld [vmem:[%s16 + $0x48] sm:$0xff]
    %v3821 = vld [vmem:[%s16 + $0x50] sm:$0xff]
    %v3822 = vld [vmem:[%s16 + $0x58] sm:$0xff]
    %v3823 = vld [vmem:[%s16 + $0x60] sm:$0xff]
    %v3824 = vld [vmem:[%s16 + $0x68] sm:$0xff]
    %v3825 = vld [vmem:[%s16 + $0x70] sm:$0xff]
    %v3826 = vld [vmem:[%s16 + $0x78] sm:$0xff]
    %v3827 = vld [vmem:[%s16 + $0x80] sm:$0xff]
    %v3828 = vld [vmem:[%s16 + $0x88] sm:$0xff]
    %v3829 = vld [vmem:[%s16 + $0x90] sm:$0xff]
    %v3830 = vld [vmem:[%s16 + $0x98] sm:$0xff]
    %v3831 = vld [vmem:[%s16 + $0xa0] sm:$0xff]
    %v3832 = vld [vmem:[%s16 + $0xa8] sm:$0xff]
    %v3833 = vld [vmem:[%s16 + $0xb0] sm:$0xff]
    %v3834 = vld [vmem:[%s16 + $0xb8] sm:$0xff]
    %v3835 = vld [vmem:[%s16 + $0xc0] sm:$0xff]
    %v3836 = vld [vmem:[%s16 + $0xc8] sm:$0xff]
    %v3837 = vld [vmem:[%s16 + $0xd0] sm:$0xff]
    %v3838 = vld [vmem:[%s16 + $0xd8] sm:$0xff]
    %v3839 = vld [vmem:[%s16 + $0xe0] sm:$0xff]
    %v3840 = vld [vmem:[%s16 + $0xe8] sm:$0xff]
    %v3841 = vld [vmem:[%s16 + $0xf0] sm:$0xff]
    %v3842 = vld [vmem:[%s16 + $0xf8] sm:$0xff]
    %v3843 = vld [vmem:[%s16 + $0x100] sm:$0xff]
    %v3844 = vld [vmem:[%s16 + $0x108] sm:$0xff]
    %v3845 = vld [vmem:[%s16 + $0x110] sm:$0xff]
    %v3846 = vld [vmem:[%s16 + $0x118] sm:$0xf]
    %v3847 = vld [vmem:[%s16 + $0x120] sm:$0xf]
    %v3848 = vld [vmem:[%s16 + $0x128] sm:$0xf]
    %v3849 = vld [vmem:[%s16 + $0x130] sm:$0xf]
    %v3850 = vld [vmem:[%s16 + $0x138] sm:$0xf]
    %v3851 = vld [vmem:[%s17] sm:$0x1f]
    %v3853 = vlaneseq
    %v3854 = vshrl.u32 %v3853, 7
    %v3855 = vsub.s32 0, %v3854
    %v3856 = vrot.slane %v3851, %v3855
    %v3857 = vlaneseq
    %v3858 = vshrl.u32 %v3857, 7
    %v3859 = vsub.s32 1, %v3858
    %v3860 = vrot.slane %v3851, %v3859
    %v3861 = vlaneseq
    %v3862 = vshrl.u32 %v3861, 7
    %v3863 = vsub.s32 2, %v3862
    %v3864 = vrot.slane %v3851, %v3863
    %v3865 = vlaneseq
    %v3866 = vshrl.u32 %v3865, 7
    %v3867 = vsub.s32 3, %v3866
    %v3868 = vrot.slane %v3851, %v3867
    %v3869 = vlaneseq
    %v3870 = vshrl.u32 %v3869, 7
    %v3871 = vsub.s32 4, %v3870
    %v3872 = vrot.slane %v3851, %v3871
    %v3879 = vsel %vm3387, %v3810, 0
    %v3882 = vsel %vm3391, %v3846, 0
    %v3885 = vsel %vm3391, %v3847, 0
    %v3888 = vsel %vm3391, %v3848, 0
    %v3891 = vsel %vm3391, %v3849, 0
    %v3894 = vsel %vm3391, %v3850, 0
    %3896 = vmatprep.subr.mxu0 0.0
    %3897 = vmatpush1.msra.mxu0 0.0
    %3898 = vmatprep.subr.mxu0 0.0
    %3899 = vmatpush1.msra.mxu0 0.0
    %3900 = vmatprep.subr.mxu0 0.0
    %3901 = vmatpush1.msra.mxu0 0.0
    %3902 = vmatprep.subr.mxu0 0.0
    %3903 = vmatpush1.msra.mxu0 0.0
    %3904 = vmatprep.subr.mxu0 0.0
    %3905 = vmatpush1.msra.mxu0 0.0
    %3906 = vmatprep.subr.mxu0 0.0
    %3907 = vmatpush1.msra.mxu0 0.0
    %3908 = vmatprep.subr.mxu0 0.0
    %3909 = vmatpush1.msra.mxu0 0.0
    %3910 = vmatprep.subr.mxu0 0.0
    %3911 = vmatpush1.msra.mxu0 0.0
    %3912 = vmatprep.subr.mxu0 %v3885
    %3913 = vmatpush1.msra.mxu0 %v3882
    %3914 = vmatprep.subr.mxu0 %v3842
    %3915 = vmatpush1.msra.mxu0 %v3841
    %3916 = vmatprep.subr.mxu0 %v3837
    %3917 = vmatpush1.msra.mxu0 %v3836
    %3918 = vmatprep.subr.mxu0 %v3832
    %3919 = vmatpush1.msra.mxu0 %v3831
    %3920 = vmatprep.subr.mxu0 %v3827
    %3921 = vmatpush1.msra.mxu0 %v3826
    %3922 = vmatprep.subr.mxu0 %v3822
    %3923 = vmatpush1.msra.mxu0 %v3821
    %3924 = vmatprep.subr.mxu0 %v3817
    %3925 = vmatpush1.msra.mxu0 %v3816
    %3926 = vmatprep.subr.mxu0 %v3812
    %3927 = vmatpush1.msra.mxu0 %v3811
    %3928 = vmatprep.subr.mxu0 0.0
    %3929 = vmatpush2.msra.mxu0 0.0
    %3930 = vmatprep.subr.mxu0 0.0
    %3931 = vmatpush2.msra.mxu0 0.0
    %3932 = vmatprep.subr.mxu0 0.0
    %3933 = vmatpush2.msra.mxu0 0.0
    %3934 = vmatprep.subr.mxu0 0.0
    %3935 = vmatpush2.msra.mxu0 0.0
    %3936 = vmatprep.subr.mxu0 0.0
    %3937 = vmatpush2.msra.mxu0 0.0
    %3938 = vmatprep.subr.mxu0 0.0
    %3939 = vmatpush2.msra.mxu0 0.0
    %3940 = vmatprep.subr.mxu0 0.0
    %3941 = vmatpush2.msra.mxu0 0.0
    %3942 = vmatprep.subr.mxu0 0.0
    %3943 = vmatpush2.msra.mxu0 0.0
    %3944 = vmatprep.subr.mxu0 0.0
    %3945 = vmatpush2.msra.mxu0 0.0
    %3946 = vmatprep.subr.mxu0 0.0
    %3947 = vmatpush2.msra.mxu0 0.0
    %3948 = vmatprep.subr.mxu0 0.0
    %3949 = vmatpush2.msra.mxu0 0.0
    %3950 = vmatprep.subr.mxu0 0.0
    %3951 = vmatpush2.msra.mxu0 0.0
    %3952 = vmatprep.subr.mxu0 0.0
    %3953 = vmatpush2.msra.mxu0 0.0
    %3954 = vmatprep.subr.mxu0 0.0
    %3955 = vmatpush2.msra.mxu0 0.0
    %3956 = vmatprep.subr.mxu0 0.0
    %3957 = vmatpush2.msra.mxu0 0.0
    %3958 = vmatprep.subr.mxu0 0.0
    %3959 = vmatpush2.msra.mxu0 0.0
    %3960 = vmatprep.mubr.f32.mxu0 0.0
    %3961 = vmatmul.mubr.f32.gmra.mxu0 %v3879
    %v3962 = vpop.f32.mrf.mxu0
    %v3963 = vadd.f32 %v3856, %v3962
    %v3964 = vpop.f32.mrf.mxu0
    %v3965 = vadd.f32 %v3860, %v3964
    %3966 = vdwg.mxu0
    %3967 = vmatprep.subr.mxu0 0.0
    %3968 = vmatpush1.msra.mxu0 0.0
    %3969 = vmatprep.subr.mxu0 0.0
    %3970 = vmatpush1.msra.mxu0 0.0
    %3971 = vmatprep.subr.mxu0 0.0
    %3972 = vmatpush1.msra.mxu0 0.0
    %3973 = vmatprep.subr.mxu0 0.0
    %3974 = vmatpush1.msra.mxu0 0.0
    %3975 = vmatprep.subr.mxu0 0.0
    %3976 = vmatpush1.msra.mxu0 0.0
    %3977 = vmatprep.subr.mxu0 0.0
    %3978 = vmatpush1.msra.mxu0 0.0
    %3979 = vmatprep.subr.mxu0 0.0
    %3980 = vmatpush1.msra.mxu0 0.0
    %3981 = vmatprep.subr.mxu0 0.0
    %3982 = vmatpush1.msra.mxu0 0.0
    %3983 = vmatprep.subr.mxu0 %v3891
    %3984 = vmatpush1.msra.mxu0 %v3888
    %3985 = vmatprep.subr.mxu0 %v3844
    %3986 = vmatpush1.msra.mxu0 %v3843
    %3987 = vmatprep.subr.mxu0 %v3839
    %3988 = vmatpush1.msra.mxu0 %v3838
    %3989 = vmatprep.subr.mxu0 %v3834
    %3990 = vmatpush1.msra.mxu0 %v3833
    %3991 = vmatprep.subr.mxu0 %v3829
    %3992 = vmatpush1.msra.mxu0 %v3828
    %3993 = vmatprep.subr.mxu0 %v3824
    %3994 = vmatpush1.msra.mxu0 %v3823
    %3995 = vmatprep.subr.mxu0 %v3819
    %3996 = vmatpush1.msra.mxu0 %v3818
    %3997 = vmatprep.subr.mxu0 %v3814
    %3998 = vmatpush1.msra.mxu0 %v3813
    %3999 = vmatprep.subr.mxu0 0.0
    %4000 = vmatpush2.msra.mxu0 0.0
    %4001 = vmatprep.subr.mxu0 0.0
    %4002 = vmatpush2.msra.mxu0 0.0
    %4003 = vmatprep.subr.mxu0 0.0
    %4004 = vmatpush2.msra.mxu0 0.0
    %4005 = vmatprep.subr.mxu0 0.0
    %4006 = vmatpush2.msra.mxu0 0.0
    %4007 = vmatprep.subr.mxu0 0.0
    %4008 = vmatpush2.msra.mxu0 0.0
    %4009 = vmatprep.subr.mxu0 0.0
    %4010 = vmatpush2.msra.mxu0 0.0
    %4011 = vmatprep.subr.mxu0 0.0
    %4012 = vmatpush2.msra.mxu0 0.0
    %4013 = vmatprep.subr.mxu0 0.0
    %4014 = vmatpush2.msra.mxu0 0.0
    %4015 = vmatprep.subr.mxu0 0.0
    %4016 = vmatpush2.msra.mxu0 0.0
    %4017 = vmatprep.subr.mxu0 0.0
    %4018 = vmatpush2.msra.mxu0 0.0
    %4019 = vmatprep.subr.mxu0 0.0
    %4020 = vmatpush2.msra.mxu0 0.0
    %4021 = vmatprep.subr.mxu0 0.0
    %4022 = vmatpush2.msra.mxu0 0.0
    %4023 = vmatprep.subr.mxu0 0.0
    %4024 = vmatpush2.msra.mxu0 0.0
    %4025 = vmatprep.subr.mxu0 0.0
    %4026 = vmatpush2.msra.mxu0 0.0
    %4027 = vmatprep.subr.mxu0 0.0
    %4028 = vmatpush2.msra.mxu0 0.0
    %4029 = vmatprep.subr.mxu0 0.0
    %4030 = vmatpush2.msra.mxu0 0.0
    %4031 = vmatprep.mubr.f32.mxu0 0.0
    %4032 = vmatmul.mubr.f32.gmra.mxu0 %v3879
    %v4033 = vpop.f32.mrf.mxu0
    %v4034 = vadd.f32 %v3864, %v4033
    %v4035 = vpop.f32.mrf.mxu0
    %v4036 = vadd.f32 %v3868, %v4035
    %4037 = vdwg.mxu0
    %4038 = vmatprep.subr.mxu0 0.0
    %4039 = vmatpush1.msra.mxu0 0.0
    %4040 = vmatprep.subr.mxu0 0.0
    %4041 = vmatpush1.msra.mxu0 0.0
    %4042 = vmatprep.subr.mxu0 0.0
    %4043 = vmatpush1.msra.mxu0 0.0
    %4044 = vmatprep.subr.mxu0 0.0
    %4045 = vmatpush1.msra.mxu0 0.0
    %4046 = vmatprep.subr.mxu0 0.0
    %4047 = vmatpush1.msra.mxu0 0.0
    %4048 = vmatprep.subr.mxu0 0.0
    %4049 = vmatpush1.msra.mxu0 0.0
    %4050 = vmatprep.subr.mxu0 0.0
    %4051 = vmatpush1.msra.mxu0 0.0
    %4052 = vmatprep.subr.mxu0 0.0
    %4053 = vmatpush1.msra.mxu0 0.0
    %4054 = vmatprep.subr.mxu0 0.0
    %4055 = vmatpush1.msra.mxu0 %v3894
    %4056 = vmatprep.subr.mxu0 0.0
    %4057 = vmatpush1.msra.mxu0 %v3845
    %4058 = vmatprep.subr.mxu0 0.0
    %4059 = vmatpush1.msra.mxu0 %v3840
    %4060 = vmatprep.subr.mxu0 0.0
    %4061 = vmatpush1.msra.mxu0 %v3835
    %4062 = vmatprep.subr.mxu0 0.0
    %4063 = vmatpush1.msra.mxu0 %v3830
    %4064 = vmatprep.subr.mxu0 0.0
    %4065 = vmatpush1.msra.mxu0 %v3825
    %4066 = vmatprep.subr.mxu0 0.0
    %4067 = vmatpush1.msra.mxu0 %v3820
    %4068 = vmatprep.subr.mxu0 0.0
    %4069 = vmatpush1.msra.mxu0 %v3815
    %4070 = vmatprep.subr.mxu0 0.0
    %4071 = vmatpush2.msra.mxu0 0.0
    %4072 = vmatprep.subr.mxu0 0.0
    %4073 = vmatpush2.msra.mxu0 0.0
    %4074 = vmatprep.subr.mxu0 0.0
    %4075 = vmatpush2.msra.mxu0 0.0
    %4076 = vmatprep.subr.mxu0 0.0
    %4077 = vmatpush2.msra.mxu0 0.0
    %4078 = vmatprep.subr.mxu0 0.0
    %4079 = vmatpush2.msra.mxu0 0.0
    %4080 = vmatprep.subr.mxu0 0.0
    %4081 = vmatpush2.msra.mxu0 0.0
    %4082 = vmatprep.subr.mxu0 0.0
    %4083 = vmatpush2.msra.mxu0 0.0
    %4084 = vmatprep.subr.mxu0 0.0
    %4085 = vmatpush2.msra.mxu0 0.0
    %4086 = vmatprep.subr.mxu0 0.0
    %4087 = vmatpush2.msra.mxu0 0.0
    %4088 = vmatprep.subr.mxu0 0.0
    %4089 = vmatpush2.msra.mxu0 0.0
    %4090 = vmatprep.subr.mxu0 0.0
    %4091 = vmatpush2.msra.mxu0 0.0
    %4092 = vmatprep.subr.mxu0 0.0
    %4093 = vmatpush2.msra.mxu0 0.0
    %4094 = vmatprep.subr.mxu0 0.0
    %4095 = vmatpush2.msra.mxu0 0.0
    %4096 = vmatprep.subr.mxu0 0.0
    %4097 = vmatpush2.msra.mxu0 0.0
    %4098 = vmatprep.subr.mxu0 0.0
    %4099 = vmatpush2.msra.mxu0 0.0
    %4100 = vmatprep.subr.mxu0 0.0
    %4101 = vmatpush2.msra.mxu0 0.0
    %4102 = vmatprep.mubr.f32.mxu0 0.0
    %4103 = vmatmul.mubr.f32.gmra.mxu0 %v3879
    %v4104 = vpop.f32.mrf.mxu0
    %v4105 = vadd.f32 %v3872, %v4104
    %v4106 = vpop.f32.mrf.mxu0
    %4107 = vdwg.mxu0
    %v4108 = vmax.f32 %v3963, 0.0
    %v4109 = vmax.f32 %v3965, 0.0
    %v4110 = vmax.f32 %v4034, 0.0
    %v4111 = vmax.f32 %v4036, 0.0
    %v4112 = vmax.f32 %v4105, 0.0
    %v4113 = vld [vmem:[%s18] sm:$0xff]
    %v4114 = vld [vmem:[%s18 + $0x8] sm:$0xff]
    %v4115 = vld [vmem:[%s18 + $0x10] sm:$0xff]
    %v4116 = vld [vmem:[%s18 + $0x18] sm:$0xff]
    %v4117 = vld [vmem:[%s18 + $0x20] sm:$0xff]
    %v4118 = vld [vmem:[%s18 + $0x28] sm:$0xff]
    %v4119 = vld [vmem:[%s18 + $0x30] sm:$0xff]
    %v4120 = vld [vmem:[%s18 + $0x38] sm:$0xff]
    %v4121 = vld [vmem:[%s18 + $0x40] sm:$0xff]
    %v4122 = vld [vmem:[%s18 + $0x48] sm:$0xff]
    %v4123 = vld [vmem:[%s18 + $0x50] sm:$0xff]
    %v4124 = vld [vmem:[%s18 + $0x58] sm:$0xff]
    %v4125 = vld [vmem:[%s18 + $0x60] sm:$0xff]
    %v4126 = vld [vmem:[%s18 + $0x68] sm:$0xff]
    %v4127 = vld [vmem:[%s18 + $0x70] sm:$0xff]
    %v4128 = vld [vmem:[%s18 + $0x78] sm:$0xff]
    %v4129 = vld [vmem:[%s18 + $0x80] sm:$0xff]
    %v4130 = vld [vmem:[%s18 + $0x88] sm:$0xff]
    %v4131 = vld [vmem:[%s18 + $0x90] sm:$0xff]
    %v4132 = vld [vmem:[%s18 + $0x98] sm:$0xff]
    %v4133 = vld [vmem:[%s18 + $0xa0] sm:$0xff]
    %v4134 = vld [vmem:[%s18 + $0xa8] sm:$0xff]
    %v4135 = vld [vmem:[%s18 + $0xb0] sm:$0xff]
    %v4136 = vld [vmem:[%s18 + $0xb8] sm:$0xff]
    %v4137 = vld [vmem:[%s18 + $0xc0] sm:$0xff]
    %v4138 = vld [vmem:[%s18 + $0xc8] sm:$0xff]
    %v4139 = vld [vmem:[%s18 + $0xd0] sm:$0xff]
    %v4140 = vld [vmem:[%s18 + $0xd8] sm:$0xff]
    %v4141 = vld [vmem:[%s18 + $0xe0] sm:$0xff]
    %v4142 = vld [vmem:[%s18 + $0xe8] sm:$0xff]
    %v4143 = vld [vmem:[%s18 + $0xf0] sm:$0xff]
    %v4144 = vld [vmem:[%s18 + $0xf8] sm:$0xff]
    %v4145 = vld [vmem:[%s18 + $0x100] sm:$0xff]
    %v4146 = vld [vmem:[%s18 + $0x108] sm:$0xff]
    %v4147 = vld [vmem:[%s18 + $0x110] sm:$0xff]
    %v4148 = vld [vmem:[%s18 + $0x118] sm:$0xff]
    %v4149 = vld [vmem:[%s18 + $0x120] sm:$0xff]
    %v4150 = vld [vmem:[%s18 + $0x128] sm:$0xff]
    %v4151 = vld [vmem:[%s18 + $0x130] sm:$0xff]
    %v4152 = vld [vmem:[%s18 + $0x138] sm:$0xff]
    %v4153 = vld [vmem:[%s18 + $0x140] sm:$0xff]
    %v4154 = vld [vmem:[%s18 + $0x148] sm:$0xff]
    %v4155 = vld [vmem:[%s18 + $0x150] sm:$0xff]
    %v4156 = vld [vmem:[%s18 + $0x158] sm:$0xff]
    %v4157 = vld [vmem:[%s18 + $0x160] sm:$0xff]
    %v4158 = vld [vmem:[%s18 + $0x168] sm:$0xff]
    %v4159 = vld [vmem:[%s18 + $0x170] sm:$0xff]
    %v4160 = vld [vmem:[%s18 + $0x178] sm:$0xff]
    %v4161 = vld [vmem:[%s18 + $0x180] sm:$0xff]
    %v4162 = vld [vmem:[%s18 + $0x188] sm:$0xff]
    %v4163 = vld [vmem:[%s18 + $0x190] sm:$0xff]
    %v4164 = vld [vmem:[%s18 + $0x198] sm:$0xff]
    %v4165 = vld [vmem:[%s18 + $0x1a0] sm:$0xff]
    %v4166 = vld [vmem:[%s18 + $0x1a8] sm:$0xff]
    %v4167 = vld [vmem:[%s18 + $0x1b0] sm:$0xff]
    %v4168 = vld [vmem:[%s18 + $0x1b8] sm:$0xff]
    %v4169 = vld [vmem:[%s18 + $0x1c0] sm:$0xff]
    %v4170 = vld [vmem:[%s18 + $0x1c8] sm:$0xff]
    %v4171 = vld [vmem:[%s18 + $0x1d0] sm:$0xff]
    %v4172 = vld [vmem:[%s18 + $0x1d8] sm:$0xff]
    %v4173 = vld [vmem:[%s18 + $0x1e0] sm:$0xff]
    %v4174 = vld [vmem:[%s18 + $0x1e8] sm:$0xff]
    %v4175 = vld [vmem:[%s18 + $0x1f0] sm:$0xff]
    %v4176 = vld [vmem:[%s18 + $0x1f8] sm:$0xff]
    %v4177 = vld [vmem:[%s18 + $0x200] sm:$0xff]
    %v4178 = vld [vmem:[%s18 + $0x208] sm:$0xff]
    %v4179 = vld [vmem:[%s18 + $0x210] sm:$0xff]
    %v4180 = vld [vmem:[%s18 + $0x218] sm:$0xff]
    %v4181 = vld [vmem:[%s18 + $0x220] sm:$0xff]
    %v4182 = vld [vmem:[%s18 + $0x228] sm:$0xff]
    %v4183 = vld [vmem:[%s18 + $0x230] sm:$0xff]
    %v4184 = vld [vmem:[%s18 + $0x238] sm:$0xff]
    %v4185 = vld [vmem:[%s18 + $0x240] sm:$0xff]
    %v4186 = vld [vmem:[%s18 + $0x248] sm:$0xff]
    %v4187 = vld [vmem:[%s18 + $0x250] sm:$0xff]
    %v4188 = vld [vmem:[%s18 + $0x258] sm:$0xff]
    %v4189 = vld [vmem:[%s18 + $0x260] sm:$0xff]
    %v4190 = vld [vmem:[%s18 + $0x268] sm:$0xff]
    %v4191 = vld [vmem:[%s18 + $0x270] sm:$0xff]
    %v4192 = vld [vmem:[%s18 + $0x278] sm:$0xff]
    %v4193 = vld [vmem:[%s18 + $0x280] sm:$0xff]
    %v4194 = vld [vmem:[%s18 + $0x288] sm:$0xff]
    %v4195 = vld [vmem:[%s18 + $0x290] sm:$0xff]
    %v4196 = vld [vmem:[%s18 + $0x298] sm:$0xff]
    %v4197 = vld [vmem:[%s18 + $0x2a0] sm:$0xff]
    %v4198 = vld [vmem:[%s18 + $0x2a8] sm:$0xff]
    %v4199 = vld [vmem:[%s18 + $0x2b0] sm:$0xff]
    %v4200 = vld [vmem:[%s18 + $0x2b8] sm:$0xff]
    %v4201 = vld [vmem:[%s18 + $0x2c0] sm:$0xff]
    %v4202 = vld [vmem:[%s18 + $0x2c8] sm:$0xff]
    %v4203 = vld [vmem:[%s18 + $0x2d0] sm:$0xff]
    %v4204 = vld [vmem:[%s18 + $0x2d8] sm:$0xff]
    %v4205 = vld [vmem:[%s18 + $0x2e0] sm:$0xff]
    %v4206 = vld [vmem:[%s18 + $0x2e8] sm:$0xff]
    %v4207 = vld [vmem:[%s18 + $0x2f0] sm:$0xff]
    %v4208 = vld [vmem:[%s18 + $0x2f8] sm:$0xff]
    %v4209 = vld [vmem:[%s18 + $0x300] sm:$0xff]
    %v4210 = vld [vmem:[%s18 + $0x308] sm:$0xff]
    %v4211 = vld [vmem:[%s18 + $0x310] sm:$0xff]
    %v4212 = vld [vmem:[%s18 + $0x318] sm:$0xff]
    %v4213 = vld [vmem:[%s18 + $0x320] sm:$0xff]
    %v4214 = vld [vmem:[%s18 + $0x328] sm:$0xff]
    %v4215 = vld [vmem:[%s18 + $0x330] sm:$0xff]
    %v4216 = vld [vmem:[%s18 + $0x338] sm:$0xff]
    %v4217 = vld [vmem:[%s18 + $0x340] sm:$0xff]
    %v4218 = vld [vmem:[%s18 + $0x348] sm:$0xff]
    %v4219 = vld [vmem:[%s18 + $0x350] sm:$0xff]
    %v4220 = vld [vmem:[%s18 + $0x358] sm:$0xff]
    %v4221 = vld [vmem:[%s18 + $0x360] sm:$0xff]
    %v4222 = vld [vmem:[%s18 + $0x368] sm:$0xff]
    %v4223 = vld [vmem:[%s18 + $0x370] sm:$0xff]
    %v4224 = vld [vmem:[%s18 + $0x378] sm:$0xff]
    %v4225 = vld [vmem:[%s18 + $0x380] sm:$0xff]
    %v4226 = vld [vmem:[%s18 + $0x388] sm:$0xff]
    %v4227 = vld [vmem:[%s18 + $0x390] sm:$0xff]
    %v4228 = vld [vmem:[%s18 + $0x398] sm:$0xff]
    %v4229 = vld [vmem:[%s18 + $0x3a0] sm:$0xff]
    %v4230 = vld [vmem:[%s18 + $0x3a8] sm:$0xff]
    %v4231 = vld [vmem:[%s18 + $0x3b0] sm:$0xff]
    %v4232 = vld [vmem:[%s18 + $0x3b8] sm:$0xff]
    %v4233 = vld [vmem:[%s18 + $0x3c0] sm:$0xff]
    %v4234 = vld [vmem:[%s18 + $0x3c8] sm:$0xff]
    %v4235 = vld [vmem:[%s18 + $0x3d0] sm:$0xff]
    %v4236 = vld [vmem:[%s18 + $0x3d8] sm:$0xff]
    %v4237 = vld [vmem:[%s18 + $0x3e0] sm:$0xff]
    %v4238 = vld [vmem:[%s18 + $0x3e8] sm:$0xff]
    %v4239 = vld [vmem:[%s18 + $0x3f0] sm:$0xff]
    %v4240 = vld [vmem:[%s18 + $0x3f8] sm:$0xff]
    %v4241 = vld [vmem:[%s18 + $0x400] sm:$0xff]
    %v4242 = vld [vmem:[%s18 + $0x408] sm:$0xff]
    %v4243 = vld [vmem:[%s18 + $0x410] sm:$0xff]
    %v4244 = vld [vmem:[%s18 + $0x418] sm:$0xff]
    %v4245 = vld [vmem:[%s18 + $0x420] sm:$0xff]
    %v4246 = vld [vmem:[%s18 + $0x428] sm:$0xff]
    %v4247 = vld [vmem:[%s18 + $0x430] sm:$0xff]
    %v4248 = vld [vmem:[%s18 + $0x438] sm:$0xff]
    %v4249 = vld [vmem:[%s18 + $0x440] sm:$0xff]
    %v4250 = vld [vmem:[%s18 + $0x448] sm:$0xff]
    %v4251 = vld [vmem:[%s18 + $0x450] sm:$0xff]
    %v4252 = vld [vmem:[%s18 + $0x458] sm:$0xff]
    %v4253 = vld [vmem:[%s18 + $0x460] sm:$0xff]
    %v4254 = vld [vmem:[%s18 + $0x468] sm:$0xff]
    %v4255 = vld [vmem:[%s18 + $0x470] sm:$0xff]
    %v4256 = vld [vmem:[%s18 + $0x478] sm:$0xff]
    %v4257 = vld [vmem:[%s18 + $0x480] sm:$0xff]
    %v4258 = vld [vmem:[%s18 + $0x488] sm:$0xff]
    %v4259 = vld [vmem:[%s18 + $0x490] sm:$0xff]
    %v4260 = vld [vmem:[%s18 + $0x498] sm:$0xff]
    %v4261 = vld [vmem:[%s18 + $0x4a0] sm:$0xff]
    %v4262 = vld [vmem:[%s18 + $0x4a8] sm:$0xff]
    %v4263 = vld [vmem:[%s18 + $0x4b0] sm:$0xff]
    %v4264 = vld [vmem:[%s18 + $0x4b8] sm:$0xff]
    %v4265 = vld [vmem:[%s18 + $0x4c0] sm:$0xff]
    %v4266 = vld [vmem:[%s18 + $0x4c8] sm:$0xff]
    %v4267 = vld [vmem:[%s18 + $0x4d0] sm:$0xff]
    %v4268 = vld [vmem:[%s18 + $0x4d8] sm:$0xff]
    %v4269 = vld [vmem:[%s18 + $0x4e0] sm:$0xff]
    %v4270 = vld [vmem:[%s18 + $0x4e8] sm:$0xff]
    %v4271 = vld [vmem:[%s18 + $0x4f0] sm:$0xff]
    %v4272 = vld [vmem:[%s18 + $0x4f8] sm:$0xff]
    %v4273 = vld [vmem:[%s18 + $0x500] sm:$0xff]
    %v4274 = vld [vmem:[%s18 + $0x508] sm:$0xff]
    %v4275 = vld [vmem:[%s18 + $0x510] sm:$0xff]
    %v4276 = vld [vmem:[%s18 + $0x518] sm:$0xff]
    %v4277 = vld [vmem:[%s18 + $0x520] sm:$0xff]
    %v4278 = vld [vmem:[%s18 + $0x528] sm:$0xff]
    %v4279 = vld [vmem:[%s18 + $0x530] sm:$0xff]
    %v4280 = vld [vmem:[%s18 + $0x538] sm:$0xff]
    %v4281 = vld [vmem:[%s18 + $0x540] sm:$0xff]
    %v4282 = vld [vmem:[%s18 + $0x548] sm:$0xff]
    %v4283 = vld [vmem:[%s18 + $0x550] sm:$0xff]
    %v4284 = vld [vmem:[%s18 + $0x558] sm:$0xff]
    %v4285 = vld [vmem:[%s18 + $0x560] sm:$0xff]
    %v4286 = vld [vmem:[%s18 + $0x568] sm:$0xff]
    %v4287 = vld [vmem:[%s18 + $0x570] sm:$0xff]
    %v4288 = vld [vmem:[%s18 + $0x578] sm:$0xff]
    %v4289 = vld [vmem:[%s18 + $0x580] sm:$0xff]
    %v4290 = vld [vmem:[%s18 + $0x588] sm:$0xff]
    %v4291 = vld [vmem:[%s18 + $0x590] sm:$0xff]
    %v4292 = vld [vmem:[%s18 + $0x598] sm:$0xff]
    %v4293 = vld [vmem:[%s18 + $0x5a0] sm:$0xff]
    %v4294 = vld [vmem:[%s18 + $0x5a8] sm:$0xff]
    %v4295 = vld [vmem:[%s18 + $0x5b0] sm:$0xff]
    %v4296 = vld [vmem:[%s18 + $0x5b8] sm:$0xff]
    %v4297 = vld [vmem:[%s18 + $0x5c0] sm:$0xff]
    %v4298 = vld [vmem:[%s18 + $0x5c8] sm:$0xff]
    %v4299 = vld [vmem:[%s18 + $0x5d0] sm:$0xff]
    %v4300 = vld [vmem:[%s18 + $0x5d8] sm:$0xff]
    %v4301 = vld [vmem:[%s18 + $0x5e0] sm:$0xff]
    %v4302 = vld [vmem:[%s18 + $0x5e8] sm:$0xff]
    %v4303 = vld [vmem:[%s18 + $0x5f0] sm:$0xff]
    %v4304 = vld [vmem:[%s18 + $0x5f8] sm:$0xff]
    %v4305 = vld [vmem:[%s18 + $0x600] sm:$0xff]
    %v4306 = vld [vmem:[%s18 + $0x608] sm:$0xff]
    %v4307 = vld [vmem:[%s18 + $0x610] sm:$0xff]
    %v4308 = vld [vmem:[%s18 + $0x618] sm:$0xff]
    %v4309 = vld [vmem:[%s18 + $0x620] sm:$0xff]
    %v4310 = vld [vmem:[%s18 + $0x628] sm:$0xff]
    %v4311 = vld [vmem:[%s18 + $0x630] sm:$0xff]
    %v4312 = vld [vmem:[%s18 + $0x638] sm:$0xff]
    %v4313 = vld [vmem:[%s18 + $0x640] sm:$0xff]
    %v4314 = vld [vmem:[%s18 + $0x648] sm:$0xff]
    %v4315 = vld [vmem:[%s18 + $0x650] sm:$0xff]
    %v4316 = vld [vmem:[%s18 + $0x658] sm:$0xff]
    %v4317 = vld [vmem:[%s18 + $0x660] sm:$0xff]
    %v4318 = vld [vmem:[%s18 + $0x668] sm:$0xff]
    %v4319 = vld [vmem:[%s18 + $0x670] sm:$0xff]
    %v4320 = vld [vmem:[%s18 + $0x678] sm:$0xff]
    %v4321 = vld [vmem:[%s18 + $0x680] sm:$0xff]
    %v4322 = vld [vmem:[%s18 + $0x688] sm:$0xff]
    %v4323 = vld [vmem:[%s18 + $0x690] sm:$0xff]
    %v4324 = vld [vmem:[%s18 + $0x698] sm:$0xff]
    %v4325 = vld [vmem:[%s18 + $0x6a0] sm:$0xff]
    %v4326 = vld [vmem:[%s18 + $0x6a8] sm:$0xff]
    %v4327 = vld [vmem:[%s18 + $0x6b0] sm:$0xff]
    %v4328 = vld [vmem:[%s18 + $0x6b8] sm:$0xff]
    %v4329 = vld [vmem:[%s18 + $0x6c0] sm:$0xff]
    %v4330 = vld [vmem:[%s18 + $0x6c8] sm:$0xff]
    %v4331 = vld [vmem:[%s18 + $0x6d0] sm:$0xff]
    %v4332 = vld [vmem:[%s18 + $0x6d8] sm:$0xff]
    %v4333 = vld [vmem:[%s18 + $0x6e0] sm:$0xff]
    %v4334 = vld [vmem:[%s18 + $0x6e8] sm:$0xff]
    %v4335 = vld [vmem:[%s18 + $0x6f0] sm:$0xff]
    %v4336 = vld [vmem:[%s18 + $0x6f8] sm:$0xff]
    %v4337 = vld [vmem:[%s18 + $0x700] sm:$0xff]
    %v4338 = vld [vmem:[%s18 + $0x708] sm:$0xff]
    %v4339 = vld [vmem:[%s18 + $0x710] sm:$0xff]
    %v4340 = vld [vmem:[%s18 + $0x718] sm:$0xff]
    %v4341 = vld [vmem:[%s18 + $0x720] sm:$0xff]
    %v4342 = vld [vmem:[%s18 + $0x728] sm:$0xff]
    %v4343 = vld [vmem:[%s18 + $0x730] sm:$0xff]
    %v4344 = vld [vmem:[%s18 + $0x738] sm:$0xff]
    %v4345 = vld [vmem:[%s18 + $0x740] sm:$0xff]
    %v4346 = vld [vmem:[%s18 + $0x748] sm:$0xff]
    %v4347 = vld [vmem:[%s18 + $0x750] sm:$0xff]
    %v4348 = vld [vmem:[%s18 + $0x758] sm:$0xff]
    %v4349 = vld [vmem:[%s18 + $0x760] sm:$0xff]
    %v4350 = vld [vmem:[%s18 + $0x768] sm:$0xff]
    %v4351 = vld [vmem:[%s18 + $0x770] sm:$0xff]
    %v4352 = vld [vmem:[%s18 + $0x778] sm:$0xff]
    %v4353 = vld [vmem:[%s18 + $0x780] sm:$0xff]
    %v4354 = vld [vmem:[%s18 + $0x788] sm:$0xff]
    %v4355 = vld [vmem:[%s18 + $0x790] sm:$0xff]
    %v4356 = vld [vmem:[%s18 + $0x798] sm:$0xff]
    %v4357 = vld [vmem:[%s18 + $0x7a0] sm:$0xff]
    %v4358 = vld [vmem:[%s18 + $0x7a8] sm:$0xff]
    %v4359 = vld [vmem:[%s18 + $0x7b0] sm:$0xff]
    %v4360 = vld [vmem:[%s18 + $0x7b8] sm:$0xff]
    %v4361 = vld [vmem:[%s18 + $0x7c0] sm:$0xff]
    %v4362 = vld [vmem:[%s18 + $0x7c8] sm:$0xff]
    %v4363 = vld [vmem:[%s18 + $0x7d0] sm:$0xff]
    %v4364 = vld [vmem:[%s18 + $0x7d8] sm:$0xff]
    %v4365 = vld [vmem:[%s18 + $0x7e0] sm:$0xff]
    %v4366 = vld [vmem:[%s18 + $0x7e8] sm:$0xff]
    %v4367 = vld [vmem:[%s18 + $0x7f0] sm:$0xff]
    %v4368 = vld [vmem:[%s18 + $0x7f8] sm:$0xff]
    %v4369 = vld [vmem:[%s18 + $0x800] sm:$0xff]
    %v4370 = vld [vmem:[%s18 + $0x808] sm:$0xff]
    %v4371 = vld [vmem:[%s18 + $0x810] sm:$0xff]
    %v4372 = vld [vmem:[%s18 + $0x818] sm:$0xff]
    %v4373 = vld [vmem:[%s18 + $0x820] sm:$0xff]
    %v4374 = vld [vmem:[%s18 + $0x828] sm:$0xff]
    %v4375 = vld [vmem:[%s18 + $0x830] sm:$0xff]
    %v4376 = vld [vmem:[%s18 + $0x838] sm:$0xff]
    %v4377 = vld [vmem:[%s18 + $0x840] sm:$0xff]
    %v4378 = vld [vmem:[%s18 + $0x848] sm:$0xff]
    %v4379 = vld [vmem:[%s18 + $0x850] sm:$0xff]
    %v4380 = vld [vmem:[%s18 + $0x858] sm:$0xff]
    %v4381 = vld [vmem:[%s18 + $0x860] sm:$0xff]
    %v4382 = vld [vmem:[%s18 + $0x868] sm:$0xff]
    %v4383 = vld [vmem:[%s18 + $0x870] sm:$0xff]
    %v4384 = vld [vmem:[%s18 + $0x878] sm:$0xff]
    %v4385 = vld [vmem:[%s18 + $0x880] sm:$0xff]
    %v4386 = vld [vmem:[%s18 + $0x888] sm:$0xff]
    %v4387 = vld [vmem:[%s18 + $0x890] sm:$0xff]
    %v4388 = vld [vmem:[%s18 + $0x898] sm:$0xff]
    %v4389 = vld [vmem:[%s18 + $0x8a0] sm:$0xff]
    %v4390 = vld [vmem:[%s18 + $0x8a8] sm:$0xff]
    %v4391 = vld [vmem:[%s18 + $0x8b0] sm:$0xff]
    %v4392 = vld [vmem:[%s18 + $0x8b8] sm:$0xff]
    %v4393 = vld [vmem:[%s18 + $0x8c0] sm:$0xff]
    %v4394 = vld [vmem:[%s18 + $0x8c8] sm:$0xff]
    %v4395 = vld [vmem:[%s18 + $0x8d0] sm:$0xff]
    %v4396 = vld [vmem:[%s18 + $0x8d8] sm:$0xff]
    %v4397 = vld [vmem:[%s18 + $0x8e0] sm:$0xff]
    %v4398 = vld [vmem:[%s18 + $0x8e8] sm:$0xff]
    %v4399 = vld [vmem:[%s18 + $0x8f0] sm:$0xff]
    %v4400 = vld [vmem:[%s18 + $0x8f8] sm:$0xff]
    %v4401 = vld [vmem:[%s18 + $0x900] sm:$0xff]
    %v4402 = vld [vmem:[%s18 + $0x908] sm:$0xff]
    %v4403 = vld [vmem:[%s18 + $0x910] sm:$0xff]
    %v4404 = vld [vmem:[%s18 + $0x918] sm:$0xff]
    %v4405 = vld [vmem:[%s18 + $0x920] sm:$0xff]
    %v4406 = vld [vmem:[%s18 + $0x928] sm:$0xff]
    %v4407 = vld [vmem:[%s18 + $0x930] sm:$0xff]
    %v4408 = vld [vmem:[%s18 + $0x938] sm:$0xff]
    %v4409 = vld [vmem:[%s18 + $0x940] sm:$0xff]
    %v4410 = vld [vmem:[%s18 + $0x948] sm:$0xff]
    %v4411 = vld [vmem:[%s18 + $0x950] sm:$0xff]
    %v4412 = vld [vmem:[%s18 + $0x958] sm:$0xff]
    %v4413 = vld [vmem:[%s18 + $0x960] sm:$0xff]
    %v4414 = vld [vmem:[%s18 + $0x968] sm:$0xff]
    %v4415 = vld [vmem:[%s18 + $0x970] sm:$0xff]
    %v4416 = vld [vmem:[%s18 + $0x978] sm:$0xff]
    %v4417 = vld [vmem:[%s18 + $0x980] sm:$0xff]
    %v4418 = vld [vmem:[%s18 + $0x988] sm:$0xff]
    %v4419 = vld [vmem:[%s18 + $0x990] sm:$0xff]
    %v4420 = vld [vmem:[%s18 + $0x998] sm:$0xff]
    %v4421 = vld [vmem:[%s18 + $0x9a0] sm:$0xff]
    %v4422 = vld [vmem:[%s18 + $0x9a8] sm:$0xff]
    %v4423 = vld [vmem:[%s18 + $0x9b0] sm:$0xff]
    %v4424 = vld [vmem:[%s18 + $0x9b8] sm:$0xff]
    %v4425 = vld [vmem:[%s18 + $0x9c0] sm:$0xff]
    %v4426 = vld [vmem:[%s18 + $0x9c8] sm:$0xff]
    %v4427 = vld [vmem:[%s18 + $0x9d0] sm:$0xff]
    %v4428 = vld [vmem:[%s18 + $0x9d8] sm:$0xff]
    %v4429 = vld [vmem:[%s18 + $0x9e0] sm:$0xff]
    %v4430 = vld [vmem:[%s18 + $0x9e8] sm:$0xff]
    %v4431 = vld [vmem:[%s18 + $0x9f0] sm:$0xff]
    %v4432 = vld [vmem:[%s18 + $0x9f8] sm:$0xff]
    %v4433 = vld [vmem:[%s18 + $0xa00] sm:$0xff]
    %v4434 = vld [vmem:[%s18 + $0xa08] sm:$0xff]
    %v4435 = vld [vmem:[%s18 + $0xa10] sm:$0xff]
    %v4436 = vld [vmem:[%s18 + $0xa18] sm:$0xff]
    %v4437 = vld [vmem:[%s18 + $0xa20] sm:$0xff]
    %v4438 = vld [vmem:[%s18 + $0xa28] sm:$0xff]
    %v4439 = vld [vmem:[%s18 + $0xa30] sm:$0xff]
    %v4440 = vld [vmem:[%s18 + $0xa38] sm:$0xff]
    %v4441 = vld [vmem:[%s18 + $0xa40] sm:$0xff]
    %v4442 = vld [vmem:[%s18 + $0xa48] sm:$0xff]
    %v4443 = vld [vmem:[%s18 + $0xa50] sm:$0xff]
    %v4444 = vld [vmem:[%s18 + $0xa58] sm:$0xff]
    %v4445 = vld [vmem:[%s18 + $0xa60] sm:$0xff]
    %v4446 = vld [vmem:[%s18 + $0xa68] sm:$0xff]
    %v4447 = vld [vmem:[%s18 + $0xa70] sm:$0xff]
    %v4448 = vld [vmem:[%s18 + $0xa78] sm:$0xff]
    %v4449 = vld [vmem:[%s18 + $0xa80] sm:$0xff]
    %v4450 = vld [vmem:[%s18 + $0xa88] sm:$0xff]
    %v4451 = vld [vmem:[%s18 + $0xa90] sm:$0xff]
    %v4452 = vld [vmem:[%s18 + $0xa98] sm:$0xff]
    %v4453 = vld [vmem:[%s18 + $0xaa0] sm:$0xff]
    %v4454 = vld [vmem:[%s18 + $0xaa8] sm:$0xff]
    %v4455 = vld [vmem:[%s18 + $0xab0] sm:$0xff]
    %v4456 = vld [vmem:[%s18 + $0xab8] sm:$0xff]
    %v4457 = vld [vmem:[%s18 + $0xac0] sm:$0xff]
    %v4458 = vld [vmem:[%s18 + $0xac8] sm:$0xff]
    %v4459 = vld [vmem:[%s18 + $0xad0] sm:$0xff]
    %v4460 = vld [vmem:[%s18 + $0xad8] sm:$0xff]
    %v4461 = vld [vmem:[%s18 + $0xae0] sm:$0xff]
    %v4462 = vld [vmem:[%s18 + $0xae8] sm:$0xff]
    %v4463 = vld [vmem:[%s18 + $0xaf0] sm:$0xff]
    %v4464 = vld [vmem:[%s18 + $0xaf8] sm:$0xff]
    %v4465 = vld [vmem:[%s18 + $0xb00] sm:$0xff]
    %v4466 = vld [vmem:[%s18 + $0xb08] sm:$0xff]
    %v4467 = vld [vmem:[%s18 + $0xb10] sm:$0xff]
    %v4468 = vld [vmem:[%s18 + $0xb18] sm:$0xff]
    %v4469 = vld [vmem:[%s18 + $0xb20] sm:$0xff]
    %v4470 = vld [vmem:[%s18 + $0xb28] sm:$0xff]
    %v4471 = vld [vmem:[%s18 + $0xb30] sm:$0xff]
    %v4472 = vld [vmem:[%s18 + $0xb38] sm:$0xff]
    %v4473 = vld [vmem:[%s18 + $0xb40] sm:$0xff]
    %v4474 = vld [vmem:[%s18 + $0xb48] sm:$0xff]
    %v4475 = vld [vmem:[%s18 + $0xb50] sm:$0xff]
    %v4476 = vld [vmem:[%s18 + $0xb58] sm:$0xff]
    %v4477 = vld [vmem:[%s18 + $0xb60] sm:$0xff]
    %v4478 = vld [vmem:[%s18 + $0xb68] sm:$0xff]
    %v4479 = vld [vmem:[%s18 + $0xb70] sm:$0xff]
    %v4480 = vld [vmem:[%s18 + $0xb78] sm:$0xff]
    %v4481 = vld [vmem:[%s18 + $0xb80] sm:$0xff]
    %v4482 = vld [vmem:[%s18 + $0xb88] sm:$0xff]
    %v4483 = vld [vmem:[%s18 + $0xb90] sm:$0xff]
    %v4484 = vld [vmem:[%s18 + $0xb98] sm:$0xff]
    %v4485 = vld [vmem:[%s18 + $0xba0] sm:$0xff]
    %v4486 = vld [vmem:[%s18 + $0xba8] sm:$0xff]
    %v4487 = vld [vmem:[%s18 + $0xbb0] sm:$0xff]
    %v4488 = vld [vmem:[%s18 + $0xbb8] sm:$0xff]
    %v4489 = vld [vmem:[%s18 + $0xbc0] sm:$0xff]
    %v4490 = vld [vmem:[%s18 + $0xbc8] sm:$0xff]
    %v4491 = vld [vmem:[%s18 + $0xbd0] sm:$0xff]
    %v4492 = vld [vmem:[%s18 + $0xbd8] sm:$0xff]
    %v4493 = vld [vmem:[%s18 + $0xbe0] sm:$0xff]
    %v4494 = vld [vmem:[%s18 + $0xbe8] sm:$0xff]
    %v4495 = vld [vmem:[%s18 + $0xbf0] sm:$0xff]
    %v4496 = vld [vmem:[%s18 + $0xbf8] sm:$0xff]
    %v4497 = vld [vmem:[%s18 + $0xc00] sm:$0xff]
    %v4498 = vld [vmem:[%s18 + $0xc08] sm:$0xff]
    %v4499 = vld [vmem:[%s18 + $0xc10] sm:$0xff]
    %v4500 = vld [vmem:[%s18 + $0xc18] sm:$0xff]
    %v4501 = vld [vmem:[%s18 + $0xc20] sm:$0xff]
    %v4502 = vld [vmem:[%s18 + $0xc28] sm:$0xff]
    %v4503 = vld [vmem:[%s18 + $0xc30] sm:$0xff]
    %v4504 = vld [vmem:[%s18 + $0xc38] sm:$0xff]
    %v4505 = vld [vmem:[%s18 + $0xc40] sm:$0xff]
    %v4506 = vld [vmem:[%s18 + $0xc48] sm:$0xff]
    %v4507 = vld [vmem:[%s18 + $0xc50] sm:$0xff]
    %v4508 = vld [vmem:[%s18 + $0xc58] sm:$0xff]
    %v4509 = vld [vmem:[%s18 + $0xc60] sm:$0xff]
    %v4510 = vld [vmem:[%s18 + $0xc68] sm:$0xff]
    %v4511 = vld [vmem:[%s18 + $0xc70] sm:$0xff]
    %v4512 = vld [vmem:[%s18 + $0xc78] sm:$0xff]
    %v4513 = vld [vmem:[%s18 + $0xc80] sm:$0xff]
    %v4514 = vld [vmem:[%s18 + $0xc88] sm:$0xff]
    %v4515 = vld [vmem:[%s18 + $0xc90] sm:$0xff]
    %v4516 = vld [vmem:[%s18 + $0xc98] sm:$0xff]
    %v4517 = vld [vmem:[%s18 + $0xca0] sm:$0xff]
    %v4518 = vld [vmem:[%s18 + $0xca8] sm:$0xff]
    %v4519 = vld [vmem:[%s18 + $0xcb0] sm:$0xff]
    %v4520 = vld [vmem:[%s18 + $0xcb8] sm:$0xff]
    %v4521 = vld [vmem:[%s18 + $0xcc0] sm:$0xff]
    %v4522 = vld [vmem:[%s18 + $0xcc8] sm:$0xff]
    %v4523 = vld [vmem:[%s18 + $0xcd0] sm:$0xff]
    %v4524 = vld [vmem:[%s18 + $0xcd8] sm:$0xff]
    %v4525 = vld [vmem:[%s18 + $0xce0] sm:$0xff]
    %v4526 = vld [vmem:[%s18 + $0xce8] sm:$0xff]
    %v4527 = vld [vmem:[%s18 + $0xcf0] sm:$0xff]
    %v4528 = vld [vmem:[%s18 + $0xcf8] sm:$0xff]
    %v4529 = vld [vmem:[%s18 + $0xd00] sm:$0xff]
    %v4530 = vld [vmem:[%s18 + $0xd08] sm:$0xff]
    %v4531 = vld [vmem:[%s18 + $0xd10] sm:$0xff]
    %v4532 = vld [vmem:[%s18 + $0xd18] sm:$0xff]
    %v4533 = vld [vmem:[%s18 + $0xd20] sm:$0xff]
    %v4534 = vld [vmem:[%s18 + $0xd28] sm:$0xff]
    %v4535 = vld [vmem:[%s18 + $0xd30] sm:$0xff]
    %v4536 = vld [vmem:[%s18 + $0xd38] sm:$0xff]
    %v4537 = vld [vmem:[%s18 + $0xd40] sm:$0xff]
    %v4538 = vld [vmem:[%s18 + $0xd48] sm:$0xff]
    %v4539 = vld [vmem:[%s18 + $0xd50] sm:$0xff]
    %v4540 = vld [vmem:[%s18 + $0xd58] sm:$0xff]
    %v4541 = vld [vmem:[%s18 + $0xd60] sm:$0xff]
    %v4542 = vld [vmem:[%s18 + $0xd68] sm:$0xff]
    %v4543 = vld [vmem:[%s18 + $0xd70] sm:$0xff]
    %v4544 = vld [vmem:[%s18 + $0xd78] sm:$0xff]
    %v4545 = vld [vmem:[%s18 + $0xd80] sm:$0xff]
    %v4546 = vld [vmem:[%s18 + $0xd88] sm:$0xff]
    %v4547 = vld [vmem:[%s18 + $0xd90] sm:$0xff]
    %v4548 = vld [vmem:[%s18 + $0xd98] sm:$0xff]
    %v4549 = vld [vmem:[%s18 + $0xda0] sm:$0xff]
    %v4550 = vld [vmem:[%s18 + $0xda8] sm:$0xff]
    %v4551 = vld [vmem:[%s18 + $0xdb0] sm:$0xff]
    %v4552 = vld [vmem:[%s18 + $0xdb8] sm:$0xff]
    %v4553 = vld [vmem:[%s18 + $0xdc0] sm:$0xff]
    %v4554 = vld [vmem:[%s18 + $0xdc8] sm:$0xff]
    %v4555 = vld [vmem:[%s18 + $0xdd0] sm:$0xff]
    %v4556 = vld [vmem:[%s18 + $0xdd8] sm:$0xff]
    %v4557 = vld [vmem:[%s18 + $0xde0] sm:$0xff]
    %v4558 = vld [vmem:[%s18 + $0xde8] sm:$0xff]
    %v4559 = vld [vmem:[%s18 + $0xdf0] sm:$0xff]
    %v4560 = vld [vmem:[%s18 + $0xdf8] sm:$0xff]
    %v4561 = vld [vmem:[%s18 + $0xe00] sm:$0xff]
    %v4562 = vld [vmem:[%s18 + $0xe08] sm:$0xff]
    %v4563 = vld [vmem:[%s18 + $0xe10] sm:$0xff]
    %v4564 = vld [vmem:[%s18 + $0xe18] sm:$0xff]
    %v4565 = vld [vmem:[%s18 + $0xe20] sm:$0xff]
    %v4566 = vld [vmem:[%s18 + $0xe28] sm:$0xff]
    %v4567 = vld [vmem:[%s18 + $0xe30] sm:$0xff]
    %v4568 = vld [vmem:[%s18 + $0xe38] sm:$0xff]
    %v4569 = vld [vmem:[%s18 + $0xe40] sm:$0xff]
    %v4570 = vld [vmem:[%s18 + $0xe48] sm:$0xff]
    %v4571 = vld [vmem:[%s18 + $0xe50] sm:$0xff]
    %v4572 = vld [vmem:[%s18 + $0xe58] sm:$0xff]
    %v4573 = vld [vmem:[%s18 + $0xe60] sm:$0xff]
    %v4574 = vld [vmem:[%s18 + $0xe68] sm:$0xff]
    %v4575 = vld [vmem:[%s18 + $0xe70] sm:$0xff]
    %v4576 = vld [vmem:[%s18 + $0xe78] sm:$0xff]
    %v4577 = vld [vmem:[%s18 + $0xe80] sm:$0xff]
    %v4578 = vld [vmem:[%s18 + $0xe88] sm:$0xff]
    %v4579 = vld [vmem:[%s18 + $0xe90] sm:$0xff]
    %v4580 = vld [vmem:[%s18 + $0xe98] sm:$0xff]
    %v4581 = vld [vmem:[%s18 + $0xea0] sm:$0xff]
    %v4582 = vld [vmem:[%s18 + $0xea8] sm:$0xff]
    %v4583 = vld [vmem:[%s18 + $0xeb0] sm:$0xff]
    %v4584 = vld [vmem:[%s18 + $0xeb8] sm:$0xff]
    %v4585 = vld [vmem:[%s18 + $0xec0] sm:$0xff]
    %v4586 = vld [vmem:[%s18 + $0xec8] sm:$0xff]
    %v4587 = vld [vmem:[%s18 + $0xed0] sm:$0xff]
    %v4588 = vld [vmem:[%s18 + $0xed8] sm:$0xff]
    %v4589 = vld [vmem:[%s18 + $0xee0] sm:$0xff]
    %v4590 = vld [vmem:[%s18 + $0xee8] sm:$0xff]
    %v4591 = vld [vmem:[%s18 + $0xef0] sm:$0xff]
    %v4592 = vld [vmem:[%s18 + $0xef8] sm:$0xff]
    %v4593 = vld [vmem:[%s18 + $0xf00] sm:$0xff]
    %v4594 = vld [vmem:[%s18 + $0xf08] sm:$0xff]
    %v4595 = vld [vmem:[%s18 + $0xf10] sm:$0xff]
    %v4596 = vld [vmem:[%s18 + $0xf18] sm:$0xff]
    %v4597 = vld [vmem:[%s18 + $0xf20] sm:$0xff]
    %v4598 = vld [vmem:[%s18 + $0xf28] sm:$0xff]
    %v4599 = vld [vmem:[%s18 + $0xf30] sm:$0xff]
    %v4600 = vld [vmem:[%s18 + $0xf38] sm:$0xff]
    %v4601 = vld [vmem:[%s18 + $0xf40] sm:$0xff]
    %v4602 = vld [vmem:[%s18 + $0xf48] sm:$0xff]
    %v4603 = vld [vmem:[%s18 + $0xf50] sm:$0xff]
    %v4604 = vld [vmem:[%s18 + $0xf58] sm:$0xff]
    %v4605 = vld [vmem:[%s18 + $0xf60] sm:$0xff]
    %v4606 = vld [vmem:[%s18 + $0xf68] sm:$0xff]
    %v4607 = vld [vmem:[%s18 + $0xf70] sm:$0xff]
    %v4608 = vld [vmem:[%s18 + $0xf78] sm:$0xff]
    %v4609 = vld [vmem:[%s18 + $0xf80] sm:$0xff]
    %v4610 = vld [vmem:[%s18 + $0xf88] sm:$0xff]
    %v4611 = vld [vmem:[%s18 + $0xf90] sm:$0xff]
    %v4612 = vld [vmem:[%s18 + $0xf98] sm:$0xff]
    %v4613 = vld [vmem:[%s18 + $0xfa0] sm:$0xff]
    %v4614 = vld [vmem:[%s18 + $0xfa8] sm:$0xff]
    %v4615 = vld [vmem:[%s18 + $0xfb0] sm:$0xff]
    %v4616 = vld [vmem:[%s18 + $0xfb8] sm:$0xff]
    %v4617 = vld [vmem:[%s18 + $0xfc0] sm:$0xff]
    %v4618 = vld [vmem:[%s18 + $0xfc8] sm:$0xff]
    %v4619 = vld [vmem:[%s18 + $0xfd0] sm:$0xff]
    %v4620 = vld [vmem:[%s18 + $0xfd8] sm:$0xff]
    %v4621 = vld [vmem:[%s18 + $0xfe0] sm:$0xff]
    %v4622 = vld [vmem:[%s18 + $0xfe8] sm:$0xff]
    %v4623 = vld [vmem:[%s18 + $0xff0] sm:$0xff]
    %v4624 = vld [vmem:[%s18 + $0xff8] sm:$0xff]
    %v4625 = vld [vmem:[%s18 + $0x1000] sm:$0xff]
    %v4626 = vld [vmem:[%s18 + $0x1008] sm:$0xff]
    %v4627 = vld [vmem:[%s18 + $0x1010] sm:$0xff]
    %v4628 = vld [vmem:[%s18 + $0x1018] sm:$0xff]
    %v4629 = vld [vmem:[%s18 + $0x1020] sm:$0xff]
    %v4630 = vld [vmem:[%s18 + $0x1028] sm:$0xff]
    %v4631 = vld [vmem:[%s18 + $0x1030] sm:$0xff]
    %v4632 = vld [vmem:[%s18 + $0x1038] sm:$0xff]
    %v4633 = vld [vmem:[%s18 + $0x1040] sm:$0xff]
    %v4634 = vld [vmem:[%s18 + $0x1048] sm:$0xff]
    %v4635 = vld [vmem:[%s18 + $0x1050] sm:$0xff]
    %v4636 = vld [vmem:[%s18 + $0x1058] sm:$0xff]
    %v4637 = vld [vmem:[%s18 + $0x1060] sm:$0xff]
    %v4638 = vld [vmem:[%s18 + $0x1068] sm:$0xff]
    %v4639 = vld [vmem:[%s18 + $0x1070] sm:$0xff]
    %v4640 = vld [vmem:[%s18 + $0x1078] sm:$0xff]
    %v4641 = vld [vmem:[%s18 + $0x1080] sm:$0xff]
    %v4642 = vld [vmem:[%s18 + $0x1088] sm:$0xff]
    %v4643 = vld [vmem:[%s18 + $0x1090] sm:$0xff]
    %v4644 = vld [vmem:[%s18 + $0x1098] sm:$0xff]
    %v4645 = vld [vmem:[%s18 + $0x10a0] sm:$0xff]
    %v4646 = vld [vmem:[%s18 + $0x10a8] sm:$0xff]
    %v4647 = vld [vmem:[%s18 + $0x10b0] sm:$0xff]
    %v4648 = vld [vmem:[%s18 + $0x10b8] sm:$0xff]
    %v4649 = vld [vmem:[%s18 + $0x10c0] sm:$0xff]
    %v4650 = vld [vmem:[%s18 + $0x10c8] sm:$0xff]
    %v4651 = vld [vmem:[%s18 + $0x10d0] sm:$0xff]
    %v4652 = vld [vmem:[%s18 + $0x10d8] sm:$0xff]
    %v4653 = vld [vmem:[%s18 + $0x10e0] sm:$0xff]
    %v4654 = vld [vmem:[%s18 + $0x10e8] sm:$0xff]
    %v4655 = vld [vmem:[%s18 + $0x10f0] sm:$0xff]
    %v4656 = vld [vmem:[%s18 + $0x10f8] sm:$0xff]
    %v4657 = vld [vmem:[%s18 + $0x1100] sm:$0xff]
    %v4658 = vld [vmem:[%s18 + $0x1108] sm:$0xff]
    %v4659 = vld [vmem:[%s18 + $0x1110] sm:$0xff]
    %v4660 = vld [vmem:[%s18 + $0x1118] sm:$0xff]
    %v4661 = vld [vmem:[%s18 + $0x1120] sm:$0xff]
    %v4662 = vld [vmem:[%s18 + $0x1128] sm:$0xff]
    %v4663 = vld [vmem:[%s18 + $0x1130] sm:$0xff]
    %v4664 = vld [vmem:[%s18 + $0x1138] sm:$0xff]
    %v4665 = vld [vmem:[%s18 + $0x1140] sm:$0xff]
    %v4666 = vld [vmem:[%s18 + $0x1148] sm:$0xff]
    %v4667 = vld [vmem:[%s18 + $0x1150] sm:$0xff]
    %v4668 = vld [vmem:[%s18 + $0x1158] sm:$0xff]
    %v4669 = vld [vmem:[%s18 + $0x1160] sm:$0xff]
    %v4670 = vld [vmem:[%s18 + $0x1168] sm:$0xff]
    %v4671 = vld [vmem:[%s18 + $0x1170] sm:$0xff]
    %v4672 = vld [vmem:[%s18 + $0x1178] sm:$0xff]
    %v4673 = vld [vmem:[%s18 + $0x1180] sm:$0xff]
    %v4674 = vld [vmem:[%s18 + $0x1188] sm:$0xff]
    %v4675 = vld [vmem:[%s18 + $0x1190] sm:$0xff]
    %v4676 = vld [vmem:[%s18 + $0x1198] sm:$0xff]
    %v4677 = vld [vmem:[%s18 + $0x11a0] sm:$0xff]
    %v4678 = vld [vmem:[%s18 + $0x11a8] sm:$0xff]
    %v4679 = vld [vmem:[%s18 + $0x11b0] sm:$0xff]
    %v4680 = vld [vmem:[%s18 + $0x11b8] sm:$0xff]
    %v4681 = vld [vmem:[%s18 + $0x11c0] sm:$0xff]
    %v4682 = vld [vmem:[%s18 + $0x11c8] sm:$0xff]
    %v4683 = vld [vmem:[%s18 + $0x11d0] sm:$0xff]
    %v4684 = vld [vmem:[%s18 + $0x11d8] sm:$0xff]
    %v4685 = vld [vmem:[%s18 + $0x11e0] sm:$0xff]
    %v4686 = vld [vmem:[%s18 + $0x11e8] sm:$0xff]
    %v4687 = vld [vmem:[%s18 + $0x11f0] sm:$0xff]
    %v4688 = vld [vmem:[%s18 + $0x11f8] sm:$0xff]
    %v4689 = vld [vmem:[%s18 + $0x1200] sm:$0xff]
    %v4690 = vld [vmem:[%s18 + $0x1208] sm:$0xff]
    %v4691 = vld [vmem:[%s18 + $0x1210] sm:$0xff]
    %v4692 = vld [vmem:[%s18 + $0x1218] sm:$0xff]
    %v4693 = vld [vmem:[%s18 + $0x1220] sm:$0xff]
    %v4694 = vld [vmem:[%s18 + $0x1228] sm:$0xff]
    %v4695 = vld [vmem:[%s18 + $0x1230] sm:$0xff]
    %v4696 = vld [vmem:[%s18 + $0x1238] sm:$0xff]
    %v4697 = vld [vmem:[%s18 + $0x1240] sm:$0xff]
    %v4698 = vld [vmem:[%s18 + $0x1248] sm:$0xff]
    %v4699 = vld [vmem:[%s18 + $0x1250] sm:$0xff]
    %v4700 = vld [vmem:[%s18 + $0x1258] sm:$0xff]
    %v4701 = vld [vmem:[%s18 + $0x1260] sm:$0xff]
    %v4702 = vld [vmem:[%s18 + $0x1268] sm:$0xff]
    %v4703 = vld [vmem:[%s18 + $0x1270] sm:$0xff]
    %v4704 = vld [vmem:[%s18 + $0x1278] sm:$0xff]
    %v4705 = vld [vmem:[%s18 + $0x1280] sm:$0xff]
    %v4706 = vld [vmem:[%s18 + $0x1288] sm:$0xff]
    %v4707 = vld [vmem:[%s18 + $0x1290] sm:$0xff]
    %v4708 = vld [vmem:[%s18 + $0x1298] sm:$0xff]
    %v4709 = vld [vmem:[%s18 + $0x12a0] sm:$0xff]
    %v4710 = vld [vmem:[%s18 + $0x12a8] sm:$0xff]
    %v4711 = vld [vmem:[%s18 + $0x12b0] sm:$0xff]
    %v4712 = vld [vmem:[%s18 + $0x12b8] sm:$0xff]
    %v4713 = vld [vmem:[%s18 + $0x12c0] sm:$0xff]
    %v4714 = vld [vmem:[%s18 + $0x12c8] sm:$0xff]
    %v4715 = vld [vmem:[%s18 + $0x12d0] sm:$0xff]
    %v4716 = vld [vmem:[%s18 + $0x12d8] sm:$0xff]
    %v4717 = vld [vmem:[%s18 + $0x12e0] sm:$0xff]
    %v4718 = vld [vmem:[%s18 + $0x12e8] sm:$0xff]
    %v4719 = vld [vmem:[%s18 + $0x12f0] sm:$0xff]
    %v4720 = vld [vmem:[%s18 + $0x12f8] sm:$0xff]
    %v4721 = vld [vmem:[%s18 + $0x1300] sm:$0xff]
    %v4722 = vld [vmem:[%s18 + $0x1308] sm:$0xff]
    %v4723 = vld [vmem:[%s18 + $0x1310] sm:$0xff]
    %v4724 = vld [vmem:[%s18 + $0x1318] sm:$0xff]
    %v4725 = vld [vmem:[%s18 + $0x1320] sm:$0xff]
    %v4726 = vld [vmem:[%s18 + $0x1328] sm:$0xff]
    %v4727 = vld [vmem:[%s18 + $0x1330] sm:$0xff]
    %v4728 = vld [vmem:[%s18 + $0x1338] sm:$0xff]
    %v4729 = vld [vmem:[%s18 + $0x1340] sm:$0xff]
    %v4730 = vld [vmem:[%s18 + $0x1348] sm:$0xff]
    %v4731 = vld [vmem:[%s18 + $0x1350] sm:$0xff]
    %v4732 = vld [vmem:[%s18 + $0x1358] sm:$0xff]
    %v4733 = vld [vmem:[%s18 + $0x1360] sm:$0xff]
    %v4734 = vld [vmem:[%s18 + $0x1368] sm:$0xff]
    %v4735 = vld [vmem:[%s18 + $0x1370] sm:$0xff]
    %v4736 = vld [vmem:[%s18 + $0x1378] sm:$0xff]
    %v4737 = vld [vmem:[%s18 + $0x1380] sm:$0xff]
    %v4738 = vld [vmem:[%s18 + $0x1388] sm:$0xff]
    %v4739 = vld [vmem:[%s18 + $0x1390] sm:$0xff]
    %v4740 = vld [vmem:[%s18 + $0x1398] sm:$0xff]
    %v4741 = vld [vmem:[%s18 + $0x13a0] sm:$0xff]
    %v4742 = vld [vmem:[%s18 + $0x13a8] sm:$0xff]
    %v4743 = vld [vmem:[%s18 + $0x13b0] sm:$0xff]
    %v4744 = vld [vmem:[%s18 + $0x13b8] sm:$0xff]
    %v4745 = vld [vmem:[%s18 + $0x13c0] sm:$0xff]
    %v4746 = vld [vmem:[%s18 + $0x13c8] sm:$0xff]
    %v4747 = vld [vmem:[%s18 + $0x13d0] sm:$0xff]
    %v4748 = vld [vmem:[%s18 + $0x13d8] sm:$0xff]
    %v4749 = vld [vmem:[%s18 + $0x13e0] sm:$0xff]
    %v4750 = vld [vmem:[%s18 + $0x13e8] sm:$0xff]
    %v4751 = vld [vmem:[%s18 + $0x13f0] sm:$0xff]
    %v4752 = vld [vmem:[%s18 + $0x13f8] sm:$0xff]
    %v4753 = vld [vmem:[%s18 + $0x1400] sm:$0xff]
    %v4754 = vld [vmem:[%s18 + $0x1408] sm:$0xff]
    %v4755 = vld [vmem:[%s18 + $0x1410] sm:$0xff]
    %v4756 = vld [vmem:[%s18 + $0x1418] sm:$0xff]
    %v4757 = vld [vmem:[%s18 + $0x1420] sm:$0xff]
    %v4758 = vld [vmem:[%s18 + $0x1428] sm:$0xff]
    %v4759 = vld [vmem:[%s18 + $0x1430] sm:$0xff]
    %v4760 = vld [vmem:[%s18 + $0x1438] sm:$0xff]
    %v4761 = vld [vmem:[%s18 + $0x1440] sm:$0xff]
    %v4762 = vld [vmem:[%s18 + $0x1448] sm:$0xff]
    %v4763 = vld [vmem:[%s18 + $0x1450] sm:$0xff]
    %v4764 = vld [vmem:[%s18 + $0x1458] sm:$0xff]
    %v4765 = vld [vmem:[%s18 + $0x1460] sm:$0xff]
    %v4766 = vld [vmem:[%s18 + $0x1468] sm:$0xff]
    %v4767 = vld [vmem:[%s18 + $0x1470] sm:$0xff]
    %v4768 = vld [vmem:[%s18 + $0x1478] sm:$0xff]
    %v4769 = vld [vmem:[%s18 + $0x1480] sm:$0xff]
    %v4770 = vld [vmem:[%s18 + $0x1488] sm:$0xff]
    %v4771 = vld [vmem:[%s18 + $0x1490] sm:$0xff]
    %v4772 = vld [vmem:[%s18 + $0x1498] sm:$0xff]
    %v4773 = vld [vmem:[%s18 + $0x14a0] sm:$0xff]
    %v4774 = vld [vmem:[%s18 + $0x14a8] sm:$0xff]
    %v4775 = vld [vmem:[%s18 + $0x14b0] sm:$0xff]
    %v4776 = vld [vmem:[%s18 + $0x14b8] sm:$0xff]
    %v4777 = vld [vmem:[%s18 + $0x14c0] sm:$0xff]
    %v4778 = vld [vmem:[%s18 + $0x14c8] sm:$0xff]
    %v4779 = vld [vmem:[%s18 + $0x14d0] sm:$0xff]
    %v4780 = vld [vmem:[%s18 + $0x14d8] sm:$0xff]
    %v4781 = vld [vmem:[%s18 + $0x14e0] sm:$0xff]
    %v4782 = vld [vmem:[%s18 + $0x14e8] sm:$0xff]
    %v4783 = vld [vmem:[%s18 + $0x14f0] sm:$0xff]
    %v4784 = vld [vmem:[%s18 + $0x14f8] sm:$0xff]
    %v4785 = vld [vmem:[%s18 + $0x1500] sm:$0xff]
    %v4786 = vld [vmem:[%s18 + $0x1508] sm:$0xff]
    %v4787 = vld [vmem:[%s18 + $0x1510] sm:$0xff]
    %v4788 = vld [vmem:[%s18 + $0x1518] sm:$0xff]
    %v4789 = vld [vmem:[%s18 + $0x1520] sm:$0xff]
    %v4790 = vld [vmem:[%s18 + $0x1528] sm:$0xff]
    %v4791 = vld [vmem:[%s18 + $0x1530] sm:$0xff]
    %v4792 = vld [vmem:[%s18 + $0x1538] sm:$0xff]
    %v4793 = vld [vmem:[%s18 + $0x1540] sm:$0xff]
    %v4794 = vld [vmem:[%s18 + $0x1548] sm:$0xff]
    %v4795 = vld [vmem:[%s18 + $0x1550] sm:$0xff]
    %v4796 = vld [vmem:[%s18 + $0x1558] sm:$0xff]
    %v4797 = vld [vmem:[%s18 + $0x1560] sm:$0xff]
    %v4798 = vld [vmem:[%s18 + $0x1568] sm:$0xff]
    %v4799 = vld [vmem:[%s18 + $0x1570] sm:$0xff]
    %v4800 = vld [vmem:[%s18 + $0x1578] sm:$0xff]
    %v4801 = vld [vmem:[%s18 + $0x1580] sm:$0xff]
    %v4802 = vld [vmem:[%s18 + $0x1588] sm:$0xff]
    %v4803 = vld [vmem:[%s18 + $0x1590] sm:$0xff]
    %v4804 = vld [vmem:[%s18 + $0x1598] sm:$0xff]
    %v4805 = vld [vmem:[%s18 + $0x15a0] sm:$0xff]
    %v4806 = vld [vmem:[%s18 + $0x15a8] sm:$0xff]
    %v4807 = vld [vmem:[%s18 + $0x15b0] sm:$0xff]
    %v4808 = vld [vmem:[%s18 + $0x15b8] sm:$0xff]
    %v4809 = vld [vmem:[%s18 + $0x15c0] sm:$0xff]
    %v4810 = vld [vmem:[%s18 + $0x15c8] sm:$0xff]
    %v4811 = vld [vmem:[%s18 + $0x15d0] sm:$0xff]
    %v4812 = vld [vmem:[%s18 + $0x15d8] sm:$0xff]
    %v4813 = vld [vmem:[%s18 + $0x15e0] sm:$0xff]
    %v4814 = vld [vmem:[%s18 + $0x15e8] sm:$0xff]
    %v4815 = vld [vmem:[%s18 + $0x15f0] sm:$0xff]
    %v4816 = vld [vmem:[%s18 + $0x15f8] sm:$0xff]
    %v4817 = vld [vmem:[%s18 + $0x1600] sm:$0xff]
    %v4818 = vld [vmem:[%s18 + $0x1608] sm:$0xff]
    %v4819 = vld [vmem:[%s18 + $0x1610] sm:$0xff]
    %v4820 = vld [vmem:[%s18 + $0x1618] sm:$0xff]
    %v4821 = vld [vmem:[%s18 + $0x1620] sm:$0xff]
    %v4822 = vld [vmem:[%s18 + $0x1628] sm:$0xff]
    %v4823 = vld [vmem:[%s18 + $0x1630] sm:$0xff]
    %v4824 = vld [vmem:[%s18 + $0x1638] sm:$0xff]
    %v4825 = vld [vmem:[%s18 + $0x1640] sm:$0xff]
    %v4826 = vld [vmem:[%s18 + $0x1648] sm:$0xff]
    %v4827 = vld [vmem:[%s18 + $0x1650] sm:$0xff]
    %v4828 = vld [vmem:[%s18 + $0x1658] sm:$0xff]
    %v4829 = vld [vmem:[%s18 + $0x1660] sm:$0xff]
    %v4830 = vld [vmem:[%s18 + $0x1668] sm:$0xff]
    %v4831 = vld [vmem:[%s18 + $0x1670] sm:$0xff]
    %v4832 = vld [vmem:[%s18 + $0x1678] sm:$0xff]
    %v4833 = vld [vmem:[%s18 + $0x1680] sm:$0xff]
    %v4834 = vld [vmem:[%s18 + $0x1688] sm:$0xff]
    %v4835 = vld [vmem:[%s18 + $0x1690] sm:$0xff]
    %v4836 = vld [vmem:[%s18 + $0x1698] sm:$0xff]
    %v4837 = vld [vmem:[%s18 + $0x16a0] sm:$0xff]
    %v4838 = vld [vmem:[%s18 + $0x16a8] sm:$0xff]
    %v4839 = vld [vmem:[%s18 + $0x16b0] sm:$0xff]
    %v4840 = vld [vmem:[%s18 + $0x16b8] sm:$0xff]
    %v4841 = vld [vmem:[%s18 + $0x16c0] sm:$0xff]
    %v4842 = vld [vmem:[%s18 + $0x16c8] sm:$0xff]
    %v4843 = vld [vmem:[%s18 + $0x16d0] sm:$0xff]
    %v4844 = vld [vmem:[%s18 + $0x16d8] sm:$0xff]
    %v4845 = vld [vmem:[%s18 + $0x16e0] sm:$0xff]
    %v4846 = vld [vmem:[%s18 + $0x16e8] sm:$0xff]
    %v4847 = vld [vmem:[%s18 + $0x16f0] sm:$0xff]
    %v4848 = vld [vmem:[%s18 + $0x16f8] sm:$0xff]
    %v4849 = vld [vmem:[%s18 + $0x1700] sm:$0xff]
    %v4850 = vld [vmem:[%s18 + $0x1708] sm:$0xff]
    %v4851 = vld [vmem:[%s18 + $0x1710] sm:$0xff]
    %v4852 = vld [vmem:[%s18 + $0x1718] sm:$0xff]
    %v4853 = vld [vmem:[%s18 + $0x1720] sm:$0xff]
    %v4854 = vld [vmem:[%s18 + $0x1728] sm:$0xff]
    %v4855 = vld [vmem:[%s18 + $0x1730] sm:$0xff]
    %v4856 = vld [vmem:[%s18 + $0x1738] sm:$0xff]
    %v4857 = vld [vmem:[%s18 + $0x1740] sm:$0xff]
    %v4858 = vld [vmem:[%s18 + $0x1748] sm:$0xff]
    %v4859 = vld [vmem:[%s18 + $0x1750] sm:$0xff]
    %v4860 = vld [vmem:[%s18 + $0x1758] sm:$0xff]
    %v4861 = vld [vmem:[%s18 + $0x1760] sm:$0xff]
    %v4862 = vld [vmem:[%s18 + $0x1768] sm:$0xff]
    %v4863 = vld [vmem:[%s18 + $0x1770] sm:$0xff]
    %v4864 = vld [vmem:[%s18 + $0x1778] sm:$0xff]
    %v4865 = vld [vmem:[%s18 + $0x1780] sm:$0xff]
    %v4866 = vld [vmem:[%s18 + $0x1788] sm:$0xff]
    %v4867 = vld [vmem:[%s18 + $0x1790] sm:$0xff]
    %v4868 = vld [vmem:[%s18 + $0x1798] sm:$0xff]
    %v4869 = vld [vmem:[%s18 + $0x17a0] sm:$0xff]
    %v4870 = vld [vmem:[%s18 + $0x17a8] sm:$0xff]
    %v4871 = vld [vmem:[%s18 + $0x17b0] sm:$0xff]
    %v4872 = vld [vmem:[%s18 + $0x17b8] sm:$0xff]
    %v4873 = vld [vmem:[%s18 + $0x17c0] sm:$0xff]
    %v4874 = vld [vmem:[%s18 + $0x17c8] sm:$0xff]
    %v4875 = vld [vmem:[%s18 + $0x17d0] sm:$0xff]
    %v4876 = vld [vmem:[%s18 + $0x17d8] sm:$0xff]
    %v4877 = vld [vmem:[%s18 + $0x17e0] sm:$0xff]
    %v4878 = vld [vmem:[%s18 + $0x17e8] sm:$0xff]
    %v4879 = vld [vmem:[%s18 + $0x17f0] sm:$0xff]
    %v4880 = vld [vmem:[%s18 + $0x17f8] sm:$0xff]
    %v4881 = vld [vmem:[%s18 + $0x1800] sm:$0xff]
    %v4882 = vld [vmem:[%s18 + $0x1808] sm:$0xff]
    %v4883 = vld [vmem:[%s18 + $0x1810] sm:$0xff]
    %v4884 = vld [vmem:[%s18 + $0x1818] sm:$0xff]
    %v4885 = vld [vmem:[%s18 + $0x1820] sm:$0xff]
    %v4886 = vld [vmem:[%s18 + $0x1828] sm:$0xff]
    %v4887 = vld [vmem:[%s18 + $0x1830] sm:$0xff]
    %v4888 = vld [vmem:[%s18 + $0x1838] sm:$0xff]
    %v4889 = vld [vmem:[%s18 + $0x1840] sm:$0xff]
    %v4890 = vld [vmem:[%s18 + $0x1848] sm:$0xff]
    %v4891 = vld [vmem:[%s18 + $0x1850] sm:$0xff]
    %v4892 = vld [vmem:[%s18 + $0x1858] sm:$0xff]
    %v4893 = vld [vmem:[%s18 + $0x1860] sm:$0xff]
    %v4894 = vld [vmem:[%s18 + $0x1868] sm:$0xff]
    %v4895 = vld [vmem:[%s18 + $0x1870] sm:$0xff]
    %v4896 = vld [vmem:[%s18 + $0x1878] sm:$0xff]
    %v4897 = vld [vmem:[%s18 + $0x1880] sm:$0xff]
    %v4898 = vld [vmem:[%s18 + $0x1888] sm:$0xff]
    %v4899 = vld [vmem:[%s18 + $0x1890] sm:$0xff]
    %v4900 = vld [vmem:[%s18 + $0x1898] sm:$0xff]
    %v4901 = vld [vmem:[%s18 + $0x18a0] sm:$0xff]
    %v4902 = vld [vmem:[%s18 + $0x18a8] sm:$0xff]
    %v4903 = vld [vmem:[%s18 + $0x18b0] sm:$0xff]
    %v4904 = vld [vmem:[%s18 + $0x18b8] sm:$0xff]
    %v4905 = vld [vmem:[%s18 + $0x18c0] sm:$0xff]
    %v4906 = vld [vmem:[%s18 + $0x18c8] sm:$0xff]
    %v4907 = vld [vmem:[%s18 + $0x18d0] sm:$0xff]
    %v4908 = vld [vmem:[%s18 + $0x18d8] sm:$0xff]
    %v4909 = vld [vmem:[%s18 + $0x18e0] sm:$0xff]
    %v4910 = vld [vmem:[%s18 + $0x18e8] sm:$0xff]
    %v4911 = vld [vmem:[%s18 + $0x18f0] sm:$0xff]
    %v4912 = vld [vmem:[%s18 + $0x18f8] sm:$0xff]
    %v4913 = vld [vmem:[%s18 + $0x1900] sm:$0xff]
    %v4914 = vld [vmem:[%s18 + $0x1908] sm:$0xff]
    %v4915 = vld [vmem:[%s18 + $0x1910] sm:$0xff]
    %v4916 = vld [vmem:[%s18 + $0x1918] sm:$0xff]
    %v4917 = vld [vmem:[%s18 + $0x1920] sm:$0xff]
    %v4918 = vld [vmem:[%s18 + $0x1928] sm:$0xff]
    %v4919 = vld [vmem:[%s18 + $0x1930] sm:$0xff]
    %v4920 = vld [vmem:[%s18 + $0x1938] sm:$0xff]
    %v4921 = vld [vmem:[%s18 + $0x1940] sm:$0xff]
    %v4922 = vld [vmem:[%s18 + $0x1948] sm:$0xff]
    %v4923 = vld [vmem:[%s18 + $0x1950] sm:$0xff]
    %v4924 = vld [vmem:[%s18 + $0x1958] sm:$0xff]
    %v4925 = vld [vmem:[%s18 + $0x1960] sm:$0xff]
    %v4926 = vld [vmem:[%s18 + $0x1968] sm:$0xff]
    %v4927 = vld [vmem:[%s18 + $0x1970] sm:$0xff]
    %v4928 = vld [vmem:[%s18 + $0x1978] sm:$0xff]
    %v4929 = vld [vmem:[%s18 + $0x1980] sm:$0xff]
    %v4930 = vld [vmem:[%s18 + $0x1988] sm:$0xff]
    %v4931 = vld [vmem:[%s18 + $0x1990] sm:$0xff]
    %v4932 = vld [vmem:[%s18 + $0x1998] sm:$0xff]
    %v4933 = vld [vmem:[%s18 + $0x19a0] sm:$0xff]
    %v4934 = vld [vmem:[%s18 + $0x19a8] sm:$0xff]
    %v4935 = vld [vmem:[%s18 + $0x19b0] sm:$0xff]
    %v4936 = vld [vmem:[%s18 + $0x19b8] sm:$0xff]
    %v4937 = vld [vmem:[%s18 + $0x19c0] sm:$0xff]
    %v4938 = vld [vmem:[%s18 + $0x19c8] sm:$0xff]
    %v4939 = vld [vmem:[%s18 + $0x19d0] sm:$0xff]
    %v4940 = vld [vmem:[%s18 + $0x19d8] sm:$0xff]
    %v4941 = vld [vmem:[%s18 + $0x19e0] sm:$0xff]
    %v4942 = vld [vmem:[%s18 + $0x19e8] sm:$0xff]
    %v4943 = vld [vmem:[%s18 + $0x19f0] sm:$0xff]
    %v4944 = vld [vmem:[%s18 + $0x19f8] sm:$0xff]
    %v4945 = vld [vmem:[%s18 + $0x1a00] sm:$0xff]
    %v4946 = vld [vmem:[%s18 + $0x1a08] sm:$0xff]
    %v4947 = vld [vmem:[%s18 + $0x1a10] sm:$0xff]
    %v4948 = vld [vmem:[%s18 + $0x1a18] sm:$0xff]
    %v4949 = vld [vmem:[%s18 + $0x1a20] sm:$0xff]
    %v4950 = vld [vmem:[%s18 + $0x1a28] sm:$0xff]
    %v4951 = vld [vmem:[%s18 + $0x1a30] sm:$0xff]
    %v4952 = vld [vmem:[%s18 + $0x1a38] sm:$0xff]
    %v4953 = vld [vmem:[%s18 + $0x1a40] sm:$0xff]
    %v4954 = vld [vmem:[%s18 + $0x1a48] sm:$0xff]
    %v4955 = vld [vmem:[%s18 + $0x1a50] sm:$0xff]
    %v4956 = vld [vmem:[%s18 + $0x1a58] sm:$0xff]
    %v4957 = vld [vmem:[%s18 + $0x1a60] sm:$0xff]
    %v4958 = vld [vmem:[%s18 + $0x1a68] sm:$0xff]
    %v4959 = vld [vmem:[%s18 + $0x1a70] sm:$0xff]
    %v4960 = vld [vmem:[%s18 + $0x1a78] sm:$0xff]
    %v4961 = vld [vmem:[%s18 + $0x1a80] sm:$0xff]
    %v4962 = vld [vmem:[%s18 + $0x1a88] sm:$0xff]
    %v4963 = vld [vmem:[%s18 + $0x1a90] sm:$0xff]
    %v4964 = vld [vmem:[%s18 + $0x1a98] sm:$0xff]
    %v4965 = vld [vmem:[%s18 + $0x1aa0] sm:$0xff]
    %v4966 = vld [vmem:[%s18 + $0x1aa8] sm:$0xff]
    %v4967 = vld [vmem:[%s18 + $0x1ab0] sm:$0xff]
    %v4968 = vld [vmem:[%s18 + $0x1ab8] sm:$0xff]
    %v4969 = vld [vmem:[%s18 + $0x1ac0] sm:$0xff]
    %v4970 = vld [vmem:[%s18 + $0x1ac8] sm:$0xff]
    %v4971 = vld [vmem:[%s18 + $0x1ad0] sm:$0xff]
    %v4972 = vld [vmem:[%s18 + $0x1ad8] sm:$0xff]
    %v4973 = vld [vmem:[%s18 + $0x1ae0] sm:$0xff]
    %v4974 = vld [vmem:[%s18 + $0x1ae8] sm:$0xff]
    %v4975 = vld [vmem:[%s18 + $0x1af0] sm:$0xff]
    %v4976 = vld [vmem:[%s18 + $0x1af8] sm:$0xff]
    %v4977 = vld [vmem:[%s18 + $0x1b00] sm:$0xff]
    %v4978 = vld [vmem:[%s18 + $0x1b08] sm:$0xff]
    %v4979 = vld [vmem:[%s18 + $0x1b10] sm:$0xff]
    %v4980 = vld [vmem:[%s18 + $0x1b18] sm:$0xff]
    %v4981 = vld [vmem:[%s18 + $0x1b20] sm:$0xff]
    %v4982 = vld [vmem:[%s18 + $0x1b28] sm:$0xff]
    %v4983 = vld [vmem:[%s18 + $0x1b30] sm:$0xff]
    %v4984 = vld [vmem:[%s18 + $0x1b38] sm:$0xff]
    %v4985 = vld [vmem:[%s18 + $0x1b40] sm:$0xff]
    %v4986 = vld [vmem:[%s18 + $0x1b48] sm:$0xff]
    %v4987 = vld [vmem:[%s18 + $0x1b50] sm:$0xff]
    %v4988 = vld [vmem:[%s18 + $0x1b58] sm:$0xff]
    %v4989 = vld [vmem:[%s18 + $0x1b60] sm:$0xff]
    %v4990 = vld [vmem:[%s18 + $0x1b68] sm:$0xff]
    %v4991 = vld [vmem:[%s18 + $0x1b70] sm:$0xff]
    %v4992 = vld [vmem:[%s18 + $0x1b78] sm:$0xff]
    %v4993 = vld [vmem:[%s18 + $0x1b80] sm:$0xff]
    %v4994 = vld [vmem:[%s18 + $0x1b88] sm:$0xff]
    %v4995 = vld [vmem:[%s18 + $0x1b90] sm:$0xff]
    %v4996 = vld [vmem:[%s18 + $0x1b98] sm:$0xff]
    %v4997 = vld [vmem:[%s18 + $0x1ba0] sm:$0xff]
    %v4998 = vld [vmem:[%s18 + $0x1ba8] sm:$0xff]
    %v4999 = vld [vmem:[%s18 + $0x1bb0] sm:$0xff]
    %v5000 = vld [vmem:[%s18 + $0x1bb8] sm:$0xff]
    %v5001 = vld [vmem:[%s18 + $0x1bc0] sm:$0xff]
    %v5002 = vld [vmem:[%s18 + $0x1bc8] sm:$0xff]
    %v5003 = vld [vmem:[%s18 + $0x1bd0] sm:$0xff]
    %v5004 = vld [vmem:[%s18 + $0x1bd8] sm:$0xff]
    %v5005 = vld [vmem:[%s18 + $0x1be0] sm:$0xff]
    %v5006 = vld [vmem:[%s18 + $0x1be8] sm:$0xff]
    %v5007 = vld [vmem:[%s18 + $0x1bf0] sm:$0xff]
    %v5008 = vld [vmem:[%s18 + $0x1bf8] sm:$0xff]
    %v5009 = vld [vmem:[%s18 + $0x1c00] sm:$0xff]
    %v5010 = vld [vmem:[%s18 + $0x1c08] sm:$0xff]
    %v5011 = vld [vmem:[%s18 + $0x1c10] sm:$0xff]
    %v5012 = vld [vmem:[%s18 + $0x1c18] sm:$0xff]
    %v5013 = vld [vmem:[%s18 + $0x1c20] sm:$0xff]
    %v5014 = vld [vmem:[%s18 + $0x1c28] sm:$0xff]
    %v5015 = vld [vmem:[%s18 + $0x1c30] sm:$0xff]
    %v5016 = vld [vmem:[%s18 + $0x1c38] sm:$0xff]
    %v5017 = vld [vmem:[%s18 + $0x1c40] sm:$0xff]
    %v5018 = vld [vmem:[%s18 + $0x1c48] sm:$0xff]
    %v5019 = vld [vmem:[%s18 + $0x1c50] sm:$0xff]
    %v5020 = vld [vmem:[%s18 + $0x1c58] sm:$0xff]
    %v5021 = vld [vmem:[%s18 + $0x1c60] sm:$0xff]
    %v5022 = vld [vmem:[%s18 + $0x1c68] sm:$0xff]
    %v5023 = vld [vmem:[%s18 + $0x1c70] sm:$0xff]
    %v5024 = vld [vmem:[%s18 + $0x1c78] sm:$0xff]
    %v5025 = vld [vmem:[%s18 + $0x1c80] sm:$0xff]
    %v5026 = vld [vmem:[%s18 + $0x1c88] sm:$0xff]
    %v5027 = vld [vmem:[%s18 + $0x1c90] sm:$0xff]
    %v5028 = vld [vmem:[%s18 + $0x1c98] sm:$0xff]
    %v5029 = vld [vmem:[%s18 + $0x1ca0] sm:$0xff]
    %v5030 = vld [vmem:[%s18 + $0x1ca8] sm:$0xff]
    %v5031 = vld [vmem:[%s18 + $0x1cb0] sm:$0xff]
    %v5032 = vld [vmem:[%s18 + $0x1cb8] sm:$0xff]
    %v5033 = vld [vmem:[%s18 + $0x1cc0] sm:$0xff]
    %v5034 = vld [vmem:[%s18 + $0x1cc8] sm:$0xff]
    %v5035 = vld [vmem:[%s18 + $0x1cd0] sm:$0xff]
    %v5036 = vld [vmem:[%s18 + $0x1cd8] sm:$0xff]
    %v5037 = vld [vmem:[%s18 + $0x1ce0] sm:$0xff]
    %v5038 = vld [vmem:[%s18 + $0x1ce8] sm:$0xff]
    %v5039 = vld [vmem:[%s18 + $0x1cf0] sm:$0xff]
    %v5040 = vld [vmem:[%s18 + $0x1cf8] sm:$0xff]
    %v5041 = vld [vmem:[%s18 + $0x1d00] sm:$0xff]
    %v5042 = vld [vmem:[%s18 + $0x1d08] sm:$0xff]
    %v5043 = vld [vmem:[%s18 + $0x1d10] sm:$0xff]
    %v5044 = vld [vmem:[%s18 + $0x1d18] sm:$0xff]
    %v5045 = vld [vmem:[%s18 + $0x1d20] sm:$0xff]
    %v5046 = vld [vmem:[%s18 + $0x1d28] sm:$0xff]
    %v5047 = vld [vmem:[%s18 + $0x1d30] sm:$0xff]
    %v5048 = vld [vmem:[%s18 + $0x1d38] sm:$0xff]
    %v5049 = vld [vmem:[%s18 + $0x1d40] sm:$0xff]
    %v5050 = vld [vmem:[%s18 + $0x1d48] sm:$0xff]
    %v5051 = vld [vmem:[%s18 + $0x1d50] sm:$0xff]
    %v5052 = vld [vmem:[%s18 + $0x1d58] sm:$0xff]
    %v5053 = vld [vmem:[%s18 + $0x1d60] sm:$0xff]
    %v5054 = vld [vmem:[%s18 + $0x1d68] sm:$0xff]
    %v5055 = vld [vmem:[%s18 + $0x1d70] sm:$0xff]
    %v5056 = vld [vmem:[%s18 + $0x1d78] sm:$0xff]
    %v5057 = vld [vmem:[%s18 + $0x1d80] sm:$0xff]
    %v5058 = vld [vmem:[%s18 + $0x1d88] sm:$0xff]
    %v5059 = vld [vmem:[%s18 + $0x1d90] sm:$0xff]
    %v5060 = vld [vmem:[%s18 + $0x1d98] sm:$0xff]
    %v5061 = vld [vmem:[%s18 + $0x1da0] sm:$0xff]
    %v5062 = vld [vmem:[%s18 + $0x1da8] sm:$0xff]
    %v5063 = vld [vmem:[%s18 + $0x1db0] sm:$0xff]
    %v5064 = vld [vmem:[%s18 + $0x1db8] sm:$0xff]
    %v5065 = vld [vmem:[%s18 + $0x1dc0] sm:$0xff]
    %v5066 = vld [vmem:[%s18 + $0x1dc8] sm:$0xff]
    %v5067 = vld [vmem:[%s18 + $0x1dd0] sm:$0xff]
    %v5068 = vld [vmem:[%s18 + $0x1dd8] sm:$0xff]
    %v5069 = vld [vmem:[%s18 + $0x1de0] sm:$0xff]
    %v5070 = vld [vmem:[%s18 + $0x1de8] sm:$0xff]
    %v5071 = vld [vmem:[%s18 + $0x1df0] sm:$0xff]
    %v5072 = vld [vmem:[%s18 + $0x1df8] sm:$0xff]
    %v5073 = vld [vmem:[%s18 + $0x1e00] sm:$0xff]
    %v5074 = vld [vmem:[%s18 + $0x1e08] sm:$0xff]
    %v5075 = vld [vmem:[%s18 + $0x1e10] sm:$0xff]
    %v5076 = vld [vmem:[%s18 + $0x1e18] sm:$0xff]
    %v5077 = vld [vmem:[%s18 + $0x1e20] sm:$0xff]
    %v5078 = vld [vmem:[%s18 + $0x1e28] sm:$0xff]
    %v5079 = vld [vmem:[%s18 + $0x1e30] sm:$0xff]
    %v5080 = vld [vmem:[%s18 + $0x1e38] sm:$0xff]
    %v5081 = vld [vmem:[%s18 + $0x1e40] sm:$0xff]
    %v5082 = vld [vmem:[%s18 + $0x1e48] sm:$0xff]
    %v5083 = vld [vmem:[%s18 + $0x1e50] sm:$0xff]
    %v5084 = vld [vmem:[%s18 + $0x1e58] sm:$0xff]
    %v5085 = vld [vmem:[%s18 + $0x1e60] sm:$0xff]
    %v5086 = vld [vmem:[%s18 + $0x1e68] sm:$0xff]
    %v5087 = vld [vmem:[%s18 + $0x1e70] sm:$0xff]
    %v5088 = vld [vmem:[%s18 + $0x1e78] sm:$0xff]
    %v5089 = vld [vmem:[%s18 + $0x1e80] sm:$0xff]
    %v5090 = vld [vmem:[%s18 + $0x1e88] sm:$0xff]
    %v5091 = vld [vmem:[%s18 + $0x1e90] sm:$0xff]
    %v5092 = vld [vmem:[%s18 + $0x1e98] sm:$0xff]
    %v5093 = vld [vmem:[%s18 + $0x1ea0] sm:$0xff]
    %v5094 = vld [vmem:[%s18 + $0x1ea8] sm:$0xff]
    %v5095 = vld [vmem:[%s18 + $0x1eb0] sm:$0xff]
    %v5096 = vld [vmem:[%s18 + $0x1eb8] sm:$0xff]
    %v5097 = vld [vmem:[%s18 + $0x1ec0] sm:$0xff]
    %v5098 = vld [vmem:[%s18 + $0x1ec8] sm:$0xff]
    %v5099 = vld [vmem:[%s18 + $0x1ed0] sm:$0xff]
    %v5100 = vld [vmem:[%s18 + $0x1ed8] sm:$0xff]
    %v5101 = vld [vmem:[%s18 + $0x1ee0] sm:$0xff]
    %v5102 = vld [vmem:[%s18 + $0x1ee8] sm:$0xff]
    %v5103 = vld [vmem:[%s18 + $0x1ef0] sm:$0xff]
    %v5104 = vld [vmem:[%s18 + $0x1ef8] sm:$0xff]
    %v5105 = vld [vmem:[%s18 + $0x1f00] sm:$0xff]
    %v5106 = vld [vmem:[%s18 + $0x1f08] sm:$0xff]
    %v5107 = vld [vmem:[%s18 + $0x1f10] sm:$0xff]
    %v5108 = vld [vmem:[%s18 + $0x1f18] sm:$0xff]
    %v5109 = vld [vmem:[%s18 + $0x1f20] sm:$0xff]
    %v5110 = vld [vmem:[%s18 + $0x1f28] sm:$0xff]
    %v5111 = vld [vmem:[%s18 + $0x1f30] sm:$0xff]
    %v5112 = vld [vmem:[%s18 + $0x1f38] sm:$0xff]
    %v5113 = vld [vmem:[%s18 + $0x1f40] sm:$0xff]
    %v5114 = vld [vmem:[%s18 + $0x1f48] sm:$0xff]
    %v5115 = vld [vmem:[%s18 + $0x1f50] sm:$0xff]
    %v5116 = vld [vmem:[%s18 + $0x1f58] sm:$0xff]
    %v5117 = vld [vmem:[%s18 + $0x1f60] sm:$0xff]
    %v5118 = vld [vmem:[%s18 + $0x1f68] sm:$0xff]
    %v5119 = vld [vmem:[%s18 + $0x1f70] sm:$0xff]
    %v5120 = vld [vmem:[%s18 + $0x1f78] sm:$0xff]
    %v5121 = vld [vmem:[%s18 + $0x1f80] sm:$0xff]
    %v5122 = vld [vmem:[%s18 + $0x1f88] sm:$0xff]
    %v5123 = vld [vmem:[%s18 + $0x1f90] sm:$0xff]
    %v5124 = vld [vmem:[%s18 + $0x1f98] sm:$0xff]
    %v5125 = vld [vmem:[%s18 + $0x1fa0] sm:$0xff]
    %v5126 = vld [vmem:[%s18 + $0x1fa8] sm:$0xff]
    %v5127 = vld [vmem:[%s18 + $0x1fb0] sm:$0xff]
    %v5128 = vld [vmem:[%s18 + $0x1fb8] sm:$0xff]
    %v5129 = vld [vmem:[%s18 + $0x1fc0] sm:$0xff]
    %v5130 = vld [vmem:[%s18 + $0x1fc8] sm:$0xff]
    %v5131 = vld [vmem:[%s18 + $0x1fd0] sm:$0xff]
    %v5132 = vld [vmem:[%s18 + $0x1fd8] sm:$0xff]
    %v5133 = vld [vmem:[%s18 + $0x1fe0] sm:$0xff]
    %v5134 = vld [vmem:[%s18 + $0x1fe8] sm:$0xff]
    %v5135 = vld [vmem:[%s18 + $0x1ff0] sm:$0xff]
    %v5136 = vld [vmem:[%s18 + $0x1ff8] sm:$0xff]
    %v5137 = vld [vmem:[%s18 + $0x2000] sm:$0xff]
    %v5138 = vld [vmem:[%s18 + $0x2008] sm:$0xff]
    %v5139 = vld [vmem:[%s18 + $0x2010] sm:$0xff]
    %v5140 = vld [vmem:[%s18 + $0x2018] sm:$0xff]
    %v5141 = vld [vmem:[%s18 + $0x2020] sm:$0xff]
    %v5142 = vld [vmem:[%s18 + $0x2028] sm:$0xff]
    %v5143 = vld [vmem:[%s18 + $0x2030] sm:$0xff]
    %v5144 = vld [vmem:[%s18 + $0x2038] sm:$0xff]
    %v5145 = vld [vmem:[%s18 + $0x2040] sm:$0xff]
    %v5146 = vld [vmem:[%s18 + $0x2048] sm:$0xff]
    %v5147 = vld [vmem:[%s18 + $0x2050] sm:$0xff]
    %v5148 = vld [vmem:[%s18 + $0x2058] sm:$0xff]
    %v5149 = vld [vmem:[%s18 + $0x2060] sm:$0xff]
    %v5150 = vld [vmem:[%s18 + $0x2068] sm:$0xff]
    %v5151 = vld [vmem:[%s18 + $0x2070] sm:$0xff]
    %v5152 = vld [vmem:[%s18 + $0x2078] sm:$0xff]
    %v5153 = vld [vmem:[%s18 + $0x2080] sm:$0xff]
    %v5154 = vld [vmem:[%s18 + $0x2088] sm:$0xff]
    %v5155 = vld [vmem:[%s18 + $0x2090] sm:$0xff]
    %v5156 = vld [vmem:[%s18 + $0x2098] sm:$0xff]
    %v5157 = vld [vmem:[%s18 + $0x20a0] sm:$0xff]
    %v5158 = vld [vmem:[%s18 + $0x20a8] sm:$0xff]
    %v5159 = vld [vmem:[%s18 + $0x20b0] sm:$0xff]
    %v5160 = vld [vmem:[%s18 + $0x20b8] sm:$0xff]
    %v5161 = vld [vmem:[%s18 + $0x20c0] sm:$0xff]
    %v5162 = vld [vmem:[%s18 + $0x20c8] sm:$0xff]
    %v5163 = vld [vmem:[%s18 + $0x20d0] sm:$0xff]
    %v5164 = vld [vmem:[%s18 + $0x20d8] sm:$0xff]
    %v5165 = vld [vmem:[%s18 + $0x20e0] sm:$0xff]
    %v5166 = vld [vmem:[%s18 + $0x20e8] sm:$0xff]
    %v5167 = vld [vmem:[%s18 + $0x20f0] sm:$0xff]
    %v5168 = vld [vmem:[%s18 + $0x20f8] sm:$0xff]
    %v5169 = vld [vmem:[%s18 + $0x2100] sm:$0xff]
    %v5170 = vld [vmem:[%s18 + $0x2108] sm:$0xff]
    %v5171 = vld [vmem:[%s18 + $0x2110] sm:$0xff]
    %v5172 = vld [vmem:[%s18 + $0x2118] sm:$0xff]
    %v5173 = vld [vmem:[%s18 + $0x2120] sm:$0xff]
    %v5174 = vld [vmem:[%s18 + $0x2128] sm:$0xff]
    %v5175 = vld [vmem:[%s18 + $0x2130] sm:$0xff]
    %v5176 = vld [vmem:[%s18 + $0x2138] sm:$0xff]
    %v5177 = vld [vmem:[%s18 + $0x2140] sm:$0xff]
    %v5178 = vld [vmem:[%s18 + $0x2148] sm:$0xff]
    %v5179 = vld [vmem:[%s18 + $0x2150] sm:$0xff]
    %v5180 = vld [vmem:[%s18 + $0x2158] sm:$0xff]
    %v5181 = vld [vmem:[%s18 + $0x2160] sm:$0xff]
    %v5182 = vld [vmem:[%s18 + $0x2168] sm:$0xff]
    %v5183 = vld [vmem:[%s18 + $0x2170] sm:$0xff]
    %v5184 = vld [vmem:[%s18 + $0x2178] sm:$0xff]
    %v5185 = vld [vmem:[%s18 + $0x2180] sm:$0xff]
    %v5186 = vld [vmem:[%s18 + $0x2188] sm:$0xff]
    %v5187 = vld [vmem:[%s18 + $0x2190] sm:$0xff]
    %v5188 = vld [vmem:[%s18 + $0x2198] sm:$0xff]
    %v5189 = vld [vmem:[%s18 + $0x21a0] sm:$0xff]
    %v5190 = vld [vmem:[%s18 + $0x21a8] sm:$0xff]
    %v5191 = vld [vmem:[%s18 + $0x21b0] sm:$0xff]
    %v5192 = vld [vmem:[%s18 + $0x21b8] sm:$0xff]
    %v5193 = vld [vmem:[%s18 + $0x21c0] sm:$0xff]
    %v5194 = vld [vmem:[%s18 + $0x21c8] sm:$0xff]
    %v5195 = vld [vmem:[%s18 + $0x21d0] sm:$0xff]
    %v5196 = vld [vmem:[%s18 + $0x21d8] sm:$0xff]
    %v5197 = vld [vmem:[%s18 + $0x21e0] sm:$0xff]
    %v5198 = vld [vmem:[%s18 + $0x21e8] sm:$0xff]
    %v5199 = vld [vmem:[%s18 + $0x21f0] sm:$0xff]
    %v5200 = vld [vmem:[%s18 + $0x21f8] sm:$0xff]
    %v5201 = vld [vmem:[%s18 + $0x2200] sm:$0xff]
    %v5202 = vld [vmem:[%s18 + $0x2208] sm:$0xff]
    %v5203 = vld [vmem:[%s18 + $0x2210] sm:$0xff]
    %v5204 = vld [vmem:[%s18 + $0x2218] sm:$0xff]
    %v5205 = vld [vmem:[%s18 + $0x2220] sm:$0xff]
    %v5206 = vld [vmem:[%s18 + $0x2228] sm:$0xff]
    %v5207 = vld [vmem:[%s18 + $0x2230] sm:$0xff]
    %v5208 = vld [vmem:[%s18 + $0x2238] sm:$0xff]
    %v5209 = vld [vmem:[%s18 + $0x2240] sm:$0xff]
    %v5210 = vld [vmem:[%s18 + $0x2248] sm:$0xff]
    %v5211 = vld [vmem:[%s18 + $0x2250] sm:$0xff]
    %v5212 = vld [vmem:[%s18 + $0x2258] sm:$0xff]
    %v5213 = vld [vmem:[%s18 + $0x2260] sm:$0xff]
    %v5214 = vld [vmem:[%s18 + $0x2268] sm:$0xff]
    %v5215 = vld [vmem:[%s18 + $0x2270] sm:$0xff]
    %v5216 = vld [vmem:[%s18 + $0x2278] sm:$0xff]
    %v5217 = vld [vmem:[%s18 + $0x2280] sm:$0xff]
    %v5218 = vld [vmem:[%s18 + $0x2288] sm:$0xff]
    %v5219 = vld [vmem:[%s18 + $0x2290] sm:$0xff]
    %v5220 = vld [vmem:[%s18 + $0x2298] sm:$0xff]
    %v5221 = vld [vmem:[%s18 + $0x22a0] sm:$0xff]
    %v5222 = vld [vmem:[%s18 + $0x22a8] sm:$0xff]
    %v5223 = vld [vmem:[%s18 + $0x22b0] sm:$0xff]
    %v5224 = vld [vmem:[%s18 + $0x22b8] sm:$0xff]
    %v5225 = vld [vmem:[%s18 + $0x22c0] sm:$0xff]
    %v5226 = vld [vmem:[%s18 + $0x22c8] sm:$0xff]
    %v5227 = vld [vmem:[%s18 + $0x22d0] sm:$0xff]
    %v5228 = vld [vmem:[%s18 + $0x22d8] sm:$0xff]
    %v5229 = vld [vmem:[%s18 + $0x22e0] sm:$0xff]
    %v5230 = vld [vmem:[%s18 + $0x22e8] sm:$0xff]
    %v5231 = vld [vmem:[%s18 + $0x22f0] sm:$0xff]
    %v5232 = vld [vmem:[%s18 + $0x22f8] sm:$0xff]
    %v5233 = vld [vmem:[%s18 + $0x2300] sm:$0xff]
    %v5234 = vld [vmem:[%s18 + $0x2308] sm:$0xff]
    %v5235 = vld [vmem:[%s18 + $0x2310] sm:$0xff]
    %v5236 = vld [vmem:[%s18 + $0x2318] sm:$0xff]
    %v5237 = vld [vmem:[%s18 + $0x2320] sm:$0xff]
    %v5238 = vld [vmem:[%s18 + $0x2328] sm:$0xff]
    %v5239 = vld [vmem:[%s18 + $0x2330] sm:$0xff]
    %v5240 = vld [vmem:[%s18 + $0x2338] sm:$0xff]
    %v5241 = vld [vmem:[%s18 + $0x2340] sm:$0xff]
    %v5242 = vld [vmem:[%s18 + $0x2348] sm:$0xff]
    %v5243 = vld [vmem:[%s18 + $0x2350] sm:$0xff]
    %v5244 = vld [vmem:[%s18 + $0x2358] sm:$0xff]
    %v5245 = vld [vmem:[%s18 + $0x2360] sm:$0xff]
    %v5246 = vld [vmem:[%s18 + $0x2368] sm:$0xff]
    %v5247 = vld [vmem:[%s18 + $0x2370] sm:$0xff]
    %v5248 = vld [vmem:[%s18 + $0x2378] sm:$0xff]
    %v5249 = vld [vmem:[%s18 + $0x2380] sm:$0xff]
    %v5250 = vld [vmem:[%s18 + $0x2388] sm:$0xff]
    %v5251 = vld [vmem:[%s18 + $0x2390] sm:$0xff]
    %v5252 = vld [vmem:[%s18 + $0x2398] sm:$0xff]
    %v5253 = vld [vmem:[%s18 + $0x23a0] sm:$0xff]
    %v5254 = vld [vmem:[%s18 + $0x23a8] sm:$0xff]
    %v5255 = vld [vmem:[%s18 + $0x23b0] sm:$0xff]
    %v5256 = vld [vmem:[%s18 + $0x23b8] sm:$0xff]
    %v5257 = vld [vmem:[%s18 + $0x23c0] sm:$0xff]
    %v5258 = vld [vmem:[%s18 + $0x23c8] sm:$0xff]
    %v5259 = vld [vmem:[%s18 + $0x23d0] sm:$0xff]
    %v5260 = vld [vmem:[%s18 + $0x23d8] sm:$0xff]
    %v5261 = vld [vmem:[%s18 + $0x23e0] sm:$0xff]
    %v5262 = vld [vmem:[%s18 + $0x23e8] sm:$0xff]
    %v5263 = vld [vmem:[%s18 + $0x23f0] sm:$0xff]
    %v5264 = vld [vmem:[%s18 + $0x23f8] sm:$0xff]
    %v5265 = vld [vmem:[%s18 + $0x2400] sm:$0xff]
    %v5266 = vld [vmem:[%s18 + $0x2408] sm:$0xff]
    %v5267 = vld [vmem:[%s18 + $0x2410] sm:$0xff]
    %v5268 = vld [vmem:[%s18 + $0x2418] sm:$0xff]
    %v5269 = vld [vmem:[%s18 + $0x2420] sm:$0xff]
    %v5270 = vld [vmem:[%s18 + $0x2428] sm:$0xff]
    %v5271 = vld [vmem:[%s18 + $0x2430] sm:$0xff]
    %v5272 = vld [vmem:[%s18 + $0x2438] sm:$0xff]
    %v5273 = vld [vmem:[%s18 + $0x2440] sm:$0xff]
    %v5274 = vld [vmem:[%s18 + $0x2448] sm:$0xff]
    %v5275 = vld [vmem:[%s18 + $0x2450] sm:$0xff]
    %v5276 = vld [vmem:[%s18 + $0x2458] sm:$0xff]
    %v5277 = vld [vmem:[%s18 + $0x2460] sm:$0xff]
    %v5278 = vld [vmem:[%s18 + $0x2468] sm:$0xff]
    %v5279 = vld [vmem:[%s18 + $0x2470] sm:$0xff]
    %v5280 = vld [vmem:[%s18 + $0x2478] sm:$0xff]
    %v5281 = vld [vmem:[%s18 + $0x2480] sm:$0xff]
    %v5282 = vld [vmem:[%s18 + $0x2488] sm:$0xff]
    %v5283 = vld [vmem:[%s18 + $0x2490] sm:$0xff]
    %v5284 = vld [vmem:[%s18 + $0x2498] sm:$0xff]
    %v5285 = vld [vmem:[%s18 + $0x24a0] sm:$0xff]
    %v5286 = vld [vmem:[%s18 + $0x24a8] sm:$0xff]
    %v5287 = vld [vmem:[%s18 + $0x24b0] sm:$0xff]
    %v5288 = vld [vmem:[%s18 + $0x24b8] sm:$0xff]
    %v5289 = vld [vmem:[%s18 + $0x24c0] sm:$0xff]
    %v5290 = vld [vmem:[%s18 + $0x24c8] sm:$0xff]
    %v5291 = vld [vmem:[%s18 + $0x24d0] sm:$0xff]
    %v5292 = vld [vmem:[%s18 + $0x24d8] sm:$0xff]
    %v5293 = vld [vmem:[%s18 + $0x24e0] sm:$0xff]
    %v5294 = vld [vmem:[%s18 + $0x24e8] sm:$0xff]
    %v5295 = vld [vmem:[%s18 + $0x24f0] sm:$0xff]
    %v5296 = vld [vmem:[%s18 + $0x24f8] sm:$0xff]
    %v5297 = vld [vmem:[%s18 + $0x2500] sm:$0xff]
    %v5298 = vld [vmem:[%s18 + $0x2508] sm:$0xff]
    %v5299 = vld [vmem:[%s18 + $0x2510] sm:$0xff]
    %v5300 = vld [vmem:[%s18 + $0x2518] sm:$0xff]
    %v5301 = vld [vmem:[%s18 + $0x2520] sm:$0xff]
    %v5302 = vld [vmem:[%s18 + $0x2528] sm:$0xff]
    %v5303 = vld [vmem:[%s18 + $0x2530] sm:$0xff]
    %v5304 = vld [vmem:[%s18 + $0x2538] sm:$0xff]
    %v5305 = vld [vmem:[%s18 + $0x2540] sm:$0xff]
    %v5306 = vld [vmem:[%s18 + $0x2548] sm:$0xff]
    %v5307 = vld [vmem:[%s18 + $0x2550] sm:$0xff]
    %v5308 = vld [vmem:[%s18 + $0x2558] sm:$0xff]
    %v5309 = vld [vmem:[%s18 + $0x2560] sm:$0xff]
    %v5310 = vld [vmem:[%s18 + $0x2568] sm:$0xff]
    %v5311 = vld [vmem:[%s18 + $0x2570] sm:$0xff]
    %v5312 = vld [vmem:[%s18 + $0x2578] sm:$0xff]
    %v5313 = vld [vmem:[%s19] sm:$0xff]
    %v5314 = vld [vmem:[%s19 + $0x8] sm:$0xff]
    %v5317 = vlaneseq
    %v5318 = vshrl.u32 %v5317, 7
    %v5319 = vsub.s32 0, %v5318
    %v5320 = vrot.slane %v5313, %v5319
    %v5321 = vlaneseq
    %v5322 = vshrl.u32 %v5321, 7
    %v5323 = vsub.s32 1, %v5322
    %v5324 = vrot.slane %v5313, %v5323
    %v5325 = vlaneseq
    %v5326 = vshrl.u32 %v5325, 7
    %v5327 = vsub.s32 2, %v5326
    %v5328 = vrot.slane %v5313, %v5327
    %v5329 = vlaneseq
    %v5330 = vshrl.u32 %v5329, 7
    %v5331 = vsub.s32 3, %v5330
    %v5332 = vrot.slane %v5313, %v5331
    %v5333 = vlaneseq
    %v5334 = vshrl.u32 %v5333, 7
    %v5335 = vsub.s32 4, %v5334
    %v5336 = vrot.slane %v5313, %v5335
    %v5337 = vlaneseq
    %v5338 = vshrl.u32 %v5337, 7
    %v5339 = vsub.s32 5, %v5338
    %v5340 = vrot.slane %v5313, %v5339
    %v5341 = vlaneseq
    %v5342 = vshrl.u32 %v5341, 7
    %v5343 = vsub.s32 6, %v5342
    %v5344 = vrot.slane %v5313, %v5343
    %v5345 = vlaneseq
    %v5346 = vshrl.u32 %v5345, 7
    %v5347 = vsub.s32 7, %v5346
    %v5348 = vrot.slane %v5313, %v5347
    %v5349 = vlaneseq
    %v5350 = vshrl.u32 %v5349, 7
    %v5351 = vsub.s32 0, %v5350
    %v5352 = vrot.slane %v5314, %v5351
    %v5353 = vlaneseq
    %v5354 = vshrl.u32 %v5353, 7
    %v5355 = vsub.s32 1, %v5354
    %v5356 = vrot.slane %v5314, %v5355
    %v5357 = vlaneseq
    %v5358 = vshrl.u32 %v5357, 7
    %v5359 = vsub.s32 2, %v5358
    %v5360 = vrot.slane %v5314, %v5359
    %v5361 = vlaneseq
    %v5362 = vshrl.u32 %v5361, 7
    %v5363 = vsub.s32 3, %v5362
    %v5364 = vrot.slane %v5314, %v5363
    %v5365 = vlaneseq
    %v5366 = vshrl.u32 %v5365, 7
    %v5367 = vsub.s32 4, %v5366
    %v5368 = vrot.slane %v5314, %v5367
    %v5369 = vlaneseq
    %v5370 = vshrl.u32 %v5369, 7
    %v5371 = vsub.s32 5, %v5370
    %v5372 = vrot.slane %v5314, %v5371
    %v5373 = vlaneseq
    %v5374 = vshrl.u32 %v5373, 7
    %v5375 = vsub.s32 6, %v5374
    %v5376 = vrot.slane %v5314, %v5375
    %v5377 = vlaneseq
    %v5378 = vshrl.u32 %v5377, 7
    %v5379 = vsub.s32 7, %v5378
    %v5380 = vrot.slane %v5314, %v5379
    %v5398 = vsel %vm3157, %v4112, 0
    %5400 = vmatprep.subr.mxu0 %v4354
    %5401 = vmatpush1.msra.mxu0 %v4353
    %5402 = vmatprep.subr.mxu0 %v4338
    %5403 = vmatpush1.msra.mxu0 %v4337
    %5404 = vmatprep.subr.mxu0 %v4322
    %5405 = vmatpush1.msra.mxu0 %v4321
    %5406 = vmatprep.subr.mxu0 %v4306
    %5407 = vmatpush1.msra.mxu0 %v4305
    %5408 = vmatprep.subr.mxu0 %v4290
    %5409 = vmatpush1.msra.mxu0 %v4289
    %5410 = vmatprep.subr.mxu0 %v4274
    %5411 = vmatpush1.msra.mxu0 %v4273
    %5412 = vmatprep.subr.mxu0 %v4258
    %5413 = vmatpush1.msra.mxu0 %v4257
    %5414 = vmatprep.subr.mxu0 %v4242
    %5415 = vmatpush1.msra.mxu0 %v4241
    %5416 = vmatprep.subr.mxu0 %v4226
    %5417 = vmatpush1.msra.mxu0 %v4225
    %5418 = vmatprep.subr.mxu0 %v4210
    %5419 = vmatpush1.msra.mxu0 %v4209
    %5420 = vmatprep.subr.mxu0 %v4194
    %5421 = vmatpush1.msra.mxu0 %v4193
    %5422 = vmatprep.subr.mxu0 %v4178
    %5423 = vmatpush1.msra.mxu0 %v4177
    %5424 = vmatprep.subr.mxu0 %v4162
    %5425 = vmatpush1.msra.mxu0 %v4161
    %5426 = vmatprep.subr.mxu0 %v4146
    %5427 = vmatpush1.msra.mxu0 %v4145
    %5428 = vmatprep.subr.mxu0 %v4130
    %5429 = vmatpush1.msra.mxu0 %v4129
    %5430 = vmatprep.subr.mxu0 %v4114
    %5431 = vmatpush1.msra.mxu0 %v4113
    %5432 = vmatprep.subr.mxu0 %v4610
    %5433 = vmatpush2.msra.mxu0 %v4609
    %5434 = vmatprep.subr.mxu0 %v4594
    %5435 = vmatpush2.msra.mxu0 %v4593
    %5436 = vmatprep.subr.mxu0 %v4578
    %5437 = vmatpush2.msra.mxu0 %v4577
    %5438 = vmatprep.subr.mxu0 %v4562
    %5439 = vmatpush2.msra.mxu0 %v4561
    %5440 = vmatprep.subr.mxu0 %v4546
    %5441 = vmatpush2.msra.mxu0 %v4545
    %5442 = vmatprep.subr.mxu0 %v4530
    %5443 = vmatpush2.msra.mxu0 %v4529
    %5444 = vmatprep.subr.mxu0 %v4514
    %5445 = vmatpush2.msra.mxu0 %v4513
    %5446 = vmatprep.subr.mxu0 %v4498
    %5447 = vmatpush2.msra.mxu0 %v4497
    %5448 = vmatprep.subr.mxu0 %v4482
    %5449 = vmatpush2.msra.mxu0 %v4481
    %5450 = vmatprep.subr.mxu0 %v4466
    %5451 = vmatpush2.msra.mxu0 %v4465
    %5452 = vmatprep.subr.mxu0 %v4450
    %5453 = vmatpush2.msra.mxu0 %v4449
    %5454 = vmatprep.subr.mxu0 %v4434
    %5455 = vmatpush2.msra.mxu0 %v4433
    %5456 = vmatprep.subr.mxu0 %v4418
    %5457 = vmatpush2.msra.mxu0 %v4417
    %5458 = vmatprep.subr.mxu0 %v4402
    %5459 = vmatpush2.msra.mxu0 %v4401
    %5460 = vmatprep.subr.mxu0 %v4386
    %5461 = vmatpush2.msra.mxu0 %v4385
    %5462 = vmatprep.subr.mxu0 %v4370
    %5463 = vmatpush2.msra.mxu0 %v4369
    %5464 = vmatprep.mubr.f32.mxu0 %v4109
    %5465 = vmatmul.mubr.f32.gmra.mxu0 %v4108
    %v5466 = vpop.f32.mrf.mxu0
    %v5467 = vadd.f32 %v5320, %v5466
    %v5468 = vpop.f32.mrf.mxu0
    %v5469 = vadd.f32 %v5324, %v5468
    %5470 = vdwg.mxu0
    %5471 = vmatprep.subr.mxu0 %v4866
    %5472 = vmatpush1.msra.mxu0 %v4865
    %5473 = vmatprep.subr.mxu0 %v4850
    %5474 = vmatpush1.msra.mxu0 %v4849
    %5475 = vmatprep.subr.mxu0 %v4834
    %5476 = vmatpush1.msra.mxu0 %v4833
    %5477 = vmatprep.subr.mxu0 %v4818
    %5478 = vmatpush1.msra.mxu0 %v4817
    %5479 = vmatprep.subr.mxu0 %v4802
    %5480 = vmatpush1.msra.mxu0 %v4801
    %5481 = vmatprep.subr.mxu0 %v4786
    %5482 = vmatpush1.msra.mxu0 %v4785
    %5483 = vmatprep.subr.mxu0 %v4770
    %5484 = vmatpush1.msra.mxu0 %v4769
    %5485 = vmatprep.subr.mxu0 %v4754
    %5486 = vmatpush1.msra.mxu0 %v4753
    %5487 = vmatprep.subr.mxu0 %v4738
    %5488 = vmatpush1.msra.mxu0 %v4737
    %5489 = vmatprep.subr.mxu0 %v4722
    %5490 = vmatpush1.msra.mxu0 %v4721
    %5491 = vmatprep.subr.mxu0 %v4706
    %5492 = vmatpush1.msra.mxu0 %v4705
    %5493 = vmatprep.subr.mxu0 %v4690
    %5494 = vmatpush1.msra.mxu0 %v4689
    %5495 = vmatprep.subr.mxu0 %v4674
    %5496 = vmatpush1.msra.mxu0 %v4673
    %5497 = vmatprep.subr.mxu0 %v4658
    %5498 = vmatpush1.msra.mxu0 %v4657
    %5499 = vmatprep.subr.mxu0 %v4642
    %5500 = vmatpush1.msra.mxu0 %v4641
    %5501 = vmatprep.subr.mxu0 %v4626
    %5502 = vmatpush1.msra.mxu0 %v4625
    %5503 = vmatprep.subr.mxu0 %v5122
    %5504 = vmatpush2.msra.mxu0 %v5121
    %5505 = vmatprep.subr.mxu0 %v5106
    %5506 = vmatpush2.msra.mxu0 %v5105
    %5507 = vmatprep.subr.mxu0 %v5090
    %5508 = vmatpush2.msra.mxu0 %v5089
    %5509 = vmatprep.subr.mxu0 %v5074
    %5510 = vmatpush2.msra.mxu0 %v5073
    %5511 = vmatprep.subr.mxu0 %v5058
    %5512 = vmatpush2.msra.mxu0 %v5057
    %5513 = vmatprep.subr.mxu0 %v5042
    %5514 = vmatpush2.msra.mxu0 %v5041
    %5515 = vmatprep.subr.mxu0 %v5026
    %5516 = vmatpush2.msra.mxu0 %v5025
    %5517 = vmatprep.subr.mxu0 %v5010
    %5518 = vmatpush2.msra.mxu0 %v5009
    %5519 = vmatprep.subr.mxu0 %v4994
    %5520 = vmatpush2.msra.mxu0 %v4993
    %5521 = vmatprep.subr.mxu0 %v4978
    %5522 = vmatpush2.msra.mxu0 %v4977
    %5523 = vmatprep.subr.mxu0 %v4962
    %5524 = vmatpush2.msra.mxu0 %v4961
    %5525 = vmatprep.subr.mxu0 %v4946
    %5526 = vmatpush2.msra.mxu0 %v4945
    %5527 = vmatprep.subr.mxu0 %v4930
    %5528 = vmatpush2.msra.mxu0 %v4929
    %5529 = vmatprep.subr.mxu0 %v4914
    %5530 = vmatpush2.msra.mxu0 %v4913
    %5531 = vmatprep.subr.mxu0 %v4898
    %5532 = vmatpush2.msra.mxu0 %v4897
    %5533 = vmatprep.subr.mxu0 %v4882
    %5534 = vmatpush2.msra.mxu0 %v4881
    %5535 = vmatprep.mubr.f32.mxu0 %v4111
    %5536 = vmatmul.mubr.f32.gmra.mxu0 %v4110
    %v5537 = vpop.f32.mrf.mxu0
    %v5538 = vadd.f32 %v5467, %v5537
    %v5539 = vpop.f32.mrf.mxu0
    %v5540 = vadd.f32 %v5469, %v5539
    %5541 = vdwg.mxu0
    %5542 = vmatprep.subr.mxu0 0.0
    %5543 = vmatpush1.msra.mxu0 0.0
    %5544 = vmatprep.subr.mxu0 0.0
    %5545 = vmatpush1.msra.mxu0 0.0
    %5546 = vmatprep.subr.mxu0 0.0
    %5547 = vmatpush1.msra.mxu0 0.0
    %5548 = vmatprep.subr.mxu0 0.0
    %5549 = vmatpush1.msra.mxu0 0.0
    %5550 = vmatprep.subr.mxu0 0.0
    %5551 = vmatpush1.msra.mxu0 0.0
    %5552 = vmatprep.subr.mxu0 %v5298
    %5553 = vmatpush1.msra.mxu0 %v5297
    %5554 = vmatprep.subr.mxu0 %v5282
    %5555 = vmatpush1.msra.mxu0 %v5281
    %5556 = vmatprep.subr.mxu0 %v5266
    %5557 = vmatpush1.msra.mxu0 %v5265
    %5558 = vmatprep.subr.mxu0 %v5250
    %5559 = vmatpush1.msra.mxu0 %v5249
    %5560 = vmatprep.subr.mxu0 %v5234
    %5561 = vmatpush1.msra.mxu0 %v5233
    %5562 = vmatprep.subr.mxu0 %v5218
    %5563 = vmatpush1.msra.mxu0 %v5217
    %5564 = vmatprep.subr.mxu0 %v5202
    %5565 = vmatpush1.msra.mxu0 %v5201
    %5566 = vmatprep.subr.mxu0 %v5186
    %5567 = vmatpush1.msra.mxu0 %v5185
    %5568 = vmatprep.subr.mxu0 %v5170
    %5569 = vmatpush1.msra.mxu0 %v5169
    %5570 = vmatprep.subr.mxu0 %v5154
    %5571 = vmatpush1.msra.mxu0 %v5153
    %5572 = vmatprep.subr.mxu0 %v5138
    %5573 = vmatpush1.msra.mxu0 %v5137
    %5574 = vmatprep.subr.mxu0 0.0
    %5575 = vmatpush2.msra.mxu0 0.0
    %5576 = vmatprep.subr.mxu0 0.0
    %5577 = vmatpush2.msra.mxu0 0.0
    %5578 = vmatprep.subr.mxu0 0.0
    %5579 = vmatpush2.msra.mxu0 0.0
    %5580 = vmatprep.subr.mxu0 0.0
    %5581 = vmatpush2.msra.mxu0 0.0
    %5582 = vmatprep.subr.mxu0 0.0
    %5583 = vmatpush2.msra.mxu0 0.0
    %5584 = vmatprep.subr.mxu0 0.0
    %5585 = vmatpush2.msra.mxu0 0.0
    %5586 = vmatprep.subr.mxu0 0.0
    %5587 = vmatpush2.msra.mxu0 0.0
    %5588 = vmatprep.subr.mxu0 0.0
    %5589 = vmatpush2.msra.mxu0 0.0
    %5590 = vmatprep.subr.mxu0 0.0
    %5591 = vmatpush2.msra.mxu0 0.0
    %5592 = vmatprep.subr.mxu0 0.0
    %5593 = vmatpush2.msra.mxu0 0.0
    %5594 = vmatprep.subr.mxu0 0.0
    %5595 = vmatpush2.msra.mxu0 0.0
    %5596 = vmatprep.subr.mxu0 0.0
    %5597 = vmatpush2.msra.mxu0 0.0
    %5598 = vmatprep.subr.mxu0 0.0
    %5599 = vmatpush2.msra.mxu0 0.0
    %5600 = vmatprep.subr.mxu0 0.0
    %5601 = vmatpush2.msra.mxu0 0.0
    %5602 = vmatprep.subr.mxu0 0.0
    %5603 = vmatpush2.msra.mxu0 0.0
    %5604 = vmatprep.subr.mxu0 0.0
    %5605 = vmatpush2.msra.mxu0 0.0
    %5606 = vmatprep.mubr.f32.mxu0 0.0
    %5607 = vmatmul.mubr.f32.gmra.mxu0 %v5398
    %v5608 = vpop.f32.mrf.mxu0
    %v5609 = vadd.f32 %v5538, %v5608
    %v5610 = vpop.f32.mrf.mxu0
    %v5611 = vadd.f32 %v5540, %v5610
    %5612 = vdwg.mxu0
    %5613 = vmatprep.subr.mxu0 %v4356
    %5614 = vmatpush1.msra.mxu0 %v4355
    %5615 = vmatprep.subr.mxu0 %v4340
    %5616 = vmatpush1.msra.mxu0 %v4339
    %5617 = vmatprep.subr.mxu0 %v4324
    %5618 = vmatpush1.msra.mxu0 %v4323
    %5619 = vmatprep.subr.mxu0 %v4308
    %5620 = vmatpush1.msra.mxu0 %v4307
    %5621 = vmatprep.subr.mxu0 %v4292
    %5622 = vmatpush1.msra.mxu0 %v4291
    %5623 = vmatprep.subr.mxu0 %v4276
    %5624 = vmatpush1.msra.mxu0 %v4275
    %5625 = vmatprep.subr.mxu0 %v4260
    %5626 = vmatpush1.msra.mxu0 %v4259
    %5627 = vmatprep.subr.mxu0 %v4244
    %5628 = vmatpush1.msra.mxu0 %v4243
    %5629 = vmatprep.subr.mxu0 %v4228
    %5630 = vmatpush1.msra.mxu0 %v4227
    %5631 = vmatprep.subr.mxu0 %v4212
    %5632 = vmatpush1.msra.mxu0 %v4211
    %5633 = vmatprep.subr.mxu0 %v4196
    %5634 = vmatpush1.msra.mxu0 %v4195
    %5635 = vmatprep.subr.mxu0 %v4180
    %5636 = vmatpush1.msra.mxu0 %v4179
    %5637 = vmatprep.subr.mxu0 %v4164
    %5638 = vmatpush1.msra.mxu0 %v4163
    %5639 = vmatprep.subr.mxu0 %v4148
    %5640 = vmatpush1.msra.mxu0 %v4147
    %5641 = vmatprep.subr.mxu0 %v4132
    %5642 = vmatpush1.msra.mxu0 %v4131
    %5643 = vmatprep.subr.mxu0 %v4116
    %5644 = vmatpush1.msra.mxu0 %v4115
    %5645 = vmatprep.subr.mxu0 %v4612
    %5646 = vmatpush2.msra.mxu0 %v4611
    %5647 = vmatprep.subr.mxu0 %v4596
    %5648 = vmatpush2.msra.mxu0 %v4595
    %5649 = vmatprep.subr.mxu0 %v4580
    %5650 = vmatpush2.msra.mxu0 %v4579
    %5651 = vmatprep.subr.mxu0 %v4564
    %5652 = vmatpush2.msra.mxu0 %v4563
    %5653 = vmatprep.subr.mxu0 %v4548
    %5654 = vmatpush2.msra.mxu0 %v4547
    %5655 = vmatprep.subr.mxu0 %v4532
    %5656 = vmatpush2.msra.mxu0 %v4531
    %5657 = vmatprep.subr.mxu0 %v4516
    %5658 = vmatpush2.msra.mxu0 %v4515
    %5659 = vmatprep.subr.mxu0 %v4500
    %5660 = vmatpush2.msra.mxu0 %v4499
    %5661 = vmatprep.subr.mxu0 %v4484
    %5662 = vmatpush2.msra.mxu0 %v4483
    %5663 = vmatprep.subr.mxu0 %v4468
    %5664 = vmatpush2.msra.mxu0 %v4467
    %5665 = vmatprep.subr.mxu0 %v4452
    %5666 = vmatpush2.msra.mxu0 %v4451
    %5667 = vmatprep.subr.mxu0 %v4436
    %5668 = vmatpush2.msra.mxu0 %v4435
    %5669 = vmatprep.subr.mxu0 %v4420
    %5670 = vmatpush2.msra.mxu0 %v4419
    %5671 = vmatprep.subr.mxu0 %v4404
    %5672 = vmatpush2.msra.mxu0 %v4403
    %5673 = vmatprep.subr.mxu0 %v4388
    %5674 = vmatpush2.msra.mxu0 %v4387
    %5675 = vmatprep.subr.mxu0 %v4372
    %5676 = vmatpush2.msra.mxu0 %v4371
    %5677 = vmatprep.mubr.f32.mxu0 %v4109
    %5678 = vmatmul.mubr.f32.gmra.mxu0 %v4108
    %v5679 = vpop.f32.mrf.mxu0
    %v5680 = vadd.f32 %v5328, %v5679
    %v5681 = vpop.f32.mrf.mxu0
    %v5682 = vadd.f32 %v5332, %v5681
    %5683 = vdwg.mxu0
    %5684 = vmatprep.subr.mxu0 %v4868
    %5685 = vmatpush1.msra.mxu0 %v4867
    %5686 = vmatprep.subr.mxu0 %v4852
    %5687 = vmatpush1.msra.mxu0 %v4851
    %5688 = vmatprep.subr.mxu0 %v4836
    %5689 = vmatpush1.msra.mxu0 %v4835
    %5690 = vmatprep.subr.mxu0 %v4820
    %5691 = vmatpush1.msra.mxu0 %v4819
    %5692 = vmatprep.subr.mxu0 %v4804
    %5693 = vmatpush1.msra.mxu0 %v4803
    %5694 = vmatprep.subr.mxu0 %v4788
    %5695 = vmatpush1.msra.mxu0 %v4787
    %5696 = vmatprep.subr.mxu0 %v4772
    %5697 = vmatpush1.msra.mxu0 %v4771
    %5698 = vmatprep.subr.mxu0 %v4756
    %5699 = vmatpush1.msra.mxu0 %v4755
    %5700 = vmatprep.subr.mxu0 %v4740
    %5701 = vmatpush1.msra.mxu0 %v4739
    %5702 = vmatprep.subr.mxu0 %v4724
    %5703 = vmatpush1.msra.mxu0 %v4723
    %5704 = vmatprep.subr.mxu0 %v4708
    %5705 = vmatpush1.msra.mxu0 %v4707
    %5706 = vmatprep.subr.mxu0 %v4692
    %5707 = vmatpush1.msra.mxu0 %v4691
    %5708 = vmatprep.subr.mxu0 %v4676
    %5709 = vmatpush1.msra.mxu0 %v4675
    %5710 = vmatprep.subr.mxu0 %v4660
    %5711 = vmatpush1.msra.mxu0 %v4659
    %5712 = vmatprep.subr.mxu0 %v4644
    %5713 = vmatpush1.msra.mxu0 %v4643
    %5714 = vmatprep.subr.mxu0 %v4628
    %5715 = vmatpush1.msra.mxu0 %v4627
    %5716 = vmatprep.subr.mxu0 %v5124
    %5717 = vmatpush2.msra.mxu0 %v5123
    %5718 = vmatprep.subr.mxu0 %v5108
    %5719 = vmatpush2.msra.mxu0 %v5107
    %5720 = vmatprep.subr.mxu0 %v5092
    %5721 = vmatpush2.msra.mxu0 %v5091
    %5722 = vmatprep.subr.mxu0 %v5076
    %5723 = vmatpush2.msra.mxu0 %v5075
    %5724 = vmatprep.subr.mxu0 %v5060
    %5725 = vmatpush2.msra.mxu0 %v5059
    %5726 = vmatprep.subr.mxu0 %v5044
    %5727 = vmatpush2.msra.mxu0 %v5043
    %5728 = vmatprep.subr.mxu0 %v5028
    %5729 = vmatpush2.msra.mxu0 %v5027
    %5730 = vmatprep.subr.mxu0 %v5012
    %5731 = vmatpush2.msra.mxu0 %v5011
    %5732 = vmatprep.subr.mxu0 %v4996
    %5733 = vmatpush2.msra.mxu0 %v4995
    %5734 = vmatprep.subr.mxu0 %v4980
    %5735 = vmatpush2.msra.mxu0 %v4979
    %5736 = vmatprep.subr.mxu0 %v4964
    %5737 = vmatpush2.msra.mxu0 %v4963
    %5738 = vmatprep.subr.mxu0 %v4948
    %5739 = vmatpush2.msra.mxu0 %v4947
    %5740 = vmatprep.subr.mxu0 %v4932
    %5741 = vmatpush2.msra.mxu0 %v4931
    %5742 = vmatprep.subr.mxu0 %v4916
    %5743 = vmatpush2.msra.mxu0 %v4915
    %5744 = vmatprep.subr.mxu0 %v4900
    %5745 = vmatpush2.msra.mxu0 %v4899
    %5746 = vmatprep.subr.mxu0 %v4884
    %5747 = vmatpush2.msra.mxu0 %v4883
    %5748 = vmatprep.mubr.f32.mxu0 %v4111
    %5749 = vmatmul.mubr.f32.gmra.mxu0 %v4110
    %v5750 = vpop.f32.mrf.mxu0
    %v5751 = vadd.f32 %v5680, %v5750
    %v5752 = vpop.f32.mrf.mxu0
    %v5753 = vadd.f32 %v5682, %v5752
    %5754 = vdwg.mxu0
    %5755 = vmatprep.subr.mxu0 0.0
    %5756 = vmatpush1.msra.mxu0 0.0
    %5757 = vmatprep.subr.mxu0 0.0
    %5758 = vmatpush1.msra.mxu0 0.0
    %5759 = vmatprep.subr.mxu0 0.0
    %5760 = vmatpush1.msra.mxu0 0.0
    %5761 = vmatprep.subr.mxu0 0.0
    %5762 = vmatpush1.msra.mxu0 0.0
    %5763 = vmatprep.subr.mxu0 0.0
    %5764 = vmatpush1.msra.mxu0 0.0
    %5765 = vmatprep.subr.mxu0 %v5300
    %5766 = vmatpush1.msra.mxu0 %v5299
    %5767 = vmatprep.subr.mxu0 %v5284
    %5768 = vmatpush1.msra.mxu0 %v5283
    %5769 = vmatprep.subr.mxu0 %v5268
    %5770 = vmatpush1.msra.mxu0 %v5267
    %5771 = vmatprep.subr.mxu0 %v5252
    %5772 = vmatpush1.msra.mxu0 %v5251
    %5773 = vmatprep.subr.mxu0 %v5236
    %5774 = vmatpush1.msra.mxu0 %v5235
    %5775 = vmatprep.subr.mxu0 %v5220
    %5776 = vmatpush1.msra.mxu0 %v5219
    %5777 = vmatprep.subr.mxu0 %v5204
    %5778 = vmatpush1.msra.mxu0 %v5203
    %5779 = vmatprep.subr.mxu0 %v5188
    %5780 = vmatpush1.msra.mxu0 %v5187
    %5781 = vmatprep.subr.mxu0 %v5172
    %5782 = vmatpush1.msra.mxu0 %v5171
    %5783 = vmatprep.subr.mxu0 %v5156
    %5784 = vmatpush1.msra.mxu0 %v5155
    %5785 = vmatprep.subr.mxu0 %v5140
    %5786 = vmatpush1.msra.mxu0 %v5139
    %5787 = vmatprep.subr.mxu0 0.0
    %5788 = vmatpush2.msra.mxu0 0.0
    %5789 = vmatprep.subr.mxu0 0.0
    %5790 = vmatpush2.msra.mxu0 0.0
    %5791 = vmatprep.subr.mxu0 0.0
    %5792 = vmatpush2.msra.mxu0 0.0
    %5793 = vmatprep.subr.mxu0 0.0
    %5794 = vmatpush2.msra.mxu0 0.0
    %5795 = vmatprep.subr.mxu0 0.0
    %5796 = vmatpush2.msra.mxu0 0.0
    %5797 = vmatprep.subr.mxu0 0.0
    %5798 = vmatpush2.msra.mxu0 0.0
    %5799 = vmatprep.subr.mxu0 0.0
    %5800 = vmatpush2.msra.mxu0 0.0
    %5801 = vmatprep.subr.mxu0 0.0
    %5802 = vmatpush2.msra.mxu0 0.0
    %5803 = vmatprep.subr.mxu0 0.0
    %5804 = vmatpush2.msra.mxu0 0.0
    %5805 = vmatprep.subr.mxu0 0.0
    %5806 = vmatpush2.msra.mxu0 0.0
    %5807 = vmatprep.subr.mxu0 0.0
    %5808 = vmatpush2.msra.mxu0 0.0
    %5809 = vmatprep.subr.mxu0 0.0
    %5810 = vmatpush2.msra.mxu0 0.0
    %5811 = vmatprep.subr.mxu0 0.0
    %5812 = vmatpush2.msra.mxu0 0.0
    %5813 = vmatprep.subr.mxu0 0.0
    %5814 = vmatpush2.msra.mxu0 0.0
    %5815 = vmatprep.subr.mxu0 0.0
    %5816 = vmatpush2.msra.mxu0 0.0
    %5817 = vmatprep.subr.mxu0 0.0
    %5818 = vmatpush2.msra.mxu0 0.0
    %5819 = vmatprep.mubr.f32.mxu0 0.0
    %5820 = vmatmul.mubr.f32.gmra.mxu0 %v5398
    %v5821 = vpop.f32.mrf.mxu0
    %v5822 = vadd.f32 %v5751, %v5821
    %v5823 = vpop.f32.mrf.mxu0
    %v5824 = vadd.f32 %v5753, %v5823
    %5825 = vdwg.mxu0
    %5826 = vmatprep.subr.mxu0 %v4358
    %5827 = vmatpush1.msra.mxu0 %v4357
    %5828 = vmatprep.subr.mxu0 %v4342
    %5829 = vmatpush1.msra.mxu0 %v4341
    %5830 = vmatprep.subr.mxu0 %v4326
    %5831 = vmatpush1.msra.mxu0 %v4325
    %5832 = vmatprep.subr.mxu0 %v4310
    %5833 = vmatpush1.msra.mxu0 %v4309
    %5834 = vmatprep.subr.mxu0 %v4294
    %5835 = vmatpush1.msra.mxu0 %v4293
    %5836 = vmatprep.subr.mxu0 %v4278
    %5837 = vmatpush1.msra.mxu0 %v4277
    %5838 = vmatprep.subr.mxu0 %v4262
    %5839 = vmatpush1.msra.mxu0 %v4261
    %5840 = vmatprep.subr.mxu0 %v4246
    %5841 = vmatpush1.msra.mxu0 %v4245
    %5842 = vmatprep.subr.mxu0 %v4230
    %5843 = vmatpush1.msra.mxu0 %v4229
    %5844 = vmatprep.subr.mxu0 %v4214
    %5845 = vmatpush1.msra.mxu0 %v4213
    %5846 = vmatprep.subr.mxu0 %v4198
    %5847 = vmatpush1.msra.mxu0 %v4197
    %5848 = vmatprep.subr.mxu0 %v4182
    %5849 = vmatpush1.msra.mxu0 %v4181
    %5850 = vmatprep.subr.mxu0 %v4166
    %5851 = vmatpush1.msra.mxu0 %v4165
    %5852 = vmatprep.subr.mxu0 %v4150
    %5853 = vmatpush1.msra.mxu0 %v4149
    %5854 = vmatprep.subr.mxu0 %v4134
    %5855 = vmatpush1.msra.mxu0 %v4133
    %5856 = vmatprep.subr.mxu0 %v4118
    %5857 = vmatpush1.msra.mxu0 %v4117
    %5858 = vmatprep.subr.mxu0 %v4614
    %5859 = vmatpush2.msra.mxu0 %v4613
    %5860 = vmatprep.subr.mxu0 %v4598
    %5861 = vmatpush2.msra.mxu0 %v4597
    %5862 = vmatprep.subr.mxu0 %v4582
    %5863 = vmatpush2.msra.mxu0 %v4581
    %5864 = vmatprep.subr.mxu0 %v4566
    %5865 = vmatpush2.msra.mxu0 %v4565
    %5866 = vmatprep.subr.mxu0 %v4550
    %5867 = vmatpush2.msra.mxu0 %v4549
    %5868 = vmatprep.subr.mxu0 %v4534
    %5869 = vmatpush2.msra.mxu0 %v4533
    %5870 = vmatprep.subr.mxu0 %v4518
    %5871 = vmatpush2.msra.mxu0 %v4517
    %5872 = vmatprep.subr.mxu0 %v4502
    %5873 = vmatpush2.msra.mxu0 %v4501
    %5874 = vmatprep.subr.mxu0 %v4486
    %5875 = vmatpush2.msra.mxu0 %v4485
    %5876 = vmatprep.subr.mxu0 %v4470
    %5877 = vmatpush2.msra.mxu0 %v4469
    %5878 = vmatprep.subr.mxu0 %v4454
    %5879 = vmatpush2.msra.mxu0 %v4453
    %5880 = vmatprep.subr.mxu0 %v4438
    %5881 = vmatpush2.msra.mxu0 %v4437
    %5882 = vmatprep.subr.mxu0 %v4422
    %5883 = vmatpush2.msra.mxu0 %v4421
    %5884 = vmatprep.subr.mxu0 %v4406
    %5885 = vmatpush2.msra.mxu0 %v4405
    %5886 = vmatprep.subr.mxu0 %v4390
    %5887 = vmatpush2.msra.mxu0 %v4389
    %5888 = vmatprep.subr.mxu0 %v4374
    %5889 = vmatpush2.msra.mxu0 %v4373
    %5890 = vmatprep.mubr.f32.mxu0 %v4109
    %5891 = vmatmul.mubr.f32.gmra.mxu0 %v4108
    %v5892 = vpop.f32.mrf.mxu0
    %v5893 = vadd.f32 %v5336, %v5892
    %v5894 = vpop.f32.mrf.mxu0
    %v5895 = vadd.f32 %v5340, %v5894
    %5896 = vdwg.mxu0
    %5897 = vmatprep.subr.mxu0 %v4870
    %5898 = vmatpush1.msra.mxu0 %v4869
    %5899 = vmatprep.subr.mxu0 %v4854
    %5900 = vmatpush1.msra.mxu0 %v4853
    %5901 = vmatprep.subr.mxu0 %v4838
    %5902 = vmatpush1.msra.mxu0 %v4837
    %5903 = vmatprep.subr.mxu0 %v4822
    %5904 = vmatpush1.msra.mxu0 %v4821
    %5905 = vmatprep.subr.mxu0 %v4806
    %5906 = vmatpush1.msra.mxu0 %v4805
    %5907 = vmatprep.subr.mxu0 %v4790
    %5908 = vmatpush1.msra.mxu0 %v4789
    %5909 = vmatprep.subr.mxu0 %v4774
    %5910 = vmatpush1.msra.mxu0 %v4773
    %5911 = vmatprep.subr.mxu0 %v4758
    %5912 = vmatpush1.msra.mxu0 %v4757
    %5913 = vmatprep.subr.mxu0 %v4742
    %5914 = vmatpush1.msra.mxu0 %v4741
    %5915 = vmatprep.subr.mxu0 %v4726
    %5916 = vmatpush1.msra.mxu0 %v4725
    %5917 = vmatprep.subr.mxu0 %v4710
    %5918 = vmatpush1.msra.mxu0 %v4709
    %5919 = vmatprep.subr.mxu0 %v4694
    %5920 = vmatpush1.msra.mxu0 %v4693
    %5921 = vmatprep.subr.mxu0 %v4678
    %5922 = vmatpush1.msra.mxu0 %v4677
    %5923 = vmatprep.subr.mxu0 %v4662
    %5924 = vmatpush1.msra.mxu0 %v4661
    %5925 = vmatprep.subr.mxu0 %v4646
    %5926 = vmatpush1.msra.mxu0 %v4645
    %5927 = vmatprep.subr.mxu0 %v4630
    %5928 = vmatpush1.msra.mxu0 %v4629
    %5929 = vmatprep.subr.mxu0 %v5126
    %5930 = vmatpush2.msra.mxu0 %v5125
    %5931 = vmatprep.subr.mxu0 %v5110
    %5932 = vmatpush2.msra.mxu0 %v5109
    %5933 = vmatprep.subr.mxu0 %v5094
    %5934 = vmatpush2.msra.mxu0 %v5093
    %5935 = vmatprep.subr.mxu0 %v5078
    %5936 = vmatpush2.msra.mxu0 %v5077
    %5937 = vmatprep.subr.mxu0 %v5062
    %5938 = vmatpush2.msra.mxu0 %v5061
    %5939 = vmatprep.subr.mxu0 %v5046
    %5940 = vmatpush2.msra.mxu0 %v5045
    %5941 = vmatprep.subr.mxu0 %v5030
    %5942 = vmatpush2.msra.mxu0 %v5029
    %5943 = vmatprep.subr.mxu0 %v5014
    %5944 = vmatpush2.msra.mxu0 %v5013
    %5945 = vmatprep.subr.mxu0 %v4998
    %5946 = vmatpush2.msra.mxu0 %v4997
    %5947 = vmatprep.subr.mxu0 %v4982
    %5948 = vmatpush2.msra.mxu0 %v4981
    %5949 = vmatprep.subr.mxu0 %v4966
    %5950 = vmatpush2.msra.mxu0 %v4965
    %5951 = vmatprep.subr.mxu0 %v4950
    %5952 = vmatpush2.msra.mxu0 %v4949
    %5953 = vmatprep.subr.mxu0 %v4934
    %5954 = vmatpush2.msra.mxu0 %v4933
    %5955 = vmatprep.subr.mxu0 %v4918
    %5956 = vmatpush2.msra.mxu0 %v4917
    %5957 = vmatprep.subr.mxu0 %v4902
    %5958 = vmatpush2.msra.mxu0 %v4901
    %5959 = vmatprep.subr.mxu0 %v4886
    %5960 = vmatpush2.msra.mxu0 %v4885
    %5961 = vmatprep.mubr.f32.mxu0 %v4111
    %5962 = vmatmul.mubr.f32.gmra.mxu0 %v4110
    %v5963 = vpop.f32.mrf.mxu0
    %v5964 = vadd.f32 %v5893, %v5963
    %v5965 = vpop.f32.mrf.mxu0
    %v5966 = vadd.f32 %v5895, %v5965
    %5967 = vdwg.mxu0
    %5968 = vmatprep.subr.mxu0 0.0
    %5969 = vmatpush1.msra.mxu0 0.0
    %5970 = vmatprep.subr.mxu0 0.0
    %5971 = vmatpush1.msra.mxu0 0.0
    %5972 = vmatprep.subr.mxu0 0.0
    %5973 = vmatpush1.msra.mxu0 0.0
    %5974 = vmatprep.subr.mxu0 0.0
    %5975 = vmatpush1.msra.mxu0 0.0
    %5976 = vmatprep.subr.mxu0 0.0
    %5977 = vmatpush1.msra.mxu0 0.0
    %5978 = vmatprep.subr.mxu0 %v5302
    %5979 = vmatpush1.msra.mxu0 %v5301
    %5980 = vmatprep.subr.mxu0 %v5286
    %5981 = vmatpush1.msra.mxu0 %v5285
    %5982 = vmatprep.subr.mxu0 %v5270
    %5983 = vmatpush1.msra.mxu0 %v5269
    %5984 = vmatprep.subr.mxu0 %v5254
    %5985 = vmatpush1.msra.mxu0 %v5253
    %5986 = vmatprep.subr.mxu0 %v5238
    %5987 = vmatpush1.msra.mxu0 %v5237
    %5988 = vmatprep.subr.mxu0 %v5222
    %5989 = vmatpush1.msra.mxu0 %v5221
    %5990 = vmatprep.subr.mxu0 %v5206
    %5991 = vmatpush1.msra.mxu0 %v5205
    %5992 = vmatprep.subr.mxu0 %v5190
    %5993 = vmatpush1.msra.mxu0 %v5189
    %5994 = vmatprep.subr.mxu0 %v5174
    %5995 = vmatpush1.msra.mxu0 %v5173
    %5996 = vmatprep.subr.mxu0 %v5158
    %5997 = vmatpush1.msra.mxu0 %v5157
    %5998 = vmatprep.subr.mxu0 %v5142
    %5999 = vmatpush1.msra.mxu0 %v5141
    %6000 = vmatprep.subr.mxu0 0.0
    %6001 = vmatpush2.msra.mxu0 0.0
    %6002 = vmatprep.subr.mxu0 0.0
    %6003 = vmatpush2.msra.mxu0 0.0
    %6004 = vmatprep.subr.mxu0 0.0
    %6005 = vmatpush2.msra.mxu0 0.0
    %6006 = vmatprep.subr.mxu0 0.0
    %6007 = vmatpush2.msra.mxu0 0.0
    %6008 = vmatprep.subr.mxu0 0.0
    %6009 = vmatpush2.msra.mxu0 0.0
    %6010 = vmatprep.subr.mxu0 0.0
    %6011 = vmatpush2.msra.mxu0 0.0
    %6012 = vmatprep.subr.mxu0 0.0
    %6013 = vmatpush2.msra.mxu0 0.0
    %6014 = vmatprep.subr.mxu0 0.0
    %6015 = vmatpush2.msra.mxu0 0.0
    %6016 = vmatprep.subr.mxu0 0.0
    %6017 = vmatpush2.msra.mxu0 0.0
    %6018 = vmatprep.subr.mxu0 0.0
    %6019 = vmatpush2.msra.mxu0 0.0
    %6020 = vmatprep.subr.mxu0 0.0
    %6021 = vmatpush2.msra.mxu0 0.0
    %6022 = vmatprep.subr.mxu0 0.0
    %6023 = vmatpush2.msra.mxu0 0.0
    %6024 = vmatprep.subr.mxu0 0.0
    %6025 = vmatpush2.msra.mxu0 0.0
    %6026 = vmatprep.subr.mxu0 0.0
    %6027 = vmatpush2.msra.mxu0 0.0
    %6028 = vmatprep.subr.mxu0 0.0
    %6029 = vmatpush2.msra.mxu0 0.0
    %6030 = vmatprep.subr.mxu0 0.0
    %6031 = vmatpush2.msra.mxu0 0.0
    %6032 = vmatprep.mubr.f32.mxu0 0.0
    %6033 = vmatmul.mubr.f32.gmra.mxu0 %v5398
    %v6034 = vpop.f32.mrf.mxu0
    %v6035 = vadd.f32 %v5964, %v6034
    %v6036 = vpop.f32.mrf.mxu0
    %v6037 = vadd.f32 %v5966, %v6036
    %6038 = vdwg.mxu0
    %6039 = vmatprep.subr.mxu0 %v4360
    %6040 = vmatpush1.msra.mxu0 %v4359
    %6041 = vmatprep.subr.mxu0 %v4344
    %6042 = vmatpush1.msra.mxu0 %v4343
    %6043 = vmatprep.subr.mxu0 %v4328
    %6044 = vmatpush1.msra.mxu0 %v4327
    %6045 = vmatprep.subr.mxu0 %v4312
    %6046 = vmatpush1.msra.mxu0 %v4311
    %6047 = vmatprep.subr.mxu0 %v4296
    %6048 = vmatpush1.msra.mxu0 %v4295
    %6049 = vmatprep.subr.mxu0 %v4280
    %6050 = vmatpush1.msra.mxu0 %v4279
    %6051 = vmatprep.subr.mxu0 %v4264
    %6052 = vmatpush1.msra.mxu0 %v4263
    %6053 = vmatprep.subr.mxu0 %v4248
    %6054 = vmatpush1.msra.mxu0 %v4247
    %6055 = vmatprep.subr.mxu0 %v4232
    %6056 = vmatpush1.msra.mxu0 %v4231
    %6057 = vmatprep.subr.mxu0 %v4216
    %6058 = vmatpush1.msra.mxu0 %v4215
    %6059 = vmatprep.subr.mxu0 %v4200
    %6060 = vmatpush1.msra.mxu0 %v4199
    %6061 = vmatprep.subr.mxu0 %v4184
    %6062 = vmatpush1.msra.mxu0 %v4183
    %6063 = vmatprep.subr.mxu0 %v4168
    %6064 = vmatpush1.msra.mxu0 %v4167
    %6065 = vmatprep.subr.mxu0 %v4152
    %6066 = vmatpush1.msra.mxu0 %v4151
    %6067 = vmatprep.subr.mxu0 %v4136
    %6068 = vmatpush1.msra.mxu0 %v4135
    %6069 = vmatprep.subr.mxu0 %v4120
    %6070 = vmatpush1.msra.mxu0 %v4119
    %6071 = vmatprep.subr.mxu0 %v4616
    %6072 = vmatpush2.msra.mxu0 %v4615
    %6073 = vmatprep.subr.mxu0 %v4600
    %6074 = vmatpush2.msra.mxu0 %v4599
    %6075 = vmatprep.subr.mxu0 %v4584
    %6076 = vmatpush2.msra.mxu0 %v4583
    %6077 = vmatprep.subr.mxu0 %v4568
    %6078 = vmatpush2.msra.mxu0 %v4567
    %6079 = vmatprep.subr.mxu0 %v4552
    %6080 = vmatpush2.msra.mxu0 %v4551
    %6081 = vmatprep.subr.mxu0 %v4536
    %6082 = vmatpush2.msra.mxu0 %v4535
    %6083 = vmatprep.subr.mxu0 %v4520
    %6084 = vmatpush2.msra.mxu0 %v4519
    %6085 = vmatprep.subr.mxu0 %v4504
    %6086 = vmatpush2.msra.mxu0 %v4503
    %6087 = vmatprep.subr.mxu0 %v4488
    %6088 = vmatpush2.msra.mxu0 %v4487
    %6089 = vmatprep.subr.mxu0 %v4472
    %6090 = vmatpush2.msra.mxu0 %v4471
    %6091 = vmatprep.subr.mxu0 %v4456
    %6092 = vmatpush2.msra.mxu0 %v4455
    %6093 = vmatprep.subr.mxu0 %v4440
    %6094 = vmatpush2.msra.mxu0 %v4439
    %6095 = vmatprep.subr.mxu0 %v4424
    %6096 = vmatpush2.msra.mxu0 %v4423
    %6097 = vmatprep.subr.mxu0 %v4408
    %6098 = vmatpush2.msra.mxu0 %v4407
    %6099 = vmatprep.subr.mxu0 %v4392
    %6100 = vmatpush2.msra.mxu0 %v4391
    %6101 = vmatprep.subr.mxu0 %v4376
    %6102 = vmatpush2.msra.mxu0 %v4375
    %6103 = vmatprep.mubr.f32.mxu0 %v4109
    %6104 = vmatmul.mubr.f32.gmra.mxu0 %v4108
    %v6105 = vpop.f32.mrf.mxu0
    %v6106 = vadd.f32 %v5344, %v6105
    %v6107 = vpop.f32.mrf.mxu0
    %v6108 = vadd.f32 %v5348, %v6107
    %6109 = vdwg.mxu0
    %6110 = vmatprep.subr.mxu0 %v4872
    %6111 = vmatpush1.msra.mxu0 %v4871
    %6112 = vmatprep.subr.mxu0 %v4856
    %6113 = vmatpush1.msra.mxu0 %v4855
    %6114 = vmatprep.subr.mxu0 %v4840
    %6115 = vmatpush1.msra.mxu0 %v4839
    %6116 = vmatprep.subr.mxu0 %v4824
    %6117 = vmatpush1.msra.mxu0 %v4823
    %6118 = vmatprep.subr.mxu0 %v4808
    %6119 = vmatpush1.msra.mxu0 %v4807
    %6120 = vmatprep.subr.mxu0 %v4792
    %6121 = vmatpush1.msra.mxu0 %v4791
    %6122 = vmatprep.subr.mxu0 %v4776
    %6123 = vmatpush1.msra.mxu0 %v4775
    %6124 = vmatprep.subr.mxu0 %v4760
    %6125 = vmatpush1.msra.mxu0 %v4759
    %6126 = vmatprep.subr.mxu0 %v4744
    %6127 = vmatpush1.msra.mxu0 %v4743
    %6128 = vmatprep.subr.mxu0 %v4728
    %6129 = vmatpush1.msra.mxu0 %v4727
    %6130 = vmatprep.subr.mxu0 %v4712
    %6131 = vmatpush1.msra.mxu0 %v4711
    %6132 = vmatprep.subr.mxu0 %v4696
    %6133 = vmatpush1.msra.mxu0 %v4695
    %6134 = vmatprep.subr.mxu0 %v4680
    %6135 = vmatpush1.msra.mxu0 %v4679
    %6136 = vmatprep.subr.mxu0 %v4664
    %6137 = vmatpush1.msra.mxu0 %v4663
    %6138 = vmatprep.subr.mxu0 %v4648
    %6139 = vmatpush1.msra.mxu0 %v4647
    %6140 = vmatprep.subr.mxu0 %v4632
    %6141 = vmatpush1.msra.mxu0 %v4631
    %6142 = vmatprep.subr.mxu0 %v5128
    %6143 = vmatpush2.msra.mxu0 %v5127
    %6144 = vmatprep.subr.mxu0 %v5112
    %6145 = vmatpush2.msra.mxu0 %v5111
    %6146 = vmatprep.subr.mxu0 %v5096
    %6147 = vmatpush2.msra.mxu0 %v5095
    %6148 = vmatprep.subr.mxu0 %v5080
    %6149 = vmatpush2.msra.mxu0 %v5079
    %6150 = vmatprep.subr.mxu0 %v5064
    %6151 = vmatpush2.msra.mxu0 %v5063
    %6152 = vmatprep.subr.mxu0 %v5048
    %6153 = vmatpush2.msra.mxu0 %v5047
    %6154 = vmatprep.subr.mxu0 %v5032
    %6155 = vmatpush2.msra.mxu0 %v5031
    %6156 = vmatprep.subr.mxu0 %v5016
    %6157 = vmatpush2.msra.mxu0 %v5015
    %6158 = vmatprep.subr.mxu0 %v5000
    %6159 = vmatpush2.msra.mxu0 %v4999
    %6160 = vmatprep.subr.mxu0 %v4984
    %6161 = vmatpush2.msra.mxu0 %v4983
    %6162 = vmatprep.subr.mxu0 %v4968
    %6163 = vmatpush2.msra.mxu0 %v4967
    %6164 = vmatprep.subr.mxu0 %v4952
    %6165 = vmatpush2.msra.mxu0 %v4951
    %6166 = vmatprep.subr.mxu0 %v4936
    %6167 = vmatpush2.msra.mxu0 %v4935
    %6168 = vmatprep.subr.mxu0 %v4920
    %6169 = vmatpush2.msra.mxu0 %v4919
    %6170 = vmatprep.subr.mxu0 %v4904
    %6171 = vmatpush2.msra.mxu0 %v4903
    %6172 = vmatprep.subr.mxu0 %v4888
    %6173 = vmatpush2.msra.mxu0 %v4887
    %6174 = vmatprep.mubr.f32.mxu0 %v4111
    %6175 = vmatmul.mubr.f32.gmra.mxu0 %v4110
    %v6176 = vpop.f32.mrf.mxu0
    %v6177 = vadd.f32 %v6106, %v6176
    %v6178 = vpop.f32.mrf.mxu0
    %v6179 = vadd.f32 %v6108, %v6178
    %6180 = vdwg.mxu0
    %6181 = vmatprep.subr.mxu0 0.0
    %6182 = vmatpush1.msra.mxu0 0.0
    %6183 = vmatprep.subr.mxu0 0.0
    %6184 = vmatpush1.msra.mxu0 0.0
    %6185 = vmatprep.subr.mxu0 0.0
    %6186 = vmatpush1.msra.mxu0 0.0
    %6187 = vmatprep.subr.mxu0 0.0
    %6188 = vmatpush1.msra.mxu0 0.0
    %6189 = vmatprep.subr.mxu0 0.0
    %6190 = vmatpush1.msra.mxu0 0.0
    %6191 = vmatprep.subr.mxu0 %v5304
    %6192 = vmatpush1.msra.mxu0 %v5303
    %6193 = vmatprep.subr.mxu0 %v5288
    %6194 = vmatpush1.msra.mxu0 %v5287
    %6195 = vmatprep.subr.mxu0 %v5272
    %6196 = vmatpush1.msra.mxu0 %v5271
    %6197 = vmatprep.subr.mxu0 %v5256
    %6198 = vmatpush1.msra.mxu0 %v5255
    %6199 = vmatprep.subr.mxu0 %v5240
    %6200 = vmatpush1.msra.mxu0 %v5239
    %6201 = vmatprep.subr.mxu0 %v5224
    %6202 = vmatpush1.msra.mxu0 %v5223
    %6203 = vmatprep.subr.mxu0 %v5208
    %6204 = vmatpush1.msra.mxu0 %v5207
    %6205 = vmatprep.subr.mxu0 %v5192
    %6206 = vmatpush1.msra.mxu0 %v5191
    %6207 = vmatprep.subr.mxu0 %v5176
    %6208 = vmatpush1.msra.mxu0 %v5175
    %6209 = vmatprep.subr.mxu0 %v5160
    %6210 = vmatpush1.msra.mxu0 %v5159
    %6211 = vmatprep.subr.mxu0 %v5144
    %6212 = vmatpush1.msra.mxu0 %v5143
    %6213 = vmatprep.subr.mxu0 0.0
    %6214 = vmatpush2.msra.mxu0 0.0
    %6215 = vmatprep.subr.mxu0 0.0
    %6216 = vmatpush2.msra.mxu0 0.0
    %6217 = vmatprep.subr.mxu0 0.0
    %6218 = vmatpush2.msra.mxu0 0.0
    %6219 = vmatprep.subr.mxu0 0.0
    %6220 = vmatpush2.msra.mxu0 0.0
    %6221 = vmatprep.subr.mxu0 0.0
    %6222 = vmatpush2.msra.mxu0 0.0
    %6223 = vmatprep.subr.mxu0 0.0
    %6224 = vmatpush2.msra.mxu0 0.0
    %6225 = vmatprep.subr.mxu0 0.0
    %6226 = vmatpush2.msra.mxu0 0.0
    %6227 = vmatprep.subr.mxu0 0.0
    %6228 = vmatpush2.msra.mxu0 0.0
    %6229 = vmatprep.subr.mxu0 0.0
    %6230 = vmatpush2.msra.mxu0 0.0
    %6231 = vmatprep.subr.mxu0 0.0
    %6232 = vmatpush2.msra.mxu0 0.0
    %6233 = vmatprep.subr.mxu0 0.0
    %6234 = vmatpush2.msra.mxu0 0.0
    %6235 = vmatprep.subr.mxu0 0.0
    %6236 = vmatpush2.msra.mxu0 0.0
    %6237 = vmatprep.subr.mxu0 0.0
    %6238 = vmatpush2.msra.mxu0 0.0
    %6239 = vmatprep.subr.mxu0 0.0
    %6240 = vmatpush2.msra.mxu0 0.0
    %6241 = vmatprep.subr.mxu0 0.0
    %6242 = vmatpush2.msra.mxu0 0.0
    %6243 = vmatprep.subr.mxu0 0.0
    %6244 = vmatpush2.msra.mxu0 0.0
    %6245 = vmatprep.mubr.f32.mxu0 0.0
    %6246 = vmatmul.mubr.f32.gmra.mxu0 %v5398
    %v6247 = vpop.f32.mrf.mxu0
    %v6248 = vadd.f32 %v6177, %v6247
    %v6249 = vpop.f32.mrf.mxu0
    %v6250 = vadd.f32 %v6179, %v6249
    %6251 = vdwg.mxu0
    %6252 = vmatprep.subr.mxu0 %v4362
    %6253 = vmatpush1.msra.mxu0 %v4361
    %6254 = vmatprep.subr.mxu0 %v4346
    %6255 = vmatpush1.msra.mxu0 %v4345
    %6256 = vmatprep.subr.mxu0 %v4330
    %6257 = vmatpush1.msra.mxu0 %v4329
    %6258 = vmatprep.subr.mxu0 %v4314
    %6259 = vmatpush1.msra.mxu0 %v4313
    %6260 = vmatprep.subr.mxu0 %v4298
    %6261 = vmatpush1.msra.mxu0 %v4297
    %6262 = vmatprep.subr.mxu0 %v4282
    %6263 = vmatpush1.msra.mxu0 %v4281
    %6264 = vmatprep.subr.mxu0 %v4266
    %6265 = vmatpush1.msra.mxu0 %v4265
    %6266 = vmatprep.subr.mxu0 %v4250
    %6267 = vmatpush1.msra.mxu0 %v4249
    %6268 = vmatprep.subr.mxu0 %v4234
    %6269 = vmatpush1.msra.mxu0 %v4233
    %6270 = vmatprep.subr.mxu0 %v4218
    %6271 = vmatpush1.msra.mxu0 %v4217
    %6272 = vmatprep.subr.mxu0 %v4202
    %6273 = vmatpush1.msra.mxu0 %v4201
    %6274 = vmatprep.subr.mxu0 %v4186
    %6275 = vmatpush1.msra.mxu0 %v4185
    %6276 = vmatprep.subr.mxu0 %v4170
    %6277 = vmatpush1.msra.mxu0 %v4169
    %6278 = vmatprep.subr.mxu0 %v4154
    %6279 = vmatpush1.msra.mxu0 %v4153
    %6280 = vmatprep.subr.mxu0 %v4138
    %6281 = vmatpush1.msra.mxu0 %v4137
    %6282 = vmatprep.subr.mxu0 %v4122
    %6283 = vmatpush1.msra.mxu0 %v4121
    %6284 = vmatprep.subr.mxu0 %v4618
    %6285 = vmatpush2.msra.mxu0 %v4617
    %6286 = vmatprep.subr.mxu0 %v4602
    %6287 = vmatpush2.msra.mxu0 %v4601
    %6288 = vmatprep.subr.mxu0 %v4586
    %6289 = vmatpush2.msra.mxu0 %v4585
    %6290 = vmatprep.subr.mxu0 %v4570
    %6291 = vmatpush2.msra.mxu0 %v4569
    %6292 = vmatprep.subr.mxu0 %v4554
    %6293 = vmatpush2.msra.mxu0 %v4553
    %6294 = vmatprep.subr.mxu0 %v4538
    %6295 = vmatpush2.msra.mxu0 %v4537
    %6296 = vmatprep.subr.mxu0 %v4522
    %6297 = vmatpush2.msra.mxu0 %v4521
    %6298 = vmatprep.subr.mxu0 %v4506
    %6299 = vmatpush2.msra.mxu0 %v4505
    %6300 = vmatprep.subr.mxu0 %v4490
    %6301 = vmatpush2.msra.mxu0 %v4489
    %6302 = vmatprep.subr.mxu0 %v4474
    %6303 = vmatpush2.msra.mxu0 %v4473
    %6304 = vmatprep.subr.mxu0 %v4458
    %6305 = vmatpush2.msra.mxu0 %v4457
    %6306 = vmatprep.subr.mxu0 %v4442
    %6307 = vmatpush2.msra.mxu0 %v4441
    %6308 = vmatprep.subr.mxu0 %v4426
    %6309 = vmatpush2.msra.mxu0 %v4425
    %6310 = vmatprep.subr.mxu0 %v4410
    %6311 = vmatpush2.msra.mxu0 %v4409
    %6312 = vmatprep.subr.mxu0 %v4394
    %6313 = vmatpush2.msra.mxu0 %v4393
    %6314 = vmatprep.subr.mxu0 %v4378
    %6315 = vmatpush2.msra.mxu0 %v4377
    %6316 = vmatprep.mubr.f32.mxu0 %v4109
    %6317 = vmatmul.mubr.f32.gmra.mxu0 %v4108
    %v6318 = vpop.f32.mrf.mxu0
    %v6319 = vadd.f32 %v5352, %v6318
    %v6320 = vpop.f32.mrf.mxu0
    %v6321 = vadd.f32 %v5356, %v6320
    %6322 = vdwg.mxu0
    %6323 = vmatprep.subr.mxu0 %v4874
    %6324 = vmatpush1.msra.mxu0 %v4873
    %6325 = vmatprep.subr.mxu0 %v4858
    %6326 = vmatpush1.msra.mxu0 %v4857
    %6327 = vmatprep.subr.mxu0 %v4842
    %6328 = vmatpush1.msra.mxu0 %v4841
    %6329 = vmatprep.subr.mxu0 %v4826
    %6330 = vmatpush1.msra.mxu0 %v4825
    %6331 = vmatprep.subr.mxu0 %v4810
    %6332 = vmatpush1.msra.mxu0 %v4809
    %6333 = vmatprep.subr.mxu0 %v4794
    %6334 = vmatpush1.msra.mxu0 %v4793
    %6335 = vmatprep.subr.mxu0 %v4778
    %6336 = vmatpush1.msra.mxu0 %v4777
    %6337 = vmatprep.subr.mxu0 %v4762
    %6338 = vmatpush1.msra.mxu0 %v4761
    %6339 = vmatprep.subr.mxu0 %v4746
    %6340 = vmatpush1.msra.mxu0 %v4745
    %6341 = vmatprep.subr.mxu0 %v4730
    %6342 = vmatpush1.msra.mxu0 %v4729
    %6343 = vmatprep.subr.mxu0 %v4714
    %6344 = vmatpush1.msra.mxu0 %v4713
    %6345 = vmatprep.subr.mxu0 %v4698
    %6346 = vmatpush1.msra.mxu0 %v4697
    %6347 = vmatprep.subr.mxu0 %v4682
    %6348 = vmatpush1.msra.mxu0 %v4681
    %6349 = vmatprep.subr.mxu0 %v4666
    %6350 = vmatpush1.msra.mxu0 %v4665
    %6351 = vmatprep.subr.mxu0 %v4650
    %6352 = vmatpush1.msra.mxu0 %v4649
    %6353 = vmatprep.subr.mxu0 %v4634
    %6354 = vmatpush1.msra.mxu0 %v4633
    %6355 = vmatprep.subr.mxu0 %v5130
    %6356 = vmatpush2.msra.mxu0 %v5129
    %6357 = vmatprep.subr.mxu0 %v5114
    %6358 = vmatpush2.msra.mxu0 %v5113
    %6359 = vmatprep.subr.mxu0 %v5098
    %6360 = vmatpush2.msra.mxu0 %v5097
    %6361 = vmatprep.subr.mxu0 %v5082
    %6362 = vmatpush2.msra.mxu0 %v5081
    %6363 = vmatprep.subr.mxu0 %v5066
    %6364 = vmatpush2.msra.mxu0 %v5065
    %6365 = vmatprep.subr.mxu0 %v5050
    %6366 = vmatpush2.msra.mxu0 %v5049
    %6367 = vmatprep.subr.mxu0 %v5034
    %6368 = vmatpush2.msra.mxu0 %v5033
    %6369 = vmatprep.subr.mxu0 %v5018
    %6370 = vmatpush2.msra.mxu0 %v5017
    %6371 = vmatprep.subr.mxu0 %v5002
    %6372 = vmatpush2.msra.mxu0 %v5001
    %6373 = vmatprep.subr.mxu0 %v4986
    %6374 = vmatpush2.msra.mxu0 %v4985
    %6375 = vmatprep.subr.mxu0 %v4970
    %6376 = vmatpush2.msra.mxu0 %v4969
    %6377 = vmatprep.subr.mxu0 %v4954
    %6378 = vmatpush2.msra.mxu0 %v4953
    %6379 = vmatprep.subr.mxu0 %v4938
    %6380 = vmatpush2.msra.mxu0 %v4937
    %6381 = vmatprep.subr.mxu0 %v4922
    %6382 = vmatpush2.msra.mxu0 %v4921
    %6383 = vmatprep.subr.mxu0 %v4906
    %6384 = vmatpush2.msra.mxu0 %v4905
    %6385 = vmatprep.subr.mxu0 %v4890
    %6386 = vmatpush2.msra.mxu0 %v4889
    %6387 = vmatprep.mubr.f32.mxu0 %v4111
    %6388 = vmatmul.mubr.f32.gmra.mxu0 %v4110
    %v6389 = vpop.f32.mrf.mxu0
    %v6390 = vadd.f32 %v6319, %v6389
    %v6391 = vpop.f32.mrf.mxu0
    %v6392 = vadd.f32 %v6321, %v6391
    %6393 = vdwg.mxu0
    %6394 = vmatprep.subr.mxu0 0.0
    %6395 = vmatpush1.msra.mxu0 0.0
    %6396 = vmatprep.subr.mxu0 0.0
    %6397 = vmatpush1.msra.mxu0 0.0
    %6398 = vmatprep.subr.mxu0 0.0
    %6399 = vmatpush1.msra.mxu0 0.0
    %6400 = vmatprep.subr.mxu0 0.0
    %6401 = vmatpush1.msra.mxu0 0.0
    %6402 = vmatprep.subr.mxu0 0.0
    %6403 = vmatpush1.msra.mxu0 0.0
    %6404 = vmatprep.subr.mxu0 %v5306
    %6405 = vmatpush1.msra.mxu0 %v5305
    %6406 = vmatprep.subr.mxu0 %v5290
    %6407 = vmatpush1.msra.mxu0 %v5289
    %6408 = vmatprep.subr.mxu0 %v5274
    %6409 = vmatpush1.msra.mxu0 %v5273
    %6410 = vmatprep.subr.mxu0 %v5258
    %6411 = vmatpush1.msra.mxu0 %v5257
    %6412 = vmatprep.subr.mxu0 %v5242
    %6413 = vmatpush1.msra.mxu0 %v5241
    %6414 = vmatprep.subr.mxu0 %v5226
    %6415 = vmatpush1.msra.mxu0 %v5225
    %6416 = vmatprep.subr.mxu0 %v5210
    %6417 = vmatpush1.msra.mxu0 %v5209
    %6418 = vmatprep.subr.mxu0 %v5194
    %6419 = vmatpush1.msra.mxu0 %v5193
    %6420 = vmatprep.subr.mxu0 %v5178
    %6421 = vmatpush1.msra.mxu0 %v5177
    %6422 = vmatprep.subr.mxu0 %v5162
    %6423 = vmatpush1.msra.mxu0 %v5161
    %6424 = vmatprep.subr.mxu0 %v5146
    %6425 = vmatpush1.msra.mxu0 %v5145
    %6426 = vmatprep.subr.mxu0 0.0
    %6427 = vmatpush2.msra.mxu0 0.0
    %6428 = vmatprep.subr.mxu0 0.0
    %6429 = vmatpush2.msra.mxu0 0.0
    %6430 = vmatprep.subr.mxu0 0.0
    %6431 = vmatpush2.msra.mxu0 0.0
    %6432 = vmatprep.subr.mxu0 0.0
    %6433 = vmatpush2.msra.mxu0 0.0
    %6434 = vmatprep.subr.mxu0 0.0
    %6435 = vmatpush2.msra.mxu0 0.0
    %6436 = vmatprep.subr.mxu0 0.0
    %6437 = vmatpush2.msra.mxu0 0.0
    %6438 = vmatprep.subr.mxu0 0.0
    %6439 = vmatpush2.msra.mxu0 0.0
    %6440 = vmatprep.subr.mxu0 0.0
    %6441 = vmatpush2.msra.mxu0 0.0
    %6442 = vmatprep.subr.mxu0 0.0
    %6443 = vmatpush2.msra.mxu0 0.0
    %6444 = vmatprep.subr.mxu0 0.0
    %6445 = vmatpush2.msra.mxu0 0.0
    %6446 = vmatprep.subr.mxu0 0.0
    %6447 = vmatpush2.msra.mxu0 0.0
    %6448 = vmatprep.subr.mxu0 0.0
    %6449 = vmatpush2.msra.mxu0 0.0
    %6450 = vmatprep.subr.mxu0 0.0
    %6451 = vmatpush2.msra.mxu0 0.0
    %6452 = vmatprep.subr.mxu0 0.0
    %6453 = vmatpush2.msra.mxu0 0.0
    %6454 = vmatprep.subr.mxu0 0.0
    %6455 = vmatpush2.msra.mxu0 0.0
    %6456 = vmatprep.subr.mxu0 0.0
    %6457 = vmatpush2.msra.mxu0 0.0
    %6458 = vmatprep.mubr.f32.mxu0 0.0
    %6459 = vmatmul.mubr.f32.gmra.mxu0 %v5398
    %v6460 = vpop.f32.mrf.mxu0
    %v6461 = vadd.f32 %v6390, %v6460
    %v6462 = vpop.f32.mrf.mxu0
    %v6463 = vadd.f32 %v6392, %v6462
    %6464 = vdwg.mxu0
    %6465 = vmatprep.subr.mxu0 %v4364
    %6466 = vmatpush1.msra.mxu0 %v4363
    %6467 = vmatprep.subr.mxu0 %v4348
    %6468 = vmatpush1.msra.mxu0 %v4347
    %6469 = vmatprep.subr.mxu0 %v4332
    %6470 = vmatpush1.msra.mxu0 %v4331
    %6471 = vmatprep.subr.mxu0 %v4316
    %6472 = vmatpush1.msra.mxu0 %v4315
    %6473 = vmatprep.subr.mxu0 %v4300
    %6474 = vmatpush1.msra.mxu0 %v4299
    %6475 = vmatprep.subr.mxu0 %v4284
    %6476 = vmatpush1.msra.mxu0 %v4283
    %6477 = vmatprep.subr.mxu0 %v4268
    %6478 = vmatpush1.msra.mxu0 %v4267
    %6479 = vmatprep.subr.mxu0 %v4252
    %6480 = vmatpush1.msra.mxu0 %v4251
    %6481 = vmatprep.subr.mxu0 %v4236
    %6482 = vmatpush1.msra.mxu0 %v4235
    %6483 = vmatprep.subr.mxu0 %v4220
    %6484 = vmatpush1.msra.mxu0 %v4219
    %6485 = vmatprep.subr.mxu0 %v4204
    %6486 = vmatpush1.msra.mxu0 %v4203
    %6487 = vmatprep.subr.mxu0 %v4188
    %6488 = vmatpush1.msra.mxu0 %v4187
    %6489 = vmatprep.subr.mxu0 %v4172
    %6490 = vmatpush1.msra.mxu0 %v4171
    %6491 = vmatprep.subr.mxu0 %v4156
    %6492 = vmatpush1.msra.mxu0 %v4155
    %6493 = vmatprep.subr.mxu0 %v4140
    %6494 = vmatpush1.msra.mxu0 %v4139
    %6495 = vmatprep.subr.mxu0 %v4124
    %6496 = vmatpush1.msra.mxu0 %v4123
    %6497 = vmatprep.subr.mxu0 %v4620
    %6498 = vmatpush2.msra.mxu0 %v4619
    %6499 = vmatprep.subr.mxu0 %v4604
    %6500 = vmatpush2.msra.mxu0 %v4603
    %6501 = vmatprep.subr.mxu0 %v4588
    %6502 = vmatpush2.msra.mxu0 %v4587
    %6503 = vmatprep.subr.mxu0 %v4572
    %6504 = vmatpush2.msra.mxu0 %v4571
    %6505 = vmatprep.subr.mxu0 %v4556
    %6506 = vmatpush2.msra.mxu0 %v4555
    %6507 = vmatprep.subr.mxu0 %v4540
    %6508 = vmatpush2.msra.mxu0 %v4539
    %6509 = vmatprep.subr.mxu0 %v4524
    %6510 = vmatpush2.msra.mxu0 %v4523
    %6511 = vmatprep.subr.mxu0 %v4508
    %6512 = vmatpush2.msra.mxu0 %v4507
    %6513 = vmatprep.subr.mxu0 %v4492
    %6514 = vmatpush2.msra.mxu0 %v4491
    %6515 = vmatprep.subr.mxu0 %v4476
    %6516 = vmatpush2.msra.mxu0 %v4475
    %6517 = vmatprep.subr.mxu0 %v4460
    %6518 = vmatpush2.msra.mxu0 %v4459
    %6519 = vmatprep.subr.mxu0 %v4444
    %6520 = vmatpush2.msra.mxu0 %v4443
    %6521 = vmatprep.subr.mxu0 %v4428
    %6522 = vmatpush2.msra.mxu0 %v4427
    %6523 = vmatprep.subr.mxu0 %v4412
    %6524 = vmatpush2.msra.mxu0 %v4411
    %6525 = vmatprep.subr.mxu0 %v4396
    %6526 = vmatpush2.msra.mxu0 %v4395
    %6527 = vmatprep.subr.mxu0 %v4380
    %6528 = vmatpush2.msra.mxu0 %v4379
    %6529 = vmatprep.mubr.f32.mxu0 %v4109
    %6530 = vmatmul.mubr.f32.gmra.mxu0 %v4108
    %v6531 = vpop.f32.mrf.mxu0
    %v6532 = vadd.f32 %v5360, %v6531
    %v6533 = vpop.f32.mrf.mxu0
    %v6534 = vadd.f32 %v5364, %v6533
    %6535 = vdwg.mxu0
    %6536 = vmatprep.subr.mxu0 %v4876
    %6537 = vmatpush1.msra.mxu0 %v4875
    %6538 = vmatprep.subr.mxu0 %v4860
    %6539 = vmatpush1.msra.mxu0 %v4859
    %6540 = vmatprep.subr.mxu0 %v4844
    %6541 = vmatpush1.msra.mxu0 %v4843
    %6542 = vmatprep.subr.mxu0 %v4828
    %6543 = vmatpush1.msra.mxu0 %v4827
    %6544 = vmatprep.subr.mxu0 %v4812
    %6545 = vmatpush1.msra.mxu0 %v4811
    %6546 = vmatprep.subr.mxu0 %v4796
    %6547 = vmatpush1.msra.mxu0 %v4795
    %6548 = vmatprep.subr.mxu0 %v4780
    %6549 = vmatpush1.msra.mxu0 %v4779
    %6550 = vmatprep.subr.mxu0 %v4764
    %6551 = vmatpush1.msra.mxu0 %v4763
    %6552 = vmatprep.subr.mxu0 %v4748
    %6553 = vmatpush1.msra.mxu0 %v4747
    %6554 = vmatprep.subr.mxu0 %v4732
    %6555 = vmatpush1.msra.mxu0 %v4731
    %6556 = vmatprep.subr.mxu0 %v4716
    %6557 = vmatpush1.msra.mxu0 %v4715
    %6558 = vmatprep.subr.mxu0 %v4700
    %6559 = vmatpush1.msra.mxu0 %v4699
    %6560 = vmatprep.subr.mxu0 %v4684
    %6561 = vmatpush1.msra.mxu0 %v4683
    %6562 = vmatprep.subr.mxu0 %v4668
    %6563 = vmatpush1.msra.mxu0 %v4667
    %6564 = vmatprep.subr.mxu0 %v4652
    %6565 = vmatpush1.msra.mxu0 %v4651
    %6566 = vmatprep.subr.mxu0 %v4636
    %6567 = vmatpush1.msra.mxu0 %v4635
    %6568 = vmatprep.subr.mxu0 %v5132
    %6569 = vmatpush2.msra.mxu0 %v5131
    %6570 = vmatprep.subr.mxu0 %v5116
    %6571 = vmatpush2.msra.mxu0 %v5115
    %6572 = vmatprep.subr.mxu0 %v5100
    %6573 = vmatpush2.msra.mxu0 %v5099
    %6574 = vmatprep.subr.mxu0 %v5084
    %6575 = vmatpush2.msra.mxu0 %v5083
    %6576 = vmatprep.subr.mxu0 %v5068
    %6577 = vmatpush2.msra.mxu0 %v5067
    %6578 = vmatprep.subr.mxu0 %v5052
    %6579 = vmatpush2.msra.mxu0 %v5051
    %6580 = vmatprep.subr.mxu0 %v5036
    %6581 = vmatpush2.msra.mxu0 %v5035
    %6582 = vmatprep.subr.mxu0 %v5020
    %6583 = vmatpush2.msra.mxu0 %v5019
    %6584 = vmatprep.subr.mxu0 %v5004
    %6585 = vmatpush2.msra.mxu0 %v5003
    %6586 = vmatprep.subr.mxu0 %v4988
    %6587 = vmatpush2.msra.mxu0 %v4987
    %6588 = vmatprep.subr.mxu0 %v4972
    %6589 = vmatpush2.msra.mxu0 %v4971
    %6590 = vmatprep.subr.mxu0 %v4956
    %6591 = vmatpush2.msra.mxu0 %v4955
    %6592 = vmatprep.subr.mxu0 %v4940
    %6593 = vmatpush2.msra.mxu0 %v4939
    %6594 = vmatprep.subr.mxu0 %v4924
    %6595 = vmatpush2.msra.mxu0 %v4923
    %6596 = vmatprep.subr.mxu0 %v4908
    %6597 = vmatpush2.msra.mxu0 %v4907
    %6598 = vmatprep.subr.mxu0 %v4892
    %6599 = vmatpush2.msra.mxu0 %v4891
    %6600 = vmatprep.mubr.f32.mxu0 %v4111
    %6601 = vmatmul.mubr.f32.gmra.mxu0 %v4110
    %v6602 = vpop.f32.mrf.mxu0
    %v6603 = vadd.f32 %v6532, %v6602
    %v6604 = vpop.f32.mrf.mxu0
    %v6605 = vadd.f32 %v6534, %v6604
    %6606 = vdwg.mxu0
    %6607 = vmatprep.subr.mxu0 0.0
    %6608 = vmatpush1.msra.mxu0 0.0
    %6609 = vmatprep.subr.mxu0 0.0
    %6610 = vmatpush1.msra.mxu0 0.0
    %6611 = vmatprep.subr.mxu0 0.0
    %6612 = vmatpush1.msra.mxu0 0.0
    %6613 = vmatprep.subr.mxu0 0.0
    %6614 = vmatpush1.msra.mxu0 0.0
    %6615 = vmatprep.subr.mxu0 0.0
    %6616 = vmatpush1.msra.mxu0 0.0
    %6617 = vmatprep.subr.mxu0 %v5308
    %6618 = vmatpush1.msra.mxu0 %v5307
    %6619 = vmatprep.subr.mxu0 %v5292
    %6620 = vmatpush1.msra.mxu0 %v5291
    %6621 = vmatprep.subr.mxu0 %v5276
    %6622 = vmatpush1.msra.mxu0 %v5275
    %6623 = vmatprep.subr.mxu0 %v5260
    %6624 = vmatpush1.msra.mxu0 %v5259
    %6625 = vmatprep.subr.mxu0 %v5244
    %6626 = vmatpush1.msra.mxu0 %v5243
    %6627 = vmatprep.subr.mxu0 %v5228
    %6628 = vmatpush1.msra.mxu0 %v5227
    %6629 = vmatprep.subr.mxu0 %v5212
    %6630 = vmatpush1.msra.mxu0 %v5211
    %6631 = vmatprep.subr.mxu0 %v5196
    %6632 = vmatpush1.msra.mxu0 %v5195
    %6633 = vmatprep.subr.mxu0 %v5180
    %6634 = vmatpush1.msra.mxu0 %v5179
    %6635 = vmatprep.subr.mxu0 %v5164
    %6636 = vmatpush1.msra.mxu0 %v5163
    %6637 = vmatprep.subr.mxu0 %v5148
    %6638 = vmatpush1.msra.mxu0 %v5147
    %6639 = vmatprep.subr.mxu0 0.0
    %6640 = vmatpush2.msra.mxu0 0.0
    %6641 = vmatprep.subr.mxu0 0.0
    %6642 = vmatpush2.msra.mxu0 0.0
    %6643 = vmatprep.subr.mxu0 0.0
    %6644 = vmatpush2.msra.mxu0 0.0
    %6645 = vmatprep.subr.mxu0 0.0
    %6646 = vmatpush2.msra.mxu0 0.0
    %6647 = vmatprep.subr.mxu0 0.0
    %6648 = vmatpush2.msra.mxu0 0.0
    %6649 = vmatprep.subr.mxu0 0.0
    %6650 = vmatpush2.msra.mxu0 0.0
    %6651 = vmatprep.subr.mxu0 0.0
    %6652 = vmatpush2.msra.mxu0 0.0
    %6653 = vmatprep.subr.mxu0 0.0
    %6654 = vmatpush2.msra.mxu0 0.0
    %6655 = vmatprep.subr.mxu0 0.0
    %6656 = vmatpush2.msra.mxu0 0.0
    %6657 = vmatprep.subr.mxu0 0.0
    %6658 = vmatpush2.msra.mxu0 0.0
    %6659 = vmatprep.subr.mxu0 0.0
    %6660 = vmatpush2.msra.mxu0 0.0
    %6661 = vmatprep.subr.mxu0 0.0
    %6662 = vmatpush2.msra.mxu0 0.0
    %6663 = vmatprep.subr.mxu0 0.0
    %6664 = vmatpush2.msra.mxu0 0.0
    %6665 = vmatprep.subr.mxu0 0.0
    %6666 = vmatpush2.msra.mxu0 0.0
    %6667 = vmatprep.subr.mxu0 0.0
    %6668 = vmatpush2.msra.mxu0 0.0
    %6669 = vmatprep.subr.mxu0 0.0
    %6670 = vmatpush2.msra.mxu0 0.0
    %6671 = vmatprep.mubr.f32.mxu0 0.0
    %6672 = vmatmul.mubr.f32.gmra.mxu0 %v5398
    %v6673 = vpop.f32.mrf.mxu0
    %v6674 = vadd.f32 %v6603, %v6673
    %v6675 = vpop.f32.mrf.mxu0
    %v6676 = vadd.f32 %v6605, %v6675
    %6677 = vdwg.mxu0
    %6678 = vmatprep.subr.mxu0 %v4366
    %6679 = vmatpush1.msra.mxu0 %v4365
    %6680 = vmatprep.subr.mxu0 %v4350
    %6681 = vmatpush1.msra.mxu0 %v4349
    %6682 = vmatprep.subr.mxu0 %v4334
    %6683 = vmatpush1.msra.mxu0 %v4333
    %6684 = vmatprep.subr.mxu0 %v4318
    %6685 = vmatpush1.msra.mxu0 %v4317
    %6686 = vmatprep.subr.mxu0 %v4302
    %6687 = vmatpush1.msra.mxu0 %v4301
    %6688 = vmatprep.subr.mxu0 %v4286
    %6689 = vmatpush1.msra.mxu0 %v4285
    %6690 = vmatprep.subr.mxu0 %v4270
    %6691 = vmatpush1.msra.mxu0 %v4269
    %6692 = vmatprep.subr.mxu0 %v4254
    %6693 = vmatpush1.msra.mxu0 %v4253
    %6694 = vmatprep.subr.mxu0 %v4238
    %6695 = vmatpush1.msra.mxu0 %v4237
    %6696 = vmatprep.subr.mxu0 %v4222
    %6697 = vmatpush1.msra.mxu0 %v4221
    %6698 = vmatprep.subr.mxu0 %v4206
    %6699 = vmatpush1.msra.mxu0 %v4205
    %6700 = vmatprep.subr.mxu0 %v4190
    %6701 = vmatpush1.msra.mxu0 %v4189
    %6702 = vmatprep.subr.mxu0 %v4174
    %6703 = vmatpush1.msra.mxu0 %v4173
    %6704 = vmatprep.subr.mxu0 %v4158
    %6705 = vmatpush1.msra.mxu0 %v4157
    %6706 = vmatprep.subr.mxu0 %v4142
    %6707 = vmatpush1.msra.mxu0 %v4141
    %6708 = vmatprep.subr.mxu0 %v4126
    %6709 = vmatpush1.msra.mxu0 %v4125
    %6710 = vmatprep.subr.mxu0 %v4622
    %6711 = vmatpush2.msra.mxu0 %v4621
    %6712 = vmatprep.subr.mxu0 %v4606
    %6713 = vmatpush2.msra.mxu0 %v4605
    %6714 = vmatprep.subr.mxu0 %v4590
    %6715 = vmatpush2.msra.mxu0 %v4589
    %6716 = vmatprep.subr.mxu0 %v4574
    %6717 = vmatpush2.msra.mxu0 %v4573
    %6718 = vmatprep.subr.mxu0 %v4558
    %6719 = vmatpush2.msra.mxu0 %v4557
    %6720 = vmatprep.subr.mxu0 %v4542
    %6721 = vmatpush2.msra.mxu0 %v4541
    %6722 = vmatprep.subr.mxu0 %v4526
    %6723 = vmatpush2.msra.mxu0 %v4525
    %6724 = vmatprep.subr.mxu0 %v4510
    %6725 = vmatpush2.msra.mxu0 %v4509
    %6726 = vmatprep.subr.mxu0 %v4494
    %6727 = vmatpush2.msra.mxu0 %v4493
    %6728 = vmatprep.subr.mxu0 %v4478
    %6729 = vmatpush2.msra.mxu0 %v4477
    %6730 = vmatprep.subr.mxu0 %v4462
    %6731 = vmatpush2.msra.mxu0 %v4461
    %6732 = vmatprep.subr.mxu0 %v4446
    %6733 = vmatpush2.msra.mxu0 %v4445
    %6734 = vmatprep.subr.mxu0 %v4430
    %6735 = vmatpush2.msra.mxu0 %v4429
    %6736 = vmatprep.subr.mxu0 %v4414
    %6737 = vmatpush2.msra.mxu0 %v4413
    %6738 = vmatprep.subr.mxu0 %v4398
    %6739 = vmatpush2.msra.mxu0 %v4397
    %6740 = vmatprep.subr.mxu0 %v4382
    %6741 = vmatpush2.msra.mxu0 %v4381
    %6742 = vmatprep.mubr.f32.mxu0 %v4109
    %6743 = vmatmul.mubr.f32.gmra.mxu0 %v4108
    %v6744 = vpop.f32.mrf.mxu0
    %v6745 = vadd.f32 %v5368, %v6744
    %v6746 = vpop.f32.mrf.mxu0
    %v6747 = vadd.f32 %v5372, %v6746
    %6748 = vdwg.mxu0
    %6749 = vmatprep.subr.mxu0 %v4878
    %6750 = vmatpush1.msra.mxu0 %v4877
    %6751 = vmatprep.subr.mxu0 %v4862
    %6752 = vmatpush1.msra.mxu0 %v4861
    %6753 = vmatprep.subr.mxu0 %v4846
    %6754 = vmatpush1.msra.mxu0 %v4845
    %6755 = vmatprep.subr.mxu0 %v4830
    %6756 = vmatpush1.msra.mxu0 %v4829
    %6757 = vmatprep.subr.mxu0 %v4814
    %6758 = vmatpush1.msra.mxu0 %v4813
    %6759 = vmatprep.subr.mxu0 %v4798
    %6760 = vmatpush1.msra.mxu0 %v4797
    %6761 = vmatprep.subr.mxu0 %v4782
    %6762 = vmatpush1.msra.mxu0 %v4781
    %6763 = vmatprep.subr.mxu0 %v4766
    %6764 = vmatpush1.msra.mxu0 %v4765
    %6765 = vmatprep.subr.mxu0 %v4750
    %6766 = vmatpush1.msra.mxu0 %v4749
    %6767 = vmatprep.subr.mxu0 %v4734
    %6768 = vmatpush1.msra.mxu0 %v4733
    %6769 = vmatprep.subr.mxu0 %v4718
    %6770 = vmatpush1.msra.mxu0 %v4717
    %6771 = vmatprep.subr.mxu0 %v4702
    %6772 = vmatpush1.msra.mxu0 %v4701
    %6773 = vmatprep.subr.mxu0 %v4686
    %6774 = vmatpush1.msra.mxu0 %v4685
    %6775 = vmatprep.subr.mxu0 %v4670
    %6776 = vmatpush1.msra.mxu0 %v4669
    %6777 = vmatprep.subr.mxu0 %v4654
    %6778 = vmatpush1.msra.mxu0 %v4653
    %6779 = vmatprep.subr.mxu0 %v4638
    %6780 = vmatpush1.msra.mxu0 %v4637
    %6781 = vmatprep.subr.mxu0 %v5134
    %6782 = vmatpush2.msra.mxu0 %v5133
    %6783 = vmatprep.subr.mxu0 %v5118
    %6784 = vmatpush2.msra.mxu0 %v5117
    %6785 = vmatprep.subr.mxu0 %v5102
    %6786 = vmatpush2.msra.mxu0 %v5101
    %6787 = vmatprep.subr.mxu0 %v5086
    %6788 = vmatpush2.msra.mxu0 %v5085
    %6789 = vmatprep.subr.mxu0 %v5070
    %6790 = vmatpush2.msra.mxu0 %v5069
    %6791 = vmatprep.subr.mxu0 %v5054
    %6792 = vmatpush2.msra.mxu0 %v5053
    %6793 = vmatprep.subr.mxu0 %v5038
    %6794 = vmatpush2.msra.mxu0 %v5037
    %6795 = vmatprep.subr.mxu0 %v5022
    %6796 = vmatpush2.msra.mxu0 %v5021
    %6797 = vmatprep.subr.mxu0 %v5006
    %6798 = vmatpush2.msra.mxu0 %v5005
    %6799 = vmatprep.subr.mxu0 %v4990
    %6800 = vmatpush2.msra.mxu0 %v4989
    %6801 = vmatprep.subr.mxu0 %v4974
    %6802 = vmatpush2.msra.mxu0 %v4973
    %6803 = vmatprep.subr.mxu0 %v4958
    %6804 = vmatpush2.msra.mxu0 %v4957
    %6805 = vmatprep.subr.mxu0 %v4942
    %6806 = vmatpush2.msra.mxu0 %v4941
    %6807 = vmatprep.subr.mxu0 %v4926
    %6808 = vmatpush2.msra.mxu0 %v4925
    %6809 = vmatprep.subr.mxu0 %v4910
    %6810 = vmatpush2.msra.mxu0 %v4909
    %6811 = vmatprep.subr.mxu0 %v4894
    %6812 = vmatpush2.msra.mxu0 %v4893
    %6813 = vmatprep.mubr.f32.mxu0 %v4111
    %6814 = vmatmul.mubr.f32.gmra.mxu0 %v4110
    %v6815 = vpop.f32.mrf.mxu0
    %v6816 = vadd.f32 %v6745, %v6815
    %v6817 = vpop.f32.mrf.mxu0
    %v6818 = vadd.f32 %v6747, %v6817
    %6819 = vdwg.mxu0
    %6820 = vmatprep.subr.mxu0 0.0
    %6821 = vmatpush1.msra.mxu0 0.0
    %6822 = vmatprep.subr.mxu0 0.0
    %6823 = vmatpush1.msra.mxu0 0.0
    %6824 = vmatprep.subr.mxu0 0.0
    %6825 = vmatpush1.msra.mxu0 0.0
    %6826 = vmatprep.subr.mxu0 0.0
    %6827 = vmatpush1.msra.mxu0 0.0
    %6828 = vmatprep.subr.mxu0 0.0
    %6829 = vmatpush1.msra.mxu0 0.0
    %6830 = vmatprep.subr.mxu0 %v5310
    %6831 = vmatpush1.msra.mxu0 %v5309
    %6832 = vmatprep.subr.mxu0 %v5294
    %6833 = vmatpush1.msra.mxu0 %v5293
    %6834 = vmatprep.subr.mxu0 %v5278
    %6835 = vmatpush1.msra.mxu0 %v5277
    %6836 = vmatprep.subr.mxu0 %v5262
    %6837 = vmatpush1.msra.mxu0 %v5261
    %6838 = vmatprep.subr.mxu0 %v5246
    %6839 = vmatpush1.msra.mxu0 %v5245
    %6840 = vmatprep.subr.mxu0 %v5230
    %6841 = vmatpush1.msra.mxu0 %v5229
    %6842 = vmatprep.subr.mxu0 %v5214
    %6843 = vmatpush1.msra.mxu0 %v5213
    %6844 = vmatprep.subr.mxu0 %v5198
    %6845 = vmatpush1.msra.mxu0 %v5197
    %6846 = vmatprep.subr.mxu0 %v5182
    %6847 = vmatpush1.msra.mxu0 %v5181
    %6848 = vmatprep.subr.mxu0 %v5166
    %6849 = vmatpush1.msra.mxu0 %v5165
    %6850 = vmatprep.subr.mxu0 %v5150
    %6851 = vmatpush1.msra.mxu0 %v5149
    %6852 = vmatprep.subr.mxu0 0.0
    %6853 = vmatpush2.msra.mxu0 0.0
    %6854 = vmatprep.subr.mxu0 0.0
    %6855 = vmatpush2.msra.mxu0 0.0
    %6856 = vmatprep.subr.mxu0 0.0
    %6857 = vmatpush2.msra.mxu0 0.0
    %6858 = vmatprep.subr.mxu0 0.0
    %6859 = vmatpush2.msra.mxu0 0.0
    %6860 = vmatprep.subr.mxu0 0.0
    %6861 = vmatpush2.msra.mxu0 0.0
    %6862 = vmatprep.subr.mxu0 0.0
    %6863 = vmatpush2.msra.mxu0 0.0
    %6864 = vmatprep.subr.mxu0 0.0
    %6865 = vmatpush2.msra.mxu0 0.0
    %6866 = vmatprep.subr.mxu0 0.0
    %6867 = vmatpush2.msra.mxu0 0.0
    %6868 = vmatprep.subr.mxu0 0.0
    %6869 = vmatpush2.msra.mxu0 0.0
    %6870 = vmatprep.subr.mxu0 0.0
    %6871 = vmatpush2.msra.mxu0 0.0
    %6872 = vmatprep.subr.mxu0 0.0
    %6873 = vmatpush2.msra.mxu0 0.0
    %6874 = vmatprep.subr.mxu0 0.0
    %6875 = vmatpush2.msra.mxu0 0.0
    %6876 = vmatprep.subr.mxu0 0.0
    %6877 = vmatpush2.msra.mxu0 0.0
    %6878 = vmatprep.subr.mxu0 0.0
    %6879 = vmatpush2.msra.mxu0 0.0
    %6880 = vmatprep.subr.mxu0 0.0
    %6881 = vmatpush2.msra.mxu0 0.0
    %6882 = vmatprep.subr.mxu0 0.0
    %6883 = vmatpush2.msra.mxu0 0.0
    %6884 = vmatprep.mubr.f32.mxu0 0.0
    %6885 = vmatmul.mubr.f32.gmra.mxu0 %v5398
    %v6886 = vpop.f32.mrf.mxu0
    %v6887 = vadd.f32 %v6816, %v6886
    %v6888 = vpop.f32.mrf.mxu0
    %v6889 = vadd.f32 %v6818, %v6888
    %6890 = vdwg.mxu0
    %6891 = vmatprep.subr.mxu0 %v4368
    %6892 = vmatpush1.msra.mxu0 %v4367
    %6893 = vmatprep.subr.mxu0 %v4352
    %6894 = vmatpush1.msra.mxu0 %v4351
    %6895 = vmatprep.subr.mxu0 %v4336
    %6896 = vmatpush1.msra.mxu0 %v4335
    %6897 = vmatprep.subr.mxu0 %v4320
    %6898 = vmatpush1.msra.mxu0 %v4319
    %6899 = vmatprep.subr.mxu0 %v4304
    %6900 = vmatpush1.msra.mxu0 %v4303
    %6901 = vmatprep.subr.mxu0 %v4288
    %6902 = vmatpush1.msra.mxu0 %v4287
    %6903 = vmatprep.subr.mxu0 %v4272
    %6904 = vmatpush1.msra.mxu0 %v4271
    %6905 = vmatprep.subr.mxu0 %v4256
    %6906 = vmatpush1.msra.mxu0 %v4255
    %6907 = vmatprep.subr.mxu0 %v4240
    %6908 = vmatpush1.msra.mxu0 %v4239
    %6909 = vmatprep.subr.mxu0 %v4224
    %6910 = vmatpush1.msra.mxu0 %v4223
    %6911 = vmatprep.subr.mxu0 %v4208
    %6912 = vmatpush1.msra.mxu0 %v4207
    %6913 = vmatprep.subr.mxu0 %v4192
    %6914 = vmatpush1.msra.mxu0 %v4191
    %6915 = vmatprep.subr.mxu0 %v4176
    %6916 = vmatpush1.msra.mxu0 %v4175
    %6917 = vmatprep.subr.mxu0 %v4160
    %6918 = vmatpush1.msra.mxu0 %v4159
    %6919 = vmatprep.subr.mxu0 %v4144
    %6920 = vmatpush1.msra.mxu0 %v4143
    %6921 = vmatprep.subr.mxu0 %v4128
    %6922 = vmatpush1.msra.mxu0 %v4127
    %6923 = vmatprep.subr.mxu0 %v4624
    %6924 = vmatpush2.msra.mxu0 %v4623
    %6925 = vmatprep.subr.mxu0 %v4608
    %6926 = vmatpush2.msra.mxu0 %v4607
    %6927 = vmatprep.subr.mxu0 %v4592
    %6928 = vmatpush2.msra.mxu0 %v4591
    %6929 = vmatprep.subr.mxu0 %v4576
    %6930 = vmatpush2.msra.mxu0 %v4575
    %6931 = vmatprep.subr.mxu0 %v4560
    %6932 = vmatpush2.msra.mxu0 %v4559
    %6933 = vmatprep.subr.mxu0 %v4544
    %6934 = vmatpush2.msra.mxu0 %v4543
    %6935 = vmatprep.subr.mxu0 %v4528
    %6936 = vmatpush2.msra.mxu0 %v4527
    %6937 = vmatprep.subr.mxu0 %v4512
    %6938 = vmatpush2.msra.mxu0 %v4511
    %6939 = vmatprep.subr.mxu0 %v4496
    %6940 = vmatpush2.msra.mxu0 %v4495
    %6941 = vmatprep.subr.mxu0 %v4480
    %6942 = vmatpush2.msra.mxu0 %v4479
    %6943 = vmatprep.subr.mxu0 %v4464
    %6944 = vmatpush2.msra.mxu0 %v4463
    %6945 = vmatprep.subr.mxu0 %v4448
    %6946 = vmatpush2.msra.mxu0 %v4447
    %6947 = vmatprep.subr.mxu0 %v4432
    %6948 = vmatpush2.msra.mxu0 %v4431
    %6949 = vmatprep.subr.mxu0 %v4416
    %6950 = vmatpush2.msra.mxu0 %v4415
    %6951 = vmatprep.subr.mxu0 %v4400
    %6952 = vmatpush2.msra.mxu0 %v4399
    %6953 = vmatprep.subr.mxu0 %v4384
    %6954 = vmatpush2.msra.mxu0 %v4383
    %6955 = vmatprep.mubr.f32.mxu0 %v4109
    %6956 = vmatmul.mubr.f32.gmra.mxu0 %v4108
    %v6957 = vpop.f32.mrf.mxu0
    %v6958 = vadd.f32 %v5376, %v6957
    %v6959 = vpop.f32.mrf.mxu0
    %v6960 = vadd.f32 %v5380, %v6959
    %6961 = vdwg.mxu0
    %6962 = vmatprep.subr.mxu0 %v4880
    %6963 = vmatpush1.msra.mxu0 %v4879
    %6964 = vmatprep.subr.mxu0 %v4864
    %6965 = vmatpush1.msra.mxu0 %v4863
    %6966 = vmatprep.subr.mxu0 %v4848
    %6967 = vmatpush1.msra.mxu0 %v4847
    %6968 = vmatprep.subr.mxu0 %v4832
    %6969 = vmatpush1.msra.mxu0 %v4831
    %6970 = vmatprep.subr.mxu0 %v4816
    %6971 = vmatpush1.msra.mxu0 %v4815
    %6972 = vmatprep.subr.mxu0 %v4800
    %6973 = vmatpush1.msra.mxu0 %v4799
    %6974 = vmatprep.subr.mxu0 %v4784
    %6975 = vmatpush1.msra.mxu0 %v4783
    %6976 = vmatprep.subr.mxu0 %v4768
    %6977 = vmatpush1.msra.mxu0 %v4767
    %6978 = vmatprep.subr.mxu0 %v4752
    %6979 = vmatpush1.msra.mxu0 %v4751
    %6980 = vmatprep.subr.mxu0 %v4736
    %6981 = vmatpush1.msra.mxu0 %v4735
    %6982 = vmatprep.subr.mxu0 %v4720
    %6983 = vmatpush1.msra.mxu0 %v4719
    %6984 = vmatprep.subr.mxu0 %v4704
    %6985 = vmatpush1.msra.mxu0 %v4703
    %6986 = vmatprep.subr.mxu0 %v4688
    %6987 = vmatpush1.msra.mxu0 %v4687
    %6988 = vmatprep.subr.mxu0 %v4672
    %6989 = vmatpush1.msra.mxu0 %v4671
    %6990 = vmatprep.subr.mxu0 %v4656
    %6991 = vmatpush1.msra.mxu0 %v4655
    %6992 = vmatprep.subr.mxu0 %v4640
    %6993 = vmatpush1.msra.mxu0 %v4639
    %6994 = vmatprep.subr.mxu0 %v5136
    %6995 = vmatpush2.msra.mxu0 %v5135
    %6996 = vmatprep.subr.mxu0 %v5120
    %6997 = vmatpush2.msra.mxu0 %v5119
    %6998 = vmatprep.subr.mxu0 %v5104
    %6999 = vmatpush2.msra.mxu0 %v5103
    %7000 = vmatprep.subr.mxu0 %v5088
    %7001 = vmatpush2.msra.mxu0 %v5087
    %7002 = vmatprep.subr.mxu0 %v5072
    %7003 = vmatpush2.msra.mxu0 %v5071
    %7004 = vmatprep.subr.mxu0 %v5056
    %7005 = vmatpush2.msra.mxu0 %v5055
    %7006 = vmatprep.subr.mxu0 %v5040
    %7007 = vmatpush2.msra.mxu0 %v5039
    %7008 = vmatprep.subr.mxu0 %v5024
    %7009 = vmatpush2.msra.mxu0 %v5023
    %7010 = vmatprep.subr.mxu0 %v5008
    %7011 = vmatpush2.msra.mxu0 %v5007
    %7012 = vmatprep.subr.mxu0 %v4992
    %7013 = vmatpush2.msra.mxu0 %v4991
    %7014 = vmatprep.subr.mxu0 %v4976
    %7015 = vmatpush2.msra.mxu0 %v4975
    %7016 = vmatprep.subr.mxu0 %v4960
    %7017 = vmatpush2.msra.mxu0 %v4959
    %7018 = vmatprep.subr.mxu0 %v4944
    %7019 = vmatpush2.msra.mxu0 %v4943
    %7020 = vmatprep.subr.mxu0 %v4928
    %7021 = vmatpush2.msra.mxu0 %v4927
    %7022 = vmatprep.subr.mxu0 %v4912
    %7023 = vmatpush2.msra.mxu0 %v4911
    %7024 = vmatprep.subr.mxu0 %v4896
    %7025 = vmatpush2.msra.mxu0 %v4895
    %7026 = vmatprep.mubr.f32.mxu0 %v4111
    %7027 = vmatmul.mubr.f32.gmra.mxu0 %v4110
    %v7028 = vpop.f32.mrf.mxu0
    %v7029 = vadd.f32 %v6958, %v7028
    %v7030 = vpop.f32.mrf.mxu0
    %v7031 = vadd.f32 %v6960, %v7030
    %7032 = vdwg.mxu0
    %7033 = vmatprep.subr.mxu0 0.0
    %7034 = vmatpush1.msra.mxu0 0.0
    %7035 = vmatprep.subr.mxu0 0.0
    %7036 = vmatpush1.msra.mxu0 0.0
    %7037 = vmatprep.subr.mxu0 0.0
    %7038 = vmatpush1.msra.mxu0 0.0
    %7039 = vmatprep.subr.mxu0 0.0
    %7040 = vmatpush1.msra.mxu0 0.0
    %7041 = vmatprep.subr.mxu0 0.0
    %7042 = vmatpush1.msra.mxu0 0.0
    %7043 = vmatprep.subr.mxu0 %v5312
    %7044 = vmatpush1.msra.mxu0 %v5311
    %7045 = vmatprep.subr.mxu0 %v5296
    %7046 = vmatpush1.msra.mxu0 %v5295
    %7047 = vmatprep.subr.mxu0 %v5280
    %7048 = vmatpush1.msra.mxu0 %v5279
    %7049 = vmatprep.subr.mxu0 %v5264
    %7050 = vmatpush1.msra.mxu0 %v5263
    %7051 = vmatprep.subr.mxu0 %v5248
    %7052 = vmatpush1.msra.mxu0 %v5247
    %7053 = vmatprep.subr.mxu0 %v5232
    %7054 = vmatpush1.msra.mxu0 %v5231
    %7055 = vmatprep.subr.mxu0 %v5216
    %7056 = vmatpush1.msra.mxu0 %v5215
    %7057 = vmatprep.subr.mxu0 %v5200
    %7058 = vmatpush1.msra.mxu0 %v5199
    %7059 = vmatprep.subr.mxu0 %v5184
    %7060 = vmatpush1.msra.mxu0 %v5183
    %7061 = vmatprep.subr.mxu0 %v5168
    %7062 = vmatpush1.msra.mxu0 %v5167
    %7063 = vmatprep.subr.mxu0 %v5152
    %7064 = vmatpush1.msra.mxu0 %v5151
    %7065 = vmatprep.subr.mxu0 0.0
    %7066 = vmatpush2.msra.mxu0 0.0
    %7067 = vmatprep.subr.mxu0 0.0
    %7068 = vmatpush2.msra.mxu0 0.0
    %7069 = vmatprep.subr.mxu0 0.0
    %7070 = vmatpush2.msra.mxu0 0.0
    %7071 = vmatprep.subr.mxu0 0.0
    %7072 = vmatpush2.msra.mxu0 0.0
    %7073 = vmatprep.subr.mxu0 0.0
    %7074 = vmatpush2.msra.mxu0 0.0
    %7075 = vmatprep.subr.mxu0 0.0
    %7076 = vmatpush2.msra.mxu0 0.0
    %7077 = vmatprep.subr.mxu0 0.0
    %7078 = vmatpush2.msra.mxu0 0.0
    %7079 = vmatprep.subr.mxu0 0.0
    %7080 = vmatpush2.msra.mxu0 0.0
    %7081 = vmatprep.subr.mxu0 0.0
    %7082 = vmatpush2.msra.mxu0 0.0
    %7083 = vmatprep.subr.mxu0 0.0
    %7084 = vmatpush2.msra.mxu0 0.0
    %7085 = vmatprep.subr.mxu0 0.0
    %7086 = vmatpush2.msra.mxu0 0.0
    %7087 = vmatprep.subr.mxu0 0.0
    %7088 = vmatpush2.msra.mxu0 0.0
    %7089 = vmatprep.subr.mxu0 0.0
    %7090 = vmatpush2.msra.mxu0 0.0
    %7091 = vmatprep.subr.mxu0 0.0
    %7092 = vmatpush2.msra.mxu0 0.0
    %7093 = vmatprep.subr.mxu0 0.0
    %7094 = vmatpush2.msra.mxu0 0.0
    %7095 = vmatprep.subr.mxu0 0.0
    %7096 = vmatpush2.msra.mxu0 0.0
    %7097 = vmatprep.mubr.f32.mxu0 0.0
    %7098 = vmatmul.mubr.f32.gmra.mxu0 %v5398
    %v7099 = vpop.f32.mrf.mxu0
    %v7100 = vadd.f32 %v7029, %v7099
    %v7101 = vpop.f32.mrf.mxu0
    %v7102 = vadd.f32 %v7031, %v7101
    %7103 = vdwg.mxu0
    %v7104 = vxor.u32 %v5609, 2147483648
    %v7105 = vxor.u32 %v5611, 2147483648
    %v7106 = vxor.u32 %v5822, 2147483648
    %v7107 = vxor.u32 %v5824, 2147483648
    %v7108 = vxor.u32 %v6035, 2147483648
    %v7109 = vxor.u32 %v6037, 2147483648
    %v7110 = vxor.u32 %v6248, 2147483648
    %v7111 = vxor.u32 %v6250, 2147483648
    %v7112 = vxor.u32 %v6461, 2147483648
    %v7113 = vxor.u32 %v6463, 2147483648
    %v7114 = vxor.u32 %v6674, 2147483648
    %v7115 = vxor.u32 %v6676, 2147483648
    %v7116 = vxor.u32 %v6887, 2147483648
    %v7117 = vxor.u32 %v6889, 2147483648
    %v7118 = vxor.u32 %v7100, 2147483648
    %v7119 = vxor.u32 %v7102, 2147483648
    %v7120 = vmul.f32 %v7104, 1.442695
    %v7121 = vpow.pop %v7120
    %v7122 = vmul.f32 %v7105, 1.442695
    %v7123 = vpow.pop %v7122
    %v7124 = vmul.f32 %v7106, 1.442695
    %v7125 = vpow.pop %v7124
    %v7126 = vmul.f32 %v7107, 1.442695
    %v7127 = vpow.pop %v7126
    %v7128 = vmul.f32 %v7108, 1.442695
    %v7129 = vpow.pop %v7128
    %v7130 = vmul.f32 %v7109, 1.442695
    %v7131 = vpow.pop %v7130
    %v7132 = vmul.f32 %v7110, 1.442695
    %v7133 = vpow.pop %v7132
    %v7134 = vmul.f32 %v7111, 1.442695
    %v7135 = vpow.pop %v7134
    %v7136 = vmul.f32 %v7112, 1.442695
    %v7137 = vpow.pop %v7136
    %v7138 = vmul.f32 %v7113, 1.442695
    %v7139 = vpow.pop %v7138
    %v7140 = vmul.f32 %v7114, 1.442695
    %v7141 = vpow.pop %v7140
    %v7142 = vmul.f32 %v7115, 1.442695
    %v7143 = vpow.pop %v7142
    %v7144 = vmul.f32 %v7116, 1.442695
    %v7145 = vpow.pop %v7144
    %v7146 = vmul.f32 %v7117, 1.442695
    %v7147 = vpow.pop %v7146
    %v7148 = vmul.f32 %v7118, 1.442695
    %v7149 = vpow.pop %v7148
    %v7150 = vmul.f32 %v7119, 1.442695
    %v7151 = vpow.pop %v7150
    %v7152 = vadd.f32 %v7121, 1.0
    %v7153 = vadd.f32 %v7123, 1.0
    %v7154 = vadd.f32 %v7125, 1.0
    %v7155 = vadd.f32 %v7127, 1.0
    %v7156 = vadd.f32 %v7129, 1.0
    %v7157 = vadd.f32 %v7131, 1.0
    %v7158 = vadd.f32 %v7133, 1.0
    %v7159 = vadd.f32 %v7135, 1.0
    %v7160 = vadd.f32 %v7137, 1.0
    %v7161 = vadd.f32 %v7139, 1.0
    %v7162 = vadd.f32 %v7141, 1.0
    %v7163 = vadd.f32 %v7143, 1.0
    %v7164 = vadd.f32 %v7145, 1.0
    %v7165 = vadd.f32 %v7147, 1.0
    %v7166 = vadd.f32 %v7149, 1.0
    %v7167 = vadd.f32 %v7151, 1.0
    %v7168 = vrcp.pop %v7152
    %v7169 = vmul.f32 1.0, %v7168
    %v7170 = vrcp.pop %v7153
    %v7171 = vmul.f32 1.0, %v7170
    %v7172 = vrcp.pop %v7154
    %v7173 = vmul.f32 1.0, %v7172
    %v7174 = vrcp.pop %v7155
    %v7175 = vmul.f32 1.0, %v7174
    %v7176 = vrcp.pop %v7156
    %v7177 = vmul.f32 1.0, %v7176
    %v7178 = vrcp.pop %v7157
    %v7179 = vmul.f32 1.0, %v7178
    %v7180 = vrcp.pop %v7158
    %v7181 = vmul.f32 1.0, %v7180
    %v7182 = vrcp.pop %v7159
    %v7183 = vmul.f32 1.0, %v7182
    %v7184 = vrcp.pop %v7160
    %v7185 = vmul.f32 1.0, %v7184
    %v7186 = vrcp.pop %v7161
    %v7187 = vmul.f32 1.0, %v7186
    %v7188 = vrcp.pop %v7162
    %v7189 = vmul.f32 1.0, %v7188
    %v7190 = vrcp.pop %v7163
    %v7191 = vmul.f32 1.0, %v7190
    %v7192 = vrcp.pop %v7164
    %v7193 = vmul.f32 1.0, %v7192
    %v7194 = vrcp.pop %v7165
    %v7195 = vmul.f32 1.0, %v7194
    %v7196 = vrcp.pop %v7166
    %v7197 = vmul.f32 1.0, %v7196
    %v7198 = vrcp.pop %v7167
    %v7199 = vmul.f32 1.0, %v7198
    %7200 = vst [vmem:[%s22] sm:$0xff] %v7169
    %7201 = vst [vmem:[%s22 + $0x8] sm:$0xff] %v7171
    %7202 = vst [vmem:[%s22 + $0x10] sm:$0xff] %v7173
    %7203 = vst [vmem:[%s22 + $0x18] sm:$0xff] %v7175
    %7204 = vst [vmem:[%s22 + $0x20] sm:$0xff] %v7177
    %7205 = vst [vmem:[%s22 + $0x28] sm:$0xff] %v7179
    %7206 = vst [vmem:[%s22 + $0x30] sm:$0xff] %v7181
    %7207 = vst [vmem:[%s22 + $0x38] sm:$0xff] %v7183
    %7208 = vst [vmem:[%s22 + $0x40] sm:$0xff] %v7185
    %7209 = vst [vmem:[%s22 + $0x48] sm:$0xff] %v7187
    %7210 = vst [vmem:[%s22 + $0x50] sm:$0xff] %v7189
    %7211 = vst [vmem:[%s22 + $0x58] sm:$0xff] %v7191
    %7212 = vst [vmem:[%s22 + $0x60] sm:$0xff] %v7193
    %7213 = vst [vmem:[%s22 + $0x68] sm:$0xff] %v7195
    %7214 = vst [vmem:[%s22 + $0x70] sm:$0xff] %v7197
    %7215 = vst.msk [vmem:[%s22 + $0x78] sm:$0xff] %vm1370, %v7199
    %v7216 = vld [vmem:[%s20] sm:$0xff]
    %v7217 = vld [vmem:[%s20 + $0x8] sm:$0xff]
    %v7218 = vld [vmem:[%s20 + $0x10] sm:$0xf]
    %v7219 = vld [vmem:[%s21] sm:$0x1]
    %v7221 = vlaneseq
    %v7222 = vshrl.u32 %v7221, 7
    %v7223 = vsub.s32 0, %v7222
    %v7224 = vrot.slane %v7219, %v7223
    %v7227 = vsel %vm3391, %v7218, 0
    %7229 = vmatprep.subr.mxu0 0.0
    %7230 = vmatpush1.msra.mxu0 0.0
    %7231 = vmatprep.subr.mxu0 0.0
    %7232 = vmatpush1.msra.mxu0 0.0
    %7233 = vmatprep.subr.mxu0 0.0
    %7234 = vmatpush1.msra.mxu0 0.0
    %7235 = vmatprep.subr.mxu0 0.0
    %7236 = vmatpush1.msra.mxu0 0.0
    %7237 = vmatprep.subr.mxu0 0.0
    %7238 = vmatpush1.msra.mxu0 0.0
    %7239 = vmatprep.subr.mxu0 0.0
    %7240 = vmatpush1.msra.mxu0 0.0
    %7241 = vmatprep.subr.mxu0 0.0
    %7242 = vmatpush1.msra.mxu0 0.0
    %7243 = vmatprep.subr.mxu0 0.0
    %7244 = vmatpush1.msra.mxu0 0.0
    %7245 = vmatprep.subr.mxu0 0.0
    %7246 = vmatpush1.msra.mxu0 0.0
    %7247 = vmatprep.subr.mxu0 0.0
    %7248 = vmatpush1.msra.mxu0 0.0
    %7249 = vmatprep.subr.mxu0 0.0
    %7250 = vmatpush1.msra.mxu0 0.0
    %7251 = vmatprep.subr.mxu0 0.0
    %7252 = vmatpush1.msra.mxu0 0.0
    %7253 = vmatprep.subr.mxu0 0.0
    %7254 = vmatpush1.msra.mxu0 0.0
    %7255 = vmatprep.subr.mxu0 0.0
    %7256 = vmatpush1.msra.mxu0 %v7227
    %7257 = vmatprep.subr.mxu0 0.0
    %7258 = vmatpush1.msra.mxu0 %v7217
    %7259 = vmatprep.subr.mxu0 0.0
    %7260 = vmatpush1.msra.mxu0 %v7216
    %7261 = vmatprep.subr.mxu0 0.0
    %7262 = vmatpush2.msra.mxu0 0.0
    %7263 = vmatprep.subr.mxu0 0.0
    %7264 = vmatpush2.msra.mxu0 0.0
    %7265 = vmatprep.subr.mxu0 0.0
    %7266 = vmatpush2.msra.mxu0 0.0
    %7267 = vmatprep.subr.mxu0 0.0
    %7268 = vmatpush2.msra.mxu0 0.0
    %7269 = vmatprep.subr.mxu0 0.0
    %7270 = vmatpush2.msra.mxu0 0.0
    %7271 = vmatprep.subr.mxu0 0.0
    %7272 = vmatpush2.msra.mxu0 0.0
    %7273 = vmatprep.subr.mxu0 0.0
    %7274 = vmatpush2.msra.mxu0 0.0
    %7275 = vmatprep.subr.mxu0 0.0
    %7276 = vmatpush2.msra.mxu0 0.0
    %7277 = vmatprep.subr.mxu0 0.0
    %7278 = vmatpush2.msra.mxu0 0.0
    %7279 = vmatprep.subr.mxu0 0.0
    %7280 = vmatpush2.msra.mxu0 0.0
    %7281 = vmatprep.subr.mxu0 0.0
    %7282 = vmatpush2.msra.mxu0 0.0
    %7283 = vmatprep.subr.mxu0 0.0
    %7284 = vmatpush2.msra.mxu0 0.0
    %7285 = vmatprep.subr.mxu0 0.0
    %7286 = vmatpush2.msra.mxu0 0.0
    %7287 = vmatprep.subr.mxu0 0.0
    %7288 = vmatpush2.msra.mxu0 0.0
    %7289 = vmatprep.subr.mxu0 0.0
    %7290 = vmatpush2.msra.mxu0 0.0
    %7291 = vmatprep.subr.mxu0 0.0
    %7292 = vmatpush2.msra.mxu0 0.0
    %7293 = vmatprep.mubr.f32.mxu0 0.0
    %7294 = vmatmul.mubr.f32.gmra.mxu0 %v3651
    %v7295 = vpop.f32.mrf.mxu0
    %v7296 = vadd.f32 %v7224, %v7295
    %v7297 = vpop.f32.mrf.mxu0
    %7298 = vdwg.mxu0
    %vm7299 = vcmask 89088
    %7300 = vst.msk [vmem:[#allocation2] sm:$0xff] %vm7299, %v7296
    %7301 = vst.msk [vmem:[#allocation4] sm:$0xff] %vm3649, %v3549
    %7302 = vst.msk [vmem:[#allocation6] sm:$0xff] %vm3649, %v3630
    // Predicated region
    $region90: #{vae2_forward.1} parent=1 // pred_check
      _
    $region91: #{vae2_forward.1} parent=1 // pred_check_branch
      %7304 = sbr.rel (0) target = $region93
    $region92: #{vae2_forward.1} parent=1 // pred_region
      _
    $region93: #{vae2_forward.1} parent=1 // pred_fallthru
      _
    // Predicated region
    $region94: #{vae2_forward.1} parent=1 // pred_check
      _
    $region95: #{vae2_forward.1} parent=1 // pred_check_branch
      %7306 = sbr.rel (0) target = $region97
    $region96: #{vae2_forward.1} parent=1 // pred_region
      %s7308 = ssub.s32 128, 128
      %7309 = vsyncadd [#allocation3], %s7308
      %s7311 = sshll.u32 [#allocation2], 4
      %s7312 = int_to_ptr.vmem [resolvable:$true] %s7311
      %7314 = dma.vmem_to_hbm [thread:$0]  %s7312, 128, %s23, [#allocation3]
    $region97: #{vae2_forward.1} parent=1 // pred_fallthru
      _
    // Predicated region
    $region98: #{vae2_forward.1} parent=1 // pred_check
      _
    $region99: #{vae2_forward.1} parent=1 // pred_check_branch
      %7316 = sbr.rel (0) target = $region101
    $region100: #{vae2_forward.1} parent=1 // pred_region
      %s7318 = ssub.s32 128, 128
      %7319 = vsyncadd [#allocation5], %s7318
      %s7321 = sshll.u32 [#allocation4], 4
      %s7322 = int_to_ptr.vmem [resolvable:$true] %s7321
      %7324 = dma.vmem_to_hbm [thread:$0]  %s7322, 128, %s24, [#allocation5]
    $region101: #{vae2_forward.1} parent=1 // pred_fallthru
      _
    // Predicated region
    $region102: #{vae2_forward.1} parent=1 // pred_check
      _
    $region103: #{vae2_forward.1} parent=1 // pred_check_branch
      %7326 = sbr.rel (0) target = $region105
    $region104: #{vae2_forward.1} parent=1 // pred_region
      %s7328 = ssub.s32 128, 128
      %7329 = vsyncadd [#allocation5], %s7328
      %s7331 = sshll.u32 [#allocation6], 4
      %s7332 = int_to_ptr.vmem [resolvable:$true] %s7331
      %7334 = dma.vmem_to_hbm [thread:$0]  %s7332, 128, %s25, [#allocation5]
    $region105: #{vae2_forward.1} parent=1 // pred_fallthru
      _
    // Predicated region
    $region106: #{vae2_forward.1} parent=1 // pred_check
      _
    $region107: #{vae2_forward.1} parent=1 // pred_check_branch
      %7336 = sbr.rel (0) target = $region109
    $region108: #{vae2_forward.1} parent=1 // pred_region
      _
    $region109: #{vae2_forward.1} parent=1 // pred_fallthru
      _
    // Predicated region
    $region110: #{vae2_forward.1} parent=1 // pred_check
      _
    $region111: #{vae2_forward.1} parent=1 // pred_check_branch
      %7338 = sbr.rel (0) target = $region113
    $region112: #{vae2_forward.1} parent=1 // pred_region
      %7339 = dma.done [#allocation3], 128
    $region113: #{vae2_forward.1} parent=1 // pred_fallthru
      _
    // Predicated region
    $region114: #{vae2_forward.1} parent=1 // pred_check
      _
    $region115: #{vae2_forward.1} parent=1 // pred_check_branch
      %7341 = sbr.rel (0) target = $region117
    $region116: #{vae2_forward.1} parent=1 // pred_region
      %7342 = dma.done [#allocation5], 128
    $region117: #{vae2_forward.1} parent=1 // pred_fallthru
      _
    // Predicated region
    $region118: #{vae2_forward.1} parent=1 // pred_check
      _
    $region119: #{vae2_forward.1} parent=1 // pred_check_branch
      %7344 = sbr.rel (0) target = $region121
    $region120: #{vae2_forward.1} parent=1 // pred_region
      %7345 = dma.done [#allocation5], 128
    $region121: #{vae2_forward.1} parent=1 // pred_fallthru
      _
    %7346 = vsyncpa [#allocation3], 1
    %7347 = vsyncpa [#allocation5], 1

</llo_original>
